<compile_context>
chip_gen: v5e
topology: v5e:2x2
jax: 0.10.0
libtpu: 0.0.40
codegen_flags: <defaults>
</compile_context>

<pallas_src>
import functools

import jax
import jax.numpy as jnp
from jax.experimental import pallas as pl
from jax.experimental.pallas import tpu as pltpu

EPS = 1e-5  # nn.BatchNorm2d default eps


def _mish(x):
    # mish(x) = x * tanh(softplus(x)).  Single-exp form (1 exp + 1 approx
    # reciprocal instead of ~3 transcendentals per element):
    #   with e = exp(x):  tanh(log(1 + e)) = ((1+e)^2 - 1) / ((1+e)^2 + 1).
    e = jnp.exp(jnp.minimum(x, 20.0))          # clamp: mish(x) == x to f32 eps there
    n = (1.0 + e) * (1.0 + e)
    return x * (n - 1.0) * pl.reciprocal(n + 1.0, approx=True)


# --------------------------------------------------------------------------
# stage 1: depthwise KxK conv + partial BN1 statistics
# --------------------------------------------------------------------------
def _dw_conv_kernel(x_ref, x_hbm, dwk_ref, u_ref, st_ref,
                    slab_ref, halo_ref, sem,
                    *, h1, W, C, K, nh, LP):
    pad = (K - 1) // 2
    n = pl.program_id(0)
    i = pl.program_id(1)
    r0 = i * h1
    use_halo = (nh > 1) and (pad > 0)

    # ---- kick off the (tiny) halo DMAs first so they overlap the slab build.
    #      The h1 interior rows arrive via the auto double-buffered x_ref tile.
    if use_halo:
        @pl.when(i > 0)
        def _():
            pltpu.make_async_copy(x_hbm.at[n, pl.ds(r0 - pad, pad)],
                                  halo_ref.at[pl.ds(0, pad)], sem.at[0]).start()

        @pl.when(i < nh - 1)
        def _():
            pltpu.make_async_copy(x_hbm.at[n, pl.ds(r0 + h1, pad)],
                                  halo_ref.at[pl.ds(pad, pad)], sem.at[1]).start()

    # ---- zero only the read border columns (columns [0, LP-pad) are never
    #      read) and copy the pipelined interior rows into the slab at a
    #      sublane-aligned column offset LP (multiple of 8 -> unmasked stores).
    if pad > 0:
        zcol = jnp.zeros((h1 + 2 * pad, pad, C), jnp.float32)
        slab_ref[:, LP - pad:LP, :] = zcol
        slab_ref[:, LP + W:LP + W + pad, :] = zcol
    slab_ref[pad:pad + h1, LP:LP + W, :] = x_ref[...].astype(jnp.float32)

    taps = dwk_ref[...]                                    # (K*K, C)

    # ---- halo rows: DMA'd neighbour rows inside the image, zeros at borders.
    if pad > 0:
        zrow = jnp.zeros((pad, W, C), jnp.float32)
        if use_halo:
            @pl.when(i > 0)
            def _():
                pltpu.make_async_copy(x_hbm.at[n, pl.ds(r0 - pad, pad)],
                                      halo_ref.at[pl.ds(0, pad)], sem.at[0]).wait()
                slab_ref[0:pad, LP:LP + W, :] = halo_ref[0:pad].astype(jnp.float32)

            @pl.when(i == 0)
            def _():
                slab_ref[0:pad, LP:LP + W, :] = zrow

            @pl.when(i < nh - 1)
            def _():
                pltpu.make_async_copy(x_hbm.at[n, pl.ds(r0 + h1, pad)],
                                      halo_ref.at[pl.ds(pad, pad)], sem.at[1]).wait()
                slab_ref[pad + h1:pad + h1 + pad, LP:LP + W, :] = (
                    halo_ref[pad:2 * pad].astype(jnp.float32))

            @pl.when(i == nh - 1)
            def _():
                slab_ref[pad + h1:pad + h1 + pad, LP:LP + W, :] = zrow
        else:
            slab_ref[0:pad, LP:LP + W, :] = zrow
            slab_ref[pad + h1:pad + h1 + pad, LP:LP + W, :] = zrow

    # ---- depthwise KxK conv: one width-shifted slab view per dx (K slices
    #      instead of K*K) and per-tap constants hoisted out of the inner loop.
    acc = jnp.zeros((h1, W, C), jnp.float32)
    for dx in range(K):
        c0 = LP - pad + dx
        wsl = slab_ref[:, c0:c0 + W, :]                    # (h1 + 2*pad, W, C)
        for dy in range(K):
            acc = acc + wsl[dy:dy + h1] * taps[dy * K + dx]

    ub = acc.astype(u_ref.dtype)
    u_ref[...] = ub                                        # bf16 intermediate to HBM

    # ---- per-tile BN1 partials on the *rounded* values BN will actually see:
    #      (sum, centred M2) so the cross-tile combine avoids E[x^2]-E[x]^2
    #      cancellation.
    flat = ub.astype(jnp.float32).reshape(h1 * W, C)
    s = jnp.sum(flat, axis=0, keepdims=True)
    d = flat - s * (1.0 / (h1 * W))
    st_ref[0:1, :] = s
    st_ref[1:2, :] = jnp.sum(d * d, axis=0, keepdims=True)


# --------------------------------------------------------------------------
# stage 2: BN1 (folded FMA) + Mish + residual + 1x1 conv (bf16 MXU) + BN2 stats
# --------------------------------------------------------------------------
def _pointwise_kernel(u_ref, x_ref, s1_ref, t1_ref, w_ref, v_ref, st_ref, *, rows):
    u = u_ref[...].astype(jnp.float32)                     # (rows, C)
    y = u * s1_ref[...] + t1_ref[...]                      # folded BatchNorm 1
    a = _mish(y) + x_ref[...].astype(jnp.float32)          # activation + residual
    v = jnp.dot(a.astype(jnp.bfloat16), w_ref[...],
                preferred_element_type=jnp.float32)        # 1x1 conv on the MXU
    vb = v.astype(v_ref.dtype)
    v_ref[...] = vb
    vf = vb.astype(jnp.float32)
    s = jnp.sum(vf, axis=0, keepdims=True)
    d = vf - s * (1.0 / rows)
    st_ref[0:1, :] = s
    st_ref[1:2, :] = jnp.sum(d * d, axis=0, keepdims=True)


# --------------------------------------------------------------------------
# stage 3: BN2 (folded FMA) + Mish
# --------------------------------------------------------------------------
def _bn_act_kernel(v_ref, s2_ref, t2_ref, o_ref):
    v = v_ref[...].astype(jnp.float32)
    o_ref[...] = _mish(v * s2_ref[...] + t2_ref[...]).astype(o_ref.dtype)


# --------------------------------------------------------------------------
# helpers
# --------------------------------------------------------------------------
def _vmem_limit_bytes():
    """Per-generation VMEM limit (v7x has 64 MiB per TC, v5e/v6e have 128 MiB)."""
    cap = 64 * 1024 * 1024
    try:
        cap = int(getattr(pltpu.get_tpu_info(), "vmem_capacity_bytes", cap))
    except Exception:
        pass
    return int(min(cap * 3 // 4, 96 * 1024 * 1024))


def _pick_h_tile(H, W, C, pad, LP, budget):
    """Prefer the whole image per step (no halo); otherwise the largest divisor."""
    def foot(t):
        slab = (t + 2 * pad) * (LP + W + pad) * C * 4      # f32 slab
        return slab + 16 * t * W * C                       # pipelined bf16 in/out + acc
    if foot(H) <= budget:
        return H
    cands = [t for t in range(1, H) if H % t == 0 and t >= pad]
    fitting = [t for t in cands if foot(t) <= budget]
    if fitting:
        return max(fitting)
    return min(cands) if cands else H


def _pick_row_tile(M, C, budget):
    """Large row tiles for stages 2/3 (better MXU occupancy, fewer grid steps)."""
    cands = [t for t in range(1, M + 1)
             if M % t == 0 and (t % 8 == 0 or t == M)]
    fitting = [t for t in cands if 24 * t * C + 4 * C * C <= budget and t <= 8192]
    return max(fitting) if fitting else min(cands)


def _fold_bn(stats, n_per_tile, n_total, gamma, beta):
    """Combine per-tile (sum, centred-M2) partials (Chan's parallel-variance
    formula: numerically stable) and fold BN into a per-channel scale/shift."""
    C = stats.shape[-1]
    st = stats.reshape(-1, 2, C)
    s, m2 = st[:, 0, :], st[:, 1, :]
    mean = jnp.sum(s, axis=0) / n_total
    mean_t = s / n_per_tile
    M2 = jnp.sum(m2, axis=0) + n_per_tile * jnp.sum((mean_t - mean) ** 2, axis=0)
    var = jnp.maximum(M2 / n_total, 0.0)                   # biased, training-mode BN
    scale = gamma * jax.lax.rsqrt(var + EPS)
    shift = beta - mean * scale
    return scale, shift


# --------------------------------------------------------------------------
# wrapper
# --------------------------------------------------------------------------
def conv_mixer_forward(x_nchw, params, kernel_size=7, h_tile=None, row_tile=None):
    """ConvMixer forward. x_nchw: (N, C, H, W) float32 -> (N, C, H, W) float32."""
    N, C, H, W = x_nchw.shape
    K = kernel_size
    if K % 2 == 0:
        raise ValueError("kernel_size must be odd for 'same' padding")
    pad = (K - 1) // 2
    LP = ((pad + 7) // 8) * 8        # sublane-aligned left padding of the conv slab

    vmem_limit = _vmem_limit_bytes()

    # NHWC + bf16: channels on the 128-lane axis, half the x HBM bytes.
    # TODO(synk): keep the surrounding model NHWC end-to-end to drop these
    # boundary transposes entirely.
    x = jnp.transpose(x_nchw, (0, 2, 3, 1)).astype(jnp.bfloat16)

    if h_tile is None:
        h_tile = _pick_h_tile(H, W, C, pad, LP, vmem_limit // 2)
    if H % h_tile != 0:
        raise ValueError(f"h_tile={h_tile} must divide H={H}")
    nh = H // h_tile
    if nh > 1 and h_tile < pad:
        raise ValueError(f"h_tile={h_tile} must be >= pad={pad} when tiled")

    dwk = params["dw_weight"].reshape(K * K, C).astype(jnp.float32)
    w_pw = params["pw_weight"].astype(jnp.bfloat16)        # (C_in, C_out), MXU bf16

    tile1 = pl.BlockSpec((None, h_tile, W, C), lambda n, i: (n, i, 0, 0))
    stat1 = pl.BlockSpec((None, None, 2, C), lambda n, i: (n, i, 0, 0))

    cparams2d = pltpu.CompilerParams(
        dimension_semantics=("parallel", "parallel"),
        vmem_limit_bytes=vmem_limit)
    cparams1d = pltpu.CompilerParams(
        dimension_semantics=("parallel",),
        vmem_limit_bytes=vmem_limit)

    # ---- stage 1: depthwise KxK conv + partial BN1 stats ----------------------
    u, st1 = pl.pallas_call(
        functools.partial(_dw_conv_kernel, h1=h_tile, W=W, C=C, K=K, nh=nh, LP=LP),
        grid=(N, nh),
        in_specs=[tile1,                                   # interior rows, pipelined
                  pl.BlockSpec(memory_space=pl.ANY),       # same x, halo DMA only
                  pl.BlockSpec((K * K, C), lambda n, i: (0, 0))],
        out_specs=[tile1, stat1],
        out_shape=[jax.ShapeDtypeStruct((N, H, W, C), jnp.bfloat16),
                   jax.ShapeDtypeStruct((N, nh, 2, C), jnp.float32)],
        scratch_shapes=[pltpu.VMEM((h_tile + 2 * pad, LP + W + pad, C), jnp.float32),
                        pltpu.VMEM((max(2 * pad, 1), W, C), jnp.bfloat16),
                        pltpu.SemaphoreType.DMA((2,))],
        compiler_params=cparams2d,
        cost_estimate=pl.CostEstimate(
            flops=2 * K * K * N * H * W * C + 4 * N * H * W * C,
            transcendentals=0,
            bytes_accessed=5 * N * H * W * C),
    )(x, x, dwk)

    total = N * H * W
    scale1, shift1 = _fold_bn(st1, h_tile * W, total,
                              params["bn1_gamma"], params["bn1_beta"])

    # ---- stage 2: BN1 + Mish + residual + 1x1 conv (MXU) + partial BN2 stats --
    # No halo needed -> decoupled from stage-1 tiling: flatten to (N*H*W, C) and
    # use much larger row tiles (bigger matmul M dim, fewer grid steps).
    M = N * H * W
    if row_tile is None:
        row_tile = _pick_row_tile(M, C, vmem_limit // 2)
    if M % row_tile != 0 or not (row_tile % 8 == 0 or row_tile == M):
        raise ValueError(f"bad row_tile={row_tile} for M={M}")
    nt = M // row_tile

    row_spec = pl.BlockSpec((row_tile, C), lambda i: (i, 0))
    chan_spec = pl.BlockSpec((1, C), lambda i: (0, 0))
    stat2 = pl.BlockSpec((None, 2, C), lambda i: (i, 0, 0))

    v, st2 = pl.pallas_call(
        functools.partial(_pointwise_kernel, rows=row_tile),
        grid=(nt,),
        in_specs=[row_spec, row_spec, chan_spec, chan_spec,
                  pl.BlockSpec((C, C), lambda i: (0, 0))],
        out_specs=[row_spec, stat2],
        out_shape=[jax.ShapeDtypeStruct((M, C), jnp.bfloat16),
                   jax.ShapeDtypeStruct((nt, 2, C), jnp.float32)],
        compiler_params=cparams1d,
        cost_estimate=pl.CostEstimate(
            flops=2 * M * C * C + 14 * M * C,
            transcendentals=M * C,
            bytes_accessed=6 * M * C + 2 * C * C),
    )(u.reshape(M, C), x.reshape(M, C),
      scale1.reshape(1, C), shift1.reshape(1, C), w_pw)

    scale2, shift2 = _fold_bn(st2, row_tile, total,
                              params["bn2_gamma"], params["bn2_beta"])

    # ---- stage 3: BN2 + Mish --------------------------------------------------
    # TODO(synk): in a multi-block network, fuse this into the next block's
    # stage 1 to save one full read+write of the activation per block.
    out_flat = pl.pallas_call(
        _bn_act_kernel,
        grid=(nt,),
        in_specs=[row_spec, chan_spec, chan_spec],
        out_specs=row_spec,
        out_shape=jax.ShapeDtypeStruct((M, C), jnp.float32),
        compiler_params=cparams1d,
        cost_estimate=pl.CostEstimate(
            flops=10 * M * C,
            transcendentals=M * C,
            bytes_accessed=6 * M * C),
    )(v, scale2.reshape(1, C), shift2.reshape(1, C))

    out_nhwc = out_flat.reshape(N, H, W, C)
    return jnp.transpose(out_nhwc, (0, 3, 1, 2))           # back to NCHW


def init_params(key, dim, kernel_size=7):
    k0, k1, k2, k3 = jax.random.split(key, 4)
    return {
        # depthwise Conv2d(dim, dim, 7, groups=dim): torch weight (dim,1,7,7)
        # stored here as (7, 7, dim); real torch weights need a transpose.
        "dw_weight": jax.random.normal(k0, (kernel_size, kernel_size, dim),
                                       jnp.float32) * 0.1,
        "dw_bias": jax.random.normal(k1, (dim,), jnp.float32) * 0.1,
        # pointwise Conv2d(dim, dim, 1): torch weight (dim,dim,1,1) stored (in, out).
        "pw_weight": jax.random.normal(k2, (dim, dim), jnp.float32) * 0.1,
        "pw_bias": jax.random.normal(k3, (dim,), jnp.float32) * 0.1,
        # BatchNorm2d defaults: weight=1, bias=0.
        "bn1_gamma": jnp.ones((dim,), jnp.float32),
        "bn1_beta": jnp.zeros((dim,), jnp.float32),
        "bn2_gamma": jnp.ones((dim,), jnp.float32),
        "bn2_beta": jnp.zeros((dim,), jnp.float32),
    }


def conv_mixer_reference(x_nchw, params, kernel_size=7):
    """Pure-JAX (XLA) reference with the exact PyTorch forward semantics."""
    C = x_nchw.shape[1]

    def mish(t):
        return t * jnp.tanh(jax.nn.softplus(t))

    def bn(t, gamma, beta):
        m = jnp.mean(t, axis=(0, 2, 3), keepdims=True)
        v = jnp.var(t, axis=(0, 2, 3), keepdims=True)
        return ((t - m) * jax.lax.rsqrt(v + EPS) * gamma[None, :, None, None]
                + beta[None, :, None, None])

    x = x_nchw.astype(jnp.float32)
    w_dw = jnp.transpose(params["dw_weight"], (2, 0, 1))[:, None, :, :]  # (C,1,K,K)
    u = jax.lax.conv_general_dilated(
        x, w_dw, window_strides=(1, 1), padding="SAME",
        feature_group_count=C, dimension_numbers=("NCHW", "OIHW", "NCHW"))
    u = u + params["dw_bias"][None, :, None, None]
    a = mish(bn(u, params["bn1_gamma"], params["bn1_beta"])) + x
    z = jnp.einsum("nihw,io->nohw", a, params["pw_weight"])
    z = z + params["pw_bias"][None, :, None, None]
    return mish(bn(z, params["bn2_gamma"], params["bn2_beta"]))


if __name__ == "__main__":
    key = jax.random.PRNGKey(0)
    key_x, key_p = jax.random.split(key)

    N, dim, H, W = 2, 8, 16, 16
    x = jax.random.normal(key_x, (N, dim, H, W), jnp.float32)
    params = init_params(key_p, dim)

    ref = conv_mixer_reference(x, params)

    # h_tile=None -> full-height slab (no halo); h_tile=8 -> halo-DMA path.
    for h_tile in (None, 8):
        fwd = jax.jit(functools.partial(conv_mixer_forward, h_tile=h_tile))
        out = jax.block_until_ready(fwd(x, params))
        assert out.shape == (N, dim, H, W)
        assert bool(jnp.all(jnp.isfinite(out)))
        # Per-element mixed tolerance (bf16 x/u/v intermediates, bf16 MXU
        # matmul, approx-reciprocal mish) instead of a single loose abs bound.
        err = jnp.abs(out - ref)
        tol = 5e-2 + 5e-2 * jnp.abs(ref)
        assert bool(jnp.all(err <= tol)), (
            f"kernel/reference mismatch (h_tile={h_tile}): "
            f"max abs err = {float(jnp.max(err))}")

    print("KERNEL_OK")
</pallas_src>

<mosaic_0001>
module attributes {stable_mosaic.version = 11 : i64} {
  func.func @_bn_act_kernel(%arg0: i32, %arg1: memref<512x8xbf16, #tpu.memory_space<vmem>>, %arg2: memref<1x8xf32, #tpu.memory_space<vmem>>, %arg3: memref<1x8xf32, #tpu.memory_space<vmem>>, %arg4: memref<512x8xf32, #tpu.memory_space<vmem>>) attributes {dimension_semantics = [#tpu.dimension_semantics<parallel>], iteration_bounds = array<i64: 1>, scalar_prefetch = 0 : i64, scratch_operands = 0 : i64, tpu.core_type = #tpu.core_type<tc>, window_params = [{transform_indices = @transform_0, window_bounds = array<i64: 512, 8>}, {pipeline_mode = #tpu.pipeline_mode<synchronous>, transform_indices = @transform_1, window_bounds = array<i64: 1, 8>}, {pipeline_mode = #tpu.pipeline_mode<synchronous>, transform_indices = @transform_2, window_bounds = array<i64: 1, 8>}, {transform_indices = @transform_3, window_bounds = array<i64: 512, 8>}]} {
    %c0 = arith.constant 0 : index
    %c0_0 = arith.constant 0 : index
    %0 = vector.load %arg1[%c0, %c0_0] : memref<512x8xbf16, #tpu.memory_space<vmem>>, vector<512x8xbf16>
    %1 = arith.extf %0 : vector<512x8xbf16> to vector<512x8xf32>
    %c0_1 = arith.constant 0 : index
    %c0_2 = arith.constant 0 : index
    %2 = vector.load %arg2[%c0_1, %c0_2] : memref<1x8xf32, #tpu.memory_space<vmem>>, vector<1x8xf32>
    %3 = vector.broadcast %2 : vector<1x8xf32> to vector<512x8xf32>
    %4 = arith.mulf %1, %3 : vector<512x8xf32>
    %c0_3 = arith.constant 0 : index
    %c0_4 = arith.constant 0 : index
    %5 = vector.load %arg3[%c0_3, %c0_4] : memref<1x8xf32, #tpu.memory_space<vmem>>, vector<1x8xf32>
    %6 = vector.broadcast %5 : vector<1x8xf32> to vector<512x8xf32>
    %7 = arith.addf %4, %6 : vector<512x8xf32>
    %cst = arith.constant 2.000000e+01 : f32
    %8 = vector.broadcast %cst : f32 to vector<512x8xf32>
    %9 = arith.minimumf %7, %8 : vector<512x8xf32>
    %10 = math.exp %9 : vector<512x8xf32>
    %cst_5 = arith.constant 1.000000e+00 : f32
    %11 = vector.broadcast %cst_5 : f32 to vector<512x8xf32>
    %12 = arith.addf %11, %10 : vector<512x8xf32>
    %cst_6 = arith.constant 1.000000e+00 : f32
    %13 = vector.broadcast %cst_6 : f32 to vector<512x8xf32>
    %14 = arith.addf %13, %10 : vector<512x8xf32>
    %15 = arith.mulf %12, %14 : vector<512x8xf32>
    %cst_7 = arith.constant 1.000000e+00 : f32
    %16 = vector.broadcast %cst_7 : f32 to vector<512x8xf32>
    %17 = arith.subf %15, %16 : vector<512x8xf32>
    %18 = arith.mulf %7, %17 : vector<512x8xf32>
    %cst_8 = arith.constant 1.000000e+00 : f32
    %19 = vector.broadcast %cst_8 : f32 to vector<512x8xf32>
    %20 = arith.addf %15, %19 : vector<512x8xf32>
    %21 = tpu.reciprocal %20 {approx = true} : vector<512x8xf32> -> vector<512x8xf32>
    %22 = arith.mulf %18, %21 : vector<512x8xf32>
    %c0_9 = arith.constant 0 : index
    %c0_10 = arith.constant 0 : index
    %23 = vector.load %arg4[%c0_9, %c0_10] : memref<512x8xf32, #tpu.memory_space<vmem>>, vector<512x8xf32>
    tpu.vector_store %arg4[%c0_9, %c0_10], %22 {strides = array<i32>} : memref<512x8xf32, #tpu.memory_space<vmem>>, vector<512x8xf32>,
    return
  }
  func.func @transform_0(%arg0: i32) -> (i32, i32) {
    %c0_i32 = arith.constant 0 : i32
    %c0_i32_0 = arith.constant 0 : i32
    return %arg0, %c0_i32 : i32, i32
  }
  func.func @transform_1(%arg0: i32) -> (i32, i32) {
    %c0_i32 = arith.constant 0 : i32
    %c0_i32_0 = arith.constant 0 : i32
    %c0_i32_1 = arith.constant 0 : i32
    return %c0_i32, %c0_i32_0 : i32, i32
  }
  func.func @transform_2(%arg0: i32) -> (i32, i32) {
    %c0_i32 = arith.constant 0 : i32
    %c0_i32_0 = arith.constant 0 : i32
    %c0_i32_1 = arith.constant 0 : i32
    return %c0_i32, %c0_i32_0 : i32, i32
  }
  func.func @transform_3(%arg0: i32) -> (i32, i32) {
    %c0_i32 = arith.constant 0 : i32
    %c0_i32_0 = arith.constant 0 : i32
    return %arg0, %c0_i32 : i32, i32
  }
}

module attributes {stable_mosaic.version = 11 : i64} {
  func.func @_pointwise_kernel(%arg0: i32, %arg1: memref<512x8xbf16, #tpu.memory_space<vmem>>, %arg2: memref<512x8xbf16, #tpu.memory_space<vmem>>, %arg3: memref<1x8xf32, #tpu.memory_space<vmem>>, %arg4: memref<1x8xf32, #tpu.memory_space<vmem>>, %arg5: memref<8x8xbf16, #tpu.memory_space<vmem>>, %arg6: memref<512x8xbf16, #tpu.memory_space<vmem>>, %arg7: memref<1x2x8xf32, #tpu.memory_space<vmem>>) attributes {dimension_semantics = [#tpu.dimension_semantics<parallel>], iteration_bounds = array<i64: 1>, scalar_prefetch = 0 : i64, scratch_operands = 0 : i64, tpu.core_type = #tpu.core_type<tc>, window_params = [{transform_indices = @transform_0, window_bounds = array<i64: 512, 8>}, {transform_indices = @transform_1, window_bounds = array<i64: 512, 8>}, {pipeline_mode = #tpu.pipeline_mode<synchronous>, transform_indices = @transform_2, window_bounds = array<i64: 1, 8>}, {pipeline_mode = #tpu.pipeline_mode<synchronous>, transform_indices = @transform_3, window_bounds = array<i64: 1, 8>}, {pipeline_mode = #tpu.pipeline_mode<synchronous>, transform_indices = @transform_4, window_bounds = array<i64: 8, 8>}, {transform_indices = @transform_5, window_bounds = array<i64: 512, 8>}, {transform_indices = @transform_6, window_bounds = array<i64: 1, 2, 8>}]} {
    %c0 = arith.constant 0 : index
    %c0_0 = arith.constant 0 : index
    %0 = vector.load %arg1[%c0, %c0_0] : memref<512x8xbf16, #tpu.memory_space<vmem>>, vector<512x8xbf16>
    %1 = arith.extf %0 : vector<512x8xbf16> to vector<512x8xf32>
    %c0_1 = arith.constant 0 : index
    %c0_2 = arith.constant 0 : index
    %2 = vector.load %arg3[%c0_1, %c0_2] : memref<1x8xf32, #tpu.memory_space<vmem>>, vector<1x8xf32>
    %3 = vector.broadcast %2 : vector<1x8xf32> to vector<512x8xf32>
    %4 = arith.mulf %1, %3 : vector<512x8xf32>
    %c0_3 = arith.constant 0 : index
    %c0_4 = arith.constant 0 : index
    %5 = vector.load %arg4[%c0_3, %c0_4] : memref<1x8xf32, #tpu.memory_space<vmem>>, vector<1x8xf32>
    %6 = vector.broadcast %5 : vector<1x8xf32> to vector<512x8xf32>
    %7 = arith.addf %4, %6 : vector<512x8xf32>
    %cst = arith.constant 2.000000e+01 : f32
    %8 = vector.broadcast %cst : f32 to vector<512x8xf32>
    %9 = arith.minimumf %7, %8 : vector<512x8xf32>
    %10 = math.exp %9 : vector<512x8xf32>
    %cst_5 = arith.constant 1.000000e+00 : f32
    %11 = vector.broadcast %cst_5 : f32 to vector<512x8xf32>
    %12 = arith.addf %11, %10 : vector<512x8xf32>
    %cst_6 = arith.constant 1.000000e+00 : f32
    %13 = vector.broadcast %cst_6 : f32 to vector<512x8xf32>
    %14 = arith.addf %13, %10 : vector<512x8xf32>
    %15 = arith.mulf %12, %14 : vector<512x8xf32>
    %cst_7 = arith.constant 1.000000e+00 : f32
    %16 = vector.broadcast %cst_7 : f32 to vector<512x8xf32>
    %17 = arith.subf %15, %16 : vector<512x8xf32>
    %18 = arith.mulf %7, %17 : vector<512x8xf32>
    %cst_8 = arith.constant 1.000000e+00 : f32
    %19 = vector.broadcast %cst_8 : f32 to vector<512x8xf32>
    %20 = arith.addf %15, %19 : vector<512x8xf32>
    %21 = tpu.reciprocal %20 {approx = true} : vector<512x8xf32> -> vector<512x8xf32>
    %22 = arith.mulf %18, %21 : vector<512x8xf32>
    %c0_9 = arith.constant 0 : index
    %c0_10 = arith.constant 0 : index
    %23 = vector.load %arg2[%c0_9, %c0_10] : memref<512x8xbf16, #tpu.memory_space<vmem>>, vector<512x8xbf16>
    %24 = arith.extf %23 : vector<512x8xbf16> to vector<512x8xf32>
    %25 = arith.addf %22, %24 : vector<512x8xf32>
    %26 = arith.truncf %25 : vector<512x8xf32> to vector<512x8xbf16>
    %c0_11 = arith.constant 0 : index
    %c0_12 = arith.constant 0 : index
    %27 = vector.load %arg5[%c0_11, %c0_12] : memref<8x8xbf16, #tpu.memory_space<vmem>>, vector<8x8xbf16>
    %cst_13 = arith.constant dense<0.000000e+00> : vector<512x8xf32>
    %28 = tpu.matmul %26, %27, %cst_13 {dimension_numbers = #tpu.dot_dimension_numbers<[1], [0], [0], [1], [0, 0, 1, 1], [], []>} : vector<512x8xbf16>, vector<8x8xbf16>, vector<512x8xf32> -> vector<512x8xf32>
    %29 = arith.truncf %28 : vector<512x8xf32> to vector<512x8xbf16>
    %c0_14 = arith.constant 0 : index
    %c0_15 = arith.constant 0 : index
    %30 = vector.load %arg6[%c0_14, %c0_15] : memref<512x8xbf16, #tpu.memory_space<vmem>>, vector<512x8xbf16>
    tpu.vector_store %arg6[%c0_14, %c0_15], %29 {strides = array<i32>} : memref<512x8xbf16, #tpu.memory_space<vmem>>, vector<512x8xbf16>,
    %31 = arith.extf %29 : vector<512x8xbf16> to vector<512x8xf32>
    %cst_16 = arith.constant dense<0.000000e+00> : vector<8xf32>
    %32 = vector.multi_reduction <add>, %31, %cst_16 [0] : vector<512x8xf32> to vector<8xf32>
    %33 = vector.shape_cast %32 : vector<8xf32> to vector<1x8xf32>
    %cst_17 = arith.constant 0.001953125 : f32
    %34 = vector.broadcast %cst_17 : f32 to vector<1x8xf32>
    %35 = arith.mulf %33, %34 : vector<1x8xf32>
    %36 = vector.broadcast %35 : vector<1x8xf32> to vector<512x8xf32>
    %37 = arith.subf %31, %36 : vector<512x8xf32>
    %c0_18 = arith.constant 0 : index
    %c0_19 = arith.constant 0 : index
    %c0_20 = arith.constant 0 : index
    %38 = vector.load %arg7[%c0_18, %c0_19, %c0_20] : memref<1x2x8xf32, #tpu.memory_space<vmem>>, vector<1x1x8xf32>
    %39 = vector.shape_cast %38 : vector<1x1x8xf32> to vector<1x8xf32>
    %40 = vector.shape_cast %33 : vector<1x8xf32> to vector<1x1x8xf32>
    tpu.vector_store %arg7[%c0_18, %c0_19, %c0_20], %40 {strides = array<i32>} : memref<1x2x8xf32, #tpu.memory_space<vmem>>, vector<1x1x8xf32>,
    %41 = arith.mulf %37, %37 : vector<512x8xf32>
    %cst_21 = arith.constant dense<0.000000e+00> : vector<8xf32>
    %42 = vector.multi_reduction <add>, %41, %cst_21 [0] : vector<512x8xf32> to vector<8xf32>
    %43 = vector.shape_cast %42 : vector<8xf32> to vector<1x8xf32>
    %c0_22 = arith.constant 0 : index
    %c1 = arith.constant 1 : index
    %c0_23 = arith.constant 0 : index
    %44 = vector.load %arg7[%c0_22, %c1, %c0_23] : memref<1x2x8xf32, #tpu.memory_space<vmem>>, vector<1x1x8xf32>
    %45 = vector.shape_cast %44 : vector<1x1x8xf32> to vector<1x8xf32>
    %46 = vector.shape_cast %43 : vector<1x8xf32> to vector<1x1x8xf32>
    tpu.vector_store %arg7[%c0_22, %c1, %c0_23], %46 {strides = array<i32>} : memref<1x2x8xf32, #tpu.memory_space<vmem>>, vector<1x1x8xf32>,
    return
  }
  func.func @transform_0(%arg0: i32) -> (i32, i32) {
    %c0_i32 = arith.constant 0 : i32
    %c0_i32_0 = arith.constant 0 : i32
    return %arg0, %c0_i32 : i32, i32
  }
  func.func @transform_1(%arg0: i32) -> (i32, i32) {
    %c0_i32 = arith.constant 0 : i32
    %c0_i32_0 = arith.constant 0 : i32
    return %arg0, %c0_i32 : i32, i32
  }
  func.func @transform_2(%arg0: i32) -> (i32, i32) {
    %c0_i32 = arith.constant 0 : i32
    %c0_i32_0 = arith.constant 0 : i32
    %c0_i32_1 = arith.constant 0 : i32
    return %c0_i32, %c0_i32_0 : i32, i32
  }
  func.func @transform_3(%arg0: i32) -> (i32, i32) {
    %c0_i32 = arith.constant 0 : i32
    %c0_i32_0 = arith.constant 0 : i32
    %c0_i32_1 = arith.constant 0 : i32
    return %c0_i32, %c0_i32_0 : i32, i32
  }
  func.func @transform_4(%arg0: i32) -> (i32, i32) {
    %c0_i32 = arith.constant 0 : i32
    %c0_i32_0 = arith.constant 0 : i32
    %c0_i32_1 = arith.constant 0 : i32
    return %c0_i32, %c0_i32_0 : i32, i32
  }
  func.func @transform_5(%arg0: i32) -> (i32, i32) {
    %c0_i32 = arith.constant 0 : i32
    %c0_i32_0 = arith.constant 0 : i32
    return %arg0, %c0_i32 : i32, i32
  }
  func.func @transform_6(%arg0: i32) -> (i32, i32, i32) {
    %c0_i32 = arith.constant 0 : i32
    %c0_i32_0 = arith.constant 0 : i32
    %c0_i32_1 = arith.constant 0 : i32
    return %arg0, %c0_i32, %c0_i32_0 : i32, i32, i32
  }
}

module attributes {stable_mosaic.version = 11 : i64} {
  func.func @_dw_conv_kernel(%arg0: i32, %arg1: i32, %arg2: memref<1x16x16x8xbf16, #tpu.memory_space<vmem>>, %arg3: memref<2x16x16x8xbf16, #tpu.memory_space<any>>, %arg4: memref<49x8xf32, #tpu.memory_space<vmem>>, %arg5: memref<1x16x16x8xbf16, #tpu.memory_space<vmem>>, %arg6: memref<1x1x2x8xf32, #tpu.memory_space<vmem>>, %arg7: memref<22x27x8xf32, #tpu.memory_space<vmem>>, %arg8: memref<6x16x8xbf16, #tpu.memory_space<vmem>>, %arg9: memref<2x!tpu.dma_semaphore, #tpu.memory_space<semaphore_mem>>) attributes {dimension_semantics = [#tpu.dimension_semantics<parallel>, #tpu.dimension_semantics<parallel>], iteration_bounds = array<i64: 2, 1>, scalar_prefetch = 0 : i64, scratch_operands = 3 : i64, tpu.core_type = #tpu.core_type<tc>, window_params = [{transform_indices = @transform_0, window_bounds = array<i64: 1, 16, 16, 8>}, {}, {pipeline_mode = #tpu.pipeline_mode<synchronous>, transform_indices = @transform_2, window_bounds = array<i64: 49, 8>}, {transform_indices = @transform_3, window_bounds = array<i64: 1, 16, 16, 8>}, {transform_indices = @transform_4, window_bounds = array<i64: 1, 1, 2, 8>}]} {
    %cst = arith.constant 0.000000e+00 : f32
    %0 = vector.broadcast %cst : f32 to vector<22x3x8xf32>
    %c0 = arith.constant 0 : index
    %c5 = arith.constant 5 : index
    %c0_0 = arith.constant 0 : index
    %1 = vector.load %arg7[%c0, %c5, %c0_0] : memref<22x27x8xf32, #tpu.memory_space<vmem>>, vector<22x3x8xf32>
    tpu.vector_store %arg7[%c0, %c5, %c0_0], %0 {strides = array<i32>} : memref<22x27x8xf32, #tpu.memory_space<vmem>>, vector<22x3x8xf32>,
    %c0_1 = arith.constant 0 : index
    %c24 = arith.constant 24 : index
    %c0_2 = arith.constant 0 : index
    %2 = vector.load %arg7[%c0_1, %c24, %c0_2] : memref<22x27x8xf32, #tpu.memory_space<vmem>>, vector<22x3x8xf32>
    tpu.vector_store %arg7[%c0_1, %c24, %c0_2], %0 {strides = array<i32>} : memref<22x27x8xf32, #tpu.memory_space<vmem>>, vector<22x3x8xf32>,
    %c0_3 = arith.constant 0 : index
    %c0_4 = arith.constant 0 : index
    %c0_5 = arith.constant 0 : index
    %c0_6 = arith.constant 0 : index
    %3 = vector.load %arg2[%c0_3, %c0_4, %c0_5, %c0_6] : memref<1x16x16x8xbf16, #tpu.memory_space<vmem>>, vector<1x16x16x8xbf16>
    %4 = vector.shape_cast %3 : vector<1x16x16x8xbf16> to vector<16x16x8xbf16>
    %5 = arith.extf %4 : vector<16x16x8xbf16> to vector<16x16x8xf32>
    %c3 = arith.constant 3 : index
    %c8 = arith.constant 8 : index
    %c0_7 = arith.constant 0 : index
    %6 = vector.load %arg7[%c3, %c8, %c0_7] : memref<22x27x8xf32, #tpu.memory_space<vmem>>, vector<16x16x8xf32>
    tpu.vector_store %arg7[%c3, %c8, %c0_7], %5 {strides = array<i32>} : memref<22x27x8xf32, #tpu.memory_space<vmem>>, vector<16x16x8xf32>,
    %c0_8 = arith.constant 0 : index
    %c0_9 = arith.constant 0 : index
    %7 = vector.load %arg4[%c0_8, %c0_9] : memref<49x8xf32, #tpu.memory_space<vmem>>, vector<49x8xf32>
    %cst_10 = arith.constant 0.000000e+00 : f32
    %8 = vector.broadcast %cst_10 : f32 to vector<3x16x8xf32>
    %c0_11 = arith.constant 0 : index
    %c8_12 = arith.constant 8 : index
    %c0_13 = arith.constant 0 : index
    %9 = vector.load %arg7[%c0_11, %c8_12, %c0_13] : memref<22x27x8xf32, #tpu.memory_space<vmem>>, vector<3x16x8xf32>
    tpu.vector_store %arg7[%c0_11, %c8_12, %c0_13], %8 {strides = array<i32>} : memref<22x27x8xf32, #tpu.memory_space<vmem>>, vector<3x16x8xf32>,
    %c19 = arith.constant 19 : index
    %c8_14 = arith.constant 8 : index
    %c0_15 = arith.constant 0 : index
    %10 = vector.load %arg7[%c19, %c8_14, %c0_15] : memref<22x27x8xf32, #tpu.memory_space<vmem>>, vector<3x16x8xf32>
    tpu.vector_store %arg7[%c19, %c8_14, %c0_15], %8 {strides = array<i32>} : memref<22x27x8xf32, #tpu.memory_space<vmem>>, vector<3x16x8xf32>,
    %cst_16 = arith.constant 0.000000e+00 : f32
    %11 = vector.broadcast %cst_16 : f32 to vector<16x16x8xf32>
    %c0_17 = arith.constant 0 : index
    %c5_18 = arith.constant 5 : index
    %c0_19 = arith.constant 0 : index
    %12 = vector.load %arg7[%c0_17, %c5_18, %c0_19] : memref<22x27x8xf32, #tpu.memory_space<vmem>>, vector<22x16x8xf32>
    %13 = vector.extract_strided_slice %12 {offsets = [0, 0, 0], sizes = [16, 16, 8], strides = [1, 1, 1]} : vector<22x16x8xf32> to vector<16x16x8xf32>
    %14 = vector.extract_strided_slice %7 {offsets = [0, 0], sizes = [1, 8], strides = [1, 1]} : vector<49x8xf32> to vector<1x8xf32>
    %15 = vector.shape_cast %14 : vector<1x8xf32> to vector<8xf32>
    %16 = vector.shape_cast %15 : vector<8xf32> to vector<1x1x8xf32>
    %17 = vector.broadcast %16 : vector<1x1x8xf32> to vector<16x16x8xf32>
    %18 = arith.mulf %13, %17 : vector<16x16x8xf32>
    %19 = arith.addf %11, %18 : vector<16x16x8xf32>
    %20 = vector.extract_strided_slice %12 {offsets = [1, 0, 0], sizes = [16, 16, 8], strides = [1, 1, 1]} : vector<22x16x8xf32> to vector<16x16x8xf32>
    %21 = vector.extract_strided_slice %7 {offsets = [7, 0], sizes = [1, 8], strides = [1, 1]} : vector<49x8xf32> to vector<1x8xf32>
    %22 = vector.shape_cast %21 : vector<1x8xf32> to vector<8xf32>
    %23 = vector.shape_cast %22 : vector<8xf32> to vector<1x1x8xf32>
    %24 = vector.broadcast %23 : vector<1x1x8xf32> to vector<16x16x8xf32>
    %25 = arith.mulf %20, %24 : vector<16x16x8xf32>
    %26 = arith.addf %19, %25 : vector<16x16x8xf32>
    %27 = vector.extract_strided_slice %12 {offsets = [2, 0, 0], sizes = [16, 16, 8], strides = [1, 1, 1]} : vector<22x16x8xf32> to vector<16x16x8xf32>
    %28 = vector.extract_strided_slice %7 {offsets = [14, 0], sizes = [1, 8], strides = [1, 1]} : vector<49x8xf32> to vector<1x8xf32>
    %29 = vector.shape_cast %28 : vector<1x8xf32> to vector<8xf32>
    %30 = vector.shape_cast %29 : vector<8xf32> to vector<1x1x8xf32>
    %31 = vector.broadcast %30 : vector<1x1x8xf32> to vector<16x16x8xf32>
    %32 = arith.mulf %27, %31 : vector<16x16x8xf32>
    %33 = arith.addf %26, %32 : vector<16x16x8xf32>
    %34 = vector.extract_strided_slice %12 {offsets = [3, 0, 0], sizes = [16, 16, 8], strides = [1, 1, 1]} : vector<22x16x8xf32> to vector<16x16x8xf32>
    %35 = vector.extract_strided_slice %7 {offsets = [21, 0], sizes = [1, 8], strides = [1, 1]} : vector<49x8xf32> to vector<1x8xf32>
    %36 = vector.shape_cast %35 : vector<1x8xf32> to vector<8xf32>
    %37 = vector.shape_cast %36 : vector<8xf32> to vector<1x1x8xf32>
    %38 = vector.broadcast %37 : vector<1x1x8xf32> to vector<16x16x8xf32>
    %39 = arith.mulf %34, %38 : vector<16x16x8xf32>
    %40 = arith.addf %33, %39 : vector<16x16x8xf32>
    %41 = vector.extract_strided_slice %12 {offsets = [4, 0, 0], sizes = [16, 16, 8], strides = [1, 1, 1]} : vector<22x16x8xf32> to vector<16x16x8xf32>
    %42 = vector.extract_strided_slice %7 {offsets = [28, 0], sizes = [1, 8], strides = [1, 1]} : vector<49x8xf32> to vector<1x8xf32>
    %43 = vector.shape_cast %42 : vector<1x8xf32> to vector<8xf32>
    %44 = vector.shape_cast %43 : vector<8xf32> to vector<1x1x8xf32>
    %45 = vector.broadcast %44 : vector<1x1x8xf32> to vector<16x16x8xf32>
    %46 = arith.mulf %41, %45 : vector<16x16x8xf32>
    %47 = arith.addf %40, %46 : vector<16x16x8xf32>
    %48 = vector.extract_strided_slice %12 {offsets = [5, 0, 0], sizes = [16, 16, 8], strides = [1, 1, 1]} : vector<22x16x8xf32> to vector<16x16x8xf32>
    %49 = vector.extract_strided_slice %7 {offsets = [35, 0], sizes = [1, 8], strides = [1, 1]} : vector<49x8xf32> to vector<1x8xf32>
    %50 = vector.shape_cast %49 : vector<1x8xf32> to vector<8xf32>
    %51 = vector.shape_cast %50 : vector<8xf32> to vector<1x1x8xf32>
    %52 = vector.broadcast %51 : vector<1x1x8xf32> to vector<16x16x8xf32>
    %53 = arith.mulf %48, %52 : vector<16x16x8xf32>
    %54 = arith.addf %47, %53 : vector<16x16x8xf32>
    %55 = vector.extract_strided_slice %12 {offsets = [6, 0, 0], sizes = [16, 16, 8], strides = [1, 1, 1]} : vector<22x16x8xf32> to vector<16x16x8xf32>
    %56 = vector.extract_strided_slice %7 {offsets = [42, 0], sizes = [1, 8], strides = [1, 1]} : vector<49x8xf32> to vector<1x8xf32>
    %57 = vector.shape_cast %56 : vector<1x8xf32> to vector<8xf32>
    %58 = vector.shape_cast %57 : vector<8xf32> to vector<1x1x8xf32>
    %59 = vector.broadcast %58 : vector<1x1x8xf32> to vector<16x16x8xf32>
    %60 = arith.mulf %55, %59 : vector<16x16x8xf32>
    %61 = arith.addf %54, %60 : vector<16x16x8xf32>
    %c0_20 = arith.constant 0 : index
    %c6 = arith.constant 6 : index
    %c0_21 = arith.constant 0 : index
    %62 = vector.load %arg7[%c0_20, %c6, %c0_21] : memref<22x27x8xf32, #tpu.memory_space<vmem>>, vector<22x16x8xf32>
    %63 = vector.extract_strided_slice %62 {offsets = [0, 0, 0], sizes = [16, 16, 8], strides = [1, 1, 1]} : vector<22x16x8xf32> to vector<16x16x8xf32>
    %64 = vector.extract_strided_slice %7 {offsets = [1, 0], sizes = [1, 8], strides = [1, 1]} : vector<49x8xf32> to vector<1x8xf32>
    %65 = vector.shape_cast %64 : vector<1x8xf32> to vector<8xf32>
    %66 = vector.shape_cast %65 : vector<8xf32> to vector<1x1x8xf32>
    %67 = vector.broadcast %66 : vector<1x1x8xf32> to vector<16x16x8xf32>
    %68 = arith.mulf %63, %67 : vector<16x16x8xf32>
    %69 = arith.addf %61, %68 : vector<16x16x8xf32>
    %70 = vector.extract_strided_slice %62 {offsets = [1, 0, 0], sizes = [16, 16, 8], strides = [1, 1, 1]} : vector<22x16x8xf32> to vector<16x16x8xf32>
    %71 = vector.extract_strided_slice %7 {offsets = [8, 0], sizes = [1, 8], strides = [1, 1]} : vector<49x8xf32> to vector<1x8xf32>
    %72 = vector.shape_cast %71 : vector<1x8xf32> to vector<8xf32>
    %73 = vector.shape_cast %72 : vector<8xf32> to vector<1x1x8xf32>
    %74 = vector.broadcast %73 : vector<1x1x8xf32> to vector<16x16x8xf32>
    %75 = arith.mulf %70, %74 : vector<16x16x8xf32>
    %76 = arith.addf %69, %75 : vector<16x16x8xf32>
    %77 = vector.extract_strided_slice %62 {offsets = [2, 0, 0], sizes = [16, 16, 8], strides = [1, 1, 1]} : vector<22x16x8xf32> to vector<16x16x8xf32>
    %78 = vector.extract_strided_slice %7 {offsets = [15, 0], sizes = [1, 8], strides = [1, 1]} : vector<49x8xf32> to vector<1x8xf32>
    %79 = vector.shape_cast %78 : vector<1x8xf32> to vector<8xf32>
    %80 = vector.shape_cast %79 : vector<8xf32> to vector<1x1x8xf32>
    %81 = vector.broadcast %80 : vector<1x1x8xf32> to vector<16x16x8xf32>
    %82 = arith.mulf %77, %81 : vector<16x16x8xf32>
    %83 = arith.addf %76, %82 : vector<16x16x8xf32>
    %84 = vector.extract_strided_slice %62 {offsets = [3, 0, 0], sizes = [16, 16, 8], strides = [1, 1, 1]} : vector<22x16x8xf32> to vector<16x16x8xf32>
    %85 = vector.extract_strided_slice %7 {offsets = [22, 0], sizes = [1, 8], strides = [1, 1]} : vector<49x8xf32> to vector<1x8xf32>
    %86 = vector.shape_cast %85 : vector<1x8xf32> to vector<8xf32>
    %87 = vector.shape_cast %86 : vector<8xf32> to vector<1x1x8xf32>
    %88 = vector.broadcast %87 : vector<1x1x8xf32> to vector<16x16x8xf32>
    %89 = arith.mulf %84, %88 : vector<16x16x8xf32>
    %90 = arith.addf %83, %89 : vector<16x16x8xf32>
    %91 = vector.extract_strided_slice %62 {offsets = [4, 0, 0], sizes = [16, 16, 8], strides = [1, 1, 1]} : vector<22x16x8xf32> to vector<16x16x8xf32>
    %92 = vector.extract_strided_slice %7 {offsets = [29, 0], sizes = [1, 8], strides = [1, 1]} : vector<49x8xf32> to vector<1x8xf32>
    %93 = vector.shape_cast %92 : vector<1x8xf32> to vector<8xf32>
    %94 = vector.shape_cast %93 : vector<8xf32> to vector<1x1x8xf32>
    %95 = vector.broadcast %94 : vector<1x1x8xf32> to vector<16x16x8xf32>
    %96 = arith.mulf %91, %95 : vector<16x16x8xf32>
    %97 = arith.addf %90, %96 : vector<16x16x8xf32>
    %98 = vector.extract_strided_slice %62 {offsets = [5, 0, 0], sizes = [16, 16, 8], strides = [1, 1, 1]} : vector<22x16x8xf32> to vector<16x16x8xf32>
    %99 = vector.extract_strided_slice %7 {offsets = [36, 0], sizes = [1, 8], strides = [1, 1]} : vector<49x8xf32> to vector<1x8xf32>
    %100 = vector.shape_cast %99 : vector<1x8xf32> to vector<8xf32>
    %101 = vector.shape_cast %100 : vector<8xf32> to vector<1x1x8xf32>
    %102 = vector.broadcast %101 : vector<1x1x8xf32> to vector<16x16x8xf32>
    %103 = arith.mulf %98, %102 : vector<16x16x8xf32>
    %104 = arith.addf %97, %103 : vector<16x16x8xf32>
    %105 = vector.extract_strided_slice %62 {offsets = [6, 0, 0], sizes = [16, 16, 8], strides = [1, 1, 1]} : vector<22x16x8xf32> to vector<16x16x8xf32>
    %106 = vector.extract_strided_slice %7 {offsets = [43, 0], sizes = [1, 8], strides = [1, 1]} : vector<49x8xf32> to vector<1x8xf32>
    %107 = vector.shape_cast %106 : vector<1x8xf32> to vector<8xf32>
    %108 = vector.shape_cast %107 : vector<8xf32> to vector<1x1x8xf32>
    %109 = vector.broadcast %108 : vector<1x1x8xf32> to vector<16x16x8xf32>
    %110 = arith.mulf %105, %109 : vector<16x16x8xf32>
    %111 = arith.addf %104, %110 : vector<16x16x8xf32>
    %c0_22 = arith.constant 0 : index
    %c7 = arith.constant 7 : index
    %c0_23 = arith.constant 0 : index
    %112 = vector.load %arg7[%c0_22, %c7, %c0_23] : memref<22x27x8xf32, #tpu.memory_space<vmem>>, vector<22x16x8xf32>
    %113 = vector.extract_strided_slice %112 {offsets = [0, 0, 0], sizes = [16, 16, 8], strides = [1, 1, 1]} : vector<22x16x8xf32> to vector<16x16x8xf32>
    %114 = vector.extract_strided_slice %7 {offsets = [2, 0], sizes = [1, 8], strides = [1, 1]} : vector<49x8xf32> to vector<1x8xf32>
    %115 = vector.shape_cast %114 : vector<1x8xf32> to vector<8xf32>
    %116 = vector.shape_cast %115 : vector<8xf32> to vector<1x1x8xf32>
    %117 = vector.broadcast %116 : vector<1x1x8xf32> to vector<16x16x8xf32>
    %118 = arith.mulf %113, %117 : vector<16x16x8xf32>
    %119 = arith.addf %111, %118 : vector<16x16x8xf32>
    %120 = vector.extract_strided_slice %112 {offsets = [1, 0, 0], sizes = [16, 16, 8], strides = [1, 1, 1]} : vector<22x16x8xf32> to vector<16x16x8xf32>
    %121 = vector.extract_strided_slice %7 {offsets = [9, 0], sizes = [1, 8], strides = [1, 1]} : vector<49x8xf32> to vector<1x8xf32>
    %122 = vector.shape_cast %121 : vector<1x8xf32> to vector<8xf32>
    %123 = vector.shape_cast %122 : vector<8xf32> to vector<1x1x8xf32>
    %124 = vector.broadcast %123 : vector<1x1x8xf32> to vector<16x16x8xf32>
    %125 = arith.mulf %120, %124 : vector<16x16x8xf32>
    %126 = arith.addf %119, %125 : vector<16x16x8xf32>
    %127 = vector.extract_strided_slice %112 {offsets = [2, 0, 0], sizes = [16, 16, 8], strides = [1, 1, 1]} : vector<22x16x8xf32> to vector<16x16x8xf32>
    %128 = vector.extract_strided_slice %7 {offsets = [16, 0], sizes = [1, 8], strides = [1, 1]} : vector<49x8xf32> to vector<1x8xf32>
    %129 = vector.shape_cast %128 : vector<1x8xf32> to vector<8xf32>
    %130 = vector.shape_cast %129 : vector<8xf32> to vector<1x1x8xf32>
    %131 = vector.broadcast %130 : vector<1x1x8xf32> to vector<16x16x8xf32>
    %132 = arith.mulf %127, %131 : vector<16x16x8xf32>
    %133 = arith.addf %126, %132 : vector<16x16x8xf32>
    %134 = vector.extract_strided_slice %112 {offsets = [3, 0, 0], sizes = [16, 16, 8], strides = [1, 1, 1]} : vector<22x16x8xf32> to vector<16x16x8xf32>
    %135 = vector.extract_strided_slice %7 {offsets = [23, 0], sizes = [1, 8], strides = [1, 1]} : vector<49x8xf32> to vector<1x8xf32>
    %136 = vector.shape_cast %135 : vector<1x8xf32> to vector<8xf32>
    %137 = vector.shape_cast %136 : vector<8xf32> to vector<1x1x8xf32>
    %138 = vector.broadcast %137 : vector<1x1x8xf32> to vector<16x16x8xf32>
    %139 = arith.mulf %134, %138 : vector<16x16x8xf32>
    %140 = arith.addf %133, %139 : vector<16x16x8xf32>
    %141 = vector.extract_strided_slice %112 {offsets = [4, 0, 0], sizes = [16, 16, 8], strides = [1, 1, 1]} : vector<22x16x8xf32> to vector<16x16x8xf32>
    %142 = vector.extract_strided_slice %7 {offsets = [30, 0], sizes = [1, 8], strides = [1, 1]} : vector<49x8xf32> to vector<1x8xf32>
    %143 = vector.shape_cast %142 : vector<1x8xf32> to vector<8xf32>
    %144 = vector.shape_cast %143 : vector<8xf32> to vector<1x1x8xf32>
    %145 = vector.broadcast %144 : vector<1x1x8xf32> to vector<16x16x8xf32>
    %146 = arith.mulf %141, %145 : vector<16x16x8xf32>
    %147 = arith.addf %140, %146 : vector<16x16x8xf32>
    %148 = vector.extract_strided_slice %112 {offsets = [5, 0, 0], sizes = [16, 16, 8], strides = [1, 1, 1]} : vector<22x16x8xf32> to vector<16x16x8xf32>
    %149 = vector.extract_strided_slice %7 {offsets = [37, 0], sizes = [1, 8], strides = [1, 1]} : vector<49x8xf32> to vector<1x8xf32>
    %150 = vector.shape_cast %149 : vector<1x8xf32> to vector<8xf32>
    %151 = vector.shape_cast %150 : vector<8xf32> to vector<1x1x8xf32>
    %152 = vector.broadcast %151 : vector<1x1x8xf32> to vector<16x16x8xf32>
    %153 = arith.mulf %148, %152 : vector<16x16x8xf32>
    %154 = arith.addf %147, %153 : vector<16x16x8xf32>
    %155 = vector.extract_strided_slice %112 {offsets = [6, 0, 0], sizes = [16, 16, 8], strides = [1, 1, 1]} : vector<22x16x8xf32> to vector<16x16x8xf32>
    %156 = vector.extract_strided_slice %7 {offsets = [44, 0], sizes = [1, 8], strides = [1, 1]} : vector<49x8xf32> to vector<1x8xf32>
    %157 = vector.shape_cast %156 : vector<1x8xf32> to vector<8xf32>
    %158 = vector.shape_cast %157 : vector<8xf32> to vector<1x1x8xf32>
    %159 = vector.broadcast %158 : vector<1x1x8xf32> to vector<16x16x8xf32>
    %160 = arith.mulf %155, %159 : vector<16x16x8xf32>
    %161 = arith.addf %154, %160 : vector<16x16x8xf32>
    %c0_24 = arith.constant 0 : index
    %c8_25 = arith.constant 8 : index
    %c0_26 = arith.constant 0 : index
    %162 = vector.load %arg7[%c0_24, %c8_25, %c0_26] : memref<22x27x8xf32, #tpu.memory_space<vmem>>, vector<22x16x8xf32>
    %163 = vector.extract_strided_slice %162 {offsets = [0, 0, 0], sizes = [16, 16, 8], strides = [1, 1, 1]} : vector<22x16x8xf32> to vector<16x16x8xf32>
    %164 = vector.extract_strided_slice %7 {offsets = [3, 0], sizes = [1, 8], strides = [1, 1]} : vector<49x8xf32> to vector<1x8xf32>
    %165 = vector.shape_cast %164 : vector<1x8xf32> to vector<8xf32>
    %166 = vector.shape_cast %165 : vector<8xf32> to vector<1x1x8xf32>
    %167 = vector.broadcast %166 : vector<1x1x8xf32> to vector<16x16x8xf32>
    %168 = arith.mulf %163, %167 : vector<16x16x8xf32>
    %169 = arith.addf %161, %168 : vector<16x16x8xf32>
    %170 = vector.extract_strided_slice %162 {offsets = [1, 0, 0], sizes = [16, 16, 8], strides = [1, 1, 1]} : vector<22x16x8xf32> to vector<16x16x8xf32>
    %171 = vector.extract_strided_slice %7 {offsets = [10, 0], sizes = [1, 8], strides = [1, 1]} : vector<49x8xf32> to vector<1x8xf32>
    %172 = vector.shape_cast %171 : vector<1x8xf32> to vector<8xf32>
    %173 = vector.shape_cast %172 : vector<8xf32> to vector<1x1x8xf32>
    %174 = vector.broadcast %173 : vector<1x1x8xf32> to vector<16x16x8xf32>
    %175 = arith.mulf %170, %174 : vector<16x16x8xf32>
    %176 = arith.addf %169, %175 : vector<16x16x8xf32>
    %177 = vector.extract_strided_slice %162 {offsets = [2, 0, 0], sizes = [16, 16, 8], strides = [1, 1, 1]} : vector<22x16x8xf32> to vector<16x16x8xf32>
    %178 = vector.extract_strided_slice %7 {offsets = [17, 0], sizes = [1, 8], strides = [1, 1]} : vector<49x8xf32> to vector<1x8xf32>
    %179 = vector.shape_cast %178 : vector<1x8xf32> to vector<8xf32>
    %180 = vector.shape_cast %179 : vector<8xf32> to vector<1x1x8xf32>
    %181 = vector.broadcast %180 : vector<1x1x8xf32> to vector<16x16x8xf32>
    %182 = arith.mulf %177, %181 : vector<16x16x8xf32>
    %183 = arith.addf %176, %182 : vector<16x16x8xf32>
    %184 = vector.extract_strided_slice %162 {offsets = [3, 0, 0], sizes = [16, 16, 8], strides = [1, 1, 1]} : vector<22x16x8xf32> to vector<16x16x8xf32>
    %185 = vector.extract_strided_slice %7 {offsets = [24, 0], sizes = [1, 8], strides = [1, 1]} : vector<49x8xf32> to vector<1x8xf32>
    %186 = vector.shape_cast %185 : vector<1x8xf32> to vector<8xf32>
    %187 = vector.shape_cast %186 : vector<8xf32> to vector<1x1x8xf32>
    %188 = vector.broadcast %187 : vector<1x1x8xf32> to vector<16x16x8xf32>
    %189 = arith.mulf %184, %188 : vector<16x16x8xf32>
    %190 = arith.addf %183, %189 : vector<16x16x8xf32>
    %191 = vector.extract_strided_slice %162 {offsets = [4, 0, 0], sizes = [16, 16, 8], strides = [1, 1, 1]} : vector<22x16x8xf32> to vector<16x16x8xf32>
    %192 = vector.extract_strided_slice %7 {offsets = [31, 0], sizes = [1, 8], strides = [1, 1]} : vector<49x8xf32> to vector<1x8xf32>
    %193 = vector.shape_cast %192 : vector<1x8xf32> to vector<8xf32>
    %194 = vector.shape_cast %193 : vector<8xf32> to vector<1x1x8xf32>
    %195 = vector.broadcast %194 : vector<1x1x8xf32> to vector<16x16x8xf32>
    %196 = arith.mulf %191, %195 : vector<16x16x8xf32>
    %197 = arith.addf %190, %196 : vector<16x16x8xf32>
    %198 = vector.extract_strided_slice %162 {offsets = [5, 0, 0], sizes = [16, 16, 8], strides = [1, 1, 1]} : vector<22x16x8xf32> to vector<16x16x8xf32>
    %199 = vector.extract_strided_slice %7 {offsets = [38, 0], sizes = [1, 8], strides = [1, 1]} : vector<49x8xf32> to vector<1x8xf32>
    %200 = vector.shape_cast %199 : vector<1x8xf32> to vector<8xf32>
    %201 = vector.shape_cast %200 : vector<8xf32> to vector<1x1x8xf32>
    %202 = vector.broadcast %201 : vector<1x1x8xf32> to vector<16x16x8xf32>
    %203 = arith.mulf %198, %202 : vector<16x16x8xf32>
    %204 = arith.addf %197, %203 : vector<16x16x8xf32>
    %205 = vector.extract_strided_slice %162 {offsets = [6, 0, 0], sizes = [16, 16, 8], strides = [1, 1, 1]} : vector<22x16x8xf32> to vector<16x16x8xf32>
    %206 = vector.extract_strided_slice %7 {offsets = [45, 0], sizes = [1, 8], strides = [1, 1]} : vector<49x8xf32> to vector<1x8xf32>
    %207 = vector.shape_cast %206 : vector<1x8xf32> to vector<8xf32>
    %208 = vector.shape_cast %207 : vector<8xf32> to vector<1x1x8xf32>
    %209 = vector.broadcast %208 : vector<1x1x8xf32> to vector<16x16x8xf32>
    %210 = arith.mulf %205, %209 : vector<16x16x8xf32>
    %211 = arith.addf %204, %210 : vector<16x16x8xf32>
    %c0_27 = arith.constant 0 : index
    %c9 = arith.constant 9 : index
    %c0_28 = arith.constant 0 : index
    %212 = vector.load %arg7[%c0_27, %c9, %c0_28] : memref<22x27x8xf32, #tpu.memory_space<vmem>>, vector<22x16x8xf32>
    %213 = vector.extract_strided_slice %212 {offsets = [0, 0, 0], sizes = [16, 16, 8], strides = [1, 1, 1]} : vector<22x16x8xf32> to vector<16x16x8xf32>
    %214 = vector.extract_strided_slice %7 {offsets = [4, 0], sizes = [1, 8], strides = [1, 1]} : vector<49x8xf32> to vector<1x8xf32>
    %215 = vector.shape_cast %214 : vector<1x8xf32> to vector<8xf32>
    %216 = vector.shape_cast %215 : vector<8xf32> to vector<1x1x8xf32>
    %217 = vector.broadcast %216 : vector<1x1x8xf32> to vector<16x16x8xf32>
    %218 = arith.mulf %213, %217 : vector<16x16x8xf32>
    %219 = arith.addf %211, %218 : vector<16x16x8xf32>
    %220 = vector.extract_strided_slice %212 {offsets = [1, 0, 0], sizes = [16, 16, 8], strides = [1, 1, 1]} : vector<22x16x8xf32> to vector<16x16x8xf32>
    %221 = vector.extract_strided_slice %7 {offsets = [11, 0], sizes = [1, 8], strides = [1, 1]} : vector<49x8xf32> to vector<1x8xf32>
    %222 = vector.shape_cast %221 : vector<1x8xf32> to vector<8xf32>
    %223 = vector.shape_cast %222 : vector<8xf32> to vector<1x1x8xf32>
    %224 = vector.broadcast %223 : vector<1x1x8xf32> to vector<16x16x8xf32>
    %225 = arith.mulf %220, %224 : vector<16x16x8xf32>
    %226 = arith.addf %219, %225 : vector<16x16x8xf32>
    %227 = vector.extract_strided_slice %212 {offsets = [2, 0, 0], sizes = [16, 16, 8], strides = [1, 1, 1]} : vector<22x16x8xf32> to vector<16x16x8xf32>
    %228 = vector.extract_strided_slice %7 {offsets = [18, 0], sizes = [1, 8], strides = [1, 1]} : vector<49x8xf32> to vector<1x8xf32>
    %229 = vector.shape_cast %228 : vector<1x8xf32> to vector<8xf32>
    %230 = vector.shape_cast %229 : vector<8xf32> to vector<1x1x8xf32>
    %231 = vector.broadcast %230 : vector<1x1x8xf32> to vector<16x16x8xf32>
    %232 = arith.mulf %227, %231 : vector<16x16x8xf32>
    %233 = arith.addf %226, %232 : vector<16x16x8xf32>
    %234 = vector.extract_strided_slice %212 {offsets = [3, 0, 0], sizes = [16, 16, 8], strides = [1, 1, 1]} : vector<22x16x8xf32> to vector<16x16x8xf32>
    %235 = vector.extract_strided_slice %7 {offsets = [25, 0], sizes = [1, 8], strides = [1, 1]} : vector<49x8xf32> to vector<1x8xf32>
    %236 = vector.shape_cast %235 : vector<1x8xf32> to vector<8xf32>
    %237 = vector.shape_cast %236 : vector<8xf32> to vector<1x1x8xf32>
    %238 = vector.broadcast %237 : vector<1x1x8xf32> to vector<16x16x8xf32>
    %239 = arith.mulf %234, %238 : vector<16x16x8xf32>
    %240 = arith.addf %233, %239 : vector<16x16x8xf32>
    %241 = vector.extract_strided_slice %212 {offsets = [4, 0, 0], sizes = [16, 16, 8], strides = [1, 1, 1]} : vector<22x16x8xf32> to vector<16x16x8xf32>
    %242 = vector.extract_strided_slice %7 {offsets = [32, 0], sizes = [1, 8], strides = [1, 1]} : vector<49x8xf32> to vector<1x8xf32>
    %243 = vector.shape_cast %242 : vector<1x8xf32> to vector<8xf32>
    %244 = vector.shape_cast %243 : vector<8xf32> to vector<1x1x8xf32>
    %245 = vector.broadcast %244 : vector<1x1x8xf32> to vector<16x16x8xf32>
    %246 = arith.mulf %241, %245 : vector<16x16x8xf32>
    %247 = arith.addf %240, %246 : vector<16x16x8xf32>
    %248 = vector.extract_strided_slice %212 {offsets = [5, 0, 0], sizes = [16, 16, 8], strides = [1, 1, 1]} : vector<22x16x8xf32> to vector<16x16x8xf32>
    %249 = vector.extract_strided_slice %7 {offsets = [39, 0], sizes = [1, 8], strides = [1, 1]} : vector<49x8xf32> to vector<1x8xf32>
    %250 = vector.shape_cast %249 : vector<1x8xf32> to vector<8xf32>
    %251 = vector.shape_cast %250 : vector<8xf32> to vector<1x1x8xf32>
    %252 = vector.broadcast %251 : vector<1x1x8xf32> to vector<16x16x8xf32>
    %253 = arith.mulf %248, %252 : vector<16x16x8xf32>
    %254 = arith.addf %247, %253 : vector<16x16x8xf32>
    %255 = vector.extract_strided_slice %212 {offsets = [6, 0, 0], sizes = [16, 16, 8], strides = [1, 1, 1]} : vector<22x16x8xf32> to vector<16x16x8xf32>
    %256 = vector.extract_strided_slice %7 {offsets = [46, 0], sizes = [1, 8], strides = [1, 1]} : vector<49x8xf32> to vector<1x8xf32>
    %257 = vector.shape_cast %256 : vector<1x8xf32> to vector<8xf32>
    %258 = vector.shape_cast %257 : vector<8xf32> to vector<1x1x8xf32>
    %259 = vector.broadcast %258 : vector<1x1x8xf32> to vector<16x16x8xf32>
    %260 = arith.mulf %255, %259 : vector<16x16x8xf32>
    %261 = arith.addf %254, %260 : vector<16x16x8xf32>
    %c0_29 = arith.constant 0 : index
    %c10 = arith.constant 10 : index
    %c0_30 = arith.constant 0 : index
    %262 = vector.load %arg7[%c0_29, %c10, %c0_30] : memref<22x27x8xf32, #tpu.memory_space<vmem>>, vector<22x16x8xf32>
    %263 = vector.extract_strided_slice %262 {offsets = [0, 0, 0], sizes = [16, 16, 8], strides = [1, 1, 1]} : vector<22x16x8xf32> to vector<16x16x8xf32>
    %264 = vector.extract_strided_slice %7 {offsets = [5, 0], sizes = [1, 8], strides = [1, 1]} : vector<49x8xf32> to vector<1x8xf32>
    %265 = vector.shape_cast %264 : vector<1x8xf32> to vector<8xf32>
    %266 = vector.shape_cast %265 : vector<8xf32> to vector<1x1x8xf32>
    %267 = vector.broadcast %266 : vector<1x1x8xf32> to vector<16x16x8xf32>
    %268 = arith.mulf %263, %267 : vector<16x16x8xf32>
    %269 = arith.addf %261, %268 : vector<16x16x8xf32>
    %270 = vector.extract_strided_slice %262 {offsets = [1, 0, 0], sizes = [16, 16, 8], strides = [1, 1, 1]} : vector<22x16x8xf32> to vector<16x16x8xf32>
    %271 = vector.extract_strided_slice %7 {offsets = [12, 0], sizes = [1, 8], strides = [1, 1]} : vector<49x8xf32> to vector<1x8xf32>
    %272 = vector.shape_cast %271 : vector<1x8xf32> to vector<8xf32>
    %273 = vector.shape_cast %272 : vector<8xf32> to vector<1x1x8xf32>
    %274 = vector.broadcast %273 : vector<1x1x8xf32> to vector<16x16x8xf32>
    %275 = arith.mulf %270, %274 : vector<16x16x8xf32>
    %276 = arith.addf %269, %275 : vector<16x16x8xf32>
    %277 = vector.extract_strided_slice %262 {offsets = [2, 0, 0], sizes = [16, 16, 8], strides = [1, 1, 1]} : vector<22x16x8xf32> to vector<16x16x8xf32>
    %278 = vector.extract_strided_slice %7 {offsets = [19, 0], sizes = [1, 8], strides = [1, 1]} : vector<49x8xf32> to vector<1x8xf32>
    %279 = vector.shape_cast %278 : vector<1x8xf32> to vector<8xf32>
    %280 = vector.shape_cast %279 : vector<8xf32> to vector<1x1x8xf32>
    %281 = vector.broadcast %280 : vector<1x1x8xf32> to vector<16x16x8xf32>
    %282 = arith.mulf %277, %281 : vector<16x16x8xf32>
    %283 = arith.addf %276, %282 : vector<16x16x8xf32>
    %284 = vector.extract_strided_slice %262 {offsets = [3, 0, 0], sizes = [16, 16, 8], strides = [1, 1, 1]} : vector<22x16x8xf32> to vector<16x16x8xf32>
    %285 = vector.extract_strided_slice %7 {offsets = [26, 0], sizes = [1, 8], strides = [1, 1]} : vector<49x8xf32> to vector<1x8xf32>
    %286 = vector.shape_cast %285 : vector<1x8xf32> to vector<8xf32>
    %287 = vector.shape_cast %286 : vector<8xf32> to vector<1x1x8xf32>
    %288 = vector.broadcast %287 : vector<1x1x8xf32> to vector<16x16x8xf32>
    %289 = arith.mulf %284, %288 : vector<16x16x8xf32>
    %290 = arith.addf %283, %289 : vector<16x16x8xf32>
    %291 = vector.extract_strided_slice %262 {offsets = [4, 0, 0], sizes = [16, 16, 8], strides = [1, 1, 1]} : vector<22x16x8xf32> to vector<16x16x8xf32>
    %292 = vector.extract_strided_slice %7 {offsets = [33, 0], sizes = [1, 8], strides = [1, 1]} : vector<49x8xf32> to vector<1x8xf32>
    %293 = vector.shape_cast %292 : vector<1x8xf32> to vector<8xf32>
    %294 = vector.shape_cast %293 : vector<8xf32> to vector<1x1x8xf32>
    %295 = vector.broadcast %294 : vector<1x1x8xf32> to vector<16x16x8xf32>
    %296 = arith.mulf %291, %295 : vector<16x16x8xf32>
    %297 = arith.addf %290, %296 : vector<16x16x8xf32>
    %298 = vector.extract_strided_slice %262 {offsets = [5, 0, 0], sizes = [16, 16, 8], strides = [1, 1, 1]} : vector<22x16x8xf32> to vector<16x16x8xf32>
    %299 = vector.extract_strided_slice %7 {offsets = [40, 0], sizes = [1, 8], strides = [1, 1]} : vector<49x8xf32> to vector<1x8xf32>
    %300 = vector.shape_cast %299 : vector<1x8xf32> to vector<8xf32>
    %301 = vector.shape_cast %300 : vector<8xf32> to vector<1x1x8xf32>
    %302 = vector.broadcast %301 : vector<1x1x8xf32> to vector<16x16x8xf32>
    %303 = arith.mulf %298, %302 : vector<16x16x8xf32>
    %304 = arith.addf %297, %303 : vector<16x16x8xf32>
    %305 = vector.extract_strided_slice %262 {offsets = [6, 0, 0], sizes = [16, 16, 8], strides = [1, 1, 1]} : vector<22x16x8xf32> to vector<16x16x8xf32>
    %306 = vector.extract_strided_slice %7 {offsets = [47, 0], sizes = [1, 8], strides = [1, 1]} : vector<49x8xf32> to vector<1x8xf32>
    %307 = vector.shape_cast %306 : vector<1x8xf32> to vector<8xf32>
    %308 = vector.shape_cast %307 : vector<8xf32> to vector<1x1x8xf32>
    %309 = vector.broadcast %308 : vector<1x1x8xf32> to vector<16x16x8xf32>
    %310 = arith.mulf %305, %309 : vector<16x16x8xf32>
    %311 = arith.addf %304, %310 : vector<16x16x8xf32>
    %c0_31 = arith.constant 0 : index
    %c11 = arith.constant 11 : index
    %c0_32 = arith.constant 0 : index
    %312 = vector.load %arg7[%c0_31, %c11, %c0_32] : memref<22x27x8xf32, #tpu.memory_space<vmem>>, vector<22x16x8xf32>
    %313 = vector.extract_strided_slice %312 {offsets = [0, 0, 0], sizes = [16, 16, 8], strides = [1, 1, 1]} : vector<22x16x8xf32> to vector<16x16x8xf32>
    %314 = vector.extract_strided_slice %7 {offsets = [6, 0], sizes = [1, 8], strides = [1, 1]} : vector<49x8xf32> to vector<1x8xf32>
    %315 = vector.shape_cast %314 : vector<1x8xf32> to vector<8xf32>
    %316 = vector.shape_cast %315 : vector<8xf32> to vector<1x1x8xf32>
    %317 = vector.broadcast %316 : vector<1x1x8xf32> to vector<16x16x8xf32>
    %318 = arith.mulf %313, %317 : vector<16x16x8xf32>
    %319 = arith.addf %311, %318 : vector<16x16x8xf32>
    %320 = vector.extract_strided_slice %312 {offsets = [1, 0, 0], sizes = [16, 16, 8], strides = [1, 1, 1]} : vector<22x16x8xf32> to vector<16x16x8xf32>
    %321 = vector.extract_strided_slice %7 {offsets = [13, 0], sizes = [1, 8], strides = [1, 1]} : vector<49x8xf32> to vector<1x8xf32>
    %322 = vector.shape_cast %321 : vector<1x8xf32> to vector<8xf32>
    %323 = vector.shape_cast %322 : vector<8xf32> to vector<1x1x8xf32>
    %324 = vector.broadcast %323 : vector<1x1x8xf32> to vector<16x16x8xf32>
    %325 = arith.mulf %320, %324 : vector<16x16x8xf32>
    %326 = arith.addf %319, %325 : vector<16x16x8xf32>
    %327 = vector.extract_strided_slice %312 {offsets = [2, 0, 0], sizes = [16, 16, 8], strides = [1, 1, 1]} : vector<22x16x8xf32> to vector<16x16x8xf32>
    %328 = vector.extract_strided_slice %7 {offsets = [20, 0], sizes = [1, 8], strides = [1, 1]} : vector<49x8xf32> to vector<1x8xf32>
    %329 = vector.shape_cast %328 : vector<1x8xf32> to vector<8xf32>
    %330 = vector.shape_cast %329 : vector<8xf32> to vector<1x1x8xf32>
    %331 = vector.broadcast %330 : vector<1x1x8xf32> to vector<16x16x8xf32>
    %332 = arith.mulf %327, %331 : vector<16x16x8xf32>
    %333 = arith.addf %326, %332 : vector<16x16x8xf32>
    %334 = vector.extract_strided_slice %312 {offsets = [3, 0, 0], sizes = [16, 16, 8], strides = [1, 1, 1]} : vector<22x16x8xf32> to vector<16x16x8xf32>
    %335 = vector.extract_strided_slice %7 {offsets = [27, 0], sizes = [1, 8], strides = [1, 1]} : vector<49x8xf32> to vector<1x8xf32>
    %336 = vector.shape_cast %335 : vector<1x8xf32> to vector<8xf32>
    %337 = vector.shape_cast %336 : vector<8xf32> to vector<1x1x8xf32>
    %338 = vector.broadcast %337 : vector<1x1x8xf32> to vector<16x16x8xf32>
    %339 = arith.mulf %334, %338 : vector<16x16x8xf32>
    %340 = arith.addf %333, %339 : vector<16x16x8xf32>
    %341 = vector.extract_strided_slice %312 {offsets = [4, 0, 0], sizes = [16, 16, 8], strides = [1, 1, 1]} : vector<22x16x8xf32> to vector<16x16x8xf32>
    %342 = vector.extract_strided_slice %7 {offsets = [34, 0], sizes = [1, 8], strides = [1, 1]} : vector<49x8xf32> to vector<1x8xf32>
    %343 = vector.shape_cast %342 : vector<1x8xf32> to vector<8xf32>
    %344 = vector.shape_cast %343 : vector<8xf32> to vector<1x1x8xf32>
    %345 = vector.broadcast %344 : vector<1x1x8xf32> to vector<16x16x8xf32>
    %346 = arith.mulf %341, %345 : vector<16x16x8xf32>
    %347 = arith.addf %340, %346 : vector<16x16x8xf32>
    %348 = vector.extract_strided_slice %312 {offsets = [5, 0, 0], sizes = [16, 16, 8], strides = [1, 1, 1]} : vector<22x16x8xf32> to vector<16x16x8xf32>
    %349 = vector.extract_strided_slice %7 {offsets = [41, 0], sizes = [1, 8], strides = [1, 1]} : vector<49x8xf32> to vector<1x8xf32>
    %350 = vector.shape_cast %349 : vector<1x8xf32> to vector<8xf32>
    %351 = vector.shape_cast %350 : vector<8xf32> to vector<1x1x8xf32>
    %352 = vector.broadcast %351 : vector<1x1x8xf32> to vector<16x16x8xf32>
    %353 = arith.mulf %348, %352 : vector<16x16x8xf32>
    %354 = arith.addf %347, %353 : vector<16x16x8xf32>
    %355 = vector.extract_strided_slice %312 {offsets = [6, 0, 0], sizes = [16, 16, 8], strides = [1, 1, 1]} : vector<22x16x8xf32> to vector<16x16x8xf32>
    %356 = vector.extract_strided_slice %7 {offsets = [48, 0], sizes = [1, 8], strides = [1, 1]} : vector<49x8xf32> to vector<1x8xf32>
    %357 = vector.shape_cast %356 : vector<1x8xf32> to vector<8xf32>
    %358 = vector.shape_cast %357 : vector<8xf32> to vector<1x1x8xf32>
    %359 = vector.broadcast %358 : vector<1x1x8xf32> to vector<16x16x8xf32>
    %360 = arith.mulf %355, %359 : vector<16x16x8xf32>
    %361 = arith.addf %354, %360 : vector<16x16x8xf32>
    %362 = arith.truncf %361 : vector<16x16x8xf32> to vector<16x16x8xbf16>
    %c0_33 = arith.constant 0 : index
    %c0_34 = arith.constant 0 : index
    %c0_35 = arith.constant 0 : index
    %c0_36 = arith.constant 0 : index
    %363 = vector.load %arg5[%c0_33, %c0_34, %c0_35, %c0_36] : memref<1x16x16x8xbf16, #tpu.memory_space<vmem>>, vector<1x16x16x8xbf16>
    %364 = vector.shape_cast %363 : vector<1x16x16x8xbf16> to vector<16x16x8xbf16>
    %365 = vector.shape_cast %362 : vector<16x16x8xbf16> to vector<1x16x16x8xbf16>
    tpu.vector_store %arg5[%c0_33, %c0_34, %c0_35, %c0_36], %365 {strides = array<i32>} : memref<1x16x16x8xbf16, #tpu.memory_space<vmem>>, vector<1x16x16x8xbf16>,
    %366 = arith.extf %362 : vector<16x16x8xbf16> to vector<16x16x8xf32>
    %367 = vector.shape_cast %366 : vector<16x16x8xf32> to vector<256x8xf32>
    %cst_37 = arith.constant dense<0.000000e+00> : vector<8xf32>
    %368 = vector.multi_reduction <add>, %367, %cst_37 [0] : vector<256x8xf32> to vector<8xf32>
    %369 = vector.shape_cast %368 : vector<8xf32> to vector<1x8xf32>
    %cst_38 = arith.constant 3.906250e-03 : f32
    %370 = vector.broadcast %cst_38 : f32 to vector<1x8xf32>
    %371 = arith.mulf %369, %370 : vector<1x8xf32>
    %372 = vector.broadcast %371 : vector<1x8xf32> to vector<256x8xf32>
    %373 = arith.subf %367, %372 : vector<256x8xf32>
    %c0_39 = arith.constant 0 : index
    %c0_40 = arith.constant 0 : index
    %c0_41 = arith.constant 0 : index
    %c0_42 = arith.constant 0 : index
    %374 = vector.load %arg6[%c0_39, %c0_40, %c0_41, %c0_42] : memref<1x1x2x8xf32, #tpu.memory_space<vmem>>, vector<1x1x1x8xf32>
    %375 = vector.shape_cast %374 : vector<1x1x1x8xf32> to vector<1x8xf32>
    %376 = vector.shape_cast %369 : vector<1x8xf32> to vector<1x1x1x8xf32>
    tpu.vector_store %arg6[%c0_39, %c0_40, %c0_41, %c0_42], %376 {strides = array<i32>} : memref<1x1x2x8xf32, #tpu.memory_space<vmem>>, vector<1x1x1x8xf32>,
    %377 = arith.mulf %373, %373 : vector<256x8xf32>
    %cst_43 = arith.constant dense<0.000000e+00> : vector<8xf32>
    %378 = vector.multi_reduction <add>, %377, %cst_43 [0] : vector<256x8xf32> to vector<8xf32>
    %379 = vector.shape_cast %378 : vector<8xf32> to vector<1x8xf32>
    %c0_44 = arith.constant 0 : index
    %c0_45 = arith.constant 0 : index
    %c1 = arith.constant 1 : index
    %c0_46 = arith.constant 0 : index
    %380 = vector.load %arg6[%c0_44, %c0_45, %c1, %c0_46] : memref<1x1x2x8xf32, #tpu.memory_space<vmem>>, vector<1x1x1x8xf32>
    %381 = vector.shape_cast %380 : vector<1x1x1x8xf32> to vector<1x8xf32>
    %382 = vector.shape_cast %379 : vector<1x8xf32> to vector<1x1x1x8xf32>
    tpu.vector_store %arg6[%c0_44, %c0_45, %c1, %c0_46], %382 {strides = array<i32>} : memref<1x1x2x8xf32, #tpu.memory_space<vmem>>, vector<1x1x1x8xf32>,
    return
  }
  func.func @transform_0(%arg0: i32, %arg1: i32) -> (i32, i32, i32, i32) {
    %c0_i32 = arith.constant 0 : i32
    %c0_i32_0 = arith.constant 0 : i32
    %c0_i32_1 = arith.constant 0 : i32
    return %arg0, %arg1, %c0_i32, %c0_i32_0 : i32, i32, i32, i32
  }
  func.func @transform_2(%arg0: i32, %arg1: i32) -> (i32, i32) {
    %c0_i32 = arith.constant 0 : i32
    %c0_i32_0 = arith.constant 0 : i32
    %c0_i32_1 = arith.constant 0 : i32
    return %c0_i32, %c0_i32_0 : i32, i32
  }
  func.func @transform_3(%arg0: i32, %arg1: i32) -> (i32, i32, i32, i32) {
    %c0_i32 = arith.constant 0 : i32
    %c0_i32_0 = arith.constant 0 : i32
    %c0_i32_1 = arith.constant 0 : i32
    return %arg0, %arg1, %c0_i32, %c0_i32_0 : i32, i32, i32, i32
  }
  func.func @transform_4(%arg0: i32, %arg1: i32) -> (i32, i32, i32, i32) {
    %c0_i32 = arith.constant 0 : i32
    %c0_i32_0 = arith.constant 0 : i32
    %c0_i32_1 = arith.constant 0 : i32
    return %arg0, %arg1, %c0_i32, %c0_i32_0 : i32, i32, i32, i32
  }
}

</mosaic_0001>

<llo_original>
// kernel: conv_mixer_forward.5
$region0: #{conv_mixer_forward.5}
  #allocation0 [shape = 'u32[]', space=smem, size = 0x4, offset = 0x4, fixed_abs, tag = 'smem constant byte address 0x4 - core index']
  #allocation1 [shape = 'u32[72,128]{1,0:T(1,128)}', space=vmem, size = 0x9000, scoped, tag = 'internal scratch']
  %s0 = inlined_call_operand.vmem [shape: bf16[512,8], index: 0, kind: input, shape index: {}]
  %s1 = inlined_call_operand.vmem [shape: f32[1,8], index: 1, kind: input, shape index: {}]
  %s2 = inlined_call_operand.vmem [shape: f32[1,8], index: 2, kind: input, shape index: {}]
  %s3 = inlined_call_operand.vmem [shape: f32[512,8], index: 3, kind: output, shape index: {}]
  %s4 = sld [smem:[#allocation0]]
  $region22: #{conv_mixer_forward.5} parent=0
    _
  %s6 = ssub.s32 1, %s4
  %s7 = scalar_select 0, %s6, %s4
  // Predicated region
  $region2: #{conv_mixer_forward.5} parent=0 // pred_check
    _
  $region3: #{conv_mixer_forward.5} parent=0 // pred_check_branch
    %9 = sbr.rel (0) target = $region5
  $region4: #{conv_mixer_forward.5} parent=0 // pred_region
    _
  $region5: #{conv_mixer_forward.5} parent=0 // pred_fallthru
    _
  // Predicated region
  $region6: #{conv_mixer_forward.5} parent=0 // pred_check
    _
  $region7: #{conv_mixer_forward.5} parent=0 // pred_check_branch
    %11 = sbr.rel (0) target = $region9
  $region8: #{conv_mixer_forward.5} parent=0 // pred_region
    _
  $region9: #{conv_mixer_forward.5} parent=0 // pred_fallthru
    _
  // Predicated region
  $region10: #{conv_mixer_forward.5} parent=0 // pred_check
    _
  $region11: #{conv_mixer_forward.5} parent=0 // pred_check_branch
    %13 = sbr.rel (0) target = $region13
  $region12: #{conv_mixer_forward.5} parent=0 // pred_region
    _
  $region13: #{conv_mixer_forward.5} parent=0 // pred_fallthru
    _
  %v14 = vld [vmem:[%s0] sm:$0xf]
  %v15 = vld [vmem:[%s0 + $0x4] sm:$0xf]
  %v16 = vld [vmem:[%s0 + $0x8] sm:$0xf]
  %v17 = vld [vmem:[%s0 + $0xc] sm:$0xf]
  %v18 = vld [vmem:[%s0 + $0x10] sm:$0xf]
  %v19 = vld [vmem:[%s0 + $0x14] sm:$0xf]
  %v20 = vld [vmem:[%s0 + $0x18] sm:$0xf]
  %v21 = vld [vmem:[%s0 + $0x1c] sm:$0xf]
  %v22 = vld [vmem:[%s0 + $0x20] sm:$0xf]
  %v23 = vld [vmem:[%s0 + $0x24] sm:$0xf]
  %v24 = vld [vmem:[%s0 + $0x28] sm:$0xf]
  %v25 = vld [vmem:[%s0 + $0x2c] sm:$0xf]
  %v26 = vld [vmem:[%s0 + $0x30] sm:$0xf]
  %v27 = vld [vmem:[%s0 + $0x34] sm:$0xf]
  %v28 = vld [vmem:[%s0 + $0x38] sm:$0xf]
  %v29 = vld [vmem:[%s0 + $0x3c] sm:$0xf]
  %v30 = vld [vmem:[%s0 + $0x40] sm:$0xf]
  %v31 = vld [vmem:[%s0 + $0x44] sm:$0xf]
  %v32 = vld [vmem:[%s0 + $0x48] sm:$0xf]
  %v33 = vld [vmem:[%s0 + $0x4c] sm:$0xf]
  %v34 = vld [vmem:[%s0 + $0x50] sm:$0xf]
  %v35 = vld [vmem:[%s0 + $0x54] sm:$0xf]
  %v36 = vld [vmem:[%s0 + $0x58] sm:$0xf]
  %v37 = vld [vmem:[%s0 + $0x5c] sm:$0xf]
  %v38 = vld [vmem:[%s0 + $0x60] sm:$0xf]
  %v39 = vld [vmem:[%s0 + $0x64] sm:$0xf]
  %v40 = vld [vmem:[%s0 + $0x68] sm:$0xf]
  %v41 = vld [vmem:[%s0 + $0x6c] sm:$0xf]
  %v42 = vld [vmem:[%s0 + $0x70] sm:$0xf]
  %v43 = vld [vmem:[%s0 + $0x74] sm:$0xf]
  %v44 = vld [vmem:[%s0 + $0x78] sm:$0xf]
  %v45 = vld [vmem:[%s0 + $0x7c] sm:$0xf]
  %v46 = vld [vmem:[%s0 + $0x80] sm:$0xf]
  %v47 = vld [vmem:[%s0 + $0x84] sm:$0xf]
  %v48 = vld [vmem:[%s0 + $0x88] sm:$0xf]
  %v49 = vld [vmem:[%s0 + $0x8c] sm:$0xf]
  %v50 = vld [vmem:[%s0 + $0x90] sm:$0xf]
  %v51 = vld [vmem:[%s0 + $0x94] sm:$0xf]
  %v52 = vld [vmem:[%s0 + $0x98] sm:$0xf]
  %v53 = vld [vmem:[%s0 + $0x9c] sm:$0xf]
  %v54 = vld [vmem:[%s0 + $0xa0] sm:$0xf]
  %v55 = vld [vmem:[%s0 + $0xa4] sm:$0xf]
  %v56 = vld [vmem:[%s0 + $0xa8] sm:$0xf]
  %v57 = vld [vmem:[%s0 + $0xac] sm:$0xf]
  %v58 = vld [vmem:[%s0 + $0xb0] sm:$0xf]
  %v59 = vld [vmem:[%s0 + $0xb4] sm:$0xf]
  %v60 = vld [vmem:[%s0 + $0xb8] sm:$0xf]
  %v61 = vld [vmem:[%s0 + $0xbc] sm:$0xf]
  %v62 = vld [vmem:[%s0 + $0xc0] sm:$0xf]
  %v63 = vld [vmem:[%s0 + $0xc4] sm:$0xf]
  %v64 = vld [vmem:[%s0 + $0xc8] sm:$0xf]
  %v65 = vld [vmem:[%s0 + $0xcc] sm:$0xf]
  %v66 = vld [vmem:[%s0 + $0xd0] sm:$0xf]
  %v67 = vld [vmem:[%s0 + $0xd4] sm:$0xf]
  %v68 = vld [vmem:[%s0 + $0xd8] sm:$0xf]
  %v69 = vld [vmem:[%s0 + $0xdc] sm:$0xf]
  %v70 = vld [vmem:[%s0 + $0xe0] sm:$0xf]
  %v71 = vld [vmem:[%s0 + $0xe4] sm:$0xf]
  %v72 = vld [vmem:[%s0 + $0xe8] sm:$0xf]
  %v73 = vld [vmem:[%s0 + $0xec] sm:$0xf]
  %v74 = vld [vmem:[%s0 + $0xf0] sm:$0xf]
  %v75 = vld [vmem:[%s0 + $0xf4] sm:$0xf]
  %v76 = vld [vmem:[%s0 + $0xf8] sm:$0xf]
  %v77 = vld [vmem:[%s0 + $0xfc] sm:$0xf]
  %v78 = vunpack.c.l.bf16 %v14
  %v79 = vunpack.c.l.bf16 %v15
  %v80 = vunpack.c.l.bf16 %v16
  %v81 = vunpack.c.l.bf16 %v17
  %v82 = vunpack.c.l.bf16 %v18
  %v83 = vunpack.c.l.bf16 %v19
  %v84 = vunpack.c.l.bf16 %v20
  %v85 = vunpack.c.l.bf16 %v21
  %v86 = vunpack.c.l.bf16 %v22
  %v87 = vunpack.c.l.bf16 %v23
  %v88 = vunpack.c.l.bf16 %v24
  %v89 = vunpack.c.l.bf16 %v25
  %v90 = vunpack.c.l.bf16 %v26
  %v91 = vunpack.c.l.bf16 %v27
  %v92 = vunpack.c.l.bf16 %v28
  %v93 = vunpack.c.l.bf16 %v29
  %v94 = vunpack.c.l.bf16 %v30
  %v95 = vunpack.c.l.bf16 %v31
  %v96 = vunpack.c.l.bf16 %v32
  %v97 = vunpack.c.l.bf16 %v33
  %v98 = vunpack.c.l.bf16 %v34
  %v99 = vunpack.c.l.bf16 %v35
  %v100 = vunpack.c.l.bf16 %v36
  %v101 = vunpack.c.l.bf16 %v37
  %v102 = vunpack.c.l.bf16 %v38
  %v103 = vunpack.c.l.bf16 %v39
  %v104 = vunpack.c.l.bf16 %v40
  %v105 = vunpack.c.l.bf16 %v41
  %v106 = vunpack.c.l.bf16 %v42
  %v107 = vunpack.c.l.bf16 %v43
  %v108 = vunpack.c.l.bf16 %v44
  %v109 = vunpack.c.l.bf16 %v45
  %v110 = vunpack.c.l.bf16 %v46
  %v111 = vunpack.c.l.bf16 %v47
  %v112 = vunpack.c.l.bf16 %v48
  %v113 = vunpack.c.l.bf16 %v49
  %v114 = vunpack.c.l.bf16 %v50
  %v115 = vunpack.c.l.bf16 %v51
  %v116 = vunpack.c.l.bf16 %v52
  %v117 = vunpack.c.l.bf16 %v53
  %v118 = vunpack.c.l.bf16 %v54
  %v119 = vunpack.c.l.bf16 %v55
  %v120 = vunpack.c.l.bf16 %v56
  %v121 = vunpack.c.l.bf16 %v57
  %v122 = vunpack.c.l.bf16 %v58
  %v123 = vunpack.c.l.bf16 %v59
  %v124 = vunpack.c.l.bf16 %v60
  %v125 = vunpack.c.l.bf16 %v61
  %v126 = vunpack.c.l.bf16 %v62
  %v127 = vunpack.c.l.bf16 %v63
  %v128 = vunpack.c.l.bf16 %v64
  %v129 = vunpack.c.l.bf16 %v65
  %v130 = vunpack.c.l.bf16 %v66
  %v131 = vunpack.c.l.bf16 %v67
  %v132 = vunpack.c.l.bf16 %v68
  %v133 = vunpack.c.l.bf16 %v69
  %v134 = vunpack.c.l.bf16 %v70
  %v135 = vunpack.c.l.bf16 %v71
  %v136 = vunpack.c.l.bf16 %v72
  %v137 = vunpack.c.l.bf16 %v73
  %v138 = vunpack.c.l.bf16 %v74
  %v139 = vunpack.c.l.bf16 %v75
  %v140 = vunpack.c.l.bf16 %v76
  %v141 = vunpack.c.l.bf16 %v77
  %v142 = vld [vmem:[%s1] sm:$0x1]
  %v144 = vperm.slane %v142, 0
  %v146 = vmul.f32 %v78, %v144
  %v147 = vmul.f32 %v79, %v144
  %v148 = vmul.f32 %v80, %v144
  %v149 = vmul.f32 %v81, %v144
  %v150 = vmul.f32 %v82, %v144
  %v151 = vmul.f32 %v83, %v144
  %v152 = vmul.f32 %v84, %v144
  %v153 = vmul.f32 %v85, %v144
  %v154 = vmul.f32 %v86, %v144
  %v155 = vmul.f32 %v87, %v144
  %v156 = vmul.f32 %v88, %v144
  %v157 = vmul.f32 %v89, %v144
  %v158 = vmul.f32 %v90, %v144
  %v159 = vmul.f32 %v91, %v144
  %v160 = vmul.f32 %v92, %v144
  %v161 = vmul.f32 %v93, %v144
  %v162 = vmul.f32 %v94, %v144
  %v163 = vmul.f32 %v95, %v144
  %v164 = vmul.f32 %v96, %v144
  %v165 = vmul.f32 %v97, %v144
  %v166 = vmul.f32 %v98, %v144
  %v167 = vmul.f32 %v99, %v144
  %v168 = vmul.f32 %v100, %v144
  %v169 = vmul.f32 %v101, %v144
  %v170 = vmul.f32 %v102, %v144
  %v171 = vmul.f32 %v103, %v144
  %v172 = vmul.f32 %v104, %v144
  %v173 = vmul.f32 %v105, %v144
  %v174 = vmul.f32 %v106, %v144
  %v175 = vmul.f32 %v107, %v144
  %v176 = vmul.f32 %v108, %v144
  %v177 = vmul.f32 %v109, %v144
  %v178 = vmul.f32 %v110, %v144
  %v179 = vmul.f32 %v111, %v144
  %v180 = vmul.f32 %v112, %v144
  %v181 = vmul.f32 %v113, %v144
  %v182 = vmul.f32 %v114, %v144
  %v183 = vmul.f32 %v115, %v144
  %v184 = vmul.f32 %v116, %v144
  %v185 = vmul.f32 %v117, %v144
  %v186 = vmul.f32 %v118, %v144
  %v187 = vmul.f32 %v119, %v144
  %v188 = vmul.f32 %v120, %v144
  %v189 = vmul.f32 %v121, %v144
  %v190 = vmul.f32 %v122, %v144
  %v191 = vmul.f32 %v123, %v144
  %v192 = vmul.f32 %v124, %v144
  %v193 = vmul.f32 %v125, %v144
  %v194 = vmul.f32 %v126, %v144
  %v195 = vmul.f32 %v127, %v144
  %v196 = vmul.f32 %v128, %v144
  %v197 = vmul.f32 %v129, %v144
  %v198 = vmul.f32 %v130, %v144
  %v199 = vmul.f32 %v131, %v144
  %v200 = vmul.f32 %v132, %v144
  %v201 = vmul.f32 %v133, %v144
  %v202 = vmul.f32 %v134, %v144
  %v203 = vmul.f32 %v135, %v144
  %v204 = vmul.f32 %v136, %v144
  %v205 = vmul.f32 %v137, %v144
  %v206 = vmul.f32 %v138, %v144
  %v207 = vmul.f32 %v139, %v144
  %v208 = vmul.f32 %v140, %v144
  %v209 = vmul.f32 %v141, %v144
  %v210 = vld [vmem:[%s2] sm:$0x1]
  %v212 = vperm.slane %v210, 0
  %v214 = vadd.f32 %v146, %v212
  %v215 = vadd.f32 %v147, %v212
  %v216 = vadd.f32 %v148, %v212
  %v217 = vadd.f32 %v149, %v212
  %v218 = vadd.f32 %v150, %v212
  %v219 = vadd.f32 %v151, %v212
  %v220 = vadd.f32 %v152, %v212
  %v221 = vadd.f32 %v153, %v212
  %v222 = vadd.f32 %v154, %v212
  %v223 = vadd.f32 %v155, %v212
  %v224 = vadd.f32 %v156, %v212
  %v225 = vadd.f32 %v157, %v212
  %v226 = vadd.f32 %v158, %v212
  %v227 = vadd.f32 %v159, %v212
  %v228 = vadd.f32 %v160, %v212
  %v229 = vadd.f32 %v161, %v212
  %v230 = vadd.f32 %v162, %v212
  %v231 = vadd.f32 %v163, %v212
  %v232 = vadd.f32 %v164, %v212
  %v233 = vadd.f32 %v165, %v212
  %v234 = vadd.f32 %v166, %v212
  %v235 = vadd.f32 %v167, %v212
  %v236 = vadd.f32 %v168, %v212
  %v237 = vadd.f32 %v169, %v212
  %v238 = vadd.f32 %v170, %v212
  %v239 = vadd.f32 %v171, %v212
  %v240 = vadd.f32 %v172, %v212
  %v241 = vadd.f32 %v173, %v212
  %v242 = vadd.f32 %v174, %v212
  %v243 = vadd.f32 %v175, %v212
  %v244 = vadd.f32 %v176, %v212
  %v245 = vadd.f32 %v177, %v212
  %v246 = vadd.f32 %v178, %v212
  %v247 = vadd.f32 %v179, %v212
  %v248 = vadd.f32 %v180, %v212
  %v249 = vadd.f32 %v181, %v212
  %v250 = vadd.f32 %v182, %v212
  %v251 = vadd.f32 %v183, %v212
  %v252 = vadd.f32 %v184, %v212
  %v253 = vadd.f32 %v185, %v212
  %v254 = vadd.f32 %v186, %v212
  %v255 = vadd.f32 %v187, %v212
  %v256 = vadd.f32 %v188, %v212
  %v257 = vadd.f32 %v189, %v212
  %v258 = vadd.f32 %v190, %v212
  %v259 = vadd.f32 %v191, %v212
  %v260 = vadd.f32 %v192, %v212
  %v261 = vadd.f32 %v193, %v212
  %v262 = vadd.f32 %v194, %v212
  %v263 = vadd.f32 %v195, %v212
  %v264 = vadd.f32 %v196, %v212
  %v265 = vadd.f32 %v197, %v212
  %v266 = vadd.f32 %v198, %v212
  %v267 = vadd.f32 %v199, %v212
  %v268 = vadd.f32 %v200, %v212
  %v269 = vadd.f32 %v201, %v212
  %v270 = vadd.f32 %v202, %v212
  %v271 = vadd.f32 %v203, %v212
  %v272 = vadd.f32 %v204, %v212
  %v273 = vadd.f32 %v205, %v212
  %v274 = vadd.f32 %v206, %v212
  %v275 = vadd.f32 %v207, %v212
  %v276 = vadd.f32 %v208, %v212
  %v277 = vadd.f32 %v209, %v212
  %v278 = vmin.f32 %v214, 20.0
  %v279 = vmin.f32 %v215, 20.0
  %v280 = vmin.f32 %v216, 20.0
  %v281 = vmin.f32 %v217, 20.0
  %v282 = vmin.f32 %v218, 20.0
  %v283 = vmin.f32 %v219, 20.0
  %v284 = vmin.f32 %v220, 20.0
  %v285 = vmin.f32 %v221, 20.0
  %v286 = vmin.f32 %v222, 20.0
  %v287 = vmin.f32 %v223, 20.0
  %v288 = vmin.f32 %v224, 20.0
  %v289 = vmin.f32 %v225, 20.0
  %v290 = vmin.f32 %v226, 20.0
  %v291 = vmin.f32 %v227, 20.0
  %v292 = vmin.f32 %v228, 20.0
  %v293 = vmin.f32 %v229, 20.0
  %v294 = vmin.f32 %v230, 20.0
  %v295 = vmin.f32 %v231, 20.0
  %v296 = vmin.f32 %v232, 20.0
  %v297 = vmin.f32 %v233, 20.0
  %v298 = vmin.f32 %v234, 20.0
  %v299 = vmin.f32 %v235, 20.0
  %v300 = vmin.f32 %v236, 20.0
  %v301 = vmin.f32 %v237, 20.0
  %v302 = vmin.f32 %v238, 20.0
  %v303 = vmin.f32 %v239, 20.0
  %v304 = vmin.f32 %v240, 20.0
  %v305 = vmin.f32 %v241, 20.0
  %v306 = vmin.f32 %v242, 20.0
  %v307 = vmin.f32 %v243, 20.0
  %v308 = vmin.f32 %v244, 20.0
  %v309 = vmin.f32 %v245, 20.0
  %v310 = vmin.f32 %v246, 20.0
  %v311 = vmin.f32 %v247, 20.0
  %v312 = vmin.f32 %v248, 20.0
  %v313 = vmin.f32 %v249, 20.0
  %v314 = vmin.f32 %v250, 20.0
  %v315 = vmin.f32 %v251, 20.0
  %v316 = vmin.f32 %v252, 20.0
  %v317 = vmin.f32 %v253, 20.0
  %v318 = vmin.f32 %v254, 20.0
  %v319 = vmin.f32 %v255, 20.0
  %v320 = vmin.f32 %v256, 20.0
  %v321 = vmin.f32 %v257, 20.0
  %v322 = vmin.f32 %v258, 20.0
  %v323 = vmin.f32 %v259, 20.0
  %v324 = vmin.f32 %v260, 20.0
  %v325 = vmin.f32 %v261, 20.0
  %v326 = vmin.f32 %v262, 20.0
  %v327 = vmin.f32 %v263, 20.0
  %v328 = vmin.f32 %v264, 20.0
  %v329 = vmin.f32 %v265, 20.0
  %v330 = vmin.f32 %v266, 20.0
  %v331 = vmin.f32 %v267, 20.0
  %v332 = vmin.f32 %v268, 20.0
  %v333 = vmin.f32 %v269, 20.0
  %v334 = vmin.f32 %v270, 20.0
  %v335 = vmin.f32 %v271, 20.0
  %v336 = vmin.f32 %v272, 20.0
  %v337 = vmin.f32 %v273, 20.0
  %v338 = vmin.f32 %v274, 20.0
  %v339 = vmin.f32 %v275, 20.0
  %v340 = vmin.f32 %v276, 20.0
  %v341 = vmin.f32 %v277, 20.0
  %v342 = vmul.f32 %v278, 1.442695
  %v343 = vpow.pop %v342
  %v344 = vmul.f32 %v279, 1.442695
  %v345 = vpow.pop %v344
  %v346 = vmul.f32 %v280, 1.442695
  %v347 = vpow.pop %v346
  %v348 = vmul.f32 %v281, 1.442695
  %v349 = vpow.pop %v348
  %v350 = vmul.f32 %v282, 1.442695
  %v351 = vpow.pop %v350
  %v352 = vmul.f32 %v283, 1.442695
  %v353 = vpow.pop %v352
  %v354 = vmul.f32 %v284, 1.442695
  %v355 = vpow.pop %v354
  %v356 = vmul.f32 %v285, 1.442695
  %v357 = vpow.pop %v356
  %v358 = vmul.f32 %v286, 1.442695
  %v359 = vpow.pop %v358
  %v360 = vmul.f32 %v287, 1.442695
  %v361 = vpow.pop %v360
  %v362 = vmul.f32 %v288, 1.442695
  %v363 = vpow.pop %v362
  %v364 = vmul.f32 %v289, 1.442695
  %v365 = vpow.pop %v364
  %v366 = vmul.f32 %v290, 1.442695
  %v367 = vpow.pop %v366
  %v368 = vmul.f32 %v291, 1.442695
  %v369 = vpow.pop %v368
  %v370 = vmul.f32 %v292, 1.442695
  %v371 = vpow.pop %v370
  %v372 = vmul.f32 %v293, 1.442695
  %v373 = vpow.pop %v372
  %v374 = vmul.f32 %v294, 1.442695
  %v375 = vpow.pop %v374
  %v376 = vmul.f32 %v295, 1.442695
  %v377 = vpow.pop %v376
  %v378 = vmul.f32 %v296, 1.442695
  %v379 = vpow.pop %v378
  %v380 = vmul.f32 %v297, 1.442695
  %v381 = vpow.pop %v380
  %v382 = vmul.f32 %v298, 1.442695
  %v383 = vpow.pop %v382
  %v384 = vmul.f32 %v299, 1.442695
  %v385 = vpow.pop %v384
  %v386 = vmul.f32 %v300, 1.442695
  %v387 = vpow.pop %v386
  %v388 = vmul.f32 %v301, 1.442695
  %v389 = vpow.pop %v388
  %v390 = vmul.f32 %v302, 1.442695
  %v391 = vpow.pop %v390
  %v392 = vmul.f32 %v303, 1.442695
  %v393 = vpow.pop %v392
  %v394 = vmul.f32 %v304, 1.442695
  %v395 = vpow.pop %v394
  %v396 = vmul.f32 %v305, 1.442695
  %v397 = vpow.pop %v396
  %v398 = vmul.f32 %v306, 1.442695
  %v399 = vpow.pop %v398
  %v400 = vmul.f32 %v307, 1.442695
  %v401 = vpow.pop %v400
  %v402 = vmul.f32 %v308, 1.442695
  %v403 = vpow.pop %v402
  %v404 = vmul.f32 %v309, 1.442695
  %v405 = vpow.pop %v404
  %v406 = vmul.f32 %v310, 1.442695
  %v407 = vpow.pop %v406
  %v408 = vmul.f32 %v311, 1.442695
  %v409 = vpow.pop %v408
  %v410 = vmul.f32 %v312, 1.442695
  %v411 = vpow.pop %v410
  %v412 = vmul.f32 %v313, 1.442695
  %v413 = vpow.pop %v412
  %v414 = vmul.f32 %v314, 1.442695
  %v415 = vpow.pop %v414
  %v416 = vmul.f32 %v315, 1.442695
  %v417 = vpow.pop %v416
  %v418 = vmul.f32 %v316, 1.442695
  %v419 = vpow.pop %v418
  %v420 = vmul.f32 %v317, 1.442695
  %v421 = vpow.pop %v420
  %v422 = vmul.f32 %v318, 1.442695
  %v423 = vpow.pop %v422
  %v424 = vmul.f32 %v319, 1.442695
  %v425 = vpow.pop %v424
  %v426 = vmul.f32 %v320, 1.442695
  %v427 = vpow.pop %v426
  %v428 = vmul.f32 %v321, 1.442695
  %v429 = vpow.pop %v428
  %v430 = vmul.f32 %v322, 1.442695
  %v431 = vpow.pop %v430
  %v432 = vmul.f32 %v323, 1.442695
  %v433 = vpow.pop %v432
  %v434 = vmul.f32 %v324, 1.442695
  %v435 = vpow.pop %v434
  %v436 = vmul.f32 %v325, 1.442695
  %v437 = vpow.pop %v436
  %v438 = vmul.f32 %v326, 1.442695
  %v439 = vpow.pop %v438
  %v440 = vmul.f32 %v327, 1.442695
  %v441 = vpow.pop %v440
  %v442 = vmul.f32 %v328, 1.442695
  %v443 = vpow.pop %v442
  %v444 = vmul.f32 %v329, 1.442695
  %v445 = vpow.pop %v444
  %v446 = vmul.f32 %v330, 1.442695
  %v447 = vpow.pop %v446
  %v448 = vmul.f32 %v331, 1.442695
  %v449 = vpow.pop %v448
  %v450 = vmul.f32 %v332, 1.442695
  %v451 = vpow.pop %v450
  %v452 = vmul.f32 %v333, 1.442695
  %v453 = vpow.pop %v452
  %v454 = vmul.f32 %v334, 1.442695
  %v455 = vpow.pop %v454
  %v456 = vmul.f32 %v335, 1.442695
  %v457 = vpow.pop %v456
  %v458 = vmul.f32 %v336, 1.442695
  %v459 = vpow.pop %v458
  %v460 = vmul.f32 %v337, 1.442695
  %v461 = vpow.pop %v460
  %v462 = vmul.f32 %v338, 1.442695
  %v463 = vpow.pop %v462
  %v464 = vmul.f32 %v339, 1.442695
  %v465 = vpow.pop %v464
  %v466 = vmul.f32 %v340, 1.442695
  %v467 = vpow.pop %v466
  %v468 = vmul.f32 %v341, 1.442695
  %v469 = vpow.pop %v468
  %v470 = vadd.f32 %v343, 1.0
  %v471 = vadd.f32 %v345, 1.0
  %v472 = vadd.f32 %v347, 1.0
  %v473 = vadd.f32 %v349, 1.0
  %v474 = vadd.f32 %v351, 1.0
  %v475 = vadd.f32 %v353, 1.0
  %v476 = vadd.f32 %v355, 1.0
  %v477 = vadd.f32 %v357, 1.0
  %v478 = vadd.f32 %v359, 1.0
  %v479 = vadd.f32 %v361, 1.0
  %v480 = vadd.f32 %v363, 1.0
  %v481 = vadd.f32 %v365, 1.0
  %v482 = vadd.f32 %v367, 1.0
  %v483 = vadd.f32 %v369, 1.0
  %v484 = vadd.f32 %v371, 1.0
  %v485 = vadd.f32 %v373, 1.0
  %v486 = vadd.f32 %v375, 1.0
  %v487 = vadd.f32 %v377, 1.0
  %v488 = vadd.f32 %v379, 1.0
  %v489 = vadd.f32 %v381, 1.0
  %v490 = vadd.f32 %v383, 1.0
  %v491 = vadd.f32 %v385, 1.0
  %v492 = vadd.f32 %v387, 1.0
  %v493 = vadd.f32 %v389, 1.0
  %v494 = vadd.f32 %v391, 1.0
  %v495 = vadd.f32 %v393, 1.0
  %v496 = vadd.f32 %v395, 1.0
  %v497 = vadd.f32 %v397, 1.0
  %v498 = vadd.f32 %v399, 1.0
  %v499 = vadd.f32 %v401, 1.0
  %v500 = vadd.f32 %v403, 1.0
  %v501 = vadd.f32 %v405, 1.0
  %v502 = vadd.f32 %v407, 1.0
  %v503 = vadd.f32 %v409, 1.0
  %v504 = vadd.f32 %v411, 1.0
  %v505 = vadd.f32 %v413, 1.0
  %v506 = vadd.f32 %v415, 1.0
  %v507 = vadd.f32 %v417, 1.0
  %v508 = vadd.f32 %v419, 1.0
  %v509 = vadd.f32 %v421, 1.0
  %v510 = vadd.f32 %v423, 1.0
  %v511 = vadd.f32 %v425, 1.0
  %v512 = vadd.f32 %v427, 1.0
  %v513 = vadd.f32 %v429, 1.0
  %v514 = vadd.f32 %v431, 1.0
  %v515 = vadd.f32 %v433, 1.0
  %v516 = vadd.f32 %v435, 1.0
  %v517 = vadd.f32 %v437, 1.0
  %v518 = vadd.f32 %v439, 1.0
  %v519 = vadd.f32 %v441, 1.0
  %v520 = vadd.f32 %v443, 1.0
  %v521 = vadd.f32 %v445, 1.0
  %v522 = vadd.f32 %v447, 1.0
  %v523 = vadd.f32 %v449, 1.0
  %v524 = vadd.f32 %v451, 1.0
  %v525 = vadd.f32 %v453, 1.0
  %v526 = vadd.f32 %v455, 1.0
  %v527 = vadd.f32 %v457, 1.0
  %v528 = vadd.f32 %v459, 1.0
  %v529 = vadd.f32 %v461, 1.0
  %v530 = vadd.f32 %v463, 1.0
  %v531 = vadd.f32 %v465, 1.0
  %v532 = vadd.f32 %v467, 1.0
  %v533 = vadd.f32 %v469, 1.0
  %v534 = vmul.f32 %v470, %v470
  %v535 = vmul.f32 %v471, %v471
  %v536 = vmul.f32 %v472, %v472
  %v537 = vmul.f32 %v473, %v473
  %v538 = vmul.f32 %v474, %v474
  %v539 = vmul.f32 %v475, %v475
  %v540 = vmul.f32 %v476, %v476
  %v541 = vmul.f32 %v477, %v477
  %v542 = vmul.f32 %v478, %v478
  %v543 = vmul.f32 %v479, %v479
  %v544 = vmul.f32 %v480, %v480
  %v545 = vmul.f32 %v481, %v481
  %v546 = vmul.f32 %v482, %v482
  %v547 = vmul.f32 %v483, %v483
  %v548 = vmul.f32 %v484, %v484
  %v549 = vmul.f32 %v485, %v485
  %v550 = vmul.f32 %v486, %v486
  %v551 = vmul.f32 %v487, %v487
  %v552 = vmul.f32 %v488, %v488
  %v553 = vmul.f32 %v489, %v489
  %v554 = vmul.f32 %v490, %v490
  %v555 = vmul.f32 %v491, %v491
  %v556 = vmul.f32 %v492, %v492
  %v557 = vmul.f32 %v493, %v493
  %v558 = vmul.f32 %v494, %v494
  %v559 = vmul.f32 %v495, %v495
  %v560 = vmul.f32 %v496, %v496
  %v561 = vmul.f32 %v497, %v497
  %v562 = vmul.f32 %v498, %v498
  %v563 = vmul.f32 %v499, %v499
  %v564 = vmul.f32 %v500, %v500
  %v565 = vmul.f32 %v501, %v501
  %v566 = vmul.f32 %v502, %v502
  %v567 = vmul.f32 %v503, %v503
  %v568 = vmul.f32 %v504, %v504
  %v569 = vmul.f32 %v505, %v505
  %v570 = vmul.f32 %v506, %v506
  %v571 = vmul.f32 %v507, %v507
  %v572 = vmul.f32 %v508, %v508
  %v573 = vmul.f32 %v509, %v509
  %v574 = vmul.f32 %v510, %v510
  %v575 = vmul.f32 %v511, %v511
  %v576 = vmul.f32 %v512, %v512
  %v577 = vmul.f32 %v513, %v513
  %v578 = vmul.f32 %v514, %v514
  %v579 = vmul.f32 %v515, %v515
  %v580 = vmul.f32 %v516, %v516
  %v581 = vmul.f32 %v517, %v517
  %v582 = vmul.f32 %v518, %v518
  %v583 = vmul.f32 %v519, %v519
  %v584 = vmul.f32 %v520, %v520
  %v585 = vmul.f32 %v521, %v521
  %v586 = vmul.f32 %v522, %v522
  %v587 = vmul.f32 %v523, %v523
  %v588 = vmul.f32 %v524, %v524
  %v589 = vmul.f32 %v525, %v525
  %v590 = vmul.f32 %v526, %v526
  %v591 = vmul.f32 %v527, %v527
  %v592 = vmul.f32 %v528, %v528
  %v593 = vmul.f32 %v529, %v529
  %v594 = vmul.f32 %v530, %v530
  %v595 = vmul.f32 %v531, %v531
  %v596 = vmul.f32 %v532, %v532
  %v597 = vmul.f32 %v533, %v533
  %v598 = vsub.f32 %v534, 1.0
  %v599 = vsub.f32 %v535, 1.0
  %v600 = vsub.f32 %v536, 1.0
  %v601 = vsub.f32 %v537, 1.0
  %v602 = vsub.f32 %v538, 1.0
  %v603 = vsub.f32 %v539, 1.0
  %v604 = vsub.f32 %v540, 1.0
  %v605 = vsub.f32 %v541, 1.0
  %v606 = vsub.f32 %v542, 1.0
  %v607 = vsub.f32 %v543, 1.0
  %v608 = vsub.f32 %v544, 1.0
  %v609 = vsub.f32 %v545, 1.0
  %v610 = vsub.f32 %v546, 1.0
  %v611 = vsub.f32 %v547, 1.0
  %v612 = vsub.f32 %v548, 1.0
  %v613 = vsub.f32 %v549, 1.0
  %v614 = vsub.f32 %v550, 1.0
  %v615 = vsub.f32 %v551, 1.0
  %v616 = vsub.f32 %v552, 1.0
  %v617 = vsub.f32 %v553, 1.0
  %v618 = vsub.f32 %v554, 1.0
  %v619 = vsub.f32 %v555, 1.0
  %v620 = vsub.f32 %v556, 1.0
  %v621 = vsub.f32 %v557, 1.0
  %v622 = vsub.f32 %v558, 1.0
  %v623 = vsub.f32 %v559, 1.0
  %v624 = vsub.f32 %v560, 1.0
  %v625 = vsub.f32 %v561, 1.0
  %v626 = vsub.f32 %v562, 1.0
  %v627 = vsub.f32 %v563, 1.0
  %v628 = vsub.f32 %v564, 1.0
  %v629 = vsub.f32 %v565, 1.0
  %v630 = vsub.f32 %v566, 1.0
  %v631 = vsub.f32 %v567, 1.0
  %v632 = vsub.f32 %v568, 1.0
  %v633 = vsub.f32 %v569, 1.0
  %v634 = vsub.f32 %v570, 1.0
  %v635 = vsub.f32 %v571, 1.0
  %v636 = vsub.f32 %v572, 1.0
  %v637 = vsub.f32 %v573, 1.0
  %v638 = vsub.f32 %v574, 1.0
  %v639 = vsub.f32 %v575, 1.0
  %v640 = vsub.f32 %v576, 1.0
  %v641 = vsub.f32 %v577, 1.0
  %v642 = vsub.f32 %v578, 1.0
  %v643 = vsub.f32 %v579, 1.0
  %v644 = vsub.f32 %v580, 1.0
  %v645 = vsub.f32 %v581, 1.0
  %v646 = vsub.f32 %v582, 1.0
  %v647 = vsub.f32 %v583, 1.0
  %v648 = vsub.f32 %v584, 1.0
  %v649 = vsub.f32 %v585, 1.0
  %v650 = vsub.f32 %v586, 1.0
  %v651 = vsub.f32 %v587, 1.0
  %v652 = vsub.f32 %v588, 1.0
  %v653 = vsub.f32 %v589, 1.0
  %v654 = vsub.f32 %v590, 1.0
  %v655 = vsub.f32 %v591, 1.0
  %v656 = vsub.f32 %v592, 1.0
  %v657 = vsub.f32 %v593, 1.0
  %v658 = vsub.f32 %v594, 1.0
  %v659 = vsub.f32 %v595, 1.0
  %v660 = vsub.f32 %v596, 1.0
  %v661 = vsub.f32 %v597, 1.0
  %v662 = vmul.f32 %v214, %v598
  %v663 = vmul.f32 %v215, %v599
  %v664 = vmul.f32 %v216, %v600
  %v665 = vmul.f32 %v217, %v601
  %v666 = vmul.f32 %v218, %v602
  %v667 = vmul.f32 %v219, %v603
  %v668 = vmul.f32 %v220, %v604
  %v669 = vmul.f32 %v221, %v605
  %v670 = vmul.f32 %v222, %v606
  %v671 = vmul.f32 %v223, %v607
  %v672 = vmul.f32 %v224, %v608
  %v673 = vmul.f32 %v225, %v609
  %v674 = vmul.f32 %v226, %v610
  %v675 = vmul.f32 %v227, %v611
  %v676 = vmul.f32 %v228, %v612
  %v677 = vmul.f32 %v229, %v613
  %v678 = vmul.f32 %v230, %v614
  %v679 = vmul.f32 %v231, %v615
  %v680 = vmul.f32 %v232, %v616
  %v681 = vmul.f32 %v233, %v617
  %v682 = vmul.f32 %v234, %v618
  %v683 = vmul.f32 %v235, %v619
  %v684 = vmul.f32 %v236, %v620
  %v685 = vmul.f32 %v237, %v621
  %v686 = vmul.f32 %v238, %v622
  %v687 = vmul.f32 %v239, %v623
  %v688 = vmul.f32 %v240, %v624
  %v689 = vmul.f32 %v241, %v625
  %v690 = vmul.f32 %v242, %v626
  %v691 = vmul.f32 %v243, %v627
  %v692 = vmul.f32 %v244, %v628
  %v693 = vmul.f32 %v245, %v629
  %v694 = vmul.f32 %v246, %v630
  %v695 = vmul.f32 %v247, %v631
  %v696 = vmul.f32 %v248, %v632
  %v697 = vmul.f32 %v249, %v633
  %v698 = vmul.f32 %v250, %v634
  %v699 = vmul.f32 %v251, %v635
  %v700 = vmul.f32 %v252, %v636
  %v701 = vmul.f32 %v253, %v637
  %v702 = vmul.f32 %v254, %v638
  %v703 = vmul.f32 %v255, %v639
  %v704 = vmul.f32 %v256, %v640
  %v705 = vmul.f32 %v257, %v641
  %v706 = vmul.f32 %v258, %v642
  %v707 = vmul.f32 %v259, %v643
  %v708 = vmul.f32 %v260, %v644
  %v709 = vmul.f32 %v261, %v645
  %v710 = vmul.f32 %v262, %v646
  %v711 = vmul.f32 %v263, %v647
  %v712 = vmul.f32 %v264, %v648
  %v713 = vmul.f32 %v265, %v649
  %v714 = vmul.f32 %v266, %v650
  %v715 = vmul.f32 %v267, %v651
  %v716 = vmul.f32 %v268, %v652
  %v717 = vmul.f32 %v269, %v653
  %v718 = vmul.f32 %v270, %v654
  %v719 = vmul.f32 %v271, %v655
  %v720 = vmul.f32 %v272, %v656
  %v721 = vmul.f32 %v273, %v657
  %v722 = vmul.f32 %v274, %v658
  %v723 = vmul.f32 %v275, %v659
  %v724 = vmul.f32 %v276, %v660
  %v725 = vmul.f32 %v277, %v661
  %v726 = vadd.f32 %v534, 1.0
  %v727 = vadd.f32 %v535, 1.0
  %v728 = vadd.f32 %v536, 1.0
  %v729 = vadd.f32 %v537, 1.0
  %v730 = vadd.f32 %v538, 1.0
  %v731 = vadd.f32 %v539, 1.0
  %v732 = vadd.f32 %v540, 1.0
  %v733 = vadd.f32 %v541, 1.0
  %v734 = vadd.f32 %v542, 1.0
  %v735 = vadd.f32 %v543, 1.0
  %v736 = vadd.f32 %v544, 1.0
  %v737 = vadd.f32 %v545, 1.0
  %v738 = vadd.f32 %v546, 1.0
  %v739 = vadd.f32 %v547, 1.0
  %v740 = vadd.f32 %v548, 1.0
  %v741 = vadd.f32 %v549, 1.0
  %v742 = vadd.f32 %v550, 1.0
  %v743 = vadd.f32 %v551, 1.0
  %v744 = vadd.f32 %v552, 1.0
  %v745 = vadd.f32 %v553, 1.0
  %v746 = vadd.f32 %v554, 1.0
  %v747 = vadd.f32 %v555, 1.0
  %v748 = vadd.f32 %v556, 1.0
  %v749 = vadd.f32 %v557, 1.0
  %v750 = vadd.f32 %v558, 1.0
  %v751 = vadd.f32 %v559, 1.0
  %v752 = vadd.f32 %v560, 1.0
  %v753 = vadd.f32 %v561, 1.0
  %v754 = vadd.f32 %v562, 1.0
  %v755 = vadd.f32 %v563, 1.0
  %v756 = vadd.f32 %v564, 1.0
  %v757 = vadd.f32 %v565, 1.0
  %v758 = vadd.f32 %v566, 1.0
  %v759 = vadd.f32 %v567, 1.0
  %v760 = vadd.f32 %v568, 1.0
  %v761 = vadd.f32 %v569, 1.0
  %v762 = vadd.f32 %v570, 1.0
  %v763 = vadd.f32 %v571, 1.0
  %v764 = vadd.f32 %v572, 1.0
  %v765 = vadd.f32 %v573, 1.0
  %v766 = vadd.f32 %v574, 1.0
  %v767 = vadd.f32 %v575, 1.0
  %v768 = vadd.f32 %v576, 1.0
  %v769 = vadd.f32 %v577, 1.0
  %v770 = vadd.f32 %v578, 1.0
  %v771 = vadd.f32 %v579, 1.0
  %v772 = vadd.f32 %v580, 1.0
  %v773 = vadd.f32 %v581, 1.0
  %v774 = vadd.f32 %v582, 1.0
  %v775 = vadd.f32 %v583, 1.0
  %v776 = vadd.f32 %v584, 1.0
  %v777 = vadd.f32 %v585, 1.0
  %v778 = vadd.f32 %v586, 1.0
  %v779 = vadd.f32 %v587, 1.0
  %v780 = vadd.f32 %v588, 1.0
  %v781 = vadd.f32 %v589, 1.0
  %v782 = vadd.f32 %v590, 1.0
  %v783 = vadd.f32 %v591, 1.0
  %v784 = vadd.f32 %v592, 1.0
  %v785 = vadd.f32 %v593, 1.0
  %v786 = vadd.f32 %v594, 1.0
  %v787 = vadd.f32 %v595, 1.0
  %v788 = vadd.f32 %v596, 1.0
  %v789 = vadd.f32 %v597, 1.0
  %v790 = vrcp.pop %v726
  %v791 = vrcp.pop %v727
  %v792 = vrcp.pop %v728
  %v793 = vrcp.pop %v729
  %v794 = vrcp.pop %v730
  %v795 = vrcp.pop %v731
  %v796 = vrcp.pop %v732
  %v797 = vrcp.pop %v733
  %v798 = vrcp.pop %v734
  %v799 = vrcp.pop %v735
  %v800 = vrcp.pop %v736
  %v801 = vrcp.pop %v737
  %v802 = vrcp.pop %v738
  %v803 = vrcp.pop %v739
  %v804 = vrcp.pop %v740
  %v805 = vrcp.pop %v741
  %v806 = vrcp.pop %v742
  %v807 = vrcp.pop %v743
  %v808 = vrcp.pop %v744
  %v809 = vrcp.pop %v745
  %v810 = vrcp.pop %v746
  %v811 = vrcp.pop %v747
  %v812 = vrcp.pop %v748
  %v813 = vrcp.pop %v749
  %v814 = vrcp.pop %v750
  %v815 = vrcp.pop %v751
  %v816 = vrcp.pop %v752
  %v817 = vrcp.pop %v753
  %v818 = vrcp.pop %v754
  %v819 = vrcp.pop %v755
  %v820 = vrcp.pop %v756
  %v821 = vrcp.pop %v757
  %v822 = vrcp.pop %v758
  %v823 = vrcp.pop %v759
  %v824 = vrcp.pop %v760
  %v825 = vrcp.pop %v761
  %v826 = vrcp.pop %v762
  %v827 = vrcp.pop %v763
  %v828 = vrcp.pop %v764
  %v829 = vrcp.pop %v765
  %v830 = vrcp.pop %v766
  %v831 = vrcp.pop %v767
  %v832 = vrcp.pop %v768
  %v833 = vrcp.pop %v769
  %v834 = vrcp.pop %v770
  %v835 = vrcp.pop %v771
  %v836 = vrcp.pop %v772
  %v837 = vrcp.pop %v773
  %v838 = vrcp.pop %v774
  %v839 = vrcp.pop %v775
  %v840 = vrcp.pop %v776
  %v841 = vrcp.pop %v777
  %v842 = vrcp.pop %v778
  %v843 = vrcp.pop %v779
  %v844 = vrcp.pop %v780
  %v845 = vrcp.pop %v781
  %v846 = vrcp.pop %v782
  %v847 = vrcp.pop %v783
  %v848 = vrcp.pop %v784
  %v849 = vrcp.pop %v785
  %v850 = vrcp.pop %v786
  %v851 = vrcp.pop %v787
  %v852 = vrcp.pop %v788
  %v853 = vrcp.pop %v789
  %v854 = vmul.f32 %v662, %v790
  %v855 = vmul.f32 %v663, %v791
  %v856 = vmul.f32 %v664, %v792
  %v857 = vmul.f32 %v665, %v793
  %v858 = vmul.f32 %v666, %v794
  %v859 = vmul.f32 %v667, %v795
  %v860 = vmul.f32 %v668, %v796
  %v861 = vmul.f32 %v669, %v797
  %v862 = vmul.f32 %v670, %v798
  %v863 = vmul.f32 %v671, %v799
  %v864 = vmul.f32 %v672, %v800
  %v865 = vmul.f32 %v673, %v801
  %v866 = vmul.f32 %v674, %v802
  %v867 = vmul.f32 %v675, %v803
  %v868 = vmul.f32 %v676, %v804
  %v869 = vmul.f32 %v677, %v805
  %v870 = vmul.f32 %v678, %v806
  %v871 = vmul.f32 %v679, %v807
  %v872 = vmul.f32 %v680, %v808
  %v873 = vmul.f32 %v681, %v809
  %v874 = vmul.f32 %v682, %v810
  %v875 = vmul.f32 %v683, %v811
  %v876 = vmul.f32 %v684, %v812
  %v877 = vmul.f32 %v685, %v813
  %v878 = vmul.f32 %v686, %v814
  %v879 = vmul.f32 %v687, %v815
  %v880 = vmul.f32 %v688, %v816
  %v881 = vmul.f32 %v689, %v817
  %v882 = vmul.f32 %v690, %v818
  %v883 = vmul.f32 %v691, %v819
  %v884 = vmul.f32 %v692, %v820
  %v885 = vmul.f32 %v693, %v821
  %v886 = vmul.f32 %v694, %v822
  %v887 = vmul.f32 %v695, %v823
  %v888 = vmul.f32 %v696, %v824
  %v889 = vmul.f32 %v697, %v825
  %v890 = vmul.f32 %v698, %v826
  %v891 = vmul.f32 %v699, %v827
  %v892 = vmul.f32 %v700, %v828
  %v893 = vmul.f32 %v701, %v829
  %v894 = vmul.f32 %v702, %v830
  %v895 = vmul.f32 %v703, %v831
  %v896 = vmul.f32 %v704, %v832
  %v897 = vmul.f32 %v705, %v833
  %v898 = vmul.f32 %v706, %v834
  %v899 = vmul.f32 %v707, %v835
  %v900 = vmul.f32 %v708, %v836
  %v901 = vmul.f32 %v709, %v837
  %v902 = vmul.f32 %v710, %v838
  %v903 = vmul.f32 %v711, %v839
  %v904 = vmul.f32 %v712, %v840
  %v905 = vmul.f32 %v713, %v841
  %v906 = vmul.f32 %v714, %v842
  %v907 = vmul.f32 %v715, %v843
  %v908 = vmul.f32 %v716, %v844
  %v909 = vmul.f32 %v717, %v845
  %v910 = vmul.f32 %v718, %v846
  %v911 = vmul.f32 %v719, %v847
  %v912 = vmul.f32 %v720, %v848
  %v913 = vmul.f32 %v721, %v849
  %v914 = vmul.f32 %v722, %v850
  %v915 = vmul.f32 %v723, %v851
  %v916 = vmul.f32 %v724, %v852
  %v917 = vmul.f32 %v725, %v853
  %vm918 = vcmask 64512
  %919 = vst.msk [vmem:[%s3] sm:$0xff] %vm918, %v854
  %920 = vst.msk [vmem:[%s3 + $0x8] sm:$0xff] %vm918, %v855
  %921 = vst.msk [vmem:[%s3 + $0x10] sm:$0xff] %vm918, %v856
  %922 = vst.msk [vmem:[%s3 + $0x18] sm:$0xff] %vm918, %v857
  %923 = vst.msk [vmem:[%s3 + $0x20] sm:$0xff] %vm918, %v858
  %924 = vst.msk [vmem:[%s3 + $0x28] sm:$0xff] %vm918, %v859
  %925 = vst.msk [vmem:[%s3 + $0x30] sm:$0xff] %vm918, %v860
  %926 = vst.msk [vmem:[%s3 + $0x38] sm:$0xff] %vm918, %v861
  %927 = vst.msk [vmem:[%s3 + $0x40] sm:$0xff] %vm918, %v862
  %928 = vst.msk [vmem:[%s3 + $0x48] sm:$0xff] %vm918, %v863
  %929 = vst.msk [vmem:[%s3 + $0x50] sm:$0xff] %vm918, %v864
  %930 = vst.msk [vmem:[%s3 + $0x58] sm:$0xff] %vm918, %v865
  %931 = vst.msk [vmem:[%s3 + $0x60] sm:$0xff] %vm918, %v866
  %932 = vst.msk [vmem:[%s3 + $0x68] sm:$0xff] %vm918, %v867
  %933 = vst.msk [vmem:[%s3 + $0x70] sm:$0xff] %vm918, %v868
  %934 = vst.msk [vmem:[%s3 + $0x78] sm:$0xff] %vm918, %v869
  %935 = vst.msk [vmem:[%s3 + $0x80] sm:$0xff] %vm918, %v870
  %936 = vst.msk [vmem:[%s3 + $0x88] sm:$0xff] %vm918, %v871
  %937 = vst.msk [vmem:[%s3 + $0x90] sm:$0xff] %vm918, %v872
  %938 = vst.msk [vmem:[%s3 + $0x98] sm:$0xff] %vm918, %v873
  %939 = vst.msk [vmem:[%s3 + $0xa0] sm:$0xff] %vm918, %v874
  %940 = vst.msk [vmem:[%s3 + $0xa8] sm:$0xff] %vm918, %v875
  %941 = vst.msk [vmem:[%s3 + $0xb0] sm:$0xff] %vm918, %v876
  %942 = vst.msk [vmem:[%s3 + $0xb8] sm:$0xff] %vm918, %v877
  %943 = vst.msk [vmem:[%s3 + $0xc0] sm:$0xff] %vm918, %v878
  %944 = vst.msk [vmem:[%s3 + $0xc8] sm:$0xff] %vm918, %v879
  %945 = vst.msk [vmem:[%s3 + $0xd0] sm:$0xff] %vm918, %v880
  %946 = vst.msk [vmem:[%s3 + $0xd8] sm:$0xff] %vm918, %v881
  %947 = vst.msk [vmem:[%s3 + $0xe0] sm:$0xff] %vm918, %v882
  %948 = vst.msk [vmem:[%s3 + $0xe8] sm:$0xff] %vm918, %v883
  %949 = vst.msk [vmem:[%s3 + $0xf0] sm:$0xff] %vm918, %v884
  %950 = vst.msk [vmem:[%s3 + $0xf8] sm:$0xff] %vm918, %v885
  %951 = vst.msk [vmem:[%s3 + $0x100] sm:$0xff] %vm918, %v886
  %952 = vst.msk [vmem:[%s3 + $0x108] sm:$0xff] %vm918, %v887
  %953 = vst.msk [vmem:[%s3 + $0x110] sm:$0xff] %vm918, %v888
  %954 = vst.msk [vmem:[%s3 + $0x118] sm:$0xff] %vm918, %v889
  %955 = vst.msk [vmem:[%s3 + $0x120] sm:$0xff] %vm918, %v890
  %956 = vst.msk [vmem:[%s3 + $0x128] sm:$0xff] %vm918, %v891
  %957 = vst.msk [vmem:[%s3 + $0x130] sm:$0xff] %vm918, %v892
  %958 = vst.msk [vmem:[%s3 + $0x138] sm:$0xff] %vm918, %v893
  %959 = vst.msk [vmem:[%s3 + $0x140] sm:$0xff] %vm918, %v894
  %960 = vst.msk [vmem:[%s3 + $0x148] sm:$0xff] %vm918, %v895
  %961 = vst.msk [vmem:[%s3 + $0x150] sm:$0xff] %vm918, %v896
  %962 = vst.msk [vmem:[%s3 + $0x158] sm:$0xff] %vm918, %v897
  %963 = vst.msk [vmem:[%s3 + $0x160] sm:$0xff] %vm918, %v898
  %964 = vst.msk [vmem:[%s3 + $0x168] sm:$0xff] %vm918, %v899
  %965 = vst.msk [vmem:[%s3 + $0x170] sm:$0xff] %vm918, %v900
  %966 = vst.msk [vmem:[%s3 + $0x178] sm:$0xff] %vm918, %v901
  %967 = vst.msk [vmem:[%s3 + $0x180] sm:$0xff] %vm918, %v902
  %968 = vst.msk [vmem:[%s3 + $0x188] sm:$0xff] %vm918, %v903
  %969 = vst.msk [vmem:[%s3 + $0x190] sm:$0xff] %vm918, %v904
  %970 = vst.msk [vmem:[%s3 + $0x198] sm:$0xff] %vm918, %v905
  %971 = vst.msk [vmem:[%s3 + $0x1a0] sm:$0xff] %vm918, %v906
  %972 = vst.msk [vmem:[%s3 + $0x1a8] sm:$0xff] %vm918, %v907
  %973 = vst.msk [vmem:[%s3 + $0x1b0] sm:$0xff] %vm918, %v908
  %974 = vst.msk [vmem:[%s3 + $0x1b8] sm:$0xff] %vm918, %v909
  %975 = vst.msk [vmem:[%s3 + $0x1c0] sm:$0xff] %vm918, %v910
  %976 = vst.msk [vmem:[%s3 + $0x1c8] sm:$0xff] %vm918, %v911
  %977 = vst.msk [vmem:[%s3 + $0x1d0] sm:$0xff] %vm918, %v912
  %978 = vst.msk [vmem:[%s3 + $0x1d8] sm:$0xff] %vm918, %v913
  %979 = vst.msk [vmem:[%s3 + $0x1e0] sm:$0xff] %vm918, %v914
  %980 = vst.msk [vmem:[%s3 + $0x1e8] sm:$0xff] %vm918, %v915
  %981 = vst.msk [vmem:[%s3 + $0x1f0] sm:$0xff] %vm918, %v916
  %982 = vst.msk [vmem:[%s3 + $0x1f8] sm:$0xff] %vm918, %v917
  // Predicated region
  $region14: #{conv_mixer_forward.5} parent=0 // pred_check
    _
  $region15: #{conv_mixer_forward.5} parent=0 // pred_check_branch
    %984 = sbr.rel (0) target = $region17
  $region16: #{conv_mixer_forward.5} parent=0 // pred_region
    _
  $region17: #{conv_mixer_forward.5} parent=0 // pred_fallthru
    _
  // Predicated region
  $region18: #{conv_mixer_forward.5} parent=0 // pred_check
    _
  $region19: #{conv_mixer_forward.5} parent=0 // pred_check_branch
    %986 = sbr.rel (0) target = $region21
  $region20: #{conv_mixer_forward.5} parent=0 // pred_region
    _
  $region21: #{conv_mixer_forward.5} parent=0 // pred_fallthru
    _

// kernel: conv_mixer_forward.4
$region0: #{conv_mixer_forward.4}
  #allocation0 [shape = 'u32[]', space=smem, size = 0x4, offset = 0x4, fixed_abs, tag = 'smem constant byte address 0x4 - core index']
  #allocation1 [shape = 'u32[72,128]{1,0:T(1,128)}', space=vmem, size = 0x9000, scoped, tag = 'internal scratch']
  %s0 = inlined_call_operand.vmem [shape: bf16[512,8], index: 0, kind: input, shape index: {}]
  %s1 = inlined_call_operand.vmem [shape: bf16[512,8], index: 1, kind: input, shape index: {}]
  %s2 = inlined_call_operand.vmem [shape: f32[1,8], index: 2, kind: input, shape index: {}]
  %s3 = inlined_call_operand.vmem [shape: f32[1,8], index: 3, kind: input, shape index: {}]
  %s4 = inlined_call_operand.vmem [shape: bf16[8,8], index: 4, kind: input, shape index: {}]
  %s5 = inlined_call_operand.vmem [shape: bf16[512,8], index: 5, kind: output, shape index: {0}]
  %s6 = inlined_call_operand.vmem [shape: f32[1,2,8], index: 6, kind: output, shape index: {1}]
  %7 = xla_tuple %s5, %s6
  %s8 = sld [smem:[#allocation0]]
  $region38: #{conv_mixer_forward.4} parent=0
    _
  %s10 = ssub.s32 1, %s8
  %s11 = scalar_select 0, %s10, %s8
  // Predicated region
  $region2: #{conv_mixer_forward.4} parent=0 // pred_check
    _
  $region3: #{conv_mixer_forward.4} parent=0 // pred_check_branch
    %13 = sbr.rel (0) target = $region5
  $region4: #{conv_mixer_forward.4} parent=0 // pred_region
    _
  $region5: #{conv_mixer_forward.4} parent=0 // pred_fallthru
    _
  // Predicated region
  $region6: #{conv_mixer_forward.4} parent=0 // pred_check
    _
  $region7: #{conv_mixer_forward.4} parent=0 // pred_check_branch
    %15 = sbr.rel (0) target = $region9
  $region8: #{conv_mixer_forward.4} parent=0 // pred_region
    _
  $region9: #{conv_mixer_forward.4} parent=0 // pred_fallthru
    _
  // Predicated region
  $region10: #{conv_mixer_forward.4} parent=0 // pred_check
    _
  $region11: #{conv_mixer_forward.4} parent=0 // pred_check_branch
    %17 = sbr.rel (0) target = $region13
  $region12: #{conv_mixer_forward.4} parent=0 // pred_region
    _
  $region13: #{conv_mixer_forward.4} parent=0 // pred_fallthru
    _
  // Predicated region
  $region14: #{conv_mixer_forward.4} parent=0 // pred_check
    _
  $region15: #{conv_mixer_forward.4} parent=0 // pred_check_branch
    %19 = sbr.rel (0) target = $region17
  $region16: #{conv_mixer_forward.4} parent=0 // pred_region
    _
  $region17: #{conv_mixer_forward.4} parent=0 // pred_fallthru
    _
  // Predicated region
  $region18: #{conv_mixer_forward.4} parent=0 // pred_check
    _
  $region19: #{conv_mixer_forward.4} parent=0 // pred_check_branch
    %21 = sbr.rel (0) target = $region21
  $region20: #{conv_mixer_forward.4} parent=0 // pred_region
    _
  $region21: #{conv_mixer_forward.4} parent=0 // pred_fallthru
    _
  %v23 = vld [vmem:[%s0] sm:$0xf]
  %v24 = vld [vmem:[%s0 + $0x4] sm:$0xf]
  %v25 = vld [vmem:[%s0 + $0x8] sm:$0xf]
  %v26 = vld [vmem:[%s0 + $0xc] sm:$0xf]
  %v27 = vld [vmem:[%s0 + $0x10] sm:$0xf]
  %v28 = vld [vmem:[%s0 + $0x14] sm:$0xf]
  %v29 = vld [vmem:[%s0 + $0x18] sm:$0xf]
  %v30 = vld [vmem:[%s0 + $0x1c] sm:$0xf]
  %v31 = vld [vmem:[%s0 + $0x20] sm:$0xf]
  %v32 = vld [vmem:[%s0 + $0x24] sm:$0xf]
  %v33 = vld [vmem:[%s0 + $0x28] sm:$0xf]
  %v34 = vld [vmem:[%s0 + $0x2c] sm:$0xf]
  %v35 = vld [vmem:[%s0 + $0x30] sm:$0xf]
  %v36 = vld [vmem:[%s0 + $0x34] sm:$0xf]
  %v37 = vld [vmem:[%s0 + $0x38] sm:$0xf]
  %v38 = vld [vmem:[%s0 + $0x3c] sm:$0xf]
  %v39 = vld [vmem:[%s0 + $0x40] sm:$0xf]
  %v40 = vld [vmem:[%s0 + $0x44] sm:$0xf]
  %v41 = vld [vmem:[%s0 + $0x48] sm:$0xf]
  %v42 = vld [vmem:[%s0 + $0x4c] sm:$0xf]
  %v43 = vld [vmem:[%s0 + $0x50] sm:$0xf]
  %v44 = vld [vmem:[%s0 + $0x54] sm:$0xf]
  %v45 = vld [vmem:[%s0 + $0x58] sm:$0xf]
  %v46 = vld [vmem:[%s0 + $0x5c] sm:$0xf]
  %v47 = vld [vmem:[%s0 + $0x60] sm:$0xf]
  %v48 = vld [vmem:[%s0 + $0x64] sm:$0xf]
  %v49 = vld [vmem:[%s0 + $0x68] sm:$0xf]
  %v50 = vld [vmem:[%s0 + $0x6c] sm:$0xf]
  %v51 = vld [vmem:[%s0 + $0x70] sm:$0xf]
  %v52 = vld [vmem:[%s0 + $0x74] sm:$0xf]
  %v53 = vld [vmem:[%s0 + $0x78] sm:$0xf]
  %v54 = vld [vmem:[%s0 + $0x7c] sm:$0xf]
  %v55 = vld [vmem:[%s0 + $0x80] sm:$0xf]
  %v56 = vld [vmem:[%s0 + $0x84] sm:$0xf]
  %v57 = vld [vmem:[%s0 + $0x88] sm:$0xf]
  %v58 = vld [vmem:[%s0 + $0x8c] sm:$0xf]
  %v59 = vld [vmem:[%s0 + $0x90] sm:$0xf]
  %v60 = vld [vmem:[%s0 + $0x94] sm:$0xf]
  %v61 = vld [vmem:[%s0 + $0x98] sm:$0xf]
  %v62 = vld [vmem:[%s0 + $0x9c] sm:$0xf]
  %v63 = vld [vmem:[%s0 + $0xa0] sm:$0xf]
  %v64 = vld [vmem:[%s0 + $0xa4] sm:$0xf]
  %v65 = vld [vmem:[%s0 + $0xa8] sm:$0xf]
  %v66 = vld [vmem:[%s0 + $0xac] sm:$0xf]
  %v67 = vld [vmem:[%s0 + $0xb0] sm:$0xf]
  %v68 = vld [vmem:[%s0 + $0xb4] sm:$0xf]
  %v69 = vld [vmem:[%s0 + $0xb8] sm:$0xf]
  %v70 = vld [vmem:[%s0 + $0xbc] sm:$0xf]
  %v71 = vld [vmem:[%s0 + $0xc0] sm:$0xf]
  %v72 = vld [vmem:[%s0 + $0xc4] sm:$0xf]
  %v73 = vld [vmem:[%s0 + $0xc8] sm:$0xf]
  %v74 = vld [vmem:[%s0 + $0xcc] sm:$0xf]
  %v75 = vld [vmem:[%s0 + $0xd0] sm:$0xf]
  %v76 = vld [vmem:[%s0 + $0xd4] sm:$0xf]
  %v77 = vld [vmem:[%s0 + $0xd8] sm:$0xf]
  %v78 = vld [vmem:[%s0 + $0xdc] sm:$0xf]
  %v79 = vld [vmem:[%s0 + $0xe0] sm:$0xf]
  %v80 = vld [vmem:[%s0 + $0xe4] sm:$0xf]
  %v81 = vld [vmem:[%s0 + $0xe8] sm:$0xf]
  %v82 = vld [vmem:[%s0 + $0xec] sm:$0xf]
  %v83 = vld [vmem:[%s0 + $0xf0] sm:$0xf]
  %v84 = vld [vmem:[%s0 + $0xf4] sm:$0xf]
  %v85 = vld [vmem:[%s0 + $0xf8] sm:$0xf]
  %v86 = vld [vmem:[%s0 + $0xfc] sm:$0xf]
  %v87 = vunpack.c.l.bf16 %v23
  %v88 = vunpack.c.l.bf16 %v24
  %v89 = vunpack.c.l.bf16 %v25
  %v90 = vunpack.c.l.bf16 %v26
  %v91 = vunpack.c.l.bf16 %v27
  %v92 = vunpack.c.l.bf16 %v28
  %v93 = vunpack.c.l.bf16 %v29
  %v94 = vunpack.c.l.bf16 %v30
  %v95 = vunpack.c.l.bf16 %v31
  %v96 = vunpack.c.l.bf16 %v32
  %v97 = vunpack.c.l.bf16 %v33
  %v98 = vunpack.c.l.bf16 %v34
  %v99 = vunpack.c.l.bf16 %v35
  %v100 = vunpack.c.l.bf16 %v36
  %v101 = vunpack.c.l.bf16 %v37
  %v102 = vunpack.c.l.bf16 %v38
  %v103 = vunpack.c.l.bf16 %v39
  %v104 = vunpack.c.l.bf16 %v40
  %v105 = vunpack.c.l.bf16 %v41
  %v106 = vunpack.c.l.bf16 %v42
  %v107 = vunpack.c.l.bf16 %v43
  %v108 = vunpack.c.l.bf16 %v44
  %v109 = vunpack.c.l.bf16 %v45
  %v110 = vunpack.c.l.bf16 %v46
  %v111 = vunpack.c.l.bf16 %v47
  %v112 = vunpack.c.l.bf16 %v48
  %v113 = vunpack.c.l.bf16 %v49
  %v114 = vunpack.c.l.bf16 %v50
  %v115 = vunpack.c.l.bf16 %v51
  %v116 = vunpack.c.l.bf16 %v52
  %v117 = vunpack.c.l.bf16 %v53
  %v118 = vunpack.c.l.bf16 %v54
  %v119 = vunpack.c.l.bf16 %v55
  %v120 = vunpack.c.l.bf16 %v56
  %v121 = vunpack.c.l.bf16 %v57
  %v122 = vunpack.c.l.bf16 %v58
  %v123 = vunpack.c.l.bf16 %v59
  %v124 = vunpack.c.l.bf16 %v60
  %v125 = vunpack.c.l.bf16 %v61
  %v126 = vunpack.c.l.bf16 %v62
  %v127 = vunpack.c.l.bf16 %v63
  %v128 = vunpack.c.l.bf16 %v64
  %v129 = vunpack.c.l.bf16 %v65
  %v130 = vunpack.c.l.bf16 %v66
  %v131 = vunpack.c.l.bf16 %v67
  %v132 = vunpack.c.l.bf16 %v68
  %v133 = vunpack.c.l.bf16 %v69
  %v134 = vunpack.c.l.bf16 %v70
  %v135 = vunpack.c.l.bf16 %v71
  %v136 = vunpack.c.l.bf16 %v72
  %v137 = vunpack.c.l.bf16 %v73
  %v138 = vunpack.c.l.bf16 %v74
  %v139 = vunpack.c.l.bf16 %v75
  %v140 = vunpack.c.l.bf16 %v76
  %v141 = vunpack.c.l.bf16 %v77
  %v142 = vunpack.c.l.bf16 %v78
  %v143 = vunpack.c.l.bf16 %v79
  %v144 = vunpack.c.l.bf16 %v80
  %v145 = vunpack.c.l.bf16 %v81
  %v146 = vunpack.c.l.bf16 %v82
  %v147 = vunpack.c.l.bf16 %v83
  %v148 = vunpack.c.l.bf16 %v84
  %v149 = vunpack.c.l.bf16 %v85
  %v150 = vunpack.c.l.bf16 %v86
  %v151 = vld [vmem:[%s2] sm:$0x1]
  %v153 = vperm.slane %v151, 0
  %v155 = vmul.f32 %v87, %v153
  %v156 = vmul.f32 %v88, %v153
  %v157 = vmul.f32 %v89, %v153
  %v158 = vmul.f32 %v90, %v153
  %v159 = vmul.f32 %v91, %v153
  %v160 = vmul.f32 %v92, %v153
  %v161 = vmul.f32 %v93, %v153
  %v162 = vmul.f32 %v94, %v153
  %v163 = vmul.f32 %v95, %v153
  %v164 = vmul.f32 %v96, %v153
  %v165 = vmul.f32 %v97, %v153
  %v166 = vmul.f32 %v98, %v153
  %v167 = vmul.f32 %v99, %v153
  %v168 = vmul.f32 %v100, %v153
  %v169 = vmul.f32 %v101, %v153
  %v170 = vmul.f32 %v102, %v153
  %v171 = vmul.f32 %v103, %v153
  %v172 = vmul.f32 %v104, %v153
  %v173 = vmul.f32 %v105, %v153
  %v174 = vmul.f32 %v106, %v153
  %v175 = vmul.f32 %v107, %v153
  %v176 = vmul.f32 %v108, %v153
  %v177 = vmul.f32 %v109, %v153
  %v178 = vmul.f32 %v110, %v153
  %v179 = vmul.f32 %v111, %v153
  %v180 = vmul.f32 %v112, %v153
  %v181 = vmul.f32 %v113, %v153
  %v182 = vmul.f32 %v114, %v153
  %v183 = vmul.f32 %v115, %v153
  %v184 = vmul.f32 %v116, %v153
  %v185 = vmul.f32 %v117, %v153
  %v186 = vmul.f32 %v118, %v153
  %v187 = vmul.f32 %v119, %v153
  %v188 = vmul.f32 %v120, %v153
  %v189 = vmul.f32 %v121, %v153
  %v190 = vmul.f32 %v122, %v153
  %v191 = vmul.f32 %v123, %v153
  %v192 = vmul.f32 %v124, %v153
  %v193 = vmul.f32 %v125, %v153
  %v194 = vmul.f32 %v126, %v153
  %v195 = vmul.f32 %v127, %v153
  %v196 = vmul.f32 %v128, %v153
  %v197 = vmul.f32 %v129, %v153
  %v198 = vmul.f32 %v130, %v153
  %v199 = vmul.f32 %v131, %v153
  %v200 = vmul.f32 %v132, %v153
  %v201 = vmul.f32 %v133, %v153
  %v202 = vmul.f32 %v134, %v153
  %v203 = vmul.f32 %v135, %v153
  %v204 = vmul.f32 %v136, %v153
  %v205 = vmul.f32 %v137, %v153
  %v206 = vmul.f32 %v138, %v153
  %v207 = vmul.f32 %v139, %v153
  %v208 = vmul.f32 %v140, %v153
  %v209 = vmul.f32 %v141, %v153
  %v210 = vmul.f32 %v142, %v153
  %v211 = vmul.f32 %v143, %v153
  %v212 = vmul.f32 %v144, %v153
  %v213 = vmul.f32 %v145, %v153
  %v214 = vmul.f32 %v146, %v153
  %v215 = vmul.f32 %v147, %v153
  %v216 = vmul.f32 %v148, %v153
  %v217 = vmul.f32 %v149, %v153
  %v218 = vmul.f32 %v150, %v153
  %v219 = vld [vmem:[%s3] sm:$0x1]
  %v221 = vperm.slane %v219, 0
  %v223 = vadd.f32 %v155, %v221
  %v224 = vadd.f32 %v156, %v221
  %v225 = vadd.f32 %v157, %v221
  %v226 = vadd.f32 %v158, %v221
  %v227 = vadd.f32 %v159, %v221
  %v228 = vadd.f32 %v160, %v221
  %v229 = vadd.f32 %v161, %v221
  %v230 = vadd.f32 %v162, %v221
  %v231 = vadd.f32 %v163, %v221
  %v232 = vadd.f32 %v164, %v221
  %v233 = vadd.f32 %v165, %v221
  %v234 = vadd.f32 %v166, %v221
  %v235 = vadd.f32 %v167, %v221
  %v236 = vadd.f32 %v168, %v221
  %v237 = vadd.f32 %v169, %v221
  %v238 = vadd.f32 %v170, %v221
  %v239 = vadd.f32 %v171, %v221
  %v240 = vadd.f32 %v172, %v221
  %v241 = vadd.f32 %v173, %v221
  %v242 = vadd.f32 %v174, %v221
  %v243 = vadd.f32 %v175, %v221
  %v244 = vadd.f32 %v176, %v221
  %v245 = vadd.f32 %v177, %v221
  %v246 = vadd.f32 %v178, %v221
  %v247 = vadd.f32 %v179, %v221
  %v248 = vadd.f32 %v180, %v221
  %v249 = vadd.f32 %v181, %v221
  %v250 = vadd.f32 %v182, %v221
  %v251 = vadd.f32 %v183, %v221
  %v252 = vadd.f32 %v184, %v221
  %v253 = vadd.f32 %v185, %v221
  %v254 = vadd.f32 %v186, %v221
  %v255 = vadd.f32 %v187, %v221
  %v256 = vadd.f32 %v188, %v221
  %v257 = vadd.f32 %v189, %v221
  %v258 = vadd.f32 %v190, %v221
  %v259 = vadd.f32 %v191, %v221
  %v260 = vadd.f32 %v192, %v221
  %v261 = vadd.f32 %v193, %v221
  %v262 = vadd.f32 %v194, %v221
  %v263 = vadd.f32 %v195, %v221
  %v264 = vadd.f32 %v196, %v221
  %v265 = vadd.f32 %v197, %v221
  %v266 = vadd.f32 %v198, %v221
  %v267 = vadd.f32 %v199, %v221
  %v268 = vadd.f32 %v200, %v221
  %v269 = vadd.f32 %v201, %v221
  %v270 = vadd.f32 %v202, %v221
  %v271 = vadd.f32 %v203, %v221
  %v272 = vadd.f32 %v204, %v221
  %v273 = vadd.f32 %v205, %v221
  %v274 = vadd.f32 %v206, %v221
  %v275 = vadd.f32 %v207, %v221
  %v276 = vadd.f32 %v208, %v221
  %v277 = vadd.f32 %v209, %v221
  %v278 = vadd.f32 %v210, %v221
  %v279 = vadd.f32 %v211, %v221
  %v280 = vadd.f32 %v212, %v221
  %v281 = vadd.f32 %v213, %v221
  %v282 = vadd.f32 %v214, %v221
  %v283 = vadd.f32 %v215, %v221
  %v284 = vadd.f32 %v216, %v221
  %v285 = vadd.f32 %v217, %v221
  %v286 = vadd.f32 %v218, %v221
  %v287 = vmin.f32 %v223, 20.0
  %v288 = vmin.f32 %v224, 20.0
  %v289 = vmin.f32 %v225, 20.0
  %v290 = vmin.f32 %v226, 20.0
  %v291 = vmin.f32 %v227, 20.0
  %v292 = vmin.f32 %v228, 20.0
  %v293 = vmin.f32 %v229, 20.0
  %v294 = vmin.f32 %v230, 20.0
  %v295 = vmin.f32 %v231, 20.0
  %v296 = vmin.f32 %v232, 20.0
  %v297 = vmin.f32 %v233, 20.0
  %v298 = vmin.f32 %v234, 20.0
  %v299 = vmin.f32 %v235, 20.0
  %v300 = vmin.f32 %v236, 20.0
  %v301 = vmin.f32 %v237, 20.0
  %v302 = vmin.f32 %v238, 20.0
  %v303 = vmin.f32 %v239, 20.0
  %v304 = vmin.f32 %v240, 20.0
  %v305 = vmin.f32 %v241, 20.0
  %v306 = vmin.f32 %v242, 20.0
  %v307 = vmin.f32 %v243, 20.0
  %v308 = vmin.f32 %v244, 20.0
  %v309 = vmin.f32 %v245, 20.0
  %v310 = vmin.f32 %v246, 20.0
  %v311 = vmin.f32 %v247, 20.0
  %v312 = vmin.f32 %v248, 20.0
  %v313 = vmin.f32 %v249, 20.0
  %v314 = vmin.f32 %v250, 20.0
  %v315 = vmin.f32 %v251, 20.0
  %v316 = vmin.f32 %v252, 20.0
  %v317 = vmin.f32 %v253, 20.0
  %v318 = vmin.f32 %v254, 20.0
  %v319 = vmin.f32 %v255, 20.0
  %v320 = vmin.f32 %v256, 20.0
  %v321 = vmin.f32 %v257, 20.0
  %v322 = vmin.f32 %v258, 20.0
  %v323 = vmin.f32 %v259, 20.0
  %v324 = vmin.f32 %v260, 20.0
  %v325 = vmin.f32 %v261, 20.0
  %v326 = vmin.f32 %v262, 20.0
  %v327 = vmin.f32 %v263, 20.0
  %v328 = vmin.f32 %v264, 20.0
  %v329 = vmin.f32 %v265, 20.0
  %v330 = vmin.f32 %v266, 20.0
  %v331 = vmin.f32 %v267, 20.0
  %v332 = vmin.f32 %v268, 20.0
  %v333 = vmin.f32 %v269, 20.0
  %v334 = vmin.f32 %v270, 20.0
  %v335 = vmin.f32 %v271, 20.0
  %v336 = vmin.f32 %v272, 20.0
  %v337 = vmin.f32 %v273, 20.0
  %v338 = vmin.f32 %v274, 20.0
  %v339 = vmin.f32 %v275, 20.0
  %v340 = vmin.f32 %v276, 20.0
  %v341 = vmin.f32 %v277, 20.0
  %v342 = vmin.f32 %v278, 20.0
  %v343 = vmin.f32 %v279, 20.0
  %v344 = vmin.f32 %v280, 20.0
  %v345 = vmin.f32 %v281, 20.0
  %v346 = vmin.f32 %v282, 20.0
  %v347 = vmin.f32 %v283, 20.0
  %v348 = vmin.f32 %v284, 20.0
  %v349 = vmin.f32 %v285, 20.0
  %v350 = vmin.f32 %v286, 20.0
  %v351 = vmul.f32 %v287, 1.442695
  %v352 = vpow.pop %v351
  %v353 = vmul.f32 %v288, 1.442695
  %v354 = vpow.pop %v353
  %v355 = vmul.f32 %v289, 1.442695
  %v356 = vpow.pop %v355
  %v357 = vmul.f32 %v290, 1.442695
  %v358 = vpow.pop %v357
  %v359 = vmul.f32 %v291, 1.442695
  %v360 = vpow.pop %v359
  %v361 = vmul.f32 %v292, 1.442695
  %v362 = vpow.pop %v361
  %v363 = vmul.f32 %v293, 1.442695
  %v364 = vpow.pop %v363
  %v365 = vmul.f32 %v294, 1.442695
  %v366 = vpow.pop %v365
  %v367 = vmul.f32 %v295, 1.442695
  %v368 = vpow.pop %v367
  %v369 = vmul.f32 %v296, 1.442695
  %v370 = vpow.pop %v369
  %v371 = vmul.f32 %v297, 1.442695
  %v372 = vpow.pop %v371
  %v373 = vmul.f32 %v298, 1.442695
  %v374 = vpow.pop %v373
  %v375 = vmul.f32 %v299, 1.442695
  %v376 = vpow.pop %v375
  %v377 = vmul.f32 %v300, 1.442695
  %v378 = vpow.pop %v377
  %v379 = vmul.f32 %v301, 1.442695
  %v380 = vpow.pop %v379
  %v381 = vmul.f32 %v302, 1.442695
  %v382 = vpow.pop %v381
  %v383 = vmul.f32 %v303, 1.442695
  %v384 = vpow.pop %v383
  %v385 = vmul.f32 %v304, 1.442695
  %v386 = vpow.pop %v385
  %v387 = vmul.f32 %v305, 1.442695
  %v388 = vpow.pop %v387
  %v389 = vmul.f32 %v306, 1.442695
  %v390 = vpow.pop %v389
  %v391 = vmul.f32 %v307, 1.442695
  %v392 = vpow.pop %v391
  %v393 = vmul.f32 %v308, 1.442695
  %v394 = vpow.pop %v393
  %v395 = vmul.f32 %v309, 1.442695
  %v396 = vpow.pop %v395
  %v397 = vmul.f32 %v310, 1.442695
  %v398 = vpow.pop %v397
  %v399 = vmul.f32 %v311, 1.442695
  %v400 = vpow.pop %v399
  %v401 = vmul.f32 %v312, 1.442695
  %v402 = vpow.pop %v401
  %v403 = vmul.f32 %v313, 1.442695
  %v404 = vpow.pop %v403
  %v405 = vmul.f32 %v314, 1.442695
  %v406 = vpow.pop %v405
  %v407 = vmul.f32 %v315, 1.442695
  %v408 = vpow.pop %v407
  %v409 = vmul.f32 %v316, 1.442695
  %v410 = vpow.pop %v409
  %v411 = vmul.f32 %v317, 1.442695
  %v412 = vpow.pop %v411
  %v413 = vmul.f32 %v318, 1.442695
  %v414 = vpow.pop %v413
  %v415 = vmul.f32 %v319, 1.442695
  %v416 = vpow.pop %v415
  %v417 = vmul.f32 %v320, 1.442695
  %v418 = vpow.pop %v417
  %v419 = vmul.f32 %v321, 1.442695
  %v420 = vpow.pop %v419
  %v421 = vmul.f32 %v322, 1.442695
  %v422 = vpow.pop %v421
  %v423 = vmul.f32 %v323, 1.442695
  %v424 = vpow.pop %v423
  %v425 = vmul.f32 %v324, 1.442695
  %v426 = vpow.pop %v425
  %v427 = vmul.f32 %v325, 1.442695
  %v428 = vpow.pop %v427
  %v429 = vmul.f32 %v326, 1.442695
  %v430 = vpow.pop %v429
  %v431 = vmul.f32 %v327, 1.442695
  %v432 = vpow.pop %v431
  %v433 = vmul.f32 %v328, 1.442695
  %v434 = vpow.pop %v433
  %v435 = vmul.f32 %v329, 1.442695
  %v436 = vpow.pop %v435
  %v437 = vmul.f32 %v330, 1.442695
  %v438 = vpow.pop %v437
  %v439 = vmul.f32 %v331, 1.442695
  %v440 = vpow.pop %v439
  %v441 = vmul.f32 %v332, 1.442695
  %v442 = vpow.pop %v441
  %v443 = vmul.f32 %v333, 1.442695
  %v444 = vpow.pop %v443
  %v445 = vmul.f32 %v334, 1.442695
  %v446 = vpow.pop %v445
  %v447 = vmul.f32 %v335, 1.442695
  %v448 = vpow.pop %v447
  %v449 = vmul.f32 %v336, 1.442695
  %v450 = vpow.pop %v449
  %v451 = vmul.f32 %v337, 1.442695
  %v452 = vpow.pop %v451
  %v453 = vmul.f32 %v338, 1.442695
  %v454 = vpow.pop %v453
  %v455 = vmul.f32 %v339, 1.442695
  %v456 = vpow.pop %v455
  %v457 = vmul.f32 %v340, 1.442695
  %v458 = vpow.pop %v457
  %v459 = vmul.f32 %v341, 1.442695
  %v460 = vpow.pop %v459
  %v461 = vmul.f32 %v342, 1.442695
  %v462 = vpow.pop %v461
  %v463 = vmul.f32 %v343, 1.442695
  %v464 = vpow.pop %v463
  %v465 = vmul.f32 %v344, 1.442695
  %v466 = vpow.pop %v465
  %v467 = vmul.f32 %v345, 1.442695
  %v468 = vpow.pop %v467
  %v469 = vmul.f32 %v346, 1.442695
  %v470 = vpow.pop %v469
  %v471 = vmul.f32 %v347, 1.442695
  %v472 = vpow.pop %v471
  %v473 = vmul.f32 %v348, 1.442695
  %v474 = vpow.pop %v473
  %v475 = vmul.f32 %v349, 1.442695
  %v476 = vpow.pop %v475
  %v477 = vmul.f32 %v350, 1.442695
  %v478 = vpow.pop %v477
  %v479 = vadd.f32 %v352, 1.0
  %v480 = vadd.f32 %v354, 1.0
  %v481 = vadd.f32 %v356, 1.0
  %v482 = vadd.f32 %v358, 1.0
  %v483 = vadd.f32 %v360, 1.0
  %v484 = vadd.f32 %v362, 1.0
  %v485 = vadd.f32 %v364, 1.0
  %v486 = vadd.f32 %v366, 1.0
  %v487 = vadd.f32 %v368, 1.0
  %v488 = vadd.f32 %v370, 1.0
  %v489 = vadd.f32 %v372, 1.0
  %v490 = vadd.f32 %v374, 1.0
  %v491 = vadd.f32 %v376, 1.0
  %v492 = vadd.f32 %v378, 1.0
  %v493 = vadd.f32 %v380, 1.0
  %v494 = vadd.f32 %v382, 1.0
  %v495 = vadd.f32 %v384, 1.0
  %v496 = vadd.f32 %v386, 1.0
  %v497 = vadd.f32 %v388, 1.0
  %v498 = vadd.f32 %v390, 1.0
  %v499 = vadd.f32 %v392, 1.0
  %v500 = vadd.f32 %v394, 1.0
  %v501 = vadd.f32 %v396, 1.0
  %v502 = vadd.f32 %v398, 1.0
  %v503 = vadd.f32 %v400, 1.0
  %v504 = vadd.f32 %v402, 1.0
  %v505 = vadd.f32 %v404, 1.0
  %v506 = vadd.f32 %v406, 1.0
  %v507 = vadd.f32 %v408, 1.0
  %v508 = vadd.f32 %v410, 1.0
  %v509 = vadd.f32 %v412, 1.0
  %v510 = vadd.f32 %v414, 1.0
  %v511 = vadd.f32 %v416, 1.0
  %v512 = vadd.f32 %v418, 1.0
  %v513 = vadd.f32 %v420, 1.0
  %v514 = vadd.f32 %v422, 1.0
  %v515 = vadd.f32 %v424, 1.0
  %v516 = vadd.f32 %v426, 1.0
  %v517 = vadd.f32 %v428, 1.0
  %v518 = vadd.f32 %v430, 1.0
  %v519 = vadd.f32 %v432, 1.0
  %v520 = vadd.f32 %v434, 1.0
  %v521 = vadd.f32 %v436, 1.0
  %v522 = vadd.f32 %v438, 1.0
  %v523 = vadd.f32 %v440, 1.0
  %v524 = vadd.f32 %v442, 1.0
  %v525 = vadd.f32 %v444, 1.0
  %v526 = vadd.f32 %v446, 1.0
  %v527 = vadd.f32 %v448, 1.0
  %v528 = vadd.f32 %v450, 1.0
  %v529 = vadd.f32 %v452, 1.0
  %v530 = vadd.f32 %v454, 1.0
  %v531 = vadd.f32 %v456, 1.0
  %v532 = vadd.f32 %v458, 1.0
  %v533 = vadd.f32 %v460, 1.0
  %v534 = vadd.f32 %v462, 1.0
  %v535 = vadd.f32 %v464, 1.0
  %v536 = vadd.f32 %v466, 1.0
  %v537 = vadd.f32 %v468, 1.0
  %v538 = vadd.f32 %v470, 1.0
  %v539 = vadd.f32 %v472, 1.0
  %v540 = vadd.f32 %v474, 1.0
  %v541 = vadd.f32 %v476, 1.0
  %v542 = vadd.f32 %v478, 1.0
  %v543 = vmul.f32 %v479, %v479
  %v544 = vmul.f32 %v480, %v480
  %v545 = vmul.f32 %v481, %v481
  %v546 = vmul.f32 %v482, %v482
  %v547 = vmul.f32 %v483, %v483
  %v548 = vmul.f32 %v484, %v484
  %v549 = vmul.f32 %v485, %v485
  %v550 = vmul.f32 %v486, %v486
  %v551 = vmul.f32 %v487, %v487
  %v552 = vmul.f32 %v488, %v488
  %v553 = vmul.f32 %v489, %v489
  %v554 = vmul.f32 %v490, %v490
  %v555 = vmul.f32 %v491, %v491
  %v556 = vmul.f32 %v492, %v492
  %v557 = vmul.f32 %v493, %v493
  %v558 = vmul.f32 %v494, %v494
  %v559 = vmul.f32 %v495, %v495
  %v560 = vmul.f32 %v496, %v496
  %v561 = vmul.f32 %v497, %v497
  %v562 = vmul.f32 %v498, %v498
  %v563 = vmul.f32 %v499, %v499
  %v564 = vmul.f32 %v500, %v500
  %v565 = vmul.f32 %v501, %v501
  %v566 = vmul.f32 %v502, %v502
  %v567 = vmul.f32 %v503, %v503
  %v568 = vmul.f32 %v504, %v504
  %v569 = vmul.f32 %v505, %v505
  %v570 = vmul.f32 %v506, %v506
  %v571 = vmul.f32 %v507, %v507
  %v572 = vmul.f32 %v508, %v508
  %v573 = vmul.f32 %v509, %v509
  %v574 = vmul.f32 %v510, %v510
  %v575 = vmul.f32 %v511, %v511
  %v576 = vmul.f32 %v512, %v512
  %v577 = vmul.f32 %v513, %v513
  %v578 = vmul.f32 %v514, %v514
  %v579 = vmul.f32 %v515, %v515
  %v580 = vmul.f32 %v516, %v516
  %v581 = vmul.f32 %v517, %v517
  %v582 = vmul.f32 %v518, %v518
  %v583 = vmul.f32 %v519, %v519
  %v584 = vmul.f32 %v520, %v520
  %v585 = vmul.f32 %v521, %v521
  %v586 = vmul.f32 %v522, %v522
  %v587 = vmul.f32 %v523, %v523
  %v588 = vmul.f32 %v524, %v524
  %v589 = vmul.f32 %v525, %v525
  %v590 = vmul.f32 %v526, %v526
  %v591 = vmul.f32 %v527, %v527
  %v592 = vmul.f32 %v528, %v528
  %v593 = vmul.f32 %v529, %v529
  %v594 = vmul.f32 %v530, %v530
  %v595 = vmul.f32 %v531, %v531
  %v596 = vmul.f32 %v532, %v532
  %v597 = vmul.f32 %v533, %v533
  %v598 = vmul.f32 %v534, %v534
  %v599 = vmul.f32 %v535, %v535
  %v600 = vmul.f32 %v536, %v536
  %v601 = vmul.f32 %v537, %v537
  %v602 = vmul.f32 %v538, %v538
  %v603 = vmul.f32 %v539, %v539
  %v604 = vmul.f32 %v540, %v540
  %v605 = vmul.f32 %v541, %v541
  %v606 = vmul.f32 %v542, %v542
  %v607 = vsub.f32 %v543, 1.0
  %v608 = vsub.f32 %v544, 1.0
  %v609 = vsub.f32 %v545, 1.0
  %v610 = vsub.f32 %v546, 1.0
  %v611 = vsub.f32 %v547, 1.0
  %v612 = vsub.f32 %v548, 1.0
  %v613 = vsub.f32 %v549, 1.0
  %v614 = vsub.f32 %v550, 1.0
  %v615 = vsub.f32 %v551, 1.0
  %v616 = vsub.f32 %v552, 1.0
  %v617 = vsub.f32 %v553, 1.0
  %v618 = vsub.f32 %v554, 1.0
  %v619 = vsub.f32 %v555, 1.0
  %v620 = vsub.f32 %v556, 1.0
  %v621 = vsub.f32 %v557, 1.0
  %v622 = vsub.f32 %v558, 1.0
  %v623 = vsub.f32 %v559, 1.0
  %v624 = vsub.f32 %v560, 1.0
  %v625 = vsub.f32 %v561, 1.0
  %v626 = vsub.f32 %v562, 1.0
  %v627 = vsub.f32 %v563, 1.0
  %v628 = vsub.f32 %v564, 1.0
  %v629 = vsub.f32 %v565, 1.0
  %v630 = vsub.f32 %v566, 1.0
  %v631 = vsub.f32 %v567, 1.0
  %v632 = vsub.f32 %v568, 1.0
  %v633 = vsub.f32 %v569, 1.0
  %v634 = vsub.f32 %v570, 1.0
  %v635 = vsub.f32 %v571, 1.0
  %v636 = vsub.f32 %v572, 1.0
  %v637 = vsub.f32 %v573, 1.0
  %v638 = vsub.f32 %v574, 1.0
  %v639 = vsub.f32 %v575, 1.0
  %v640 = vsub.f32 %v576, 1.0
  %v641 = vsub.f32 %v577, 1.0
  %v642 = vsub.f32 %v578, 1.0
  %v643 = vsub.f32 %v579, 1.0
  %v644 = vsub.f32 %v580, 1.0
  %v645 = vsub.f32 %v581, 1.0
  %v646 = vsub.f32 %v582, 1.0
  %v647 = vsub.f32 %v583, 1.0
  %v648 = vsub.f32 %v584, 1.0
  %v649 = vsub.f32 %v585, 1.0
  %v650 = vsub.f32 %v586, 1.0
  %v651 = vsub.f32 %v587, 1.0
  %v652 = vsub.f32 %v588, 1.0
  %v653 = vsub.f32 %v589, 1.0
  %v654 = vsub.f32 %v590, 1.0
  %v655 = vsub.f32 %v591, 1.0
  %v656 = vsub.f32 %v592, 1.0
  %v657 = vsub.f32 %v593, 1.0
  %v658 = vsub.f32 %v594, 1.0
  %v659 = vsub.f32 %v595, 1.0
  %v660 = vsub.f32 %v596, 1.0
  %v661 = vsub.f32 %v597, 1.0
  %v662 = vsub.f32 %v598, 1.0
  %v663 = vsub.f32 %v599, 1.0
  %v664 = vsub.f32 %v600, 1.0
  %v665 = vsub.f32 %v601, 1.0
  %v666 = vsub.f32 %v602, 1.0
  %v667 = vsub.f32 %v603, 1.0
  %v668 = vsub.f32 %v604, 1.0
  %v669 = vsub.f32 %v605, 1.0
  %v670 = vsub.f32 %v606, 1.0
  %v671 = vmul.f32 %v223, %v607
  %v672 = vmul.f32 %v224, %v608
  %v673 = vmul.f32 %v225, %v609
  %v674 = vmul.f32 %v226, %v610
  %v675 = vmul.f32 %v227, %v611
  %v676 = vmul.f32 %v228, %v612
  %v677 = vmul.f32 %v229, %v613
  %v678 = vmul.f32 %v230, %v614
  %v679 = vmul.f32 %v231, %v615
  %v680 = vmul.f32 %v232, %v616
  %v681 = vmul.f32 %v233, %v617
  %v682 = vmul.f32 %v234, %v618
  %v683 = vmul.f32 %v235, %v619
  %v684 = vmul.f32 %v236, %v620
  %v685 = vmul.f32 %v237, %v621
  %v686 = vmul.f32 %v238, %v622
  %v687 = vmul.f32 %v239, %v623
  %v688 = vmul.f32 %v240, %v624
  %v689 = vmul.f32 %v241, %v625
  %v690 = vmul.f32 %v242, %v626
  %v691 = vmul.f32 %v243, %v627
  %v692 = vmul.f32 %v244, %v628
  %v693 = vmul.f32 %v245, %v629
  %v694 = vmul.f32 %v246, %v630
  %v695 = vmul.f32 %v247, %v631
  %v696 = vmul.f32 %v248, %v632
  %v697 = vmul.f32 %v249, %v633
  %v698 = vmul.f32 %v250, %v634
  %v699 = vmul.f32 %v251, %v635
  %v700 = vmul.f32 %v252, %v636
  %v701 = vmul.f32 %v253, %v637
  %v702 = vmul.f32 %v254, %v638
  %v703 = vmul.f32 %v255, %v639
  %v704 = vmul.f32 %v256, %v640
  %v705 = vmul.f32 %v257, %v641
  %v706 = vmul.f32 %v258, %v642
  %v707 = vmul.f32 %v259, %v643
  %v708 = vmul.f32 %v260, %v644
  %v709 = vmul.f32 %v261, %v645
  %v710 = vmul.f32 %v262, %v646
  %v711 = vmul.f32 %v263, %v647
  %v712 = vmul.f32 %v264, %v648
  %v713 = vmul.f32 %v265, %v649
  %v714 = vmul.f32 %v266, %v650
  %v715 = vmul.f32 %v267, %v651
  %v716 = vmul.f32 %v268, %v652
  %v717 = vmul.f32 %v269, %v653
  %v718 = vmul.f32 %v270, %v654
  %v719 = vmul.f32 %v271, %v655
  %v720 = vmul.f32 %v272, %v656
  %v721 = vmul.f32 %v273, %v657
  %v722 = vmul.f32 %v274, %v658
  %v723 = vmul.f32 %v275, %v659
  %v724 = vmul.f32 %v276, %v660
  %v725 = vmul.f32 %v277, %v661
  %v726 = vmul.f32 %v278, %v662
  %v727 = vmul.f32 %v279, %v663
  %v728 = vmul.f32 %v280, %v664
  %v729 = vmul.f32 %v281, %v665
  %v730 = vmul.f32 %v282, %v666
  %v731 = vmul.f32 %v283, %v667
  %v732 = vmul.f32 %v284, %v668
  %v733 = vmul.f32 %v285, %v669
  %v734 = vmul.f32 %v286, %v670
  %v735 = vadd.f32 %v543, 1.0
  %v736 = vadd.f32 %v544, 1.0
  %v737 = vadd.f32 %v545, 1.0
  %v738 = vadd.f32 %v546, 1.0
  %v739 = vadd.f32 %v547, 1.0
  %v740 = vadd.f32 %v548, 1.0
  %v741 = vadd.f32 %v549, 1.0
  %v742 = vadd.f32 %v550, 1.0
  %v743 = vadd.f32 %v551, 1.0
  %v744 = vadd.f32 %v552, 1.0
  %v745 = vadd.f32 %v553, 1.0
  %v746 = vadd.f32 %v554, 1.0
  %v747 = vadd.f32 %v555, 1.0
  %v748 = vadd.f32 %v556, 1.0
  %v749 = vadd.f32 %v557, 1.0
  %v750 = vadd.f32 %v558, 1.0
  %v751 = vadd.f32 %v559, 1.0
  %v752 = vadd.f32 %v560, 1.0
  %v753 = vadd.f32 %v561, 1.0
  %v754 = vadd.f32 %v562, 1.0
  %v755 = vadd.f32 %v563, 1.0
  %v756 = vadd.f32 %v564, 1.0
  %v757 = vadd.f32 %v565, 1.0
  %v758 = vadd.f32 %v566, 1.0
  %v759 = vadd.f32 %v567, 1.0
  %v760 = vadd.f32 %v568, 1.0
  %v761 = vadd.f32 %v569, 1.0
  %v762 = vadd.f32 %v570, 1.0
  %v763 = vadd.f32 %v571, 1.0
  %v764 = vadd.f32 %v572, 1.0
  %v765 = vadd.f32 %v573, 1.0
  %v766 = vadd.f32 %v574, 1.0
  %v767 = vadd.f32 %v575, 1.0
  %v768 = vadd.f32 %v576, 1.0
  %v769 = vadd.f32 %v577, 1.0
  %v770 = vadd.f32 %v578, 1.0
  %v771 = vadd.f32 %v579, 1.0
  %v772 = vadd.f32 %v580, 1.0
  %v773 = vadd.f32 %v581, 1.0
  %v774 = vadd.f32 %v582, 1.0
  %v775 = vadd.f32 %v583, 1.0
  %v776 = vadd.f32 %v584, 1.0
  %v777 = vadd.f32 %v585, 1.0
  %v778 = vadd.f32 %v586, 1.0
  %v779 = vadd.f32 %v587, 1.0
  %v780 = vadd.f32 %v588, 1.0
  %v781 = vadd.f32 %v589, 1.0
  %v782 = vadd.f32 %v590, 1.0
  %v783 = vadd.f32 %v591, 1.0
  %v784 = vadd.f32 %v592, 1.0
  %v785 = vadd.f32 %v593, 1.0
  %v786 = vadd.f32 %v594, 1.0
  %v787 = vadd.f32 %v595, 1.0
  %v788 = vadd.f32 %v596, 1.0
  %v789 = vadd.f32 %v597, 1.0
  %v790 = vadd.f32 %v598, 1.0
  %v791 = vadd.f32 %v599, 1.0
  %v792 = vadd.f32 %v600, 1.0
  %v793 = vadd.f32 %v601, 1.0
  %v794 = vadd.f32 %v602, 1.0
  %v795 = vadd.f32 %v603, 1.0
  %v796 = vadd.f32 %v604, 1.0
  %v797 = vadd.f32 %v605, 1.0
  %v798 = vadd.f32 %v606, 1.0
  %v799 = vrcp.pop %v735
  %v800 = vrcp.pop %v736
  %v801 = vrcp.pop %v737
  %v802 = vrcp.pop %v738
  %v803 = vrcp.pop %v739
  %v804 = vrcp.pop %v740
  %v805 = vrcp.pop %v741
  %v806 = vrcp.pop %v742
  %v807 = vrcp.pop %v743
  %v808 = vrcp.pop %v744
  %v809 = vrcp.pop %v745
  %v810 = vrcp.pop %v746
  %v811 = vrcp.pop %v747
  %v812 = vrcp.pop %v748
  %v813 = vrcp.pop %v749
  %v814 = vrcp.pop %v750
  %v815 = vrcp.pop %v751
  %v816 = vrcp.pop %v752
  %v817 = vrcp.pop %v753
  %v818 = vrcp.pop %v754
  %v819 = vrcp.pop %v755
  %v820 = vrcp.pop %v756
  %v821 = vrcp.pop %v757
  %v822 = vrcp.pop %v758
  %v823 = vrcp.pop %v759
  %v824 = vrcp.pop %v760
  %v825 = vrcp.pop %v761
  %v826 = vrcp.pop %v762
  %v827 = vrcp.pop %v763
  %v828 = vrcp.pop %v764
  %v829 = vrcp.pop %v765
  %v830 = vrcp.pop %v766
  %v831 = vrcp.pop %v767
  %v832 = vrcp.pop %v768
  %v833 = vrcp.pop %v769
  %v834 = vrcp.pop %v770
  %v835 = vrcp.pop %v771
  %v836 = vrcp.pop %v772
  %v837 = vrcp.pop %v773
  %v838 = vrcp.pop %v774
  %v839 = vrcp.pop %v775
  %v840 = vrcp.pop %v776
  %v841 = vrcp.pop %v777
  %v842 = vrcp.pop %v778
  %v843 = vrcp.pop %v779
  %v844 = vrcp.pop %v780
  %v845 = vrcp.pop %v781
  %v846 = vrcp.pop %v782
  %v847 = vrcp.pop %v783
  %v848 = vrcp.pop %v784
  %v849 = vrcp.pop %v785
  %v850 = vrcp.pop %v786
  %v851 = vrcp.pop %v787
  %v852 = vrcp.pop %v788
  %v853 = vrcp.pop %v789
  %v854 = vrcp.pop %v790
  %v855 = vrcp.pop %v791
  %v856 = vrcp.pop %v792
  %v857 = vrcp.pop %v793
  %v858 = vrcp.pop %v794
  %v859 = vrcp.pop %v795
  %v860 = vrcp.pop %v796
  %v861 = vrcp.pop %v797
  %v862 = vrcp.pop %v798
  %v863 = vmul.f32 %v671, %v799
  %v864 = vmul.f32 %v672, %v800
  %v865 = vmul.f32 %v673, %v801
  %v866 = vmul.f32 %v674, %v802
  %v867 = vmul.f32 %v675, %v803
  %v868 = vmul.f32 %v676, %v804
  %v869 = vmul.f32 %v677, %v805
  %v870 = vmul.f32 %v678, %v806
  %v871 = vmul.f32 %v679, %v807
  %v872 = vmul.f32 %v680, %v808
  %v873 = vmul.f32 %v681, %v809
  %v874 = vmul.f32 %v682, %v810
  %v875 = vmul.f32 %v683, %v811
  %v876 = vmul.f32 %v684, %v812
  %v877 = vmul.f32 %v685, %v813
  %v878 = vmul.f32 %v686, %v814
  %v879 = vmul.f32 %v687, %v815
  %v880 = vmul.f32 %v688, %v816
  %v881 = vmul.f32 %v689, %v817
  %v882 = vmul.f32 %v690, %v818
  %v883 = vmul.f32 %v691, %v819
  %v884 = vmul.f32 %v692, %v820
  %v885 = vmul.f32 %v693, %v821
  %v886 = vmul.f32 %v694, %v822
  %v887 = vmul.f32 %v695, %v823
  %v888 = vmul.f32 %v696, %v824
  %v889 = vmul.f32 %v697, %v825
  %v890 = vmul.f32 %v698, %v826
  %v891 = vmul.f32 %v699, %v827
  %v892 = vmul.f32 %v700, %v828
  %v893 = vmul.f32 %v701, %v829
  %v894 = vmul.f32 %v702, %v830
  %v895 = vmul.f32 %v703, %v831
  %v896 = vmul.f32 %v704, %v832
  %v897 = vmul.f32 %v705, %v833
  %v898 = vmul.f32 %v706, %v834
  %v899 = vmul.f32 %v707, %v835
  %v900 = vmul.f32 %v708, %v836
  %v901 = vmul.f32 %v709, %v837
  %v902 = vmul.f32 %v710, %v838
  %v903 = vmul.f32 %v711, %v839
  %v904 = vmul.f32 %v712, %v840
  %v905 = vmul.f32 %v713, %v841
  %v906 = vmul.f32 %v714, %v842
  %v907 = vmul.f32 %v715, %v843
  %v908 = vmul.f32 %v716, %v844
  %v909 = vmul.f32 %v717, %v845
  %v910 = vmul.f32 %v718, %v846
  %v911 = vmul.f32 %v719, %v847
  %v912 = vmul.f32 %v720, %v848
  %v913 = vmul.f32 %v721, %v849
  %v914 = vmul.f32 %v722, %v850
  %v915 = vmul.f32 %v723, %v851
  %v916 = vmul.f32 %v724, %v852
  %v917 = vmul.f32 %v725, %v853
  %v918 = vmul.f32 %v726, %v854
  %v919 = vmul.f32 %v727, %v855
  %v920 = vmul.f32 %v728, %v856
  %v921 = vmul.f32 %v729, %v857
  %v922 = vmul.f32 %v730, %v858
  %v923 = vmul.f32 %v731, %v859
  %v924 = vmul.f32 %v732, %v860
  %v925 = vmul.f32 %v733, %v861
  %v926 = vmul.f32 %v734, %v862
  %v927 = vld [vmem:[%s1] sm:$0xf]
  %v928 = vld [vmem:[%s1 + $0x4] sm:$0xf]
  %v929 = vld [vmem:[%s1 + $0x8] sm:$0xf]
  %v930 = vld [vmem:[%s1 + $0xc] sm:$0xf]
  %v931 = vld [vmem:[%s1 + $0x10] sm:$0xf]
  %v932 = vld [vmem:[%s1 + $0x14] sm:$0xf]
  %v933 = vld [vmem:[%s1 + $0x18] sm:$0xf]
  %v934 = vld [vmem:[%s1 + $0x1c] sm:$0xf]
  %v935 = vld [vmem:[%s1 + $0x20] sm:$0xf]
  %v936 = vld [vmem:[%s1 + $0x24] sm:$0xf]
  %v937 = vld [vmem:[%s1 + $0x28] sm:$0xf]
  %v938 = vld [vmem:[%s1 + $0x2c] sm:$0xf]
  %v939 = vld [vmem:[%s1 + $0x30] sm:$0xf]
  %v940 = vld [vmem:[%s1 + $0x34] sm:$0xf]
  %v941 = vld [vmem:[%s1 + $0x38] sm:$0xf]
  %v942 = vld [vmem:[%s1 + $0x3c] sm:$0xf]
  %v943 = vld [vmem:[%s1 + $0x40] sm:$0xf]
  %v944 = vld [vmem:[%s1 + $0x44] sm:$0xf]
  %v945 = vld [vmem:[%s1 + $0x48] sm:$0xf]
  %v946 = vld [vmem:[%s1 + $0x4c] sm:$0xf]
  %v947 = vld [vmem:[%s1 + $0x50] sm:$0xf]
  %v948 = vld [vmem:[%s1 + $0x54] sm:$0xf]
  %v949 = vld [vmem:[%s1 + $0x58] sm:$0xf]
  %v950 = vld [vmem:[%s1 + $0x5c] sm:$0xf]
  %v951 = vld [vmem:[%s1 + $0x60] sm:$0xf]
  %v952 = vld [vmem:[%s1 + $0x64] sm:$0xf]
  %v953 = vld [vmem:[%s1 + $0x68] sm:$0xf]
  %v954 = vld [vmem:[%s1 + $0x6c] sm:$0xf]
  %v955 = vld [vmem:[%s1 + $0x70] sm:$0xf]
  %v956 = vld [vmem:[%s1 + $0x74] sm:$0xf]
  %v957 = vld [vmem:[%s1 + $0x78] sm:$0xf]
  %v958 = vld [vmem:[%s1 + $0x7c] sm:$0xf]
  %v959 = vld [vmem:[%s1 + $0x80] sm:$0xf]
  %v960 = vld [vmem:[%s1 + $0x84] sm:$0xf]
  %v961 = vld [vmem:[%s1 + $0x88] sm:$0xf]
  %v962 = vld [vmem:[%s1 + $0x8c] sm:$0xf]
  %v963 = vld [vmem:[%s1 + $0x90] sm:$0xf]
  %v964 = vld [vmem:[%s1 + $0x94] sm:$0xf]
  %v965 = vld [vmem:[%s1 + $0x98] sm:$0xf]
  %v966 = vld [vmem:[%s1 + $0x9c] sm:$0xf]
  %v967 = vld [vmem:[%s1 + $0xa0] sm:$0xf]
  %v968 = vld [vmem:[%s1 + $0xa4] sm:$0xf]
  %v969 = vld [vmem:[%s1 + $0xa8] sm:$0xf]
  %v970 = vld [vmem:[%s1 + $0xac] sm:$0xf]
  %v971 = vld [vmem:[%s1 + $0xb0] sm:$0xf]
  %v972 = vld [vmem:[%s1 + $0xb4] sm:$0xf]
  %v973 = vld [vmem:[%s1 + $0xb8] sm:$0xf]
  %v974 = vld [vmem:[%s1 + $0xbc] sm:$0xf]
  %v975 = vld [vmem:[%s1 + $0xc0] sm:$0xf]
  %v976 = vld [vmem:[%s1 + $0xc4] sm:$0xf]
  %v977 = vld [vmem:[%s1 + $0xc8] sm:$0xf]
  %v978 = vld [vmem:[%s1 + $0xcc] sm:$0xf]
  %v979 = vld [vmem:[%s1 + $0xd0] sm:$0xf]
  %v980 = vld [vmem:[%s1 + $0xd4] sm:$0xf]
  %v981 = vld [vmem:[%s1 + $0xd8] sm:$0xf]
  %v982 = vld [vmem:[%s1 + $0xdc] sm:$0xf]
  %v983 = vld [vmem:[%s1 + $0xe0] sm:$0xf]
  %v984 = vld [vmem:[%s1 + $0xe4] sm:$0xf]
  %v985 = vld [vmem:[%s1 + $0xe8] sm:$0xf]
  %v986 = vld [vmem:[%s1 + $0xec] sm:$0xf]
  %v987 = vld [vmem:[%s1 + $0xf0] sm:$0xf]
  %v988 = vld [vmem:[%s1 + $0xf4] sm:$0xf]
  %v989 = vld [vmem:[%s1 + $0xf8] sm:$0xf]
  %v990 = vld [vmem:[%s1 + $0xfc] sm:$0xf]
  %v991 = vunpack.c.l.bf16 %v927
  %v992 = vunpack.c.l.bf16 %v928
  %v993 = vunpack.c.l.bf16 %v929
  %v994 = vunpack.c.l.bf16 %v930
  %v995 = vunpack.c.l.bf16 %v931
  %v996 = vunpack.c.l.bf16 %v932
  %v997 = vunpack.c.l.bf16 %v933
  %v998 = vunpack.c.l.bf16 %v934
  %v999 = vunpack.c.l.bf16 %v935
  %v1000 = vunpack.c.l.bf16 %v936
  %v1001 = vunpack.c.l.bf16 %v937
  %v1002 = vunpack.c.l.bf16 %v938
  %v1003 = vunpack.c.l.bf16 %v939
  %v1004 = vunpack.c.l.bf16 %v940
  %v1005 = vunpack.c.l.bf16 %v941
  %v1006 = vunpack.c.l.bf16 %v942
  %v1007 = vunpack.c.l.bf16 %v943
  %v1008 = vunpack.c.l.bf16 %v944
  %v1009 = vunpack.c.l.bf16 %v945
  %v1010 = vunpack.c.l.bf16 %v946
  %v1011 = vunpack.c.l.bf16 %v947
  %v1012 = vunpack.c.l.bf16 %v948
  %v1013 = vunpack.c.l.bf16 %v949
  %v1014 = vunpack.c.l.bf16 %v950
  %v1015 = vunpack.c.l.bf16 %v951
  %v1016 = vunpack.c.l.bf16 %v952
  %v1017 = vunpack.c.l.bf16 %v953
  %v1018 = vunpack.c.l.bf16 %v954
  %v1019 = vunpack.c.l.bf16 %v955
  %v1020 = vunpack.c.l.bf16 %v956
  %v1021 = vunpack.c.l.bf16 %v957
  %v1022 = vunpack.c.l.bf16 %v958
  %v1023 = vunpack.c.l.bf16 %v959
  %v1024 = vunpack.c.l.bf16 %v960
  %v1025 = vunpack.c.l.bf16 %v961
  %v1026 = vunpack.c.l.bf16 %v962
  %v1027 = vunpack.c.l.bf16 %v963
  %v1028 = vunpack.c.l.bf16 %v964
  %v1029 = vunpack.c.l.bf16 %v965
  %v1030 = vunpack.c.l.bf16 %v966
  %v1031 = vunpack.c.l.bf16 %v967
  %v1032 = vunpack.c.l.bf16 %v968
  %v1033 = vunpack.c.l.bf16 %v969
  %v1034 = vunpack.c.l.bf16 %v970
  %v1035 = vunpack.c.l.bf16 %v971
  %v1036 = vunpack.c.l.bf16 %v972
  %v1037 = vunpack.c.l.bf16 %v973
  %v1038 = vunpack.c.l.bf16 %v974
  %v1039 = vunpack.c.l.bf16 %v975
  %v1040 = vunpack.c.l.bf16 %v976
  %v1041 = vunpack.c.l.bf16 %v977
  %v1042 = vunpack.c.l.bf16 %v978
  %v1043 = vunpack.c.l.bf16 %v979
  %v1044 = vunpack.c.l.bf16 %v980
  %v1045 = vunpack.c.l.bf16 %v981
  %v1046 = vunpack.c.l.bf16 %v982
  %v1047 = vunpack.c.l.bf16 %v983
  %v1048 = vunpack.c.l.bf16 %v984
  %v1049 = vunpack.c.l.bf16 %v985
  %v1050 = vunpack.c.l.bf16 %v986
  %v1051 = vunpack.c.l.bf16 %v987
  %v1052 = vunpack.c.l.bf16 %v988
  %v1053 = vunpack.c.l.bf16 %v989
  %v1054 = vunpack.c.l.bf16 %v990
  %v1055 = vadd.f32 %v863, %v991
  %v1056 = vadd.f32 %v864, %v992
  %v1057 = vadd.f32 %v865, %v993
  %v1058 = vadd.f32 %v866, %v994
  %v1059 = vadd.f32 %v867, %v995
  %v1060 = vadd.f32 %v868, %v996
  %v1061 = vadd.f32 %v869, %v997
  %v1062 = vadd.f32 %v870, %v998
  %v1063 = vadd.f32 %v871, %v999
  %v1064 = vadd.f32 %v872, %v1000
  %v1065 = vadd.f32 %v873, %v1001
  %v1066 = vadd.f32 %v874, %v1002
  %v1067 = vadd.f32 %v875, %v1003
  %v1068 = vadd.f32 %v876, %v1004
  %v1069 = vadd.f32 %v877, %v1005
  %v1070 = vadd.f32 %v878, %v1006
  %v1071 = vadd.f32 %v879, %v1007
  %v1072 = vadd.f32 %v880, %v1008
  %v1073 = vadd.f32 %v881, %v1009
  %v1074 = vadd.f32 %v882, %v1010
  %v1075 = vadd.f32 %v883, %v1011
  %v1076 = vadd.f32 %v884, %v1012
  %v1077 = vadd.f32 %v885, %v1013
  %v1078 = vadd.f32 %v886, %v1014
  %v1079 = vadd.f32 %v887, %v1015
  %v1080 = vadd.f32 %v888, %v1016
  %v1081 = vadd.f32 %v889, %v1017
  %v1082 = vadd.f32 %v890, %v1018
  %v1083 = vadd.f32 %v891, %v1019
  %v1084 = vadd.f32 %v892, %v1020
  %v1085 = vadd.f32 %v893, %v1021
  %v1086 = vadd.f32 %v894, %v1022
  %v1087 = vadd.f32 %v895, %v1023
  %v1088 = vadd.f32 %v896, %v1024
  %v1089 = vadd.f32 %v897, %v1025
  %v1090 = vadd.f32 %v898, %v1026
  %v1091 = vadd.f32 %v899, %v1027
  %v1092 = vadd.f32 %v900, %v1028
  %v1093 = vadd.f32 %v901, %v1029
  %v1094 = vadd.f32 %v902, %v1030
  %v1095 = vadd.f32 %v903, %v1031
  %v1096 = vadd.f32 %v904, %v1032
  %v1097 = vadd.f32 %v905, %v1033
  %v1098 = vadd.f32 %v906, %v1034
  %v1099 = vadd.f32 %v907, %v1035
  %v1100 = vadd.f32 %v908, %v1036
  %v1101 = vadd.f32 %v909, %v1037
  %v1102 = vadd.f32 %v910, %v1038
  %v1103 = vadd.f32 %v911, %v1039
  %v1104 = vadd.f32 %v912, %v1040
  %v1105 = vadd.f32 %v913, %v1041
  %v1106 = vadd.f32 %v914, %v1042
  %v1107 = vadd.f32 %v915, %v1043
  %v1108 = vadd.f32 %v916, %v1044
  %v1109 = vadd.f32 %v917, %v1045
  %v1110 = vadd.f32 %v918, %v1046
  %v1111 = vadd.f32 %v919, %v1047
  %v1112 = vadd.f32 %v920, %v1048
  %v1113 = vadd.f32 %v921, %v1049
  %v1114 = vadd.f32 %v922, %v1050
  %v1115 = vadd.f32 %v923, %v1051
  %v1116 = vadd.f32 %v924, %v1052
  %v1117 = vadd.f32 %v925, %v1053
  %v1118 = vadd.f32 %v926, %v1054
  %v1119 = vpack.c.bf16 %v1056, %v1055
  %v1120 = vpack.c.bf16 %v1058, %v1057
  %v1121 = vpack.c.bf16 %v1060, %v1059
  %v1122 = vpack.c.bf16 %v1062, %v1061
  %v1123 = vpack.c.bf16 %v1064, %v1063
  %v1124 = vpack.c.bf16 %v1066, %v1065
  %v1125 = vpack.c.bf16 %v1068, %v1067
  %v1126 = vpack.c.bf16 %v1070, %v1069
  %v1127 = vpack.c.bf16 %v1072, %v1071
  %v1128 = vpack.c.bf16 %v1074, %v1073
  %v1129 = vpack.c.bf16 %v1076, %v1075
  %v1130 = vpack.c.bf16 %v1078, %v1077
  %v1131 = vpack.c.bf16 %v1080, %v1079
  %v1132 = vpack.c.bf16 %v1082, %v1081
  %v1133 = vpack.c.bf16 %v1084, %v1083
  %v1134 = vpack.c.bf16 %v1086, %v1085
  %v1135 = vpack.c.bf16 %v1088, %v1087
  %v1136 = vpack.c.bf16 %v1090, %v1089
  %v1137 = vpack.c.bf16 %v1092, %v1091
  %v1138 = vpack.c.bf16 %v1094, %v1093
  %v1139 = vpack.c.bf16 %v1096, %v1095
  %v1140 = vpack.c.bf16 %v1098, %v1097
  %v1141 = vpack.c.bf16 %v1100, %v1099
  %v1142 = vpack.c.bf16 %v1102, %v1101
  %v1143 = vpack.c.bf16 %v1104, %v1103
  %v1144 = vpack.c.bf16 %v1106, %v1105
  %v1145 = vpack.c.bf16 %v1108, %v1107
  %v1146 = vpack.c.bf16 %v1110, %v1109
  %v1147 = vpack.c.bf16 %v1112, %v1111
  %v1148 = vpack.c.bf16 %v1114, %v1113
  %v1149 = vpack.c.bf16 %v1116, %v1115
  %v1150 = vpack.c.bf16 %v1118, %v1117
  %v1151 = vld [vmem:[%s4] sm:$0xf]
  %vm1152 = vcmask 64512
  %v1154 = vsel %vm1152, %v1119, 0
  %v1157 = vsel %vm1152, %v1120, 0
  %v1160 = vsel %vm1152, %v1121, 0
  %v1163 = vsel %vm1152, %v1122, 0
  %v1166 = vsel %vm1152, %v1123, 0
  %v1169 = vsel %vm1152, %v1124, 0
  %v1172 = vsel %vm1152, %v1125, 0
  %v1175 = vsel %vm1152, %v1126, 0
  %v1178 = vsel %vm1152, %v1127, 0
  %v1181 = vsel %vm1152, %v1128, 0
  %v1184 = vsel %vm1152, %v1129, 0
  %v1187 = vsel %vm1152, %v1130, 0
  %v1190 = vsel %vm1152, %v1131, 0
  %v1193 = vsel %vm1152, %v1132, 0
  %v1196 = vsel %vm1152, %v1133, 0
  %v1199 = vsel %vm1152, %v1134, 0
  %v1202 = vsel %vm1152, %v1135, 0
  %v1205 = vsel %vm1152, %v1136, 0
  %v1208 = vsel %vm1152, %v1137, 0
  %v1211 = vsel %vm1152, %v1138, 0
  %v1214 = vsel %vm1152, %v1139, 0
  %v1217 = vsel %vm1152, %v1140, 0
  %v1220 = vsel %vm1152, %v1141, 0
  %v1223 = vsel %vm1152, %v1142, 0
  %v1226 = vsel %vm1152, %v1143, 0
  %v1229 = vsel %vm1152, %v1144, 0
  %v1232 = vsel %vm1152, %v1145, 0
  %v1235 = vsel %vm1152, %v1146, 0
  %v1238 = vsel %vm1152, %v1147, 0
  %v1241 = vsel %vm1152, %v1148, 0
  %v1244 = vsel %vm1152, %v1149, 0
  %v1247 = vsel %vm1152, %v1150, 0
  %vm1249 = vcmask 1043456
  %v1251 = vsel %vm1249, %v1151, 0
  %1253 = vmatpush.bf16.msra.mxu0 0
  %1254 = vmatpush.bf16.msra.mxu0 0
  %1255 = vmatpush.bf16.msra.mxu0 0
  %1256 = vmatpush.bf16.msra.mxu0 0
  %1257 = vmatpush.bf16.msra.mxu0 0
  %1258 = vmatpush.bf16.msra.mxu0 0
  %1259 = vmatpush.bf16.msra.mxu0 0
  %1260 = vmatpush.bf16.msra.mxu0 %v1251
  %1261 = vmatmul.bf16.gmra.mxu0 %v1154
  %v1262 = vpop.f32.mrf.mxu0
  %v1263 = vadd.f32 0.0, %v1262
  %v1264 = vpop.f32.mrf.mxu0
  %v1265 = vadd.f32 0.0, %v1264
  %1266 = vmatmul.bf16.gmra.mxu0 %v1157
  %v1267 = vpop.f32.mrf.mxu0
  %v1268 = vadd.f32 0.0, %v1267
  %v1269 = vpop.f32.mrf.mxu0
  %v1270 = vadd.f32 0.0, %v1269
  %1271 = vmatmul.bf16.gmra.mxu0 %v1160
  %v1272 = vpop.f32.mrf.mxu0
  %v1273 = vadd.f32 0.0, %v1272
  %v1274 = vpop.f32.mrf.mxu0
  %v1275 = vadd.f32 0.0, %v1274
  %1276 = vmatmul.bf16.gmra.mxu0 %v1163
  %v1277 = vpop.f32.mrf.mxu0
  %v1278 = vadd.f32 0.0, %v1277
  %v1279 = vpop.f32.mrf.mxu0
  %v1280 = vadd.f32 0.0, %v1279
  %1281 = vmatmul.bf16.gmra.mxu0 %v1166
  %v1282 = vpop.f32.mrf.mxu0
  %v1283 = vadd.f32 0.0, %v1282
  %v1284 = vpop.f32.mrf.mxu0
  %v1285 = vadd.f32 0.0, %v1284
  %1286 = vmatmul.bf16.gmra.mxu0 %v1169
  %v1287 = vpop.f32.mrf.mxu0
  %v1288 = vadd.f32 0.0, %v1287
  %v1289 = vpop.f32.mrf.mxu0
  %v1290 = vadd.f32 0.0, %v1289
  %1291 = vmatmul.bf16.gmra.mxu0 %v1172
  %v1292 = vpop.f32.mrf.mxu0
  %v1293 = vadd.f32 0.0, %v1292
  %v1294 = vpop.f32.mrf.mxu0
  %v1295 = vadd.f32 0.0, %v1294
  %1296 = vmatmul.bf16.gmra.mxu0 %v1175
  %v1297 = vpop.f32.mrf.mxu0
  %v1298 = vadd.f32 0.0, %v1297
  %v1299 = vpop.f32.mrf.mxu0
  %v1300 = vadd.f32 0.0, %v1299
  %1301 = vmatmul.bf16.gmra.mxu0 %v1178
  %v1302 = vpop.f32.mrf.mxu0
  %v1303 = vadd.f32 0.0, %v1302
  %v1304 = vpop.f32.mrf.mxu0
  %v1305 = vadd.f32 0.0, %v1304
  %1306 = vmatmul.bf16.gmra.mxu0 %v1181
  %v1307 = vpop.f32.mrf.mxu0
  %v1308 = vadd.f32 0.0, %v1307
  %v1309 = vpop.f32.mrf.mxu0
  %v1310 = vadd.f32 0.0, %v1309
  %1311 = vmatmul.bf16.gmra.mxu0 %v1184
  %v1312 = vpop.f32.mrf.mxu0
  %v1313 = vadd.f32 0.0, %v1312
  %v1314 = vpop.f32.mrf.mxu0
  %v1315 = vadd.f32 0.0, %v1314
  %1316 = vmatmul.bf16.gmra.mxu0 %v1187
  %v1317 = vpop.f32.mrf.mxu0
  %v1318 = vadd.f32 0.0, %v1317
  %v1319 = vpop.f32.mrf.mxu0
  %v1320 = vadd.f32 0.0, %v1319
  %1321 = vmatmul.bf16.gmra.mxu0 %v1190
  %v1322 = vpop.f32.mrf.mxu0
  %v1323 = vadd.f32 0.0, %v1322
  %v1324 = vpop.f32.mrf.mxu0
  %v1325 = vadd.f32 0.0, %v1324
  %1326 = vmatmul.bf16.gmra.mxu0 %v1193
  %v1327 = vpop.f32.mrf.mxu0
  %v1328 = vadd.f32 0.0, %v1327
  %v1329 = vpop.f32.mrf.mxu0
  %v1330 = vadd.f32 0.0, %v1329
  %1331 = vmatmul.bf16.gmra.mxu0 %v1196
  %v1332 = vpop.f32.mrf.mxu0
  %v1333 = vadd.f32 0.0, %v1332
  %v1334 = vpop.f32.mrf.mxu0
  %v1335 = vadd.f32 0.0, %v1334
  %1336 = vmatmul.bf16.gmra.mxu0 %v1199
  %v1337 = vpop.f32.mrf.mxu0
  %v1338 = vadd.f32 0.0, %v1337
  %v1339 = vpop.f32.mrf.mxu0
  %v1340 = vadd.f32 0.0, %v1339
  %1341 = vmatmul.bf16.gmra.mxu0 %v1202
  %v1342 = vpop.f32.mrf.mxu0
  %v1343 = vadd.f32 0.0, %v1342
  %v1344 = vpop.f32.mrf.mxu0
  %v1345 = vadd.f32 0.0, %v1344
  %1346 = vmatmul.bf16.gmra.mxu0 %v1205
  %v1347 = vpop.f32.mrf.mxu0
  %v1348 = vadd.f32 0.0, %v1347
  %v1349 = vpop.f32.mrf.mxu0
  %v1350 = vadd.f32 0.0, %v1349
  %1351 = vmatmul.bf16.gmra.mxu0 %v1208
  %v1352 = vpop.f32.mrf.mxu0
  %v1353 = vadd.f32 0.0, %v1352
  %v1354 = vpop.f32.mrf.mxu0
  %v1355 = vadd.f32 0.0, %v1354
  %1356 = vmatmul.bf16.gmra.mxu0 %v1211
  %v1357 = vpop.f32.mrf.mxu0
  %v1358 = vadd.f32 0.0, %v1357
  %v1359 = vpop.f32.mrf.mxu0
  %v1360 = vadd.f32 0.0, %v1359
  %1361 = vmatmul.bf16.gmra.mxu0 %v1214
  %v1362 = vpop.f32.mrf.mxu0
  %v1363 = vadd.f32 0.0, %v1362
  %v1364 = vpop.f32.mrf.mxu0
  %v1365 = vadd.f32 0.0, %v1364
  %1366 = vmatmul.bf16.gmra.mxu0 %v1217
  %v1367 = vpop.f32.mrf.mxu0
  %v1368 = vadd.f32 0.0, %v1367
  %v1369 = vpop.f32.mrf.mxu0
  %v1370 = vadd.f32 0.0, %v1369
  %1371 = vmatmul.bf16.gmra.mxu0 %v1220
  %v1372 = vpop.f32.mrf.mxu0
  %v1373 = vadd.f32 0.0, %v1372
  %v1374 = vpop.f32.mrf.mxu0
  %v1375 = vadd.f32 0.0, %v1374
  %1376 = vmatmul.bf16.gmra.mxu0 %v1223
  %v1377 = vpop.f32.mrf.mxu0
  %v1378 = vadd.f32 0.0, %v1377
  %v1379 = vpop.f32.mrf.mxu0
  %v1380 = vadd.f32 0.0, %v1379
  %1381 = vmatmul.bf16.gmra.mxu0 %v1226
  %v1382 = vpop.f32.mrf.mxu0
  %v1383 = vadd.f32 0.0, %v1382
  %v1384 = vpop.f32.mrf.mxu0
  %v1385 = vadd.f32 0.0, %v1384
  %1386 = vmatmul.bf16.gmra.mxu0 %v1229
  %v1387 = vpop.f32.mrf.mxu0
  %v1388 = vadd.f32 0.0, %v1387
  %v1389 = vpop.f32.mrf.mxu0
  %v1390 = vadd.f32 0.0, %v1389
  %1391 = vmatmul.bf16.gmra.mxu0 %v1232
  %v1392 = vpop.f32.mrf.mxu0
  %v1393 = vadd.f32 0.0, %v1392
  %v1394 = vpop.f32.mrf.mxu0
  %v1395 = vadd.f32 0.0, %v1394
  %1396 = vmatmul.bf16.gmra.mxu0 %v1235
  %v1397 = vpop.f32.mrf.mxu0
  %v1398 = vadd.f32 0.0, %v1397
  %v1399 = vpop.f32.mrf.mxu0
  %v1400 = vadd.f32 0.0, %v1399
  %1401 = vmatmul.bf16.gmra.mxu0 %v1238
  %v1402 = vpop.f32.mrf.mxu0
  %v1403 = vadd.f32 0.0, %v1402
  %v1404 = vpop.f32.mrf.mxu0
  %v1405 = vadd.f32 0.0, %v1404
  %1406 = vmatmul.bf16.gmra.mxu0 %v1241
  %v1407 = vpop.f32.mrf.mxu0
  %v1408 = vadd.f32 0.0, %v1407
  %v1409 = vpop.f32.mrf.mxu0
  %v1410 = vadd.f32 0.0, %v1409
  %1411 = vmatmul.bf16.gmra.mxu0 %v1244
  %v1412 = vpop.f32.mrf.mxu0
  %v1413 = vadd.f32 0.0, %v1412
  %v1414 = vpop.f32.mrf.mxu0
  %v1415 = vadd.f32 0.0, %v1414
  %1416 = vmatmul.bf16.gmra.mxu0 %v1247
  %v1417 = vpop.f32.mrf.mxu0
  %v1418 = vadd.f32 0.0, %v1417
  %v1419 = vpop.f32.mrf.mxu0
  %v1420 = vadd.f32 0.0, %v1419
  %1421 = vdwg.mxu0
  %v1422 = vpack.c.bf16 %v1263, %v1263
  %v1423 = vpack.c.bf16 %v1265, %v1265
  %v1424 = vpack.c.bf16 %v1268, %v1268
  %v1425 = vpack.c.bf16 %v1270, %v1270
  %v1426 = vpack.c.bf16 %v1273, %v1273
  %v1427 = vpack.c.bf16 %v1275, %v1275
  %v1428 = vpack.c.bf16 %v1278, %v1278
  %v1429 = vpack.c.bf16 %v1280, %v1280
  %v1430 = vpack.c.bf16 %v1283, %v1283
  %v1431 = vpack.c.bf16 %v1285, %v1285
  %v1432 = vpack.c.bf16 %v1288, %v1288
  %v1433 = vpack.c.bf16 %v1290, %v1290
  %v1434 = vpack.c.bf16 %v1293, %v1293
  %v1435 = vpack.c.bf16 %v1295, %v1295
  %v1436 = vpack.c.bf16 %v1298, %v1298
  %v1437 = vpack.c.bf16 %v1300, %v1300
  %v1438 = vpack.c.bf16 %v1303, %v1303
  %v1439 = vpack.c.bf16 %v1305, %v1305
  %v1440 = vpack.c.bf16 %v1308, %v1308
  %v1441 = vpack.c.bf16 %v1310, %v1310
  %v1442 = vpack.c.bf16 %v1313, %v1313
  %v1443 = vpack.c.bf16 %v1315, %v1315
  %v1444 = vpack.c.bf16 %v1318, %v1318
  %v1445 = vpack.c.bf16 %v1320, %v1320
  %v1446 = vpack.c.bf16 %v1323, %v1323
  %v1447 = vpack.c.bf16 %v1325, %v1325
  %v1448 = vpack.c.bf16 %v1328, %v1328
  %v1449 = vpack.c.bf16 %v1330, %v1330
  %v1450 = vpack.c.bf16 %v1333, %v1333
  %v1451 = vpack.c.bf16 %v1335, %v1335
  %v1452 = vpack.c.bf16 %v1338, %v1338
  %v1453 = vpack.c.bf16 %v1340, %v1340
  %v1454 = vpack.c.bf16 %v1343, %v1343
  %v1455 = vpack.c.bf16 %v1345, %v1345
  %v1456 = vpack.c.bf16 %v1348, %v1348
  %v1457 = vpack.c.bf16 %v1350, %v1350
  %v1458 = vpack.c.bf16 %v1353, %v1353
  %v1459 = vpack.c.bf16 %v1355, %v1355
  %v1460 = vpack.c.bf16 %v1358, %v1358
  %v1461 = vpack.c.bf16 %v1360, %v1360
  %v1462 = vpack.c.bf16 %v1363, %v1363
  %v1463 = vpack.c.bf16 %v1365, %v1365
  %v1464 = vpack.c.bf16 %v1368, %v1368
  %v1465 = vpack.c.bf16 %v1370, %v1370
  %v1466 = vpack.c.bf16 %v1373, %v1373
  %v1467 = vpack.c.bf16 %v1375, %v1375
  %v1468 = vpack.c.bf16 %v1378, %v1378
  %v1469 = vpack.c.bf16 %v1380, %v1380
  %v1470 = vpack.c.bf16 %v1383, %v1383
  %v1471 = vpack.c.bf16 %v1385, %v1385
  %v1472 = vpack.c.bf16 %v1388, %v1388
  %v1473 = vpack.c.bf16 %v1390, %v1390
  %v1474 = vpack.c.bf16 %v1393, %v1393
  %v1475 = vpack.c.bf16 %v1395, %v1395
  %v1476 = vpack.c.bf16 %v1398, %v1398
  %v1477 = vpack.c.bf16 %v1400, %v1400
  %v1478 = vpack.c.bf16 %v1403, %v1403
  %v1479 = vpack.c.bf16 %v1405, %v1405
  %v1480 = vpack.c.bf16 %v1408, %v1408
  %v1481 = vpack.c.bf16 %v1410, %v1410
  %v1482 = vpack.c.bf16 %v1413, %v1413
  %v1483 = vpack.c.bf16 %v1415, %v1415
  %v1484 = vpack.c.bf16 %v1418, %v1418
  %v1485 = vpack.c.bf16 %v1420, %v1420
  %vm1486 = vcmask 60416
  %1487 = vst.msk [vmem:[%s5] sm:$0xf] %vm1486, %v1422
  %1488 = vst.msk [vmem:[%s5 + $0x4] sm:$0xf] %vm1486, %v1423
  %1489 = vst.msk [vmem:[%s5 + $0x8] sm:$0xf] %vm1486, %v1424
  %1490 = vst.msk [vmem:[%s5 + $0xc] sm:$0xf] %vm1486, %v1425
  %1491 = vst.msk [vmem:[%s5 + $0x10] sm:$0xf] %vm1486, %v1426
  %1492 = vst.msk [vmem:[%s5 + $0x14] sm:$0xf] %vm1486, %v1427
  %1493 = vst.msk [vmem:[%s5 + $0x18] sm:$0xf] %vm1486, %v1428
  %1494 = vst.msk [vmem:[%s5 + $0x1c] sm:$0xf] %vm1486, %v1429
  %1495 = vst.msk [vmem:[%s5 + $0x20] sm:$0xf] %vm1486, %v1430
  %1496 = vst.msk [vmem:[%s5 + $0x24] sm:$0xf] %vm1486, %v1431
  %1497 = vst.msk [vmem:[%s5 + $0x28] sm:$0xf] %vm1486, %v1432
  %1498 = vst.msk [vmem:[%s5 + $0x2c] sm:$0xf] %vm1486, %v1433
  %1499 = vst.msk [vmem:[%s5 + $0x30] sm:$0xf] %vm1486, %v1434
  %1500 = vst.msk [vmem:[%s5 + $0x34] sm:$0xf] %vm1486, %v1435
  %1501 = vst.msk [vmem:[%s5 + $0x38] sm:$0xf] %vm1486, %v1436
  %1502 = vst.msk [vmem:[%s5 + $0x3c] sm:$0xf] %vm1486, %v1437
  %1503 = vst.msk [vmem:[%s5 + $0x40] sm:$0xf] %vm1486, %v1438
  %1504 = vst.msk [vmem:[%s5 + $0x44] sm:$0xf] %vm1486, %v1439
  %1505 = vst.msk [vmem:[%s5 + $0x48] sm:$0xf] %vm1486, %v1440
  %1506 = vst.msk [vmem:[%s5 + $0x4c] sm:$0xf] %vm1486, %v1441
  %1507 = vst.msk [vmem:[%s5 + $0x50] sm:$0xf] %vm1486, %v1442
  %1508 = vst.msk [vmem:[%s5 + $0x54] sm:$0xf] %vm1486, %v1443
  %1509 = vst.msk [vmem:[%s5 + $0x58] sm:$0xf] %vm1486, %v1444
  %1510 = vst.msk [vmem:[%s5 + $0x5c] sm:$0xf] %vm1486, %v1445
  %1511 = vst.msk [vmem:[%s5 + $0x60] sm:$0xf] %vm1486, %v1446
  %1512 = vst.msk [vmem:[%s5 + $0x64] sm:$0xf] %vm1486, %v1447
  %1513 = vst.msk [vmem:[%s5 + $0x68] sm:$0xf] %vm1486, %v1448
  %1514 = vst.msk [vmem:[%s5 + $0x6c] sm:$0xf] %vm1486, %v1449
  %1515 = vst.msk [vmem:[%s5 + $0x70] sm:$0xf] %vm1486, %v1450
  %1516 = vst.msk [vmem:[%s5 + $0x74] sm:$0xf] %vm1486, %v1451
  %1517 = vst.msk [vmem:[%s5 + $0x78] sm:$0xf] %vm1486, %v1452
  %1518 = vst.msk [vmem:[%s5 + $0x7c] sm:$0xf] %vm1486, %v1453
  %1519 = vst.msk [vmem:[%s5 + $0x80] sm:$0xf] %vm1486, %v1454
  %1520 = vst.msk [vmem:[%s5 + $0x84] sm:$0xf] %vm1486, %v1455
  %1521 = vst.msk [vmem:[%s5 + $0x88] sm:$0xf] %vm1486, %v1456
  %1522 = vst.msk [vmem:[%s5 + $0x8c] sm:$0xf] %vm1486, %v1457
  %1523 = vst.msk [vmem:[%s5 + $0x90] sm:$0xf] %vm1486, %v1458
  %1524 = vst.msk [vmem:[%s5 + $0x94] sm:$0xf] %vm1486, %v1459
  %1525 = vst.msk [vmem:[%s5 + $0x98] sm:$0xf] %vm1486, %v1460
  %1526 = vst.msk [vmem:[%s5 + $0x9c] sm:$0xf] %vm1486, %v1461
  %1527 = vst.msk [vmem:[%s5 + $0xa0] sm:$0xf] %vm1486, %v1462
  %1528 = vst.msk [vmem:[%s5 + $0xa4] sm:$0xf] %vm1486, %v1463
  %1529 = vst.msk [vmem:[%s5 + $0xa8] sm:$0xf] %vm1486, %v1464
  %1530 = vst.msk [vmem:[%s5 + $0xac] sm:$0xf] %vm1486, %v1465
  %1531 = vst.msk [vmem:[%s5 + $0xb0] sm:$0xf] %vm1486, %v1466
  %1532 = vst.msk [vmem:[%s5 + $0xb4] sm:$0xf] %vm1486, %v1467
  %1533 = vst.msk [vmem:[%s5 + $0xb8] sm:$0xf] %vm1486, %v1468
  %1534 = vst.msk [vmem:[%s5 + $0xbc] sm:$0xf] %vm1486, %v1469
  %1535 = vst.msk [vmem:[%s5 + $0xc0] sm:$0xf] %vm1486, %v1470
  %1536 = vst.msk [vmem:[%s5 + $0xc4] sm:$0xf] %vm1486, %v1471
  %1537 = vst.msk [vmem:[%s5 + $0xc8] sm:$0xf] %vm1486, %v1472
  %1538 = vst.msk [vmem:[%s5 + $0xcc] sm:$0xf] %vm1486, %v1473
  %1539 = vst.msk [vmem:[%s5 + $0xd0] sm:$0xf] %vm1486, %v1474
  %1540 = vst.msk [vmem:[%s5 + $0xd4] sm:$0xf] %vm1486, %v1475
  %1541 = vst.msk [vmem:[%s5 + $0xd8] sm:$0xf] %vm1486, %v1476
  %1542 = vst.msk [vmem:[%s5 + $0xdc] sm:$0xf] %vm1486, %v1477
  %1543 = vst.msk [vmem:[%s5 + $0xe0] sm:$0xf] %vm1486, %v1478
  %1544 = vst.msk [vmem:[%s5 + $0xe4] sm:$0xf] %vm1486, %v1479
  %1545 = vst.msk [vmem:[%s5 + $0xe8] sm:$0xf] %vm1486, %v1480
  %1546 = vst.msk [vmem:[%s5 + $0xec] sm:$0xf] %vm1486, %v1481
  %1547 = vst.msk [vmem:[%s5 + $0xf0] sm:$0xf] %vm1486, %v1482
  %1548 = vst.msk [vmem:[%s5 + $0xf4] sm:$0xf] %vm1486, %v1483
  %1549 = vst.msk [vmem:[%s5 + $0xf8] sm:$0xf] %vm1486, %v1484
  %1550 = vst.msk [vmem:[%s5 + $0xfc] sm:$0xf] %vm1486, %v1485
  %v1551 = vunpack.c.l.bf16 %v1422
  %v1552 = vunpack.c.l.bf16 %v1423
  %v1553 = vunpack.c.l.bf16 %v1424
  %v1554 = vunpack.c.l.bf16 %v1425
  %v1555 = vunpack.c.l.bf16 %v1426
  %v1556 = vunpack.c.l.bf16 %v1427
  %v1557 = vunpack.c.l.bf16 %v1428
  %v1558 = vunpack.c.l.bf16 %v1429
  %v1559 = vunpack.c.l.bf16 %v1430
  %v1560 = vunpack.c.l.bf16 %v1431
  %v1561 = vunpack.c.l.bf16 %v1432
  %v1562 = vunpack.c.l.bf16 %v1433
  %v1563 = vunpack.c.l.bf16 %v1434
  %v1564 = vunpack.c.l.bf16 %v1435
  %v1565 = vunpack.c.l.bf16 %v1436
  %v1566 = vunpack.c.l.bf16 %v1437
  %v1567 = vunpack.c.l.bf16 %v1438
  %v1568 = vunpack.c.l.bf16 %v1439
  %v1569 = vunpack.c.l.bf16 %v1440
  %v1570 = vunpack.c.l.bf16 %v1441
  %v1571 = vunpack.c.l.bf16 %v1442
  %v1572 = vunpack.c.l.bf16 %v1443
  %v1573 = vunpack.c.l.bf16 %v1444
  %v1574 = vunpack.c.l.bf16 %v1445
  %v1575 = vunpack.c.l.bf16 %v1446
  %v1576 = vunpack.c.l.bf16 %v1447
  %v1577 = vunpack.c.l.bf16 %v1448
  %v1578 = vunpack.c.l.bf16 %v1449
  %v1579 = vunpack.c.l.bf16 %v1450
  %v1580 = vunpack.c.l.bf16 %v1451
  %v1581 = vunpack.c.l.bf16 %v1452
  %v1582 = vunpack.c.l.bf16 %v1453
  %v1583 = vunpack.c.l.bf16 %v1454
  %v1584 = vunpack.c.l.bf16 %v1455
  %v1585 = vunpack.c.l.bf16 %v1456
  %v1586 = vunpack.c.l.bf16 %v1457
  %v1587 = vunpack.c.l.bf16 %v1458
  %v1588 = vunpack.c.l.bf16 %v1459
  %v1589 = vunpack.c.l.bf16 %v1460
  %v1590 = vunpack.c.l.bf16 %v1461
  %v1591 = vunpack.c.l.bf16 %v1462
  %v1592 = vunpack.c.l.bf16 %v1463
  %v1593 = vunpack.c.l.bf16 %v1464
  %v1594 = vunpack.c.l.bf16 %v1465
  %v1595 = vunpack.c.l.bf16 %v1466
  %v1596 = vunpack.c.l.bf16 %v1467
  %v1597 = vunpack.c.l.bf16 %v1468
  %v1598 = vunpack.c.l.bf16 %v1469
  %v1599 = vunpack.c.l.bf16 %v1470
  %v1600 = vunpack.c.l.bf16 %v1471
  %v1601 = vunpack.c.l.bf16 %v1472
  %v1602 = vunpack.c.l.bf16 %v1473
  %v1603 = vunpack.c.l.bf16 %v1474
  %v1604 = vunpack.c.l.bf16 %v1475
  %v1605 = vunpack.c.l.bf16 %v1476
  %v1606 = vunpack.c.l.bf16 %v1477
  %v1607 = vunpack.c.l.bf16 %v1478
  %v1608 = vunpack.c.l.bf16 %v1479
  %v1609 = vunpack.c.l.bf16 %v1480
  %v1610 = vunpack.c.l.bf16 %v1481
  %v1611 = vunpack.c.l.bf16 %v1482
  %v1612 = vunpack.c.l.bf16 %v1483
  %v1613 = vunpack.c.l.bf16 %v1484
  %v1614 = vunpack.c.l.bf16 %v1485
  %v1615 = vsel %vm1152, %v1551, 0.0
  %v1616 = vsel %vm1152, %v1552, 0.0
  %v1617 = vadd.f32 %v1615, %v1616
  %v1618 = vsel %vm1152, %v1553, 0.0
  %v1619 = vadd.f32 %v1617, %v1618
  %v1620 = vsel %vm1152, %v1554, 0.0
  %v1621 = vadd.f32 %v1619, %v1620
  %v1622 = vsel %vm1152, %v1555, 0.0
  %v1623 = vadd.f32 %v1621, %v1622
  %v1624 = vsel %vm1152, %v1556, 0.0
  %v1625 = vadd.f32 %v1623, %v1624
  %v1626 = vsel %vm1152, %v1557, 0.0
  %v1627 = vadd.f32 %v1625, %v1626
  %v1628 = vsel %vm1152, %v1558, 0.0
  %v1629 = vadd.f32 %v1627, %v1628
  %v1630 = vsel %vm1152, %v1559, 0.0
  %v1631 = vadd.f32 %v1629, %v1630
  %v1632 = vsel %vm1152, %v1560, 0.0
  %v1633 = vadd.f32 %v1631, %v1632
  %v1634 = vsel %vm1152, %v1561, 0.0
  %v1635 = vadd.f32 %v1633, %v1634
  %v1636 = vsel %vm1152, %v1562, 0.0
  %v1637 = vadd.f32 %v1635, %v1636
  %v1638 = vsel %vm1152, %v1563, 0.0
  %v1639 = vadd.f32 %v1637, %v1638
  %v1640 = vsel %vm1152, %v1564, 0.0
  %v1641 = vadd.f32 %v1639, %v1640
  %v1642 = vsel %vm1152, %v1565, 0.0
  %v1643 = vadd.f32 %v1641, %v1642
  %v1644 = vsel %vm1152, %v1566, 0.0
  %v1645 = vadd.f32 %v1643, %v1644
  %v1646 = vsel %vm1152, %v1567, 0.0
  %v1647 = vadd.f32 %v1645, %v1646
  %v1648 = vsel %vm1152, %v1568, 0.0
  %v1649 = vadd.f32 %v1647, %v1648
  %v1650 = vsel %vm1152, %v1569, 0.0
  %v1651 = vadd.f32 %v1649, %v1650
  %v1652 = vsel %vm1152, %v1570, 0.0
  %v1653 = vadd.f32 %v1651, %v1652
  %v1654 = vsel %vm1152, %v1571, 0.0
  %v1655 = vadd.f32 %v1653, %v1654
  %v1656 = vsel %vm1152, %v1572, 0.0
  %v1657 = vadd.f32 %v1655, %v1656
  %v1658 = vsel %vm1152, %v1573, 0.0
  %v1659 = vadd.f32 %v1657, %v1658
  %v1660 = vsel %vm1152, %v1574, 0.0
  %v1661 = vadd.f32 %v1659, %v1660
  %v1662 = vsel %vm1152, %v1575, 0.0
  %v1663 = vadd.f32 %v1661, %v1662
  %v1664 = vsel %vm1152, %v1576, 0.0
  %v1665 = vadd.f32 %v1663, %v1664
  %v1666 = vsel %vm1152, %v1577, 0.0
  %v1667 = vadd.f32 %v1665, %v1666
  %v1668 = vsel %vm1152, %v1578, 0.0
  %v1669 = vadd.f32 %v1667, %v1668
  %v1670 = vsel %vm1152, %v1579, 0.0
  %v1671 = vadd.f32 %v1669, %v1670
  %v1672 = vsel %vm1152, %v1580, 0.0
  %v1673 = vadd.f32 %v1671, %v1672
  %v1674 = vsel %vm1152, %v1581, 0.0
  %v1675 = vadd.f32 %v1673, %v1674
  %v1676 = vsel %vm1152, %v1582, 0.0
  %v1677 = vadd.f32 %v1675, %v1676
  %v1678 = vsel %vm1152, %v1583, 0.0
  %v1679 = vadd.f32 %v1677, %v1678
  %v1680 = vsel %vm1152, %v1584, 0.0
  %v1681 = vadd.f32 %v1679, %v1680
  %v1682 = vsel %vm1152, %v1585, 0.0
  %v1683 = vadd.f32 %v1681, %v1682
  %v1684 = vsel %vm1152, %v1586, 0.0
  %v1685 = vadd.f32 %v1683, %v1684
  %v1686 = vsel %vm1152, %v1587, 0.0
  %v1687 = vadd.f32 %v1685, %v1686
  %v1688 = vsel %vm1152, %v1588, 0.0
  %v1689 = vadd.f32 %v1687, %v1688
  %v1690 = vsel %vm1152, %v1589, 0.0
  %v1691 = vadd.f32 %v1689, %v1690
  %v1692 = vsel %vm1152, %v1590, 0.0
  %v1693 = vadd.f32 %v1691, %v1692
  %v1694 = vsel %vm1152, %v1591, 0.0
  %v1695 = vadd.f32 %v1693, %v1694
  %v1696 = vsel %vm1152, %v1592, 0.0
  %v1697 = vadd.f32 %v1695, %v1696
  %v1698 = vsel %vm1152, %v1593, 0.0
  %v1699 = vadd.f32 %v1697, %v1698
  %v1700 = vsel %vm1152, %v1594, 0.0
  %v1701 = vadd.f32 %v1699, %v1700
  %v1702 = vsel %vm1152, %v1595, 0.0
  %v1703 = vadd.f32 %v1701, %v1702
  %v1704 = vsel %vm1152, %v1596, 0.0
  %v1705 = vadd.f32 %v1703, %v1704
  %v1706 = vsel %vm1152, %v1597, 0.0
  %v1707 = vadd.f32 %v1705, %v1706
  %v1708 = vsel %vm1152, %v1598, 0.0
  %v1709 = vadd.f32 %v1707, %v1708
  %v1710 = vsel %vm1152, %v1599, 0.0
  %v1711 = vadd.f32 %v1709, %v1710
  %v1712 = vsel %vm1152, %v1600, 0.0
  %v1713 = vadd.f32 %v1711, %v1712
  %v1714 = vsel %vm1152, %v1601, 0.0
  %v1715 = vadd.f32 %v1713, %v1714
  %v1716 = vsel %vm1152, %v1602, 0.0
  %v1717 = vadd.f32 %v1715, %v1716
  %v1718 = vsel %vm1152, %v1603, 0.0
  %v1719 = vadd.f32 %v1717, %v1718
  %v1720 = vsel %vm1152, %v1604, 0.0
  %v1721 = vadd.f32 %v1719, %v1720
  %v1722 = vsel %vm1152, %v1605, 0.0
  %v1723 = vadd.f32 %v1721, %v1722
  %v1724 = vsel %vm1152, %v1606, 0.0
  %v1725 = vadd.f32 %v1723, %v1724
  %v1726 = vsel %vm1152, %v1607, 0.0
  %v1727 = vadd.f32 %v1725, %v1726
  %v1728 = vsel %vm1152, %v1608, 0.0
  %v1729 = vadd.f32 %v1727, %v1728
  %v1730 = vsel %vm1152, %v1609, 0.0
  %v1731 = vadd.f32 %v1729, %v1730
  %v1732 = vsel %vm1152, %v1610, 0.0
  %v1733 = vadd.f32 %v1731, %v1732
  %v1734 = vsel %vm1152, %v1611, 0.0
  %v1735 = vadd.f32 %v1733, %v1734
  %v1736 = vsel %vm1152, %v1612, 0.0
  %v1737 = vadd.f32 %v1735, %v1736
  %v1738 = vsel %vm1152, %v1613, 0.0
  %v1739 = vadd.f32 %v1737, %v1738
  %v1740 = vsel %vm1152, %v1614, 0.0
  %v1741 = vadd.f32 %v1739, %v1740
  %v1742 = vrot.slane %v1741, 4
  %v1743 = vadd.f32 %v1741, %v1742
  %v1744 = vrot.slane %v1743, 2
  %v1745 = vadd.f32 %v1743, %v1744
  %v1746 = vrot.slane %v1745, 1
  %v1747 = vadd.f32 %v1745, %v1746
  %v1748 = vmul.f32 %v1747, 0.001953125
  %v1749 = vsub.f32 %v1551, %v1748
  %v1750 = vsub.f32 %v1552, %v1748
  %v1751 = vsub.f32 %v1553, %v1748
  %v1752 = vsub.f32 %v1554, %v1748
  %v1753 = vsub.f32 %v1555, %v1748
  %v1754 = vsub.f32 %v1556, %v1748
  %v1755 = vsub.f32 %v1557, %v1748
  %v1756 = vsub.f32 %v1558, %v1748
  %v1757 = vsub.f32 %v1559, %v1748
  %v1758 = vsub.f32 %v1560, %v1748
  %v1759 = vsub.f32 %v1561, %v1748
  %v1760 = vsub.f32 %v1562, %v1748
  %v1761 = vsub.f32 %v1563, %v1748
  %v1762 = vsub.f32 %v1564, %v1748
  %v1763 = vsub.f32 %v1565, %v1748
  %v1764 = vsub.f32 %v1566, %v1748
  %v1765 = vsub.f32 %v1567, %v1748
  %v1766 = vsub.f32 %v1568, %v1748
  %v1767 = vsub.f32 %v1569, %v1748
  %v1768 = vsub.f32 %v1570, %v1748
  %v1769 = vsub.f32 %v1571, %v1748
  %v1770 = vsub.f32 %v1572, %v1748
  %v1771 = vsub.f32 %v1573, %v1748
  %v1772 = vsub.f32 %v1574, %v1748
  %v1773 = vsub.f32 %v1575, %v1748
  %v1774 = vsub.f32 %v1576, %v1748
  %v1775 = vsub.f32 %v1577, %v1748
  %v1776 = vsub.f32 %v1578, %v1748
  %v1777 = vsub.f32 %v1579, %v1748
  %v1778 = vsub.f32 %v1580, %v1748
  %v1779 = vsub.f32 %v1581, %v1748
  %v1780 = vsub.f32 %v1582, %v1748
  %v1781 = vsub.f32 %v1583, %v1748
  %v1782 = vsub.f32 %v1584, %v1748
  %v1783 = vsub.f32 %v1585, %v1748
  %v1784 = vsub.f32 %v1586, %v1748
  %v1785 = vsub.f32 %v1587, %v1748
  %v1786 = vsub.f32 %v1588, %v1748
  %v1787 = vsub.f32 %v1589, %v1748
  %v1788 = vsub.f32 %v1590, %v1748
  %v1789 = vsub.f32 %v1591, %v1748
  %v1790 = vsub.f32 %v1592, %v1748
  %v1791 = vsub.f32 %v1593, %v1748
  %v1792 = vsub.f32 %v1594, %v1748
  %v1793 = vsub.f32 %v1595, %v1748
  %v1794 = vsub.f32 %v1596, %v1748
  %v1795 = vsub.f32 %v1597, %v1748
  %v1796 = vsub.f32 %v1598, %v1748
  %v1797 = vsub.f32 %v1599, %v1748
  %v1798 = vsub.f32 %v1600, %v1748
  %v1799 = vsub.f32 %v1601, %v1748
  %v1800 = vsub.f32 %v1602, %v1748
  %v1801 = vsub.f32 %v1603, %v1748
  %v1802 = vsub.f32 %v1604, %v1748
  %v1803 = vsub.f32 %v1605, %v1748
  %v1804 = vsub.f32 %v1606, %v1748
  %v1805 = vsub.f32 %v1607, %v1748
  %v1806 = vsub.f32 %v1608, %v1748
  %v1807 = vsub.f32 %v1609, %v1748
  %v1808 = vsub.f32 %v1610, %v1748
  %v1809 = vsub.f32 %v1611, %v1748
  %v1810 = vsub.f32 %v1612, %v1748
  %v1811 = vsub.f32 %v1613, %v1748
  %v1812 = vsub.f32 %v1614, %v1748
  %vm1813 = vcmask 57344
  %1814 = vst.msk [vmem:[%s6] sm:$0x1] %vm1813, %v1747
  %v1815 = vmul.f32 %v1749, %v1749
  %v1816 = vmul.f32 %v1750, %v1750
  %v1817 = vmul.f32 %v1751, %v1751
  %v1818 = vmul.f32 %v1752, %v1752
  %v1819 = vmul.f32 %v1753, %v1753
  %v1820 = vmul.f32 %v1754, %v1754
  %v1821 = vmul.f32 %v1755, %v1755
  %v1822 = vmul.f32 %v1756, %v1756
  %v1823 = vmul.f32 %v1757, %v1757
  %v1824 = vmul.f32 %v1758, %v1758
  %v1825 = vmul.f32 %v1759, %v1759
  %v1826 = vmul.f32 %v1760, %v1760
  %v1827 = vmul.f32 %v1761, %v1761
  %v1828 = vmul.f32 %v1762, %v1762
  %v1829 = vmul.f32 %v1763, %v1763
  %v1830 = vmul.f32 %v1764, %v1764
  %v1831 = vmul.f32 %v1765, %v1765
  %v1832 = vmul.f32 %v1766, %v1766
  %v1833 = vmul.f32 %v1767, %v1767
  %v1834 = vmul.f32 %v1768, %v1768
  %v1835 = vmul.f32 %v1769, %v1769
  %v1836 = vmul.f32 %v1770, %v1770
  %v1837 = vmul.f32 %v1771, %v1771
  %v1838 = vmul.f32 %v1772, %v1772
  %v1839 = vmul.f32 %v1773, %v1773
  %v1840 = vmul.f32 %v1774, %v1774
  %v1841 = vmul.f32 %v1775, %v1775
  %v1842 = vmul.f32 %v1776, %v1776
  %v1843 = vmul.f32 %v1777, %v1777
  %v1844 = vmul.f32 %v1778, %v1778
  %v1845 = vmul.f32 %v1779, %v1779
  %v1846 = vmul.f32 %v1780, %v1780
  %v1847 = vmul.f32 %v1781, %v1781
  %v1848 = vmul.f32 %v1782, %v1782
  %v1849 = vmul.f32 %v1783, %v1783
  %v1850 = vmul.f32 %v1784, %v1784
  %v1851 = vmul.f32 %v1785, %v1785
  %v1852 = vmul.f32 %v1786, %v1786
  %v1853 = vmul.f32 %v1787, %v1787
  %v1854 = vmul.f32 %v1788, %v1788
  %v1855 = vmul.f32 %v1789, %v1789
  %v1856 = vmul.f32 %v1790, %v1790
  %v1857 = vmul.f32 %v1791, %v1791
  %v1858 = vmul.f32 %v1792, %v1792
  %v1859 = vmul.f32 %v1793, %v1793
  %v1860 = vmul.f32 %v1794, %v1794
  %v1861 = vmul.f32 %v1795, %v1795
  %v1862 = vmul.f32 %v1796, %v1796
  %v1863 = vmul.f32 %v1797, %v1797
  %v1864 = vmul.f32 %v1798, %v1798
  %v1865 = vmul.f32 %v1799, %v1799
  %v1866 = vmul.f32 %v1800, %v1800
  %v1867 = vmul.f32 %v1801, %v1801
  %v1868 = vmul.f32 %v1802, %v1802
  %v1869 = vmul.f32 %v1803, %v1803
  %v1870 = vmul.f32 %v1804, %v1804
  %v1871 = vmul.f32 %v1805, %v1805
  %v1872 = vmul.f32 %v1806, %v1806
  %v1873 = vmul.f32 %v1807, %v1807
  %v1874 = vmul.f32 %v1808, %v1808
  %v1875 = vmul.f32 %v1809, %v1809
  %v1876 = vmul.f32 %v1810, %v1810
  %v1877 = vmul.f32 %v1811, %v1811
  %v1878 = vmul.f32 %v1812, %v1812
  %v1879 = vsel %vm1152, %v1815, 0.0
  %v1880 = vsel %vm1152, %v1816, 0.0
  %v1881 = vadd.f32 %v1879, %v1880
  %v1882 = vsel %vm1152, %v1817, 0.0
  %v1883 = vadd.f32 %v1881, %v1882
  %v1884 = vsel %vm1152, %v1818, 0.0
  %v1885 = vadd.f32 %v1883, %v1884
  %v1886 = vsel %vm1152, %v1819, 0.0
  %v1887 = vadd.f32 %v1885, %v1886
  %v1888 = vsel %vm1152, %v1820, 0.0
  %v1889 = vadd.f32 %v1887, %v1888
  %v1890 = vsel %vm1152, %v1821, 0.0
  %v1891 = vadd.f32 %v1889, %v1890
  %v1892 = vsel %vm1152, %v1822, 0.0
  %v1893 = vadd.f32 %v1891, %v1892
  %v1894 = vsel %vm1152, %v1823, 0.0
  %v1895 = vadd.f32 %v1893, %v1894
  %v1896 = vsel %vm1152, %v1824, 0.0
  %v1897 = vadd.f32 %v1895, %v1896
  %v1898 = vsel %vm1152, %v1825, 0.0
  %v1899 = vadd.f32 %v1897, %v1898
  %v1900 = vsel %vm1152, %v1826, 0.0
  %v1901 = vadd.f32 %v1899, %v1900
  %v1902 = vsel %vm1152, %v1827, 0.0
  %v1903 = vadd.f32 %v1901, %v1902
  %v1904 = vsel %vm1152, %v1828, 0.0
  %v1905 = vadd.f32 %v1903, %v1904
  %v1906 = vsel %vm1152, %v1829, 0.0
  %v1907 = vadd.f32 %v1905, %v1906
  %v1908 = vsel %vm1152, %v1830, 0.0
  %v1909 = vadd.f32 %v1907, %v1908
  %v1910 = vsel %vm1152, %v1831, 0.0
  %v1911 = vadd.f32 %v1909, %v1910
  %v1912 = vsel %vm1152, %v1832, 0.0
  %v1913 = vadd.f32 %v1911, %v1912
  %v1914 = vsel %vm1152, %v1833, 0.0
  %v1915 = vadd.f32 %v1913, %v1914
  %v1916 = vsel %vm1152, %v1834, 0.0
  %v1917 = vadd.f32 %v1915, %v1916
  %v1918 = vsel %vm1152, %v1835, 0.0
  %v1919 = vadd.f32 %v1917, %v1918
  %v1920 = vsel %vm1152, %v1836, 0.0
  %v1921 = vadd.f32 %v1919, %v1920
  %v1922 = vsel %vm1152, %v1837, 0.0
  %v1923 = vadd.f32 %v1921, %v1922
  %v1924 = vsel %vm1152, %v1838, 0.0
  %v1925 = vadd.f32 %v1923, %v1924
  %v1926 = vsel %vm1152, %v1839, 0.0
  %v1927 = vadd.f32 %v1925, %v1926
  %v1928 = vsel %vm1152, %v1840, 0.0
  %v1929 = vadd.f32 %v1927, %v1928
  %v1930 = vsel %vm1152, %v1841, 0.0
  %v1931 = vadd.f32 %v1929, %v1930
  %v1932 = vsel %vm1152, %v1842, 0.0
  %v1933 = vadd.f32 %v1931, %v1932
  %v1934 = vsel %vm1152, %v1843, 0.0
  %v1935 = vadd.f32 %v1933, %v1934
  %v1936 = vsel %vm1152, %v1844, 0.0
  %v1937 = vadd.f32 %v1935, %v1936
  %v1938 = vsel %vm1152, %v1845, 0.0
  %v1939 = vadd.f32 %v1937, %v1938
  %v1940 = vsel %vm1152, %v1846, 0.0
  %v1941 = vadd.f32 %v1939, %v1940
  %v1942 = vsel %vm1152, %v1847, 0.0
  %v1943 = vadd.f32 %v1941, %v1942
  %v1944 = vsel %vm1152, %v1848, 0.0
  %v1945 = vadd.f32 %v1943, %v1944
  %v1946 = vsel %vm1152, %v1849, 0.0
  %v1947 = vadd.f32 %v1945, %v1946
  %v1948 = vsel %vm1152, %v1850, 0.0
  %v1949 = vadd.f32 %v1947, %v1948
  %v1950 = vsel %vm1152, %v1851, 0.0
  %v1951 = vadd.f32 %v1949, %v1950
  %v1952 = vsel %vm1152, %v1852, 0.0
  %v1953 = vadd.f32 %v1951, %v1952
  %v1954 = vsel %vm1152, %v1853, 0.0
  %v1955 = vadd.f32 %v1953, %v1954
  %v1956 = vsel %vm1152, %v1854, 0.0
  %v1957 = vadd.f32 %v1955, %v1956
  %v1958 = vsel %vm1152, %v1855, 0.0
  %v1959 = vadd.f32 %v1957, %v1958
  %v1960 = vsel %vm1152, %v1856, 0.0
  %v1961 = vadd.f32 %v1959, %v1960
  %v1962 = vsel %vm1152, %v1857, 0.0
  %v1963 = vadd.f32 %v1961, %v1962
  %v1964 = vsel %vm1152, %v1858, 0.0
  %v1965 = vadd.f32 %v1963, %v1964
  %v1966 = vsel %vm1152, %v1859, 0.0
  %v1967 = vadd.f32 %v1965, %v1966
  %v1968 = vsel %vm1152, %v1860, 0.0
  %v1969 = vadd.f32 %v1967, %v1968
  %v1970 = vsel %vm1152, %v1861, 0.0
  %v1971 = vadd.f32 %v1969, %v1970
  %v1972 = vsel %vm1152, %v1862, 0.0
  %v1973 = vadd.f32 %v1971, %v1972
  %v1974 = vsel %vm1152, %v1863, 0.0
  %v1975 = vadd.f32 %v1973, %v1974
  %v1976 = vsel %vm1152, %v1864, 0.0
  %v1977 = vadd.f32 %v1975, %v1976
  %v1978 = vsel %vm1152, %v1865, 0.0
  %v1979 = vadd.f32 %v1977, %v1978
  %v1980 = vsel %vm1152, %v1866, 0.0
  %v1981 = vadd.f32 %v1979, %v1980
  %v1982 = vsel %vm1152, %v1867, 0.0
  %v1983 = vadd.f32 %v1981, %v1982
  %v1984 = vsel %vm1152, %v1868, 0.0
  %v1985 = vadd.f32 %v1983, %v1984
  %v1986 = vsel %vm1152, %v1869, 0.0
  %v1987 = vadd.f32 %v1985, %v1986
  %v1988 = vsel %vm1152, %v1870, 0.0
  %v1989 = vadd.f32 %v1987, %v1988
  %v1990 = vsel %vm1152, %v1871, 0.0
  %v1991 = vadd.f32 %v1989, %v1990
  %v1992 = vsel %vm1152, %v1872, 0.0
  %v1993 = vadd.f32 %v1991, %v1992
  %v1994 = vsel %vm1152, %v1873, 0.0
  %v1995 = vadd.f32 %v1993, %v1994
  %v1996 = vsel %vm1152, %v1874, 0.0
  %v1997 = vadd.f32 %v1995, %v1996
  %v1998 = vsel %vm1152, %v1875, 0.0
  %v1999 = vadd.f32 %v1997, %v1998
  %v2000 = vsel %vm1152, %v1876, 0.0
  %v2001 = vadd.f32 %v1999, %v2000
  %v2002 = vsel %vm1152, %v1877, 0.0
  %v2003 = vadd.f32 %v2001, %v2002
  %v2004 = vsel %vm1152, %v1878, 0.0
  %v2005 = vadd.f32 %v2003, %v2004
  %v2006 = vrot.slane %v2005, 4
  %v2007 = vadd.f32 %v2005, %v2006
  %v2008 = vrot.slane %v2007, 2
  %v2009 = vadd.f32 %v2007, %v2008
  %v2010 = vrot.slane %v2009, 1
  %v2011 = vadd.f32 %v2009, %v2010
  %2012 = vst.msk [vmem:[%s6 + $0x1] sm:$0x1] %vm1813, %v2011
  // Predicated region
  $region22: #{conv_mixer_forward.4} parent=0 // pred_check
    _
  $region23: #{conv_mixer_forward.4} parent=0 // pred_check_branch
    %2014 = sbr.rel (0) target = $region25
  $region24: #{conv_mixer_forward.4} parent=0 // pred_region
    _
  $region25: #{conv_mixer_forward.4} parent=0 // pred_fallthru
    _
  // Predicated region
  $region26: #{conv_mixer_forward.4} parent=0 // pred_check
    _
  $region27: #{conv_mixer_forward.4} parent=0 // pred_check_branch
    %2016 = sbr.rel (0) target = $region29
  $region28: #{conv_mixer_forward.4} parent=0 // pred_region
    _
  $region29: #{conv_mixer_forward.4} parent=0 // pred_fallthru
    _
  // Predicated region
  $region30: #{conv_mixer_forward.4} parent=0 // pred_check
    _
  $region31: #{conv_mixer_forward.4} parent=0 // pred_check_branch
    %2018 = sbr.rel (0) target = $region33
  $region32: #{conv_mixer_forward.4} parent=0 // pred_region
    _
  $region33: #{conv_mixer_forward.4} parent=0 // pred_fallthru
    _
  // Predicated region
  $region34: #{conv_mixer_forward.4} parent=0 // pred_check
    _
  $region35: #{conv_mixer_forward.4} parent=0 // pred_check_branch
    %2020 = sbr.rel (0) target = $region37
  $region36: #{conv_mixer_forward.4} parent=0 // pred_region
    _
  $region37: #{conv_mixer_forward.4} parent=0 // pred_fallthru
    _

// kernel: conv_mixer_forward.3
$region0: #{conv_mixer_forward.3}
  #allocation0 [shape = 'u32[]', space=smem, size = 0x4, offset = 0x4, fixed_abs, tag = 'smem constant byte address 0x4 - core index']
  #allocation1 [shape = 'u32[72,128]{1,0:T(1,128)}', space=vmem, size = 0x9000, scoped, tag = 'internal scratch']
  #allocation2 [shape = 'f32[22,27,8]{2,1,0:T(8,128)}', space=vmem, size = 0x58000, scoped, tag = 'scratch operand']
  #allocation3 [shape = 'bf16[6,16,8]{2,1,0:T(8,128)(2,1)}', space=vmem, size = 0x6000, scoped, tag = 'scratch operand']
  #allocation4 [shape = 's32[2]{0}', space=sflag, size = 0x8, scoped, tag = 'scratch operand']
  %s0 = inlined_call_operand.vmem [shape: bf16[2,16,16,8], index: 0, kind: input, shape index: {}, may-alias: {0,1}]
  %s1 = inlined_call_operand.vmem [shape: bf16[2,16,16,8], index: 1, kind: input, shape index: {}, may-alias: {0,1}]
  %s2 = inlined_call_operand.vmem [shape: f32[49,8], index: 2, kind: input, shape index: {}]
  %s3 = inlined_call_operand.vmem [shape: bf16[2,16,16,8], index: 3, kind: output, shape index: {0}]
  %s4 = inlined_call_operand.vmem [shape: f32[2,1,2,8], index: 4, kind: output, shape index: {1}]
  %5 = xla_tuple %s3, %s4
  %s6 = sld [smem:[#allocation0]]
  $region49: #{conv_mixer_forward.3} parent=0
    _
  %s8 = ssub.s32 1, %s6
  %s9 = scalar_select 0, %s8, %s6
  loop: start=0, step=1, limit=4
  $region2: #{conv_mixer_forward.3} parent=0 // loop_pre_header
    _
  $region3: #{conv_mixer_forward.3} parent=0 // loop_header
    %s11 = sphi 0, %s15
    %p12 = scmp.ge.s32.totalorder %s11, 4
    %s18 = sphi 0, %s30
    %s19 = sphi 0, %s26
    %s20 = sphi 0, %s18
    %s21 = sphi 0, %s19
    %s22 = sphi 0, %s20
    %s23 = sphi 0, %s21
    %s35 = sphi 0, %s37
    %s38 = sphi 0, %s35
    %s39 = sphi 0, %s38
    %s55 = sphi 0, %s39
    %s59 = sphi 0, %s59
    %s61 = sphi 0, %s59
    %s62 = sphi 0, %s61
    %s76 = sphi 0, %s62
    %s84 = sphi 0, %s86
    %s87 = sphi 0, %s84
    %s88 = sphi 0, %s87
    %s104 = sphi 0, %s88
    %s112 = sphi 0, %s114
    %s115 = sphi 0, %s112
    %s116 = sphi 0, %s115
    %s132 = sphi 0, %s116
  $region4: #{conv_mixer_forward.3} parent=0 // loop_header_branch
    %14 = sbr.rel (%p12) target = $region8
  $region5: #{conv_mixer_forward.3} parent=0 // loop_body
    %s16 = ssub.s32 %s11, 1
    %s17 = ssub.s32 %s11, 2
    %s24 = sadd.s32 1, %s19
    %p25 = scmp.ge.s32.totalorder %s24, 1
    %s26 = scalar_select %p25, 0, %s24
    %s27 = sadd.s32 1, %s18
    %s28 = scalar_select %p25, %s27, %s18
    %p29 = scmp.ge.s32.totalorder %s28, 2
    %s30 = scalar_select %p29, 0, %s28
    %s31 = ssub.s32 %s18, %s30
    %s32 = ssub.s32 %s19, %s26
    %s33 = sor.u32 %s31, %s32
    %p34 = scmp.eq.s32.totalorder %s33, 0
    %s36 = sadd.s32 %s35, 1
    %s37 = scalar_select %p34, %s35, %s36
    %p40 = pneg %p34
    %p41 = scmp.eq.s32.totalorder %s11, 1
    %p42 = por %p40, %p41
    %p43 = scmp.ne.s32.totalorder %s35, %s38
    %p44 = scmp.eq.s32.totalorder %s11, 0
    %p45 = por %p43, %p44
    %p46 = scmp.ne.s32.totalorder %s35, %s38
    %p47 = scmp.eq.s32.totalorder %s16, 1
    %p48 = por %p46, %p47
    %p49 = scmp.ne.s32.totalorder %s38, %s39
    %p50 = scmp.eq.s32.totalorder %s16, 0
    %p51 = por %p49, %p50
    %p52 = scmp.ne.s32.totalorder %s38, %s39
    %p53 = scmp.eq.s32.totalorder %s17, 1
    %p54 = por %p52, %p53
    %p56 = scmp.ne.s32.totalorder %s39, %s55
    %p57 = scmp.eq.s32.totalorder %s17, 0
    %p58 = por %p56, %p57
    %s60 = sadd.s32 %s59, 1
    %p63 = scmp.eq.s32.totalorder %s11, 1
    %p64 = scmp.ne.s32.totalorder %s59, %s61
    %p65 = scmp.eq.s32.totalorder %s11, 0
    %p66 = por %p64, %p65
    %p67 = scmp.ne.s32.totalorder %s59, %s61
    %p68 = scmp.eq.s32.totalorder %s16, 1
    %p69 = por %p67, %p68
    %p70 = scmp.ne.s32.totalorder %s61, %s62
    %p71 = scmp.eq.s32.totalorder %s16, 0
    %p72 = por %p70, %p71
    %p73 = scmp.ne.s32.totalorder %s61, %s62
    %p74 = scmp.eq.s32.totalorder %s17, 1
    %p75 = por %p73, %p74
    %p77 = scmp.ne.s32.totalorder %s62, %s76
    %p78 = scmp.eq.s32.totalorder %s17, 0
    %p79 = por %p77, %p78
    %s80 = ssub.s32 %s18, %s30
    %s81 = ssub.s32 %s19, %s26
    %s82 = sor.u32 %s80, %s81
    %p83 = scmp.eq.s32.totalorder %s82, 0
    %s85 = sadd.s32 %s84, 1
    %s86 = scalar_select %p83, %s84, %s85
    %p89 = pneg %p83
    %p90 = scmp.eq.s32.totalorder %s11, 1
    %p91 = por %p89, %p90
    %p92 = scmp.ne.s32.totalorder %s84, %s87
    %p93 = scmp.eq.s32.totalorder %s11, 0
    %p94 = por %p92, %p93
    %p95 = scmp.ne.s32.totalorder %s84, %s87
    %p96 = scmp.eq.s32.totalorder %s16, 1
    %p97 = por %p95, %p96
    %p98 = scmp.ne.s32.totalorder %s87, %s88
    %p99 = scmp.eq.s32.totalorder %s16, 0
    %p100 = por %p98, %p99
    %p101 = scmp.ne.s32.totalorder %s87, %s88
    %p102 = scmp.eq.s32.totalorder %s17, 1
    %p103 = por %p101, %p102
    %p105 = scmp.ne.s32.totalorder %s88, %s104
    %p106 = scmp.eq.s32.totalorder %s17, 0
    %p107 = por %p105, %p106
    %s108 = ssub.s32 %s18, %s30
    %s109 = ssub.s32 %s19, %s26
    %s110 = sor.u32 %s108, %s109
    %p111 = scmp.eq.s32.totalorder %s110, 0
    %s113 = sadd.s32 %s112, 1
    %s114 = scalar_select %p111, %s112, %s113
    %p117 = pneg %p111
    %p118 = scmp.eq.s32.totalorder %s11, 1
    %p119 = por %p117, %p118
    %p120 = scmp.ne.s32.totalorder %s112, %s115
    %p121 = scmp.eq.s32.totalorder %s11, 0
    %p122 = por %p120, %p121
    %p123 = scmp.ne.s32.totalorder %s112, %s115
    %p124 = scmp.eq.s32.totalorder %s16, 1
    %p125 = por %p123, %p124
    %p126 = scmp.ne.s32.totalorder %s115, %s116
    %p127 = scmp.eq.s32.totalorder %s16, 0
    %p128 = por %p126, %p127
    %p129 = scmp.ne.s32.totalorder %s115, %s116
    %p130 = scmp.eq.s32.totalorder %s17, 1
    %p131 = por %p129, %p130
    %p133 = scmp.ne.s32.totalorder %s116, %s132
    %p134 = scmp.eq.s32.totalorder %s17, 0
    %p135 = por %p133, %p134
    %p136 = scmp.le.s32.totalorder 1, %s11
    %p137 = scmp.lt.s32.totalorder %s11, 3
    %p138 = pnand %p136, %p137
    %p139 = pneg %p138
    // Predicated region
    $region9: #{conv_mixer_forward.3} parent=5 // pred_check
      _
    $region10: #{conv_mixer_forward.3} parent=5 // pred_check_branch
      %141 = sbr.rel (%p138) target = $region12
    $region11: #{conv_mixer_forward.3} parent=5 // pred_region
      %s142 = ssub.s32 %s11, 1
      // Predicated region
      $region13: #{conv_mixer_forward.3} parent=11 // pred_check
        %p143 = pneg %p72
      $region14: #{conv_mixer_forward.3} parent=11 // pred_check_branch
        %145 = sbr.rel (%p143) target = $region16
      $region15: #{conv_mixer_forward.3} parent=11 // pred_region
        _
      $region16: #{conv_mixer_forward.3} parent=11 // pred_fallthru
        _
    $region12: #{conv_mixer_forward.3} parent=5 // pred_fallthru
      _
    %p146 = scmp.lt.s32.totalorder %s11, 2
    // Predicated region
    $region17: #{conv_mixer_forward.3} parent=5 // pred_check
      %p147 = pneg %p146
    $region18: #{conv_mixer_forward.3} parent=5 // pred_check_branch
      %149 = sbr.rel (%p147) target = $region20
    $region19: #{conv_mixer_forward.3} parent=5 // pred_region
      // Predicated region
      $region21: #{conv_mixer_forward.3} parent=19 // pred_check
        %p150 = pneg %p45
      $region22: #{conv_mixer_forward.3} parent=19 // pred_check_branch
        %152 = sbr.rel (%p150) target = $region24
      $region23: #{conv_mixer_forward.3} parent=19 // pred_region
        %s153 = smul.u32 16, %s19
        %p154 = scmp.lt.s32.totalorder %s18, 1
        %s155 = scalar_select %p154, %s18, 1
        %p156 = scmp.lt.s32.totalorder %s153, 15
        %s157 = scalar_select %p156, %s153, 15
        %s158 = smul.addr %s157, 2
        %s159 = smul.addr %s155, 32
        %s160 = sadd.s32 %s158, %s159
        %s161 = smul.addr %s160, 4
        %s162 = scalar_lea.vmem %s0, %s161
        %s163 = smul.u32 16, %s19
      $region24: #{conv_mixer_forward.3} parent=19 // pred_fallthru
        _
    $region20: #{conv_mixer_forward.3} parent=5 // pred_fallthru
      _
    %p164 = scmp.le.s32.totalorder 1, %s11
    %p165 = scmp.lt.s32.totalorder %s11, 3
    %p166 = pnand %p164, %p165
    %p167 = pneg %p166
    // Predicated region
    $region25: #{conv_mixer_forward.3} parent=5 // pred_check
      _
    $region26: #{conv_mixer_forward.3} parent=5 // pred_check_branch
      %169 = sbr.rel (%p166) target = $region28
    $region27: #{conv_mixer_forward.3} parent=5 // pred_region
      %s170 = ssub.s32 %s11, 1
      %s171 = smul.u32 16, %s21
      %p172 = scmp.lt.s32.totalorder %s20, 1
      %s173 = scalar_select %p172, %s20, 1
      %p174 = scmp.lt.s32.totalorder %s171, 15
      %s175 = scalar_select %p174, %s171, 15
      %s176 = smul.addr %s175, 2
      %s177 = smul.addr %s173, 32
      %s178 = sadd.s32 %s176, %s177
      %s179 = smul.addr %s178, 4
      %s180 = scalar_lea.vmem %s0, %s179
      %p181 = pneg %p51
      %p182 = pneg %p48
      %p183 = pneg %p72
      %p184 = pneg %p69
      %p185 = pneg %p100
      %p186 = pneg %p97
      %s187 = smul.u32 16, %s21
      %p188 = scmp.lt.s32.totalorder %s20, 1
      %s189 = scalar_select %p188, %s20, 1
      %p190 = scmp.lt.s32.totalorder %s187, 15
      %s191 = scalar_select %p190, %s187, 15
      %s192 = smul.addr %s191, 2
      %s193 = smul.addr %s189, 32
      %s194 = sadd.s32 %s192, %s193
      %s195 = smul.addr %s194, 4
      %s196 = scalar_lea.vmem %s3, %s195
      %p197 = pneg %p128
      %p198 = pneg %p125
      %p199 = scmp.lt.s32.totalorder %s20, 1
      %s200 = scalar_select %p199, %s20, 1
      %p201 = scmp.lt.s32.totalorder %s21, 0
      %s202 = scalar_select %p201, %s21, 0
      %s203 = sadd.s32 %s202, %s200
      %s204 = smul.addr %s203, 2
      %s205 = scalar_lea.vmem %s4, %s204
      %s206 = smul.u32 16, %s21
      %p207 = scmp.lt.s32.totalorder %s20, 1
      %s208 = scalar_select %p207, %s20, 1
      %p209 = scmp.lt.s32.totalorder %s206, 15
      %s210 = scalar_select %p209, %s206, 15
      %s211 = smul.addr %s210, 2
      %s212 = smul.addr %s208, 32
      %s213 = sadd.s32 %s211, %s212
      %s214 = smul.addr %s213, 4
      %s215 = scalar_lea.vmem %s0, %s214
      %s216 = smul.u32 16, %s21
      %s217 = smul.u32 16, %s21
      %p218 = scmp.lt.s32.totalorder %s20, 1
      %s219 = scalar_select %p218, %s20, 1
      %p220 = scmp.lt.s32.totalorder %s217, 15
      %s221 = scalar_select %p220, %s217, 15
      %s222 = smul.addr %s221, 2
      %s223 = smul.addr %s219, 32
      %s224 = sadd.s32 %s222, %s223
      %s225 = smul.addr %s224, 4
      %s226 = scalar_lea.vmem %s3, %s225
      %s227 = smul.u32 16, %s21
      %p228 = scmp.lt.s32.totalorder %s20, 1
      %s229 = scalar_select %p228, %s20, 1
      %p230 = scmp.lt.s32.totalorder %s21, 0
      %s231 = scalar_select %p230, %s21, 0
      %s232 = sadd.s32 %s231, %s229
      %s233 = smul.addr %s232, 2
      %s234 = scalar_lea.vmem %s4, %s233
      %vm235 = vcmask 59392
      %236 = vst.msk [vmem:[#allocation2 + $0x5] sm:$0x7] %vm235, 0.0
      %237 = vst.msk [vmem:[#allocation2 + $0x25] sm:$0x7] %vm235, 0.0
      %238 = vst.msk [vmem:[#allocation2 + $0x45] sm:$0x7] %vm235, 0.0
      %239 = vst.msk [vmem:[#allocation2 + $0x65] sm:$0x7] %vm235, 0.0
      %240 = vst.msk [vmem:[#allocation2 + $0x85] sm:$0x7] %vm235, 0.0
      %241 = vst.msk [vmem:[#allocation2 + $0xa5] sm:$0x7] %vm235, 0.0
      %242 = vst.msk [vmem:[#allocation2 + $0xc5] sm:$0x7] %vm235, 0.0
      %243 = vst.msk [vmem:[#allocation2 + $0xe5] sm:$0x7] %vm235, 0.0
      %244 = vst.msk [vmem:[#allocation2 + $0x105] sm:$0x7] %vm235, 0.0
      %245 = vst.msk [vmem:[#allocation2 + $0x125] sm:$0x7] %vm235, 0.0
      %246 = vst.msk [vmem:[#allocation2 + $0x145] sm:$0x7] %vm235, 0.0
      %247 = vst.msk [vmem:[#allocation2 + $0x165] sm:$0x7] %vm235, 0.0
      %248 = vst.msk [vmem:[#allocation2 + $0x185] sm:$0x7] %vm235, 0.0
      %249 = vst.msk [vmem:[#allocation2 + $0x1a5] sm:$0x7] %vm235, 0.0
      %250 = vst.msk [vmem:[#allocation2 + $0x1c5] sm:$0x7] %vm235, 0.0
      %251 = vst.msk [vmem:[#allocation2 + $0x1e5] sm:$0x7] %vm235, 0.0
      %252 = vst.msk [vmem:[#allocation2 + $0x205] sm:$0x7] %vm235, 0.0
      %253 = vst.msk [vmem:[#allocation2 + $0x225] sm:$0x7] %vm235, 0.0
      %254 = vst.msk [vmem:[#allocation2 + $0x245] sm:$0x7] %vm235, 0.0
      %255 = vst.msk [vmem:[#allocation2 + $0x265] sm:$0x7] %vm235, 0.0
      %256 = vst.msk [vmem:[#allocation2 + $0x285] sm:$0x7] %vm235, 0.0
      %257 = vst.msk [vmem:[#allocation2 + $0x2a5] sm:$0x7] %vm235, 0.0
      %258 = vst.msk [vmem:[#allocation2 + $0x18] sm:$0x7] %vm235, 0.0
      %259 = vst.msk [vmem:[#allocation2 + $0x38] sm:$0x7] %vm235, 0.0
      %260 = vst.msk [vmem:[#allocation2 + $0x58] sm:$0x7] %vm235, 0.0
      %261 = vst.msk [vmem:[#allocation2 + $0x78] sm:$0x7] %vm235, 0.0
      %262 = vst.msk [vmem:[#allocation2 + $0x98] sm:$0x7] %vm235, 0.0
      %263 = vst.msk [vmem:[#allocation2 + $0xb8] sm:$0x7] %vm235, 0.0
      %264 = vst.msk [vmem:[#allocation2 + $0xd8] sm:$0x7] %vm235, 0.0
      %265 = vst.msk [vmem:[#allocation2 + $0xf8] sm:$0x7] %vm235, 0.0
      %266 = vst.msk [vmem:[#allocation2 + $0x118] sm:$0x7] %vm235, 0.0
      %267 = vst.msk [vmem:[#allocation2 + $0x138] sm:$0x7] %vm235, 0.0
      %268 = vst.msk [vmem:[#allocation2 + $0x158] sm:$0x7] %vm235, 0.0
      %269 = vst.msk [vmem:[#allocation2 + $0x178] sm:$0x7] %vm235, 0.0
      %270 = vst.msk [vmem:[#allocation2 + $0x198] sm:$0x7] %vm235, 0.0
      %271 = vst.msk [vmem:[#allocation2 + $0x1b8] sm:$0x7] %vm235, 0.0
      %272 = vst.msk [vmem:[#allocation2 + $0x1d8] sm:$0x7] %vm235, 0.0
      %273 = vst.msk [vmem:[#allocation2 + $0x1f8] sm:$0x7] %vm235, 0.0
      %274 = vst.msk [vmem:[#allocation2 + $0x218] sm:$0x7] %vm235, 0.0
      %275 = vst.msk [vmem:[#allocation2 + $0x238] sm:$0x7] %vm235, 0.0
      %276 = vst.msk [vmem:[#allocation2 + $0x258] sm:$0x7] %vm235, 0.0
      %277 = vst.msk [vmem:[#allocation2 + $0x278] sm:$0x7] %vm235, 0.0
      %278 = vst.msk [vmem:[#allocation2 + $0x298] sm:$0x7] %vm235, 0.0
      %279 = vst.msk [vmem:[#allocation2 + $0x2b8] sm:$0x7] %vm235, 0.0
      %v280 = vld [vmem:[%s215] sm:$0xf]
      %v281 = vld [vmem:[%s215 + $0x4] sm:$0xf]
      %v282 = vld [vmem:[%s215 + $0x8] sm:$0xf]
      %v283 = vld [vmem:[%s215 + $0xc] sm:$0xf]
      %v284 = vld [vmem:[%s215 + $0x10] sm:$0xf]
      %v285 = vld [vmem:[%s215 + $0x14] sm:$0xf]
      %v286 = vld [vmem:[%s215 + $0x18] sm:$0xf]
      %v287 = vld [vmem:[%s215 + $0x1c] sm:$0xf]
      %v288 = vld [vmem:[%s215 + $0x20] sm:$0xf]
      %v289 = vld [vmem:[%s215 + $0x24] sm:$0xf]
      %v290 = vld [vmem:[%s215 + $0x28] sm:$0xf]
      %v291 = vld [vmem:[%s215 + $0x2c] sm:$0xf]
      %v292 = vld [vmem:[%s215 + $0x30] sm:$0xf]
      %v293 = vld [vmem:[%s215 + $0x34] sm:$0xf]
      %v294 = vld [vmem:[%s215 + $0x38] sm:$0xf]
      %v295 = vld [vmem:[%s215 + $0x3c] sm:$0xf]
      %v296 = vld [vmem:[%s215 + $0x40] sm:$0xf]
      %v297 = vld [vmem:[%s215 + $0x44] sm:$0xf]
      %v298 = vld [vmem:[%s215 + $0x48] sm:$0xf]
      %v299 = vld [vmem:[%s215 + $0x4c] sm:$0xf]
      %v300 = vld [vmem:[%s215 + $0x50] sm:$0xf]
      %v301 = vld [vmem:[%s215 + $0x54] sm:$0xf]
      %v302 = vld [vmem:[%s215 + $0x58] sm:$0xf]
      %v303 = vld [vmem:[%s215 + $0x5c] sm:$0xf]
      %v304 = vld [vmem:[%s215 + $0x60] sm:$0xf]
      %v305 = vld [vmem:[%s215 + $0x64] sm:$0xf]
      %v306 = vld [vmem:[%s215 + $0x68] sm:$0xf]
      %v307 = vld [vmem:[%s215 + $0x6c] sm:$0xf]
      %v308 = vld [vmem:[%s215 + $0x70] sm:$0xf]
      %v309 = vld [vmem:[%s215 + $0x74] sm:$0xf]
      %v310 = vld [vmem:[%s215 + $0x78] sm:$0xf]
      %v311 = vld [vmem:[%s215 + $0x7c] sm:$0xf]
      %v312 = vunpack.c.l.bf16 %v280
      %v313 = vunpack.c.l.bf16 %v281
      %v314 = vunpack.c.l.bf16 %v282
      %v315 = vunpack.c.l.bf16 %v283
      %v316 = vunpack.c.l.bf16 %v284
      %v317 = vunpack.c.l.bf16 %v285
      %v318 = vunpack.c.l.bf16 %v286
      %v319 = vunpack.c.l.bf16 %v287
      %v320 = vunpack.c.l.bf16 %v288
      %v321 = vunpack.c.l.bf16 %v289
      %v322 = vunpack.c.l.bf16 %v290
      %v323 = vunpack.c.l.bf16 %v291
      %v324 = vunpack.c.l.bf16 %v292
      %v325 = vunpack.c.l.bf16 %v293
      %v326 = vunpack.c.l.bf16 %v294
      %v327 = vunpack.c.l.bf16 %v295
      %v328 = vunpack.c.l.bf16 %v296
      %v329 = vunpack.c.l.bf16 %v297
      %v330 = vunpack.c.l.bf16 %v298
      %v331 = vunpack.c.l.bf16 %v299
      %v332 = vunpack.c.l.bf16 %v300
      %v333 = vunpack.c.l.bf16 %v301
      %v334 = vunpack.c.l.bf16 %v302
      %v335 = vunpack.c.l.bf16 %v303
      %v336 = vunpack.c.l.bf16 %v304
      %v337 = vunpack.c.l.bf16 %v305
      %v338 = vunpack.c.l.bf16 %v306
      %v339 = vunpack.c.l.bf16 %v307
      %v340 = vunpack.c.l.bf16 %v308
      %v341 = vunpack.c.l.bf16 %v309
      %v342 = vunpack.c.l.bf16 %v310
      %v343 = vunpack.c.l.bf16 %v311
      %s344 = scalar_lea.vmem [#allocation2], 96
      %vm345 = vcmask 64512
      %346 = vst.msk [vmem:[%s344 + $0x8] sm:$0xff] %vm345, %v312
      %347 = vst.msk [vmem:[%s344 + $0x10] sm:$0xff] %vm345, %v313
      %348 = vst.msk [vmem:[%s344 + $0x28] sm:$0xff] %vm345, %v314
      %349 = vst.msk [vmem:[%s344 + $0x30] sm:$0xff] %vm345, %v315
      %350 = vst.msk [vmem:[%s344 + $0x48] sm:$0xff] %vm345, %v316
      %351 = vst.msk [vmem:[%s344 + $0x50] sm:$0xff] %vm345, %v317
      %352 = vst.msk [vmem:[%s344 + $0x68] sm:$0xff] %vm345, %v318
      %353 = vst.msk [vmem:[%s344 + $0x70] sm:$0xff] %vm345, %v319
      %354 = vst.msk [vmem:[%s344 + $0x88] sm:$0xff] %vm345, %v320
      %355 = vst.msk [vmem:[%s344 + $0x90] sm:$0xff] %vm345, %v321
      %356 = vst.msk [vmem:[%s344 + $0xa8] sm:$0xff] %vm345, %v322
      %357 = vst.msk [vmem:[%s344 + $0xb0] sm:$0xff] %vm345, %v323
      %358 = vst.msk [vmem:[%s344 + $0xc8] sm:$0xff] %vm345, %v324
      %359 = vst.msk [vmem:[%s344 + $0xd0] sm:$0xff] %vm345, %v325
      %360 = vst.msk [vmem:[%s344 + $0xe8] sm:$0xff] %vm345, %v326
      %361 = vst.msk [vmem:[%s344 + $0xf0] sm:$0xff] %vm345, %v327
      %362 = vst.msk [vmem:[%s344 + $0x108] sm:$0xff] %vm345, %v328
      %363 = vst.msk [vmem:[%s344 + $0x110] sm:$0xff] %vm345, %v329
      %364 = vst.msk [vmem:[%s344 + $0x128] sm:$0xff] %vm345, %v330
      %365 = vst.msk [vmem:[%s344 + $0x130] sm:$0xff] %vm345, %v331
      %366 = vst.msk [vmem:[%s344 + $0x148] sm:$0xff] %vm345, %v332
      %367 = vst.msk [vmem:[%s344 + $0x150] sm:$0xff] %vm345, %v333
      %368 = vst.msk [vmem:[%s344 + $0x168] sm:$0xff] %vm345, %v334
      %369 = vst.msk [vmem:[%s344 + $0x170] sm:$0xff] %vm345, %v335
      %370 = vst.msk [vmem:[%s344 + $0x188] sm:$0xff] %vm345, %v336
      %371 = vst.msk [vmem:[%s344 + $0x190] sm:$0xff] %vm345, %v337
      %372 = vst.msk [vmem:[%s344 + $0x1a8] sm:$0xff] %vm345, %v338
      %373 = vst.msk [vmem:[%s344 + $0x1b0] sm:$0xff] %vm345, %v339
      %374 = vst.msk [vmem:[%s344 + $0x1c8] sm:$0xff] %vm345, %v340
      %375 = vst.msk [vmem:[%s344 + $0x1d0] sm:$0xff] %vm345, %v341
      %376 = vst.msk [vmem:[%s344 + $0x1e8] sm:$0xff] %vm345, %v342
      %377 = vst.msk [vmem:[%s344 + $0x1f0] sm:$0xff] %vm345, %v343
      %v378 = vld [vmem:[%s2] sm:$0xff]
      %v379 = vld [vmem:[%s2 + $0x8] sm:$0xff]
      %v380 = vld [vmem:[%s2 + $0x10] sm:$0xff]
      %v381 = vld [vmem:[%s2 + $0x18] sm:$0xff]
      %v382 = vld [vmem:[%s2 + $0x20] sm:$0xff]
      %v383 = vld [vmem:[%s2 + $0x28] sm:$0xff]
      %v384 = vld [vmem:[%s2 + $0x30] sm:$0x1]
      %385 = vst.msk [vmem:[#allocation2 + $0x8] sm:$0xff] %vm345, 0.0
      %386 = vst.msk [vmem:[#allocation2 + $0x10] sm:$0xff] %vm345, 0.0
      %387 = vst.msk [vmem:[#allocation2 + $0x28] sm:$0xff] %vm345, 0.0
      %388 = vst.msk [vmem:[#allocation2 + $0x30] sm:$0xff] %vm345, 0.0
      %389 = vst.msk [vmem:[#allocation2 + $0x48] sm:$0xff] %vm345, 0.0
      %390 = vst.msk [vmem:[#allocation2 + $0x50] sm:$0xff] %vm345, 0.0
      %s391 = scalar_lea.vmem [#allocation2], 608
      %392 = vst.msk [vmem:[%s391 + $0x8] sm:$0xff] %vm345, 0.0
      %393 = vst.msk [vmem:[%s391 + $0x10] sm:$0xff] %vm345, 0.0
      %394 = vst.msk [vmem:[%s391 + $0x28] sm:$0xff] %vm345, 0.0
      %395 = vst.msk [vmem:[%s391 + $0x30] sm:$0xff] %vm345, 0.0
      %396 = vst.msk [vmem:[%s391 + $0x48] sm:$0xff] %vm345, 0.0
      %397 = vst.msk [vmem:[%s391 + $0x50] sm:$0xff] %vm345, 0.0
      %v398 = vld [vmem:[#allocation2 + $0x5] sm:$0xff]
      %v399 = vld [vmem:[#allocation2 + $0xd] sm:$0xff]
      %v400 = vld [vmem:[#allocation2 + $0x25] sm:$0xff]
      %v401 = vld [vmem:[#allocation2 + $0x2d] sm:$0xff]
      %v402 = vld [vmem:[#allocation2 + $0x45] sm:$0xff]
      %v403 = vld [vmem:[#allocation2 + $0x4d] sm:$0xff]
      %v404 = vld [vmem:[#allocation2 + $0x65] sm:$0xff]
      %v405 = vld [vmem:[#allocation2 + $0x6d] sm:$0xff]
      %v406 = vld [vmem:[#allocation2 + $0x85] sm:$0xff]
      %v407 = vld [vmem:[#allocation2 + $0x8d] sm:$0xff]
      %v408 = vld [vmem:[#allocation2 + $0xa5] sm:$0xff]
      %v409 = vld [vmem:[#allocation2 + $0xad] sm:$0xff]
      %v410 = vld [vmem:[#allocation2 + $0xc5] sm:$0xff]
      %v411 = vld [vmem:[#allocation2 + $0xcd] sm:$0xff]
      %v412 = vld [vmem:[#allocation2 + $0xe5] sm:$0xff]
      %v413 = vld [vmem:[#allocation2 + $0xed] sm:$0xff]
      %v414 = vld [vmem:[#allocation2 + $0x105] sm:$0xff]
      %v415 = vld [vmem:[#allocation2 + $0x10d] sm:$0xff]
      %v416 = vld [vmem:[#allocation2 + $0x125] sm:$0xff]
      %v417 = vld [vmem:[#allocation2 + $0x12d] sm:$0xff]
      %v418 = vld [vmem:[#allocation2 + $0x145] sm:$0xff]
      %v419 = vld [vmem:[#allocation2 + $0x14d] sm:$0xff]
      %v420 = vld [vmem:[#allocation2 + $0x165] sm:$0xff]
      %v421 = vld [vmem:[#allocation2 + $0x16d] sm:$0xff]
      %v422 = vld [vmem:[#allocation2 + $0x185] sm:$0xff]
      %v423 = vld [vmem:[#allocation2 + $0x18d] sm:$0xff]
      %v424 = vld [vmem:[#allocation2 + $0x1a5] sm:$0xff]
      %v425 = vld [vmem:[#allocation2 + $0x1ad] sm:$0xff]
      %v426 = vld [vmem:[#allocation2 + $0x1c5] sm:$0xff]
      %v427 = vld [vmem:[#allocation2 + $0x1cd] sm:$0xff]
      %v428 = vld [vmem:[#allocation2 + $0x1e5] sm:$0xff]
      %v429 = vld [vmem:[#allocation2 + $0x1ed] sm:$0xff]
      %v430 = vld [vmem:[#allocation2 + $0x205] sm:$0xff]
      %v431 = vld [vmem:[#allocation2 + $0x20d] sm:$0xff]
      %v432 = vld [vmem:[#allocation2 + $0x225] sm:$0xff]
      %v433 = vld [vmem:[#allocation2 + $0x22d] sm:$0xff]
      %v434 = vld [vmem:[#allocation2 + $0x245] sm:$0xff]
      %v435 = vld [vmem:[#allocation2 + $0x24d] sm:$0xff]
      %v436 = vld [vmem:[#allocation2 + $0x265] sm:$0xff]
      %v437 = vld [vmem:[#allocation2 + $0x26d] sm:$0xff]
      %v438 = vld [vmem:[#allocation2 + $0x285] sm:$0xff]
      %v439 = vld [vmem:[#allocation2 + $0x28d] sm:$0xff]
      %v440 = vld [vmem:[#allocation2 + $0x2a5] sm:$0xff]
      %v441 = vld [vmem:[#allocation2 + $0x2ad] sm:$0xff]
      %v442 = vperm.slane %v378, 0
      %v443 = vmul.f32 %v398, %v442
      %v444 = vmul.f32 %v399, %v442
      %v445 = vmul.f32 %v400, %v442
      %v446 = vmul.f32 %v401, %v442
      %v447 = vmul.f32 %v402, %v442
      %v448 = vmul.f32 %v403, %v442
      %v449 = vmul.f32 %v404, %v442
      %v450 = vmul.f32 %v405, %v442
      %v451 = vmul.f32 %v406, %v442
      %v452 = vmul.f32 %v407, %v442
      %v453 = vmul.f32 %v408, %v442
      %v454 = vmul.f32 %v409, %v442
      %v455 = vmul.f32 %v410, %v442
      %v456 = vmul.f32 %v411, %v442
      %v457 = vmul.f32 %v412, %v442
      %v458 = vmul.f32 %v413, %v442
      %v459 = vmul.f32 %v414, %v442
      %v460 = vmul.f32 %v415, %v442
      %v461 = vmul.f32 %v416, %v442
      %v462 = vmul.f32 %v417, %v442
      %v463 = vmul.f32 %v418, %v442
      %v464 = vmul.f32 %v419, %v442
      %v465 = vmul.f32 %v420, %v442
      %v466 = vmul.f32 %v421, %v442
      %v467 = vmul.f32 %v422, %v442
      %v468 = vmul.f32 %v423, %v442
      %v469 = vmul.f32 %v424, %v442
      %v470 = vmul.f32 %v425, %v442
      %v471 = vmul.f32 %v426, %v442
      %v472 = vmul.f32 %v427, %v442
      %v473 = vmul.f32 %v428, %v442
      %v474 = vmul.f32 %v429, %v442
      %v475 = vadd.f32 %v443, 0.0
      %v476 = vadd.f32 %v444, 0.0
      %v477 = vadd.f32 %v445, 0.0
      %v478 = vadd.f32 %v446, 0.0
      %v479 = vadd.f32 %v447, 0.0
      %v480 = vadd.f32 %v448, 0.0
      %v481 = vadd.f32 %v449, 0.0
      %v482 = vadd.f32 %v450, 0.0
      %v483 = vadd.f32 %v451, 0.0
      %v484 = vadd.f32 %v452, 0.0
      %v485 = vadd.f32 %v453, 0.0
      %v486 = vadd.f32 %v454, 0.0
      %v487 = vadd.f32 %v455, 0.0
      %v488 = vadd.f32 %v456, 0.0
      %v489 = vadd.f32 %v457, 0.0
      %v490 = vadd.f32 %v458, 0.0
      %v491 = vadd.f32 %v459, 0.0
      %v492 = vadd.f32 %v460, 0.0
      %v493 = vadd.f32 %v461, 0.0
      %v494 = vadd.f32 %v462, 0.0
      %v495 = vadd.f32 %v463, 0.0
      %v496 = vadd.f32 %v464, 0.0
      %v497 = vadd.f32 %v465, 0.0
      %v498 = vadd.f32 %v466, 0.0
      %v499 = vadd.f32 %v467, 0.0
      %v500 = vadd.f32 %v468, 0.0
      %v501 = vadd.f32 %v469, 0.0
      %v502 = vadd.f32 %v470, 0.0
      %v503 = vadd.f32 %v471, 0.0
      %v504 = vadd.f32 %v472, 0.0
      %v505 = vadd.f32 %v473, 0.0
      %v506 = vadd.f32 %v474, 0.0
      %v507 = vperm.slane %v378, 7
      %v508 = vmul.f32 %v400, %v507
      %v509 = vmul.f32 %v401, %v507
      %v510 = vmul.f32 %v402, %v507
      %v511 = vmul.f32 %v403, %v507
      %v512 = vmul.f32 %v404, %v507
      %v513 = vmul.f32 %v405, %v507
      %v514 = vmul.f32 %v406, %v507
      %v515 = vmul.f32 %v407, %v507
      %v516 = vmul.f32 %v408, %v507
      %v517 = vmul.f32 %v409, %v507
      %v518 = vmul.f32 %v410, %v507
      %v519 = vmul.f32 %v411, %v507
      %v520 = vmul.f32 %v412, %v507
      %v521 = vmul.f32 %v413, %v507
      %v522 = vmul.f32 %v414, %v507
      %v523 = vmul.f32 %v415, %v507
      %v524 = vmul.f32 %v416, %v507
      %v525 = vmul.f32 %v417, %v507
      %v526 = vmul.f32 %v418, %v507
      %v527 = vmul.f32 %v419, %v507
      %v528 = vmul.f32 %v420, %v507
      %v529 = vmul.f32 %v421, %v507
      %v530 = vmul.f32 %v422, %v507
      %v531 = vmul.f32 %v423, %v507
      %v532 = vmul.f32 %v424, %v507
      %v533 = vmul.f32 %v425, %v507
      %v534 = vmul.f32 %v426, %v507
      %v535 = vmul.f32 %v427, %v507
      %v536 = vmul.f32 %v428, %v507
      %v537 = vmul.f32 %v429, %v507
      %v538 = vmul.f32 %v430, %v507
      %v539 = vmul.f32 %v431, %v507
      %v540 = vadd.f32 %v475, %v508
      %v541 = vadd.f32 %v476, %v509
      %v542 = vadd.f32 %v477, %v510
      %v543 = vadd.f32 %v478, %v511
      %v544 = vadd.f32 %v479, %v512
      %v545 = vadd.f32 %v480, %v513
      %v546 = vadd.f32 %v481, %v514
      %v547 = vadd.f32 %v482, %v515
      %v548 = vadd.f32 %v483, %v516
      %v549 = vadd.f32 %v484, %v517
      %v550 = vadd.f32 %v485, %v518
      %v551 = vadd.f32 %v486, %v519
      %v552 = vadd.f32 %v487, %v520
      %v553 = vadd.f32 %v488, %v521
      %v554 = vadd.f32 %v489, %v522
      %v555 = vadd.f32 %v490, %v523
      %v556 = vadd.f32 %v491, %v524
      %v557 = vadd.f32 %v492, %v525
      %v558 = vadd.f32 %v493, %v526
      %v559 = vadd.f32 %v494, %v527
      %v560 = vadd.f32 %v495, %v528
      %v561 = vadd.f32 %v496, %v529
      %v562 = vadd.f32 %v497, %v530
      %v563 = vadd.f32 %v498, %v531
      %v564 = vadd.f32 %v499, %v532
      %v565 = vadd.f32 %v500, %v533
      %v566 = vadd.f32 %v501, %v534
      %v567 = vadd.f32 %v502, %v535
      %v568 = vadd.f32 %v503, %v536
      %v569 = vadd.f32 %v504, %v537
      %v570 = vadd.f32 %v505, %v538
      %v571 = vadd.f32 %v506, %v539
      %v572 = vperm.slane %v379, 6
      %v573 = vmul.f32 %v402, %v572
      %v574 = vmul.f32 %v403, %v572
      %v575 = vmul.f32 %v404, %v572
      %v576 = vmul.f32 %v405, %v572
      %v577 = vmul.f32 %v406, %v572
      %v578 = vmul.f32 %v407, %v572
      %v579 = vmul.f32 %v408, %v572
      %v580 = vmul.f32 %v409, %v572
      %v581 = vmul.f32 %v410, %v572
      %v582 = vmul.f32 %v411, %v572
      %v583 = vmul.f32 %v412, %v572
      %v584 = vmul.f32 %v413, %v572
      %v585 = vmul.f32 %v414, %v572
      %v586 = vmul.f32 %v415, %v572
      %v587 = vmul.f32 %v416, %v572
      %v588 = vmul.f32 %v417, %v572
      %v589 = vmul.f32 %v418, %v572
      %v590 = vmul.f32 %v419, %v572
      %v591 = vmul.f32 %v420, %v572
      %v592 = vmul.f32 %v421, %v572
      %v593 = vmul.f32 %v422, %v572
      %v594 = vmul.f32 %v423, %v572
      %v595 = vmul.f32 %v424, %v572
      %v596 = vmul.f32 %v425, %v572
      %v597 = vmul.f32 %v426, %v572
      %v598 = vmul.f32 %v427, %v572
      %v599 = vmul.f32 %v428, %v572
      %v600 = vmul.f32 %v429, %v572
      %v601 = vmul.f32 %v430, %v572
      %v602 = vmul.f32 %v431, %v572
      %v603 = vmul.f32 %v432, %v572
      %v604 = vmul.f32 %v433, %v572
      %v605 = vadd.f32 %v540, %v573
      %v606 = vadd.f32 %v541, %v574
      %v607 = vadd.f32 %v542, %v575
      %v608 = vadd.f32 %v543, %v576
      %v609 = vadd.f32 %v544, %v577
      %v610 = vadd.f32 %v545, %v578
      %v611 = vadd.f32 %v546, %v579
      %v612 = vadd.f32 %v547, %v580
      %v613 = vadd.f32 %v548, %v581
      %v614 = vadd.f32 %v549, %v582
      %v615 = vadd.f32 %v550, %v583
      %v616 = vadd.f32 %v551, %v584
      %v617 = vadd.f32 %v552, %v585
      %v618 = vadd.f32 %v553, %v586
      %v619 = vadd.f32 %v554, %v587
      %v620 = vadd.f32 %v555, %v588
      %v621 = vadd.f32 %v556, %v589
      %v622 = vadd.f32 %v557, %v590
      %v623 = vadd.f32 %v558, %v591
      %v624 = vadd.f32 %v559, %v592
      %v625 = vadd.f32 %v560, %v593
      %v626 = vadd.f32 %v561, %v594
      %v627 = vadd.f32 %v562, %v595
      %v628 = vadd.f32 %v563, %v596
      %v629 = vadd.f32 %v564, %v597
      %v630 = vadd.f32 %v565, %v598
      %v631 = vadd.f32 %v566, %v599
      %v632 = vadd.f32 %v567, %v600
      %v633 = vadd.f32 %v568, %v601
      %v634 = vadd.f32 %v569, %v602
      %v635 = vadd.f32 %v570, %v603
      %v636 = vadd.f32 %v571, %v604
      %v637 = vperm.slane %v380, 5
      %v638 = vmul.f32 %v404, %v637
      %v639 = vmul.f32 %v405, %v637
      %v640 = vmul.f32 %v406, %v637
      %v641 = vmul.f32 %v407, %v637
      %v642 = vmul.f32 %v408, %v637
      %v643 = vmul.f32 %v409, %v637
      %v644 = vmul.f32 %v410, %v637
      %v645 = vmul.f32 %v411, %v637
      %v646 = vmul.f32 %v412, %v637
      %v647 = vmul.f32 %v413, %v637
      %v648 = vmul.f32 %v414, %v637
      %v649 = vmul.f32 %v415, %v637
      %v650 = vmul.f32 %v416, %v637
      %v651 = vmul.f32 %v417, %v637
      %v652 = vmul.f32 %v418, %v637
      %v653 = vmul.f32 %v419, %v637
      %v654 = vmul.f32 %v420, %v637
      %v655 = vmul.f32 %v421, %v637
      %v656 = vmul.f32 %v422, %v637
      %v657 = vmul.f32 %v423, %v637
      %v658 = vmul.f32 %v424, %v637
      %v659 = vmul.f32 %v425, %v637
      %v660 = vmul.f32 %v426, %v637
      %v661 = vmul.f32 %v427, %v637
      %v662 = vmul.f32 %v428, %v637
      %v663 = vmul.f32 %v429, %v637
      %v664 = vmul.f32 %v430, %v637
      %v665 = vmul.f32 %v431, %v637
      %v666 = vmul.f32 %v432, %v637
      %v667 = vmul.f32 %v433, %v637
      %v668 = vmul.f32 %v434, %v637
      %v669 = vmul.f32 %v435, %v637
      %v670 = vadd.f32 %v605, %v638
      %v671 = vadd.f32 %v606, %v639
      %v672 = vadd.f32 %v607, %v640
      %v673 = vadd.f32 %v608, %v641
      %v674 = vadd.f32 %v609, %v642
      %v675 = vadd.f32 %v610, %v643
      %v676 = vadd.f32 %v611, %v644
      %v677 = vadd.f32 %v612, %v645
      %v678 = vadd.f32 %v613, %v646
      %v679 = vadd.f32 %v614, %v647
      %v680 = vadd.f32 %v615, %v648
      %v681 = vadd.f32 %v616, %v649
      %v682 = vadd.f32 %v617, %v650
      %v683 = vadd.f32 %v618, %v651
      %v684 = vadd.f32 %v619, %v652
      %v685 = vadd.f32 %v620, %v653
      %v686 = vadd.f32 %v621, %v654
      %v687 = vadd.f32 %v622, %v655
      %v688 = vadd.f32 %v623, %v656
      %v689 = vadd.f32 %v624, %v657
      %v690 = vadd.f32 %v625, %v658
      %v691 = vadd.f32 %v626, %v659
      %v692 = vadd.f32 %v627, %v660
      %v693 = vadd.f32 %v628, %v661
      %v694 = vadd.f32 %v629, %v662
      %v695 = vadd.f32 %v630, %v663
      %v696 = vadd.f32 %v631, %v664
      %v697 = vadd.f32 %v632, %v665
      %v698 = vadd.f32 %v633, %v666
      %v699 = vadd.f32 %v634, %v667
      %v700 = vadd.f32 %v635, %v668
      %v701 = vadd.f32 %v636, %v669
      %v702 = vperm.slane %v381, 4
      %v703 = vmul.f32 %v406, %v702
      %v704 = vmul.f32 %v407, %v702
      %v705 = vmul.f32 %v408, %v702
      %v706 = vmul.f32 %v409, %v702
      %v707 = vmul.f32 %v410, %v702
      %v708 = vmul.f32 %v411, %v702
      %v709 = vmul.f32 %v412, %v702
      %v710 = vmul.f32 %v413, %v702
      %v711 = vmul.f32 %v414, %v702
      %v712 = vmul.f32 %v415, %v702
      %v713 = vmul.f32 %v416, %v702
      %v714 = vmul.f32 %v417, %v702
      %v715 = vmul.f32 %v418, %v702
      %v716 = vmul.f32 %v419, %v702
      %v717 = vmul.f32 %v420, %v702
      %v718 = vmul.f32 %v421, %v702
      %v719 = vmul.f32 %v422, %v702
      %v720 = vmul.f32 %v423, %v702
      %v721 = vmul.f32 %v424, %v702
      %v722 = vmul.f32 %v425, %v702
      %v723 = vmul.f32 %v426, %v702
      %v724 = vmul.f32 %v427, %v702
      %v725 = vmul.f32 %v428, %v702
      %v726 = vmul.f32 %v429, %v702
      %v727 = vmul.f32 %v430, %v702
      %v728 = vmul.f32 %v431, %v702
      %v729 = vmul.f32 %v432, %v702
      %v730 = vmul.f32 %v433, %v702
      %v731 = vmul.f32 %v434, %v702
      %v732 = vmul.f32 %v435, %v702
      %v733 = vmul.f32 %v436, %v702
      %v734 = vmul.f32 %v437, %v702
      %v735 = vadd.f32 %v670, %v703
      %v736 = vadd.f32 %v671, %v704
      %v737 = vadd.f32 %v672, %v705
      %v738 = vadd.f32 %v673, %v706
      %v739 = vadd.f32 %v674, %v707
      %v740 = vadd.f32 %v675, %v708
      %v741 = vadd.f32 %v676, %v709
      %v742 = vadd.f32 %v677, %v710
      %v743 = vadd.f32 %v678, %v711
      %v744 = vadd.f32 %v679, %v712
      %v745 = vadd.f32 %v680, %v713
      %v746 = vadd.f32 %v681, %v714
      %v747 = vadd.f32 %v682, %v715
      %v748 = vadd.f32 %v683, %v716
      %v749 = vadd.f32 %v684, %v717
      %v750 = vadd.f32 %v685, %v718
      %v751 = vadd.f32 %v686, %v719
      %v752 = vadd.f32 %v687, %v720
      %v753 = vadd.f32 %v688, %v721
      %v754 = vadd.f32 %v689, %v722
      %v755 = vadd.f32 %v690, %v723
      %v756 = vadd.f32 %v691, %v724
      %v757 = vadd.f32 %v692, %v725
      %v758 = vadd.f32 %v693, %v726
      %v759 = vadd.f32 %v694, %v727
      %v760 = vadd.f32 %v695, %v728
      %v761 = vadd.f32 %v696, %v729
      %v762 = vadd.f32 %v697, %v730
      %v763 = vadd.f32 %v698, %v731
      %v764 = vadd.f32 %v699, %v732
      %v765 = vadd.f32 %v700, %v733
      %v766 = vadd.f32 %v701, %v734
      %v767 = vperm.slane %v382, 3
      %v768 = vmul.f32 %v408, %v767
      %v769 = vmul.f32 %v409, %v767
      %v770 = vmul.f32 %v410, %v767
      %v771 = vmul.f32 %v411, %v767
      %v772 = vmul.f32 %v412, %v767
      %v773 = vmul.f32 %v413, %v767
      %v774 = vmul.f32 %v414, %v767
      %v775 = vmul.f32 %v415, %v767
      %v776 = vmul.f32 %v416, %v767
      %v777 = vmul.f32 %v417, %v767
      %v778 = vmul.f32 %v418, %v767
      %v779 = vmul.f32 %v419, %v767
      %v780 = vmul.f32 %v420, %v767
      %v781 = vmul.f32 %v421, %v767
      %v782 = vmul.f32 %v422, %v767
      %v783 = vmul.f32 %v423, %v767
      %v784 = vmul.f32 %v424, %v767
      %v785 = vmul.f32 %v425, %v767
      %v786 = vmul.f32 %v426, %v767
      %v787 = vmul.f32 %v427, %v767
      %v788 = vmul.f32 %v428, %v767
      %v789 = vmul.f32 %v429, %v767
      %v790 = vmul.f32 %v430, %v767
      %v791 = vmul.f32 %v431, %v767
      %v792 = vmul.f32 %v432, %v767
      %v793 = vmul.f32 %v433, %v767
      %v794 = vmul.f32 %v434, %v767
      %v795 = vmul.f32 %v435, %v767
      %v796 = vmul.f32 %v436, %v767
      %v797 = vmul.f32 %v437, %v767
      %v798 = vmul.f32 %v438, %v767
      %v799 = vmul.f32 %v439, %v767
      %v800 = vadd.f32 %v735, %v768
      %v801 = vadd.f32 %v736, %v769
      %v802 = vadd.f32 %v737, %v770
      %v803 = vadd.f32 %v738, %v771
      %v804 = vadd.f32 %v739, %v772
      %v805 = vadd.f32 %v740, %v773
      %v806 = vadd.f32 %v741, %v774
      %v807 = vadd.f32 %v742, %v775
      %v808 = vadd.f32 %v743, %v776
      %v809 = vadd.f32 %v744, %v777
      %v810 = vadd.f32 %v745, %v778
      %v811 = vadd.f32 %v746, %v779
      %v812 = vadd.f32 %v747, %v780
      %v813 = vadd.f32 %v748, %v781
      %v814 = vadd.f32 %v749, %v782
      %v815 = vadd.f32 %v750, %v783
      %v816 = vadd.f32 %v751, %v784
      %v817 = vadd.f32 %v752, %v785
      %v818 = vadd.f32 %v753, %v786
      %v819 = vadd.f32 %v754, %v787
      %v820 = vadd.f32 %v755, %v788
      %v821 = vadd.f32 %v756, %v789
      %v822 = vadd.f32 %v757, %v790
      %v823 = vadd.f32 %v758, %v791
      %v824 = vadd.f32 %v759, %v792
      %v825 = vadd.f32 %v760, %v793
      %v826 = vadd.f32 %v761, %v794
      %v827 = vadd.f32 %v762, %v795
      %v828 = vadd.f32 %v763, %v796
      %v829 = vadd.f32 %v764, %v797
      %v830 = vadd.f32 %v765, %v798
      %v831 = vadd.f32 %v766, %v799
      %v832 = vperm.slane %v383, 2
      %v833 = vmul.f32 %v410, %v832
      %v834 = vmul.f32 %v411, %v832
      %v835 = vmul.f32 %v412, %v832
      %v836 = vmul.f32 %v413, %v832
      %v837 = vmul.f32 %v414, %v832
      %v838 = vmul.f32 %v415, %v832
      %v839 = vmul.f32 %v416, %v832
      %v840 = vmul.f32 %v417, %v832
      %v841 = vmul.f32 %v418, %v832
      %v842 = vmul.f32 %v419, %v832
      %v843 = vmul.f32 %v420, %v832
      %v844 = vmul.f32 %v421, %v832
      %v845 = vmul.f32 %v422, %v832
      %v846 = vmul.f32 %v423, %v832
      %v847 = vmul.f32 %v424, %v832
      %v848 = vmul.f32 %v425, %v832
      %v849 = vmul.f32 %v426, %v832
      %v850 = vmul.f32 %v427, %v832
      %v851 = vmul.f32 %v428, %v832
      %v852 = vmul.f32 %v429, %v832
      %v853 = vmul.f32 %v430, %v832
      %v854 = vmul.f32 %v431, %v832
      %v855 = vmul.f32 %v432, %v832
      %v856 = vmul.f32 %v433, %v832
      %v857 = vmul.f32 %v434, %v832
      %v858 = vmul.f32 %v435, %v832
      %v859 = vmul.f32 %v436, %v832
      %v860 = vmul.f32 %v437, %v832
      %v861 = vmul.f32 %v438, %v832
      %v862 = vmul.f32 %v439, %v832
      %v863 = vmul.f32 %v440, %v832
      %v864 = vmul.f32 %v441, %v832
      %v865 = vadd.f32 %v800, %v833
      %v866 = vadd.f32 %v801, %v834
      %v867 = vadd.f32 %v802, %v835
      %v868 = vadd.f32 %v803, %v836
      %v869 = vadd.f32 %v804, %v837
      %v870 = vadd.f32 %v805, %v838
      %v871 = vadd.f32 %v806, %v839
      %v872 = vadd.f32 %v807, %v840
      %v873 = vadd.f32 %v808, %v841
      %v874 = vadd.f32 %v809, %v842
      %v875 = vadd.f32 %v810, %v843
      %v876 = vadd.f32 %v811, %v844
      %v877 = vadd.f32 %v812, %v845
      %v878 = vadd.f32 %v813, %v846
      %v879 = vadd.f32 %v814, %v847
      %v880 = vadd.f32 %v815, %v848
      %v881 = vadd.f32 %v816, %v849
      %v882 = vadd.f32 %v817, %v850
      %v883 = vadd.f32 %v818, %v851
      %v884 = vadd.f32 %v819, %v852
      %v885 = vadd.f32 %v820, %v853
      %v886 = vadd.f32 %v821, %v854
      %v887 = vadd.f32 %v822, %v855
      %v888 = vadd.f32 %v823, %v856
      %v889 = vadd.f32 %v824, %v857
      %v890 = vadd.f32 %v825, %v858
      %v891 = vadd.f32 %v826, %v859
      %v892 = vadd.f32 %v827, %v860
      %v893 = vadd.f32 %v828, %v861
      %v894 = vadd.f32 %v829, %v862
      %v895 = vadd.f32 %v830, %v863
      %v896 = vadd.f32 %v831, %v864
      %v897 = vld [vmem:[#allocation2 + $0x6] sm:$0xff]
      %v898 = vld [vmem:[#allocation2 + $0xe] sm:$0xff]
      %v899 = vld [vmem:[#allocation2 + $0x26] sm:$0xff]
      %v900 = vld [vmem:[#allocation2 + $0x2e] sm:$0xff]
      %v901 = vld [vmem:[#allocation2 + $0x46] sm:$0xff]
      %v902 = vld [vmem:[#allocation2 + $0x4e] sm:$0xff]
      %v903 = vld [vmem:[#allocation2 + $0x66] sm:$0xff]
      %v904 = vld [vmem:[#allocation2 + $0x6e] sm:$0xff]
      %v905 = vld [vmem:[#allocation2 + $0x86] sm:$0xff]
      %v906 = vld [vmem:[#allocation2 + $0x8e] sm:$0xff]
      %v907 = vld [vmem:[#allocation2 + $0xa6] sm:$0xff]
      %v908 = vld [vmem:[#allocation2 + $0xae] sm:$0xff]
      %v909 = vld [vmem:[#allocation2 + $0xc6] sm:$0xff]
      %v910 = vld [vmem:[#allocation2 + $0xce] sm:$0xff]
      %v911 = vld [vmem:[#allocation2 + $0xe6] sm:$0xff]
      %v912 = vld [vmem:[#allocation2 + $0xee] sm:$0xff]
      %v913 = vld [vmem:[#allocation2 + $0x106] sm:$0xff]
      %v914 = vld [vmem:[#allocation2 + $0x10e] sm:$0xff]
      %v915 = vld [vmem:[#allocation2 + $0x126] sm:$0xff]
      %v916 = vld [vmem:[#allocation2 + $0x12e] sm:$0xff]
      %v917 = vld [vmem:[#allocation2 + $0x146] sm:$0xff]
      %v918 = vld [vmem:[#allocation2 + $0x14e] sm:$0xff]
      %v919 = vld [vmem:[#allocation2 + $0x166] sm:$0xff]
      %v920 = vld [vmem:[#allocation2 + $0x16e] sm:$0xff]
      %v921 = vld [vmem:[#allocation2 + $0x186] sm:$0xff]
      %v922 = vld [vmem:[#allocation2 + $0x18e] sm:$0xff]
      %v923 = vld [vmem:[#allocation2 + $0x1a6] sm:$0xff]
      %v924 = vld [vmem:[#allocation2 + $0x1ae] sm:$0xff]
      %v925 = vld [vmem:[#allocation2 + $0x1c6] sm:$0xff]
      %v926 = vld [vmem:[#allocation2 + $0x1ce] sm:$0xff]
      %v927 = vld [vmem:[#allocation2 + $0x1e6] sm:$0xff]
      %v928 = vld [vmem:[#allocation2 + $0x1ee] sm:$0xff]
      %v929 = vld [vmem:[#allocation2 + $0x206] sm:$0xff]
      %v930 = vld [vmem:[#allocation2 + $0x20e] sm:$0xff]
      %v931 = vld [vmem:[#allocation2 + $0x226] sm:$0xff]
      %v932 = vld [vmem:[#allocation2 + $0x22e] sm:$0xff]
      %v933 = vld [vmem:[#allocation2 + $0x246] sm:$0xff]
      %v934 = vld [vmem:[#allocation2 + $0x24e] sm:$0xff]
      %v935 = vld [vmem:[#allocation2 + $0x266] sm:$0xff]
      %v936 = vld [vmem:[#allocation2 + $0x26e] sm:$0xff]
      %v937 = vld [vmem:[#allocation2 + $0x286] sm:$0xff]
      %v938 = vld [vmem:[#allocation2 + $0x28e] sm:$0xff]
      %v939 = vld [vmem:[#allocation2 + $0x2a6] sm:$0xff]
      %v940 = vld [vmem:[#allocation2 + $0x2ae] sm:$0xff]
      %v941 = vperm.slane %v378, 1
      %v942 = vmul.f32 %v897, %v941
      %v943 = vmul.f32 %v898, %v941
      %v944 = vmul.f32 %v899, %v941
      %v945 = vmul.f32 %v900, %v941
      %v946 = vmul.f32 %v901, %v941
      %v947 = vmul.f32 %v902, %v941
      %v948 = vmul.f32 %v903, %v941
      %v949 = vmul.f32 %v904, %v941
      %v950 = vmul.f32 %v905, %v941
      %v951 = vmul.f32 %v906, %v941
      %v952 = vmul.f32 %v907, %v941
      %v953 = vmul.f32 %v908, %v941
      %v954 = vmul.f32 %v909, %v941
      %v955 = vmul.f32 %v910, %v941
      %v956 = vmul.f32 %v911, %v941
      %v957 = vmul.f32 %v912, %v941
      %v958 = vmul.f32 %v913, %v941
      %v959 = vmul.f32 %v914, %v941
      %v960 = vmul.f32 %v915, %v941
      %v961 = vmul.f32 %v916, %v941
      %v962 = vmul.f32 %v917, %v941
      %v963 = vmul.f32 %v918, %v941
      %v964 = vmul.f32 %v919, %v941
      %v965 = vmul.f32 %v920, %v941
      %v966 = vmul.f32 %v921, %v941
      %v967 = vmul.f32 %v922, %v941
      %v968 = vmul.f32 %v923, %v941
      %v969 = vmul.f32 %v924, %v941
      %v970 = vmul.f32 %v925, %v941
      %v971 = vmul.f32 %v926, %v941
      %v972 = vmul.f32 %v927, %v941
      %v973 = vmul.f32 %v928, %v941
      %v974 = vadd.f32 %v865, %v942
      %v975 = vadd.f32 %v866, %v943
      %v976 = vadd.f32 %v867, %v944
      %v977 = vadd.f32 %v868, %v945
      %v978 = vadd.f32 %v869, %v946
      %v979 = vadd.f32 %v870, %v947
      %v980 = vadd.f32 %v871, %v948
      %v981 = vadd.f32 %v872, %v949
      %v982 = vadd.f32 %v873, %v950
      %v983 = vadd.f32 %v874, %v951
      %v984 = vadd.f32 %v875, %v952
      %v985 = vadd.f32 %v876, %v953
      %v986 = vadd.f32 %v877, %v954
      %v987 = vadd.f32 %v878, %v955
      %v988 = vadd.f32 %v879, %v956
      %v989 = vadd.f32 %v880, %v957
      %v990 = vadd.f32 %v881, %v958
      %v991 = vadd.f32 %v882, %v959
      %v992 = vadd.f32 %v883, %v960
      %v993 = vadd.f32 %v884, %v961
      %v994 = vadd.f32 %v885, %v962
      %v995 = vadd.f32 %v886, %v963
      %v996 = vadd.f32 %v887, %v964
      %v997 = vadd.f32 %v888, %v965
      %v998 = vadd.f32 %v889, %v966
      %v999 = vadd.f32 %v890, %v967
      %v1000 = vadd.f32 %v891, %v968
      %v1001 = vadd.f32 %v892, %v969
      %v1002 = vadd.f32 %v893, %v970
      %v1003 = vadd.f32 %v894, %v971
      %v1004 = vadd.f32 %v895, %v972
      %v1005 = vadd.f32 %v896, %v973
      %v1006 = vperm.slane %v379, 0
      %v1007 = vmul.f32 %v899, %v1006
      %v1008 = vmul.f32 %v900, %v1006
      %v1009 = vmul.f32 %v901, %v1006
      %v1010 = vmul.f32 %v902, %v1006
      %v1011 = vmul.f32 %v903, %v1006
      %v1012 = vmul.f32 %v904, %v1006
      %v1013 = vmul.f32 %v905, %v1006
      %v1014 = vmul.f32 %v906, %v1006
      %v1015 = vmul.f32 %v907, %v1006
      %v1016 = vmul.f32 %v908, %v1006
      %v1017 = vmul.f32 %v909, %v1006
      %v1018 = vmul.f32 %v910, %v1006
      %v1019 = vmul.f32 %v911, %v1006
      %v1020 = vmul.f32 %v912, %v1006
      %v1021 = vmul.f32 %v913, %v1006
      %v1022 = vmul.f32 %v914, %v1006
      %v1023 = vmul.f32 %v915, %v1006
      %v1024 = vmul.f32 %v916, %v1006
      %v1025 = vmul.f32 %v917, %v1006
      %v1026 = vmul.f32 %v918, %v1006
      %v1027 = vmul.f32 %v919, %v1006
      %v1028 = vmul.f32 %v920, %v1006
      %v1029 = vmul.f32 %v921, %v1006
      %v1030 = vmul.f32 %v922, %v1006
      %v1031 = vmul.f32 %v923, %v1006
      %v1032 = vmul.f32 %v924, %v1006
      %v1033 = vmul.f32 %v925, %v1006
      %v1034 = vmul.f32 %v926, %v1006
      %v1035 = vmul.f32 %v927, %v1006
      %v1036 = vmul.f32 %v928, %v1006
      %v1037 = vmul.f32 %v929, %v1006
      %v1038 = vmul.f32 %v930, %v1006
      %v1039 = vadd.f32 %v974, %v1007
      %v1040 = vadd.f32 %v975, %v1008
      %v1041 = vadd.f32 %v976, %v1009
      %v1042 = vadd.f32 %v977, %v1010
      %v1043 = vadd.f32 %v978, %v1011
      %v1044 = vadd.f32 %v979, %v1012
      %v1045 = vadd.f32 %v980, %v1013
      %v1046 = vadd.f32 %v981, %v1014
      %v1047 = vadd.f32 %v982, %v1015
      %v1048 = vadd.f32 %v983, %v1016
      %v1049 = vadd.f32 %v984, %v1017
      %v1050 = vadd.f32 %v985, %v1018
      %v1051 = vadd.f32 %v986, %v1019
      %v1052 = vadd.f32 %v987, %v1020
      %v1053 = vadd.f32 %v988, %v1021
      %v1054 = vadd.f32 %v989, %v1022
      %v1055 = vadd.f32 %v990, %v1023
      %v1056 = vadd.f32 %v991, %v1024
      %v1057 = vadd.f32 %v992, %v1025
      %v1058 = vadd.f32 %v993, %v1026
      %v1059 = vadd.f32 %v994, %v1027
      %v1060 = vadd.f32 %v995, %v1028
      %v1061 = vadd.f32 %v996, %v1029
      %v1062 = vadd.f32 %v997, %v1030
      %v1063 = vadd.f32 %v998, %v1031
      %v1064 = vadd.f32 %v999, %v1032
      %v1065 = vadd.f32 %v1000, %v1033
      %v1066 = vadd.f32 %v1001, %v1034
      %v1067 = vadd.f32 %v1002, %v1035
      %v1068 = vadd.f32 %v1003, %v1036
      %v1069 = vadd.f32 %v1004, %v1037
      %v1070 = vadd.f32 %v1005, %v1038
      %v1071 = vperm.slane %v379, 7
      %v1072 = vmul.f32 %v901, %v1071
      %v1073 = vmul.f32 %v902, %v1071
      %v1074 = vmul.f32 %v903, %v1071
      %v1075 = vmul.f32 %v904, %v1071
      %v1076 = vmul.f32 %v905, %v1071
      %v1077 = vmul.f32 %v906, %v1071
      %v1078 = vmul.f32 %v907, %v1071
      %v1079 = vmul.f32 %v908, %v1071
      %v1080 = vmul.f32 %v909, %v1071
      %v1081 = vmul.f32 %v910, %v1071
      %v1082 = vmul.f32 %v911, %v1071
      %v1083 = vmul.f32 %v912, %v1071
      %v1084 = vmul.f32 %v913, %v1071
      %v1085 = vmul.f32 %v914, %v1071
      %v1086 = vmul.f32 %v915, %v1071
      %v1087 = vmul.f32 %v916, %v1071
      %v1088 = vmul.f32 %v917, %v1071
      %v1089 = vmul.f32 %v918, %v1071
      %v1090 = vmul.f32 %v919, %v1071
      %v1091 = vmul.f32 %v920, %v1071
      %v1092 = vmul.f32 %v921, %v1071
      %v1093 = vmul.f32 %v922, %v1071
      %v1094 = vmul.f32 %v923, %v1071
      %v1095 = vmul.f32 %v924, %v1071
      %v1096 = vmul.f32 %v925, %v1071
      %v1097 = vmul.f32 %v926, %v1071
      %v1098 = vmul.f32 %v927, %v1071
      %v1099 = vmul.f32 %v928, %v1071
      %v1100 = vmul.f32 %v929, %v1071
      %v1101 = vmul.f32 %v930, %v1071
      %v1102 = vmul.f32 %v931, %v1071
      %v1103 = vmul.f32 %v932, %v1071
      %v1104 = vadd.f32 %v1039, %v1072
      %v1105 = vadd.f32 %v1040, %v1073
      %v1106 = vadd.f32 %v1041, %v1074
      %v1107 = vadd.f32 %v1042, %v1075
      %v1108 = vadd.f32 %v1043, %v1076
      %v1109 = vadd.f32 %v1044, %v1077
      %v1110 = vadd.f32 %v1045, %v1078
      %v1111 = vadd.f32 %v1046, %v1079
      %v1112 = vadd.f32 %v1047, %v1080
      %v1113 = vadd.f32 %v1048, %v1081
      %v1114 = vadd.f32 %v1049, %v1082
      %v1115 = vadd.f32 %v1050, %v1083
      %v1116 = vadd.f32 %v1051, %v1084
      %v1117 = vadd.f32 %v1052, %v1085
      %v1118 = vadd.f32 %v1053, %v1086
      %v1119 = vadd.f32 %v1054, %v1087
      %v1120 = vadd.f32 %v1055, %v1088
      %v1121 = vadd.f32 %v1056, %v1089
      %v1122 = vadd.f32 %v1057, %v1090
      %v1123 = vadd.f32 %v1058, %v1091
      %v1124 = vadd.f32 %v1059, %v1092
      %v1125 = vadd.f32 %v1060, %v1093
      %v1126 = vadd.f32 %v1061, %v1094
      %v1127 = vadd.f32 %v1062, %v1095
      %v1128 = vadd.f32 %v1063, %v1096
      %v1129 = vadd.f32 %v1064, %v1097
      %v1130 = vadd.f32 %v1065, %v1098
      %v1131 = vadd.f32 %v1066, %v1099
      %v1132 = vadd.f32 %v1067, %v1100
      %v1133 = vadd.f32 %v1068, %v1101
      %v1134 = vadd.f32 %v1069, %v1102
      %v1135 = vadd.f32 %v1070, %v1103
      %v1136 = vperm.slane %v380, 6
      %v1137 = vmul.f32 %v903, %v1136
      %v1138 = vmul.f32 %v904, %v1136
      %v1139 = vmul.f32 %v905, %v1136
      %v1140 = vmul.f32 %v906, %v1136
      %v1141 = vmul.f32 %v907, %v1136
      %v1142 = vmul.f32 %v908, %v1136
      %v1143 = vmul.f32 %v909, %v1136
      %v1144 = vmul.f32 %v910, %v1136
      %v1145 = vmul.f32 %v911, %v1136
      %v1146 = vmul.f32 %v912, %v1136
      %v1147 = vmul.f32 %v913, %v1136
      %v1148 = vmul.f32 %v914, %v1136
      %v1149 = vmul.f32 %v915, %v1136
      %v1150 = vmul.f32 %v916, %v1136
      %v1151 = vmul.f32 %v917, %v1136
      %v1152 = vmul.f32 %v918, %v1136
      %v1153 = vmul.f32 %v919, %v1136
      %v1154 = vmul.f32 %v920, %v1136
      %v1155 = vmul.f32 %v921, %v1136
      %v1156 = vmul.f32 %v922, %v1136
      %v1157 = vmul.f32 %v923, %v1136
      %v1158 = vmul.f32 %v924, %v1136
      %v1159 = vmul.f32 %v925, %v1136
      %v1160 = vmul.f32 %v926, %v1136
      %v1161 = vmul.f32 %v927, %v1136
      %v1162 = vmul.f32 %v928, %v1136
      %v1163 = vmul.f32 %v929, %v1136
      %v1164 = vmul.f32 %v930, %v1136
      %v1165 = vmul.f32 %v931, %v1136
      %v1166 = vmul.f32 %v932, %v1136
      %v1167 = vmul.f32 %v933, %v1136
      %v1168 = vmul.f32 %v934, %v1136
      %v1169 = vadd.f32 %v1104, %v1137
      %v1170 = vadd.f32 %v1105, %v1138
      %v1171 = vadd.f32 %v1106, %v1139
      %v1172 = vadd.f32 %v1107, %v1140
      %v1173 = vadd.f32 %v1108, %v1141
      %v1174 = vadd.f32 %v1109, %v1142
      %v1175 = vadd.f32 %v1110, %v1143
      %v1176 = vadd.f32 %v1111, %v1144
      %v1177 = vadd.f32 %v1112, %v1145
      %v1178 = vadd.f32 %v1113, %v1146
      %v1179 = vadd.f32 %v1114, %v1147
      %v1180 = vadd.f32 %v1115, %v1148
      %v1181 = vadd.f32 %v1116, %v1149
      %v1182 = vadd.f32 %v1117, %v1150
      %v1183 = vadd.f32 %v1118, %v1151
      %v1184 = vadd.f32 %v1119, %v1152
      %v1185 = vadd.f32 %v1120, %v1153
      %v1186 = vadd.f32 %v1121, %v1154
      %v1187 = vadd.f32 %v1122, %v1155
      %v1188 = vadd.f32 %v1123, %v1156
      %v1189 = vadd.f32 %v1124, %v1157
      %v1190 = vadd.f32 %v1125, %v1158
      %v1191 = vadd.f32 %v1126, %v1159
      %v1192 = vadd.f32 %v1127, %v1160
      %v1193 = vadd.f32 %v1128, %v1161
      %v1194 = vadd.f32 %v1129, %v1162
      %v1195 = vadd.f32 %v1130, %v1163
      %v1196 = vadd.f32 %v1131, %v1164
      %v1197 = vadd.f32 %v1132, %v1165
      %v1198 = vadd.f32 %v1133, %v1166
      %v1199 = vadd.f32 %v1134, %v1167
      %v1200 = vadd.f32 %v1135, %v1168
      %v1201 = vperm.slane %v381, 5
      %v1202 = vmul.f32 %v905, %v1201
      %v1203 = vmul.f32 %v906, %v1201
      %v1204 = vmul.f32 %v907, %v1201
      %v1205 = vmul.f32 %v908, %v1201
      %v1206 = vmul.f32 %v909, %v1201
      %v1207 = vmul.f32 %v910, %v1201
      %v1208 = vmul.f32 %v911, %v1201
      %v1209 = vmul.f32 %v912, %v1201
      %v1210 = vmul.f32 %v913, %v1201
      %v1211 = vmul.f32 %v914, %v1201
      %v1212 = vmul.f32 %v915, %v1201
      %v1213 = vmul.f32 %v916, %v1201
      %v1214 = vmul.f32 %v917, %v1201
      %v1215 = vmul.f32 %v918, %v1201
      %v1216 = vmul.f32 %v919, %v1201
      %v1217 = vmul.f32 %v920, %v1201
      %v1218 = vmul.f32 %v921, %v1201
      %v1219 = vmul.f32 %v922, %v1201
      %v1220 = vmul.f32 %v923, %v1201
      %v1221 = vmul.f32 %v924, %v1201
      %v1222 = vmul.f32 %v925, %v1201
      %v1223 = vmul.f32 %v926, %v1201
      %v1224 = vmul.f32 %v927, %v1201
      %v1225 = vmul.f32 %v928, %v1201
      %v1226 = vmul.f32 %v929, %v1201
      %v1227 = vmul.f32 %v930, %v1201
      %v1228 = vmul.f32 %v931, %v1201
      %v1229 = vmul.f32 %v932, %v1201
      %v1230 = vmul.f32 %v933, %v1201
      %v1231 = vmul.f32 %v934, %v1201
      %v1232 = vmul.f32 %v935, %v1201
      %v1233 = vmul.f32 %v936, %v1201
      %v1234 = vadd.f32 %v1169, %v1202
      %v1235 = vadd.f32 %v1170, %v1203
      %v1236 = vadd.f32 %v1171, %v1204
      %v1237 = vadd.f32 %v1172, %v1205
      %v1238 = vadd.f32 %v1173, %v1206
      %v1239 = vadd.f32 %v1174, %v1207
      %v1240 = vadd.f32 %v1175, %v1208
      %v1241 = vadd.f32 %v1176, %v1209
      %v1242 = vadd.f32 %v1177, %v1210
      %v1243 = vadd.f32 %v1178, %v1211
      %v1244 = vadd.f32 %v1179, %v1212
      %v1245 = vadd.f32 %v1180, %v1213
      %v1246 = vadd.f32 %v1181, %v1214
      %v1247 = vadd.f32 %v1182, %v1215
      %v1248 = vadd.f32 %v1183, %v1216
      %v1249 = vadd.f32 %v1184, %v1217
      %v1250 = vadd.f32 %v1185, %v1218
      %v1251 = vadd.f32 %v1186, %v1219
      %v1252 = vadd.f32 %v1187, %v1220
      %v1253 = vadd.f32 %v1188, %v1221
      %v1254 = vadd.f32 %v1189, %v1222
      %v1255 = vadd.f32 %v1190, %v1223
      %v1256 = vadd.f32 %v1191, %v1224
      %v1257 = vadd.f32 %v1192, %v1225
      %v1258 = vadd.f32 %v1193, %v1226
      %v1259 = vadd.f32 %v1194, %v1227
      %v1260 = vadd.f32 %v1195, %v1228
      %v1261 = vadd.f32 %v1196, %v1229
      %v1262 = vadd.f32 %v1197, %v1230
      %v1263 = vadd.f32 %v1198, %v1231
      %v1264 = vadd.f32 %v1199, %v1232
      %v1265 = vadd.f32 %v1200, %v1233
      %v1266 = vperm.slane %v382, 4
      %v1267 = vmul.f32 %v907, %v1266
      %v1268 = vmul.f32 %v908, %v1266
      %v1269 = vmul.f32 %v909, %v1266
      %v1270 = vmul.f32 %v910, %v1266
      %v1271 = vmul.f32 %v911, %v1266
      %v1272 = vmul.f32 %v912, %v1266
      %v1273 = vmul.f32 %v913, %v1266
      %v1274 = vmul.f32 %v914, %v1266
      %v1275 = vmul.f32 %v915, %v1266
      %v1276 = vmul.f32 %v916, %v1266
      %v1277 = vmul.f32 %v917, %v1266
      %v1278 = vmul.f32 %v918, %v1266
      %v1279 = vmul.f32 %v919, %v1266
      %v1280 = vmul.f32 %v920, %v1266
      %v1281 = vmul.f32 %v921, %v1266
      %v1282 = vmul.f32 %v922, %v1266
      %v1283 = vmul.f32 %v923, %v1266
      %v1284 = vmul.f32 %v924, %v1266
      %v1285 = vmul.f32 %v925, %v1266
      %v1286 = vmul.f32 %v926, %v1266
      %v1287 = vmul.f32 %v927, %v1266
      %v1288 = vmul.f32 %v928, %v1266
      %v1289 = vmul.f32 %v929, %v1266
      %v1290 = vmul.f32 %v930, %v1266
      %v1291 = vmul.f32 %v931, %v1266
      %v1292 = vmul.f32 %v932, %v1266
      %v1293 = vmul.f32 %v933, %v1266
      %v1294 = vmul.f32 %v934, %v1266
      %v1295 = vmul.f32 %v935, %v1266
      %v1296 = vmul.f32 %v936, %v1266
      %v1297 = vmul.f32 %v937, %v1266
      %v1298 = vmul.f32 %v938, %v1266
      %v1299 = vadd.f32 %v1234, %v1267
      %v1300 = vadd.f32 %v1235, %v1268
      %v1301 = vadd.f32 %v1236, %v1269
      %v1302 = vadd.f32 %v1237, %v1270
      %v1303 = vadd.f32 %v1238, %v1271
      %v1304 = vadd.f32 %v1239, %v1272
      %v1305 = vadd.f32 %v1240, %v1273
      %v1306 = vadd.f32 %v1241, %v1274
      %v1307 = vadd.f32 %v1242, %v1275
      %v1308 = vadd.f32 %v1243, %v1276
      %v1309 = vadd.f32 %v1244, %v1277
      %v1310 = vadd.f32 %v1245, %v1278
      %v1311 = vadd.f32 %v1246, %v1279
      %v1312 = vadd.f32 %v1247, %v1280
      %v1313 = vadd.f32 %v1248, %v1281
      %v1314 = vadd.f32 %v1249, %v1282
      %v1315 = vadd.f32 %v1250, %v1283
      %v1316 = vadd.f32 %v1251, %v1284
      %v1317 = vadd.f32 %v1252, %v1285
      %v1318 = vadd.f32 %v1253, %v1286
      %v1319 = vadd.f32 %v1254, %v1287
      %v1320 = vadd.f32 %v1255, %v1288
      %v1321 = vadd.f32 %v1256, %v1289
      %v1322 = vadd.f32 %v1257, %v1290
      %v1323 = vadd.f32 %v1258, %v1291
      %v1324 = vadd.f32 %v1259, %v1292
      %v1325 = vadd.f32 %v1260, %v1293
      %v1326 = vadd.f32 %v1261, %v1294
      %v1327 = vadd.f32 %v1262, %v1295
      %v1328 = vadd.f32 %v1263, %v1296
      %v1329 = vadd.f32 %v1264, %v1297
      %v1330 = vadd.f32 %v1265, %v1298
      %v1331 = vperm.slane %v383, 3
      %v1332 = vmul.f32 %v909, %v1331
      %v1333 = vmul.f32 %v910, %v1331
      %v1334 = vmul.f32 %v911, %v1331
      %v1335 = vmul.f32 %v912, %v1331
      %v1336 = vmul.f32 %v913, %v1331
      %v1337 = vmul.f32 %v914, %v1331
      %v1338 = vmul.f32 %v915, %v1331
      %v1339 = vmul.f32 %v916, %v1331
      %v1340 = vmul.f32 %v917, %v1331
      %v1341 = vmul.f32 %v918, %v1331
      %v1342 = vmul.f32 %v919, %v1331
      %v1343 = vmul.f32 %v920, %v1331
      %v1344 = vmul.f32 %v921, %v1331
      %v1345 = vmul.f32 %v922, %v1331
      %v1346 = vmul.f32 %v923, %v1331
      %v1347 = vmul.f32 %v924, %v1331
      %v1348 = vmul.f32 %v925, %v1331
      %v1349 = vmul.f32 %v926, %v1331
      %v1350 = vmul.f32 %v927, %v1331
      %v1351 = vmul.f32 %v928, %v1331
      %v1352 = vmul.f32 %v929, %v1331
      %v1353 = vmul.f32 %v930, %v1331
      %v1354 = vmul.f32 %v931, %v1331
      %v1355 = vmul.f32 %v932, %v1331
      %v1356 = vmul.f32 %v933, %v1331
      %v1357 = vmul.f32 %v934, %v1331
      %v1358 = vmul.f32 %v935, %v1331
      %v1359 = vmul.f32 %v936, %v1331
      %v1360 = vmul.f32 %v937, %v1331
      %v1361 = vmul.f32 %v938, %v1331
      %v1362 = vmul.f32 %v939, %v1331
      %v1363 = vmul.f32 %v940, %v1331
      %v1364 = vadd.f32 %v1299, %v1332
      %v1365 = vadd.f32 %v1300, %v1333
      %v1366 = vadd.f32 %v1301, %v1334
      %v1367 = vadd.f32 %v1302, %v1335
      %v1368 = vadd.f32 %v1303, %v1336
      %v1369 = vadd.f32 %v1304, %v1337
      %v1370 = vadd.f32 %v1305, %v1338
      %v1371 = vadd.f32 %v1306, %v1339
      %v1372 = vadd.f32 %v1307, %v1340
      %v1373 = vadd.f32 %v1308, %v1341
      %v1374 = vadd.f32 %v1309, %v1342
      %v1375 = vadd.f32 %v1310, %v1343
      %v1376 = vadd.f32 %v1311, %v1344
      %v1377 = vadd.f32 %v1312, %v1345
      %v1378 = vadd.f32 %v1313, %v1346
      %v1379 = vadd.f32 %v1314, %v1347
      %v1380 = vadd.f32 %v1315, %v1348
      %v1381 = vadd.f32 %v1316, %v1349
      %v1382 = vadd.f32 %v1317, %v1350
      %v1383 = vadd.f32 %v1318, %v1351
      %v1384 = vadd.f32 %v1319, %v1352
      %v1385 = vadd.f32 %v1320, %v1353
      %v1386 = vadd.f32 %v1321, %v1354
      %v1387 = vadd.f32 %v1322, %v1355
      %v1388 = vadd.f32 %v1323, %v1356
      %v1389 = vadd.f32 %v1324, %v1357
      %v1390 = vadd.f32 %v1325, %v1358
      %v1391 = vadd.f32 %v1326, %v1359
      %v1392 = vadd.f32 %v1327, %v1360
      %v1393 = vadd.f32 %v1328, %v1361
      %v1394 = vadd.f32 %v1329, %v1362
      %v1395 = vadd.f32 %v1330, %v1363
      %v1396 = vld [vmem:[#allocation2 + $0x7] sm:$0xff]
      %v1397 = vld [vmem:[#allocation2 + $0xf] sm:$0xff]
      %v1398 = vld [vmem:[#allocation2 + $0x27] sm:$0xff]
      %v1399 = vld [vmem:[#allocation2 + $0x2f] sm:$0xff]
      %v1400 = vld [vmem:[#allocation2 + $0x47] sm:$0xff]
      %v1401 = vld [vmem:[#allocation2 + $0x4f] sm:$0xff]
      %v1402 = vld [vmem:[#allocation2 + $0x67] sm:$0xff]
      %v1403 = vld [vmem:[#allocation2 + $0x6f] sm:$0xff]
      %v1404 = vld [vmem:[#allocation2 + $0x87] sm:$0xff]
      %v1405 = vld [vmem:[#allocation2 + $0x8f] sm:$0xff]
      %v1406 = vld [vmem:[#allocation2 + $0xa7] sm:$0xff]
      %v1407 = vld [vmem:[#allocation2 + $0xaf] sm:$0xff]
      %v1408 = vld [vmem:[#allocation2 + $0xc7] sm:$0xff]
      %v1409 = vld [vmem:[#allocation2 + $0xcf] sm:$0xff]
      %v1410 = vld [vmem:[#allocation2 + $0xe7] sm:$0xff]
      %v1411 = vld [vmem:[#allocation2 + $0xef] sm:$0xff]
      %v1412 = vld [vmem:[#allocation2 + $0x107] sm:$0xff]
      %v1413 = vld [vmem:[#allocation2 + $0x10f] sm:$0xff]
      %v1414 = vld [vmem:[#allocation2 + $0x127] sm:$0xff]
      %v1415 = vld [vmem:[#allocation2 + $0x12f] sm:$0xff]
      %v1416 = vld [vmem:[#allocation2 + $0x147] sm:$0xff]
      %v1417 = vld [vmem:[#allocation2 + $0x14f] sm:$0xff]
      %v1418 = vld [vmem:[#allocation2 + $0x167] sm:$0xff]
      %v1419 = vld [vmem:[#allocation2 + $0x16f] sm:$0xff]
      %v1420 = vld [vmem:[#allocation2 + $0x187] sm:$0xff]
      %v1421 = vld [vmem:[#allocation2 + $0x18f] sm:$0xff]
      %v1422 = vld [vmem:[#allocation2 + $0x1a7] sm:$0xff]
      %v1423 = vld [vmem:[#allocation2 + $0x1af] sm:$0xff]
      %v1424 = vld [vmem:[#allocation2 + $0x1c7] sm:$0xff]
      %v1425 = vld [vmem:[#allocation2 + $0x1cf] sm:$0xff]
      %v1426 = vld [vmem:[#allocation2 + $0x1e7] sm:$0xff]
      %v1427 = vld [vmem:[#allocation2 + $0x1ef] sm:$0xff]
      %v1428 = vld [vmem:[#allocation2 + $0x207] sm:$0xff]
      %v1429 = vld [vmem:[#allocation2 + $0x20f] sm:$0xff]
      %v1430 = vld [vmem:[#allocation2 + $0x227] sm:$0xff]
      %v1431 = vld [vmem:[#allocation2 + $0x22f] sm:$0xff]
      %v1432 = vld [vmem:[#allocation2 + $0x247] sm:$0xff]
      %v1433 = vld [vmem:[#allocation2 + $0x24f] sm:$0xff]
      %v1434 = vld [vmem:[#allocation2 + $0x267] sm:$0xff]
      %v1435 = vld [vmem:[#allocation2 + $0x26f] sm:$0xff]
      %v1436 = vld [vmem:[#allocation2 + $0x287] sm:$0xff]
      %v1437 = vld [vmem:[#allocation2 + $0x28f] sm:$0xff]
      %v1438 = vld [vmem:[#allocation2 + $0x2a7] sm:$0xff]
      %v1439 = vld [vmem:[#allocation2 + $0x2af] sm:$0xff]
      %v1440 = vperm.slane %v378, 2
      %v1441 = vmul.f32 %v1396, %v1440
      %v1442 = vmul.f32 %v1397, %v1440
      %v1443 = vmul.f32 %v1398, %v1440
      %v1444 = vmul.f32 %v1399, %v1440
      %v1445 = vmul.f32 %v1400, %v1440
      %v1446 = vmul.f32 %v1401, %v1440
      %v1447 = vmul.f32 %v1402, %v1440
      %v1448 = vmul.f32 %v1403, %v1440
      %v1449 = vmul.f32 %v1404, %v1440
      %v1450 = vmul.f32 %v1405, %v1440
      %v1451 = vmul.f32 %v1406, %v1440
      %v1452 = vmul.f32 %v1407, %v1440
      %v1453 = vmul.f32 %v1408, %v1440
      %v1454 = vmul.f32 %v1409, %v1440
      %v1455 = vmul.f32 %v1410, %v1440
      %v1456 = vmul.f32 %v1411, %v1440
      %v1457 = vmul.f32 %v1412, %v1440
      %v1458 = vmul.f32 %v1413, %v1440
      %v1459 = vmul.f32 %v1414, %v1440
      %v1460 = vmul.f32 %v1415, %v1440
      %v1461 = vmul.f32 %v1416, %v1440
      %v1462 = vmul.f32 %v1417, %v1440
      %v1463 = vmul.f32 %v1418, %v1440
      %v1464 = vmul.f32 %v1419, %v1440
      %v1465 = vmul.f32 %v1420, %v1440
      %v1466 = vmul.f32 %v1421, %v1440
      %v1467 = vmul.f32 %v1422, %v1440
      %v1468 = vmul.f32 %v1423, %v1440
      %v1469 = vmul.f32 %v1424, %v1440
      %v1470 = vmul.f32 %v1425, %v1440
      %v1471 = vmul.f32 %v1426, %v1440
      %v1472 = vmul.f32 %v1427, %v1440
      %v1473 = vadd.f32 %v1364, %v1441
      %v1474 = vadd.f32 %v1365, %v1442
      %v1475 = vadd.f32 %v1366, %v1443
      %v1476 = vadd.f32 %v1367, %v1444
      %v1477 = vadd.f32 %v1368, %v1445
      %v1478 = vadd.f32 %v1369, %v1446
      %v1479 = vadd.f32 %v1370, %v1447
      %v1480 = vadd.f32 %v1371, %v1448
      %v1481 = vadd.f32 %v1372, %v1449
      %v1482 = vadd.f32 %v1373, %v1450
      %v1483 = vadd.f32 %v1374, %v1451
      %v1484 = vadd.f32 %v1375, %v1452
      %v1485 = vadd.f32 %v1376, %v1453
      %v1486 = vadd.f32 %v1377, %v1454
      %v1487 = vadd.f32 %v1378, %v1455
      %v1488 = vadd.f32 %v1379, %v1456
      %v1489 = vadd.f32 %v1380, %v1457
      %v1490 = vadd.f32 %v1381, %v1458
      %v1491 = vadd.f32 %v1382, %v1459
      %v1492 = vadd.f32 %v1383, %v1460
      %v1493 = vadd.f32 %v1384, %v1461
      %v1494 = vadd.f32 %v1385, %v1462
      %v1495 = vadd.f32 %v1386, %v1463
      %v1496 = vadd.f32 %v1387, %v1464
      %v1497 = vadd.f32 %v1388, %v1465
      %v1498 = vadd.f32 %v1389, %v1466
      %v1499 = vadd.f32 %v1390, %v1467
      %v1500 = vadd.f32 %v1391, %v1468
      %v1501 = vadd.f32 %v1392, %v1469
      %v1502 = vadd.f32 %v1393, %v1470
      %v1503 = vadd.f32 %v1394, %v1471
      %v1504 = vadd.f32 %v1395, %v1472
      %v1505 = vperm.slane %v379, 1
      %v1506 = vmul.f32 %v1398, %v1505
      %v1507 = vmul.f32 %v1399, %v1505
      %v1508 = vmul.f32 %v1400, %v1505
      %v1509 = vmul.f32 %v1401, %v1505
      %v1510 = vmul.f32 %v1402, %v1505
      %v1511 = vmul.f32 %v1403, %v1505
      %v1512 = vmul.f32 %v1404, %v1505
      %v1513 = vmul.f32 %v1405, %v1505
      %v1514 = vmul.f32 %v1406, %v1505
      %v1515 = vmul.f32 %v1407, %v1505
      %v1516 = vmul.f32 %v1408, %v1505
      %v1517 = vmul.f32 %v1409, %v1505
      %v1518 = vmul.f32 %v1410, %v1505
      %v1519 = vmul.f32 %v1411, %v1505
      %v1520 = vmul.f32 %v1412, %v1505
      %v1521 = vmul.f32 %v1413, %v1505
      %v1522 = vmul.f32 %v1414, %v1505
      %v1523 = vmul.f32 %v1415, %v1505
      %v1524 = vmul.f32 %v1416, %v1505
      %v1525 = vmul.f32 %v1417, %v1505
      %v1526 = vmul.f32 %v1418, %v1505
      %v1527 = vmul.f32 %v1419, %v1505
      %v1528 = vmul.f32 %v1420, %v1505
      %v1529 = vmul.f32 %v1421, %v1505
      %v1530 = vmul.f32 %v1422, %v1505
      %v1531 = vmul.f32 %v1423, %v1505
      %v1532 = vmul.f32 %v1424, %v1505
      %v1533 = vmul.f32 %v1425, %v1505
      %v1534 = vmul.f32 %v1426, %v1505
      %v1535 = vmul.f32 %v1427, %v1505
      %v1536 = vmul.f32 %v1428, %v1505
      %v1537 = vmul.f32 %v1429, %v1505
      %v1538 = vadd.f32 %v1473, %v1506
      %v1539 = vadd.f32 %v1474, %v1507
      %v1540 = vadd.f32 %v1475, %v1508
      %v1541 = vadd.f32 %v1476, %v1509
      %v1542 = vadd.f32 %v1477, %v1510
      %v1543 = vadd.f32 %v1478, %v1511
      %v1544 = vadd.f32 %v1479, %v1512
      %v1545 = vadd.f32 %v1480, %v1513
      %v1546 = vadd.f32 %v1481, %v1514
      %v1547 = vadd.f32 %v1482, %v1515
      %v1548 = vadd.f32 %v1483, %v1516
      %v1549 = vadd.f32 %v1484, %v1517
      %v1550 = vadd.f32 %v1485, %v1518
      %v1551 = vadd.f32 %v1486, %v1519
      %v1552 = vadd.f32 %v1487, %v1520
      %v1553 = vadd.f32 %v1488, %v1521
      %v1554 = vadd.f32 %v1489, %v1522
      %v1555 = vadd.f32 %v1490, %v1523
      %v1556 = vadd.f32 %v1491, %v1524
      %v1557 = vadd.f32 %v1492, %v1525
      %v1558 = vadd.f32 %v1493, %v1526
      %v1559 = vadd.f32 %v1494, %v1527
      %v1560 = vadd.f32 %v1495, %v1528
      %v1561 = vadd.f32 %v1496, %v1529
      %v1562 = vadd.f32 %v1497, %v1530
      %v1563 = vadd.f32 %v1498, %v1531
      %v1564 = vadd.f32 %v1499, %v1532
      %v1565 = vadd.f32 %v1500, %v1533
      %v1566 = vadd.f32 %v1501, %v1534
      %v1567 = vadd.f32 %v1502, %v1535
      %v1568 = vadd.f32 %v1503, %v1536
      %v1569 = vadd.f32 %v1504, %v1537
      %v1570 = vperm.slane %v380, 0
      %v1571 = vmul.f32 %v1400, %v1570
      %v1572 = vmul.f32 %v1401, %v1570
      %v1573 = vmul.f32 %v1402, %v1570
      %v1574 = vmul.f32 %v1403, %v1570
      %v1575 = vmul.f32 %v1404, %v1570
      %v1576 = vmul.f32 %v1405, %v1570
      %v1577 = vmul.f32 %v1406, %v1570
      %v1578 = vmul.f32 %v1407, %v1570
      %v1579 = vmul.f32 %v1408, %v1570
      %v1580 = vmul.f32 %v1409, %v1570
      %v1581 = vmul.f32 %v1410, %v1570
      %v1582 = vmul.f32 %v1411, %v1570
      %v1583 = vmul.f32 %v1412, %v1570
      %v1584 = vmul.f32 %v1413, %v1570
      %v1585 = vmul.f32 %v1414, %v1570
      %v1586 = vmul.f32 %v1415, %v1570
      %v1587 = vmul.f32 %v1416, %v1570
      %v1588 = vmul.f32 %v1417, %v1570
      %v1589 = vmul.f32 %v1418, %v1570
      %v1590 = vmul.f32 %v1419, %v1570
      %v1591 = vmul.f32 %v1420, %v1570
      %v1592 = vmul.f32 %v1421, %v1570
      %v1593 = vmul.f32 %v1422, %v1570
      %v1594 = vmul.f32 %v1423, %v1570
      %v1595 = vmul.f32 %v1424, %v1570
      %v1596 = vmul.f32 %v1425, %v1570
      %v1597 = vmul.f32 %v1426, %v1570
      %v1598 = vmul.f32 %v1427, %v1570
      %v1599 = vmul.f32 %v1428, %v1570
      %v1600 = vmul.f32 %v1429, %v1570
      %v1601 = vmul.f32 %v1430, %v1570
      %v1602 = vmul.f32 %v1431, %v1570
      %v1603 = vadd.f32 %v1538, %v1571
      %v1604 = vadd.f32 %v1539, %v1572
      %v1605 = vadd.f32 %v1540, %v1573
      %v1606 = vadd.f32 %v1541, %v1574
      %v1607 = vadd.f32 %v1542, %v1575
      %v1608 = vadd.f32 %v1543, %v1576
      %v1609 = vadd.f32 %v1544, %v1577
      %v1610 = vadd.f32 %v1545, %v1578
      %v1611 = vadd.f32 %v1546, %v1579
      %v1612 = vadd.f32 %v1547, %v1580
      %v1613 = vadd.f32 %v1548, %v1581
      %v1614 = vadd.f32 %v1549, %v1582
      %v1615 = vadd.f32 %v1550, %v1583
      %v1616 = vadd.f32 %v1551, %v1584
      %v1617 = vadd.f32 %v1552, %v1585
      %v1618 = vadd.f32 %v1553, %v1586
      %v1619 = vadd.f32 %v1554, %v1587
      %v1620 = vadd.f32 %v1555, %v1588
      %v1621 = vadd.f32 %v1556, %v1589
      %v1622 = vadd.f32 %v1557, %v1590
      %v1623 = vadd.f32 %v1558, %v1591
      %v1624 = vadd.f32 %v1559, %v1592
      %v1625 = vadd.f32 %v1560, %v1593
      %v1626 = vadd.f32 %v1561, %v1594
      %v1627 = vadd.f32 %v1562, %v1595
      %v1628 = vadd.f32 %v1563, %v1596
      %v1629 = vadd.f32 %v1564, %v1597
      %v1630 = vadd.f32 %v1565, %v1598
      %v1631 = vadd.f32 %v1566, %v1599
      %v1632 = vadd.f32 %v1567, %v1600
      %v1633 = vadd.f32 %v1568, %v1601
      %v1634 = vadd.f32 %v1569, %v1602
      %v1635 = vperm.slane %v380, 7
      %v1636 = vmul.f32 %v1402, %v1635
      %v1637 = vmul.f32 %v1403, %v1635
      %v1638 = vmul.f32 %v1404, %v1635
      %v1639 = vmul.f32 %v1405, %v1635
      %v1640 = vmul.f32 %v1406, %v1635
      %v1641 = vmul.f32 %v1407, %v1635
      %v1642 = vmul.f32 %v1408, %v1635
      %v1643 = vmul.f32 %v1409, %v1635
      %v1644 = vmul.f32 %v1410, %v1635
      %v1645 = vmul.f32 %v1411, %v1635
      %v1646 = vmul.f32 %v1412, %v1635
      %v1647 = vmul.f32 %v1413, %v1635
      %v1648 = vmul.f32 %v1414, %v1635
      %v1649 = vmul.f32 %v1415, %v1635
      %v1650 = vmul.f32 %v1416, %v1635
      %v1651 = vmul.f32 %v1417, %v1635
      %v1652 = vmul.f32 %v1418, %v1635
      %v1653 = vmul.f32 %v1419, %v1635
      %v1654 = vmul.f32 %v1420, %v1635
      %v1655 = vmul.f32 %v1421, %v1635
      %v1656 = vmul.f32 %v1422, %v1635
      %v1657 = vmul.f32 %v1423, %v1635
      %v1658 = vmul.f32 %v1424, %v1635
      %v1659 = vmul.f32 %v1425, %v1635
      %v1660 = vmul.f32 %v1426, %v1635
      %v1661 = vmul.f32 %v1427, %v1635
      %v1662 = vmul.f32 %v1428, %v1635
      %v1663 = vmul.f32 %v1429, %v1635
      %v1664 = vmul.f32 %v1430, %v1635
      %v1665 = vmul.f32 %v1431, %v1635
      %v1666 = vmul.f32 %v1432, %v1635
      %v1667 = vmul.f32 %v1433, %v1635
      %v1668 = vadd.f32 %v1603, %v1636
      %v1669 = vadd.f32 %v1604, %v1637
      %v1670 = vadd.f32 %v1605, %v1638
      %v1671 = vadd.f32 %v1606, %v1639
      %v1672 = vadd.f32 %v1607, %v1640
      %v1673 = vadd.f32 %v1608, %v1641
      %v1674 = vadd.f32 %v1609, %v1642
      %v1675 = vadd.f32 %v1610, %v1643
      %v1676 = vadd.f32 %v1611, %v1644
      %v1677 = vadd.f32 %v1612, %v1645
      %v1678 = vadd.f32 %v1613, %v1646
      %v1679 = vadd.f32 %v1614, %v1647
      %v1680 = vadd.f32 %v1615, %v1648
      %v1681 = vadd.f32 %v1616, %v1649
      %v1682 = vadd.f32 %v1617, %v1650
      %v1683 = vadd.f32 %v1618, %v1651
      %v1684 = vadd.f32 %v1619, %v1652
      %v1685 = vadd.f32 %v1620, %v1653
      %v1686 = vadd.f32 %v1621, %v1654
      %v1687 = vadd.f32 %v1622, %v1655
      %v1688 = vadd.f32 %v1623, %v1656
      %v1689 = vadd.f32 %v1624, %v1657
      %v1690 = vadd.f32 %v1625, %v1658
      %v1691 = vadd.f32 %v1626, %v1659
      %v1692 = vadd.f32 %v1627, %v1660
      %v1693 = vadd.f32 %v1628, %v1661
      %v1694 = vadd.f32 %v1629, %v1662
      %v1695 = vadd.f32 %v1630, %v1663
      %v1696 = vadd.f32 %v1631, %v1664
      %v1697 = vadd.f32 %v1632, %v1665
      %v1698 = vadd.f32 %v1633, %v1666
      %v1699 = vadd.f32 %v1634, %v1667
      %v1700 = vperm.slane %v381, 6
      %v1701 = vmul.f32 %v1404, %v1700
      %v1702 = vmul.f32 %v1405, %v1700
      %v1703 = vmul.f32 %v1406, %v1700
      %v1704 = vmul.f32 %v1407, %v1700
      %v1705 = vmul.f32 %v1408, %v1700
      %v1706 = vmul.f32 %v1409, %v1700
      %v1707 = vmul.f32 %v1410, %v1700
      %v1708 = vmul.f32 %v1411, %v1700
      %v1709 = vmul.f32 %v1412, %v1700
      %v1710 = vmul.f32 %v1413, %v1700
      %v1711 = vmul.f32 %v1414, %v1700
      %v1712 = vmul.f32 %v1415, %v1700
      %v1713 = vmul.f32 %v1416, %v1700
      %v1714 = vmul.f32 %v1417, %v1700
      %v1715 = vmul.f32 %v1418, %v1700
      %v1716 = vmul.f32 %v1419, %v1700
      %v1717 = vmul.f32 %v1420, %v1700
      %v1718 = vmul.f32 %v1421, %v1700
      %v1719 = vmul.f32 %v1422, %v1700
      %v1720 = vmul.f32 %v1423, %v1700
      %v1721 = vmul.f32 %v1424, %v1700
      %v1722 = vmul.f32 %v1425, %v1700
      %v1723 = vmul.f32 %v1426, %v1700
      %v1724 = vmul.f32 %v1427, %v1700
      %v1725 = vmul.f32 %v1428, %v1700
      %v1726 = vmul.f32 %v1429, %v1700
      %v1727 = vmul.f32 %v1430, %v1700
      %v1728 = vmul.f32 %v1431, %v1700
      %v1729 = vmul.f32 %v1432, %v1700
      %v1730 = vmul.f32 %v1433, %v1700
      %v1731 = vmul.f32 %v1434, %v1700
      %v1732 = vmul.f32 %v1435, %v1700
      %v1733 = vadd.f32 %v1668, %v1701
      %v1734 = vadd.f32 %v1669, %v1702
      %v1735 = vadd.f32 %v1670, %v1703
      %v1736 = vadd.f32 %v1671, %v1704
      %v1737 = vadd.f32 %v1672, %v1705
      %v1738 = vadd.f32 %v1673, %v1706
      %v1739 = vadd.f32 %v1674, %v1707
      %v1740 = vadd.f32 %v1675, %v1708
      %v1741 = vadd.f32 %v1676, %v1709
      %v1742 = vadd.f32 %v1677, %v1710
      %v1743 = vadd.f32 %v1678, %v1711
      %v1744 = vadd.f32 %v1679, %v1712
      %v1745 = vadd.f32 %v1680, %v1713
      %v1746 = vadd.f32 %v1681, %v1714
      %v1747 = vadd.f32 %v1682, %v1715
      %v1748 = vadd.f32 %v1683, %v1716
      %v1749 = vadd.f32 %v1684, %v1717
      %v1750 = vadd.f32 %v1685, %v1718
      %v1751 = vadd.f32 %v1686, %v1719
      %v1752 = vadd.f32 %v1687, %v1720
      %v1753 = vadd.f32 %v1688, %v1721
      %v1754 = vadd.f32 %v1689, %v1722
      %v1755 = vadd.f32 %v1690, %v1723
      %v1756 = vadd.f32 %v1691, %v1724
      %v1757 = vadd.f32 %v1692, %v1725
      %v1758 = vadd.f32 %v1693, %v1726
      %v1759 = vadd.f32 %v1694, %v1727
      %v1760 = vadd.f32 %v1695, %v1728
      %v1761 = vadd.f32 %v1696, %v1729
      %v1762 = vadd.f32 %v1697, %v1730
      %v1763 = vadd.f32 %v1698, %v1731
      %v1764 = vadd.f32 %v1699, %v1732
      %v1765 = vperm.slane %v382, 5
      %v1766 = vmul.f32 %v1406, %v1765
      %v1767 = vmul.f32 %v1407, %v1765
      %v1768 = vmul.f32 %v1408, %v1765
      %v1769 = vmul.f32 %v1409, %v1765
      %v1770 = vmul.f32 %v1410, %v1765
      %v1771 = vmul.f32 %v1411, %v1765
      %v1772 = vmul.f32 %v1412, %v1765
      %v1773 = vmul.f32 %v1413, %v1765
      %v1774 = vmul.f32 %v1414, %v1765
      %v1775 = vmul.f32 %v1415, %v1765
      %v1776 = vmul.f32 %v1416, %v1765
      %v1777 = vmul.f32 %v1417, %v1765
      %v1778 = vmul.f32 %v1418, %v1765
      %v1779 = vmul.f32 %v1419, %v1765
      %v1780 = vmul.f32 %v1420, %v1765
      %v1781 = vmul.f32 %v1421, %v1765
      %v1782 = vmul.f32 %v1422, %v1765
      %v1783 = vmul.f32 %v1423, %v1765
      %v1784 = vmul.f32 %v1424, %v1765
      %v1785 = vmul.f32 %v1425, %v1765
      %v1786 = vmul.f32 %v1426, %v1765
      %v1787 = vmul.f32 %v1427, %v1765
      %v1788 = vmul.f32 %v1428, %v1765
      %v1789 = vmul.f32 %v1429, %v1765
      %v1790 = vmul.f32 %v1430, %v1765
      %v1791 = vmul.f32 %v1431, %v1765
      %v1792 = vmul.f32 %v1432, %v1765
      %v1793 = vmul.f32 %v1433, %v1765
      %v1794 = vmul.f32 %v1434, %v1765
      %v1795 = vmul.f32 %v1435, %v1765
      %v1796 = vmul.f32 %v1436, %v1765
      %v1797 = vmul.f32 %v1437, %v1765
      %v1798 = vadd.f32 %v1733, %v1766
      %v1799 = vadd.f32 %v1734, %v1767
      %v1800 = vadd.f32 %v1735, %v1768
      %v1801 = vadd.f32 %v1736, %v1769
      %v1802 = vadd.f32 %v1737, %v1770
      %v1803 = vadd.f32 %v1738, %v1771
      %v1804 = vadd.f32 %v1739, %v1772
      %v1805 = vadd.f32 %v1740, %v1773
      %v1806 = vadd.f32 %v1741, %v1774
      %v1807 = vadd.f32 %v1742, %v1775
      %v1808 = vadd.f32 %v1743, %v1776
      %v1809 = vadd.f32 %v1744, %v1777
      %v1810 = vadd.f32 %v1745, %v1778
      %v1811 = vadd.f32 %v1746, %v1779
      %v1812 = vadd.f32 %v1747, %v1780
      %v1813 = vadd.f32 %v1748, %v1781
      %v1814 = vadd.f32 %v1749, %v1782
      %v1815 = vadd.f32 %v1750, %v1783
      %v1816 = vadd.f32 %v1751, %v1784
      %v1817 = vadd.f32 %v1752, %v1785
      %v1818 = vadd.f32 %v1753, %v1786
      %v1819 = vadd.f32 %v1754, %v1787
      %v1820 = vadd.f32 %v1755, %v1788
      %v1821 = vadd.f32 %v1756, %v1789
      %v1822 = vadd.f32 %v1757, %v1790
      %v1823 = vadd.f32 %v1758, %v1791
      %v1824 = vadd.f32 %v1759, %v1792
      %v1825 = vadd.f32 %v1760, %v1793
      %v1826 = vadd.f32 %v1761, %v1794
      %v1827 = vadd.f32 %v1762, %v1795
      %v1828 = vadd.f32 %v1763, %v1796
      %v1829 = vadd.f32 %v1764, %v1797
      %v1830 = vperm.slane %v383, 4
      %v1831 = vmul.f32 %v1408, %v1830
      %v1832 = vmul.f32 %v1409, %v1830
      %v1833 = vmul.f32 %v1410, %v1830
      %v1834 = vmul.f32 %v1411, %v1830
      %v1835 = vmul.f32 %v1412, %v1830
      %v1836 = vmul.f32 %v1413, %v1830
      %v1837 = vmul.f32 %v1414, %v1830
      %v1838 = vmul.f32 %v1415, %v1830
      %v1839 = vmul.f32 %v1416, %v1830
      %v1840 = vmul.f32 %v1417, %v1830
      %v1841 = vmul.f32 %v1418, %v1830
      %v1842 = vmul.f32 %v1419, %v1830
      %v1843 = vmul.f32 %v1420, %v1830
      %v1844 = vmul.f32 %v1421, %v1830
      %v1845 = vmul.f32 %v1422, %v1830
      %v1846 = vmul.f32 %v1423, %v1830
      %v1847 = vmul.f32 %v1424, %v1830
      %v1848 = vmul.f32 %v1425, %v1830
      %v1849 = vmul.f32 %v1426, %v1830
      %v1850 = vmul.f32 %v1427, %v1830
      %v1851 = vmul.f32 %v1428, %v1830
      %v1852 = vmul.f32 %v1429, %v1830
      %v1853 = vmul.f32 %v1430, %v1830
      %v1854 = vmul.f32 %v1431, %v1830
      %v1855 = vmul.f32 %v1432, %v1830
      %v1856 = vmul.f32 %v1433, %v1830
      %v1857 = vmul.f32 %v1434, %v1830
      %v1858 = vmul.f32 %v1435, %v1830
      %v1859 = vmul.f32 %v1436, %v1830
      %v1860 = vmul.f32 %v1437, %v1830
      %v1861 = vmul.f32 %v1438, %v1830
      %v1862 = vmul.f32 %v1439, %v1830
      %v1863 = vadd.f32 %v1798, %v1831
      %v1864 = vadd.f32 %v1799, %v1832
      %v1865 = vadd.f32 %v1800, %v1833
      %v1866 = vadd.f32 %v1801, %v1834
      %v1867 = vadd.f32 %v1802, %v1835
      %v1868 = vadd.f32 %v1803, %v1836
      %v1869 = vadd.f32 %v1804, %v1837
      %v1870 = vadd.f32 %v1805, %v1838
      %v1871 = vadd.f32 %v1806, %v1839
      %v1872 = vadd.f32 %v1807, %v1840
      %v1873 = vadd.f32 %v1808, %v1841
      %v1874 = vadd.f32 %v1809, %v1842
      %v1875 = vadd.f32 %v1810, %v1843
      %v1876 = vadd.f32 %v1811, %v1844
      %v1877 = vadd.f32 %v1812, %v1845
      %v1878 = vadd.f32 %v1813, %v1846
      %v1879 = vadd.f32 %v1814, %v1847
      %v1880 = vadd.f32 %v1815, %v1848
      %v1881 = vadd.f32 %v1816, %v1849
      %v1882 = vadd.f32 %v1817, %v1850
      %v1883 = vadd.f32 %v1818, %v1851
      %v1884 = vadd.f32 %v1819, %v1852
      %v1885 = vadd.f32 %v1820, %v1853
      %v1886 = vadd.f32 %v1821, %v1854
      %v1887 = vadd.f32 %v1822, %v1855
      %v1888 = vadd.f32 %v1823, %v1856
      %v1889 = vadd.f32 %v1824, %v1857
      %v1890 = vadd.f32 %v1825, %v1858
      %v1891 = vadd.f32 %v1826, %v1859
      %v1892 = vadd.f32 %v1827, %v1860
      %v1893 = vadd.f32 %v1828, %v1861
      %v1894 = vadd.f32 %v1829, %v1862
      %v1895 = vld [vmem:[#allocation2 + $0x8] sm:$0xff]
      %v1896 = vld [vmem:[#allocation2 + $0x10] sm:$0xff]
      %v1897 = vld [vmem:[#allocation2 + $0x28] sm:$0xff]
      %v1898 = vld [vmem:[#allocation2 + $0x30] sm:$0xff]
      %v1899 = vld [vmem:[#allocation2 + $0x48] sm:$0xff]
      %v1900 = vld [vmem:[#allocation2 + $0x50] sm:$0xff]
      %v1901 = vld [vmem:[#allocation2 + $0x68] sm:$0xff]
      %v1902 = vld [vmem:[#allocation2 + $0x70] sm:$0xff]
      %v1903 = vld [vmem:[#allocation2 + $0x88] sm:$0xff]
      %v1904 = vld [vmem:[#allocation2 + $0x90] sm:$0xff]
      %v1905 = vld [vmem:[#allocation2 + $0xa8] sm:$0xff]
      %v1906 = vld [vmem:[#allocation2 + $0xb0] sm:$0xff]
      %v1907 = vld [vmem:[#allocation2 + $0xc8] sm:$0xff]
      %v1908 = vld [vmem:[#allocation2 + $0xd0] sm:$0xff]
      %v1909 = vld [vmem:[#allocation2 + $0xe8] sm:$0xff]
      %v1910 = vld [vmem:[#allocation2 + $0xf0] sm:$0xff]
      %v1911 = vld [vmem:[#allocation2 + $0x108] sm:$0xff]
      %v1912 = vld [vmem:[#allocation2 + $0x110] sm:$0xff]
      %v1913 = vld [vmem:[#allocation2 + $0x128] sm:$0xff]
      %v1914 = vld [vmem:[#allocation2 + $0x130] sm:$0xff]
      %v1915 = vld [vmem:[#allocation2 + $0x148] sm:$0xff]
      %v1916 = vld [vmem:[#allocation2 + $0x150] sm:$0xff]
      %v1917 = vld [vmem:[#allocation2 + $0x168] sm:$0xff]
      %v1918 = vld [vmem:[#allocation2 + $0x170] sm:$0xff]
      %v1919 = vld [vmem:[#allocation2 + $0x188] sm:$0xff]
      %v1920 = vld [vmem:[#allocation2 + $0x190] sm:$0xff]
      %v1921 = vld [vmem:[#allocation2 + $0x1a8] sm:$0xff]
      %v1922 = vld [vmem:[#allocation2 + $0x1b0] sm:$0xff]
      %v1923 = vld [vmem:[#allocation2 + $0x1c8] sm:$0xff]
      %v1924 = vld [vmem:[#allocation2 + $0x1d0] sm:$0xff]
      %v1925 = vld [vmem:[#allocation2 + $0x1e8] sm:$0xff]
      %v1926 = vld [vmem:[#allocation2 + $0x1f0] sm:$0xff]
      %v1927 = vld [vmem:[#allocation2 + $0x208] sm:$0xff]
      %v1928 = vld [vmem:[#allocation2 + $0x210] sm:$0xff]
      %v1929 = vld [vmem:[#allocation2 + $0x228] sm:$0xff]
      %v1930 = vld [vmem:[#allocation2 + $0x230] sm:$0xff]
      %v1931 = vld [vmem:[#allocation2 + $0x248] sm:$0xff]
      %v1932 = vld [vmem:[#allocation2 + $0x250] sm:$0xff]
      %v1933 = vld [vmem:[#allocation2 + $0x268] sm:$0xff]
      %v1934 = vld [vmem:[#allocation2 + $0x270] sm:$0xff]
      %v1935 = vld [vmem:[#allocation2 + $0x288] sm:$0xff]
      %v1936 = vld [vmem:[#allocation2 + $0x290] sm:$0xff]
      %v1937 = vld [vmem:[#allocation2 + $0x2a8] sm:$0xff]
      %v1938 = vld [vmem:[#allocation2 + $0x2b0] sm:$0xff]
      %v1939 = vperm.slane %v378, 3
      %v1940 = vmul.f32 %v1895, %v1939
      %v1941 = vmul.f32 %v1896, %v1939
      %v1942 = vmul.f32 %v1897, %v1939
      %v1943 = vmul.f32 %v1898, %v1939
      %v1944 = vmul.f32 %v1899, %v1939
      %v1945 = vmul.f32 %v1900, %v1939
      %v1946 = vmul.f32 %v1901, %v1939
      %v1947 = vmul.f32 %v1902, %v1939
      %v1948 = vmul.f32 %v1903, %v1939
      %v1949 = vmul.f32 %v1904, %v1939
      %v1950 = vmul.f32 %v1905, %v1939
      %v1951 = vmul.f32 %v1906, %v1939
      %v1952 = vmul.f32 %v1907, %v1939
      %v1953 = vmul.f32 %v1908, %v1939
      %v1954 = vmul.f32 %v1909, %v1939
      %v1955 = vmul.f32 %v1910, %v1939
      %v1956 = vmul.f32 %v1911, %v1939
      %v1957 = vmul.f32 %v1912, %v1939
      %v1958 = vmul.f32 %v1913, %v1939
      %v1959 = vmul.f32 %v1914, %v1939
      %v1960 = vmul.f32 %v1915, %v1939
      %v1961 = vmul.f32 %v1916, %v1939
      %v1962 = vmul.f32 %v1917, %v1939
      %v1963 = vmul.f32 %v1918, %v1939
      %v1964 = vmul.f32 %v1919, %v1939
      %v1965 = vmul.f32 %v1920, %v1939
      %v1966 = vmul.f32 %v1921, %v1939
      %v1967 = vmul.f32 %v1922, %v1939
      %v1968 = vmul.f32 %v1923, %v1939
      %v1969 = vmul.f32 %v1924, %v1939
      %v1970 = vmul.f32 %v1925, %v1939
      %v1971 = vmul.f32 %v1926, %v1939
      %v1972 = vadd.f32 %v1863, %v1940
      %v1973 = vadd.f32 %v1864, %v1941
      %v1974 = vadd.f32 %v1865, %v1942
      %v1975 = vadd.f32 %v1866, %v1943
      %v1976 = vadd.f32 %v1867, %v1944
      %v1977 = vadd.f32 %v1868, %v1945
      %v1978 = vadd.f32 %v1869, %v1946
      %v1979 = vadd.f32 %v1870, %v1947
      %v1980 = vadd.f32 %v1871, %v1948
      %v1981 = vadd.f32 %v1872, %v1949
      %v1982 = vadd.f32 %v1873, %v1950
      %v1983 = vadd.f32 %v1874, %v1951
      %v1984 = vadd.f32 %v1875, %v1952
      %v1985 = vadd.f32 %v1876, %v1953
      %v1986 = vadd.f32 %v1877, %v1954
      %v1987 = vadd.f32 %v1878, %v1955
      %v1988 = vadd.f32 %v1879, %v1956
      %v1989 = vadd.f32 %v1880, %v1957
      %v1990 = vadd.f32 %v1881, %v1958
      %v1991 = vadd.f32 %v1882, %v1959
      %v1992 = vadd.f32 %v1883, %v1960
      %v1993 = vadd.f32 %v1884, %v1961
      %v1994 = vadd.f32 %v1885, %v1962
      %v1995 = vadd.f32 %v1886, %v1963
      %v1996 = vadd.f32 %v1887, %v1964
      %v1997 = vadd.f32 %v1888, %v1965
      %v1998 = vadd.f32 %v1889, %v1966
      %v1999 = vadd.f32 %v1890, %v1967
      %v2000 = vadd.f32 %v1891, %v1968
      %v2001 = vadd.f32 %v1892, %v1969
      %v2002 = vadd.f32 %v1893, %v1970
      %v2003 = vadd.f32 %v1894, %v1971
      %v2004 = vperm.slane %v379, 2
      %v2005 = vmul.f32 %v1897, %v2004
      %v2006 = vmul.f32 %v1898, %v2004
      %v2007 = vmul.f32 %v1899, %v2004
      %v2008 = vmul.f32 %v1900, %v2004
      %v2009 = vmul.f32 %v1901, %v2004
      %v2010 = vmul.f32 %v1902, %v2004
      %v2011 = vmul.f32 %v1903, %v2004
      %v2012 = vmul.f32 %v1904, %v2004
      %v2013 = vmul.f32 %v1905, %v2004
      %v2014 = vmul.f32 %v1906, %v2004
      %v2015 = vmul.f32 %v1907, %v2004
      %v2016 = vmul.f32 %v1908, %v2004
      %v2017 = vmul.f32 %v1909, %v2004
      %v2018 = vmul.f32 %v1910, %v2004
      %v2019 = vmul.f32 %v1911, %v2004
      %v2020 = vmul.f32 %v1912, %v2004
      %v2021 = vmul.f32 %v1913, %v2004
      %v2022 = vmul.f32 %v1914, %v2004
      %v2023 = vmul.f32 %v1915, %v2004
      %v2024 = vmul.f32 %v1916, %v2004
      %v2025 = vmul.f32 %v1917, %v2004
      %v2026 = vmul.f32 %v1918, %v2004
      %v2027 = vmul.f32 %v1919, %v2004
      %v2028 = vmul.f32 %v1920, %v2004
      %v2029 = vmul.f32 %v1921, %v2004
      %v2030 = vmul.f32 %v1922, %v2004
      %v2031 = vmul.f32 %v1923, %v2004
      %v2032 = vmul.f32 %v1924, %v2004
      %v2033 = vmul.f32 %v1925, %v2004
      %v2034 = vmul.f32 %v1926, %v2004
      %v2035 = vmul.f32 %v1927, %v2004
      %v2036 = vmul.f32 %v1928, %v2004
      %v2037 = vadd.f32 %v1972, %v2005
      %v2038 = vadd.f32 %v1973, %v2006
      %v2039 = vadd.f32 %v1974, %v2007
      %v2040 = vadd.f32 %v1975, %v2008
      %v2041 = vadd.f32 %v1976, %v2009
      %v2042 = vadd.f32 %v1977, %v2010
      %v2043 = vadd.f32 %v1978, %v2011
      %v2044 = vadd.f32 %v1979, %v2012
      %v2045 = vadd.f32 %v1980, %v2013
      %v2046 = vadd.f32 %v1981, %v2014
      %v2047 = vadd.f32 %v1982, %v2015
      %v2048 = vadd.f32 %v1983, %v2016
      %v2049 = vadd.f32 %v1984, %v2017
      %v2050 = vadd.f32 %v1985, %v2018
      %v2051 = vadd.f32 %v1986, %v2019
      %v2052 = vadd.f32 %v1987, %v2020
      %v2053 = vadd.f32 %v1988, %v2021
      %v2054 = vadd.f32 %v1989, %v2022
      %v2055 = vadd.f32 %v1990, %v2023
      %v2056 = vadd.f32 %v1991, %v2024
      %v2057 = vadd.f32 %v1992, %v2025
      %v2058 = vadd.f32 %v1993, %v2026
      %v2059 = vadd.f32 %v1994, %v2027
      %v2060 = vadd.f32 %v1995, %v2028
      %v2061 = vadd.f32 %v1996, %v2029
      %v2062 = vadd.f32 %v1997, %v2030
      %v2063 = vadd.f32 %v1998, %v2031
      %v2064 = vadd.f32 %v1999, %v2032
      %v2065 = vadd.f32 %v2000, %v2033
      %v2066 = vadd.f32 %v2001, %v2034
      %v2067 = vadd.f32 %v2002, %v2035
      %v2068 = vadd.f32 %v2003, %v2036
      %v2069 = vperm.slane %v380, 1
      %v2070 = vmul.f32 %v1899, %v2069
      %v2071 = vmul.f32 %v1900, %v2069
      %v2072 = vmul.f32 %v1901, %v2069
      %v2073 = vmul.f32 %v1902, %v2069
      %v2074 = vmul.f32 %v1903, %v2069
      %v2075 = vmul.f32 %v1904, %v2069
      %v2076 = vmul.f32 %v1905, %v2069
      %v2077 = vmul.f32 %v1906, %v2069
      %v2078 = vmul.f32 %v1907, %v2069
      %v2079 = vmul.f32 %v1908, %v2069
      %v2080 = vmul.f32 %v1909, %v2069
      %v2081 = vmul.f32 %v1910, %v2069
      %v2082 = vmul.f32 %v1911, %v2069
      %v2083 = vmul.f32 %v1912, %v2069
      %v2084 = vmul.f32 %v1913, %v2069
      %v2085 = vmul.f32 %v1914, %v2069
      %v2086 = vmul.f32 %v1915, %v2069
      %v2087 = vmul.f32 %v1916, %v2069
      %v2088 = vmul.f32 %v1917, %v2069
      %v2089 = vmul.f32 %v1918, %v2069
      %v2090 = vmul.f32 %v1919, %v2069
      %v2091 = vmul.f32 %v1920, %v2069
      %v2092 = vmul.f32 %v1921, %v2069
      %v2093 = vmul.f32 %v1922, %v2069
      %v2094 = vmul.f32 %v1923, %v2069
      %v2095 = vmul.f32 %v1924, %v2069
      %v2096 = vmul.f32 %v1925, %v2069
      %v2097 = vmul.f32 %v1926, %v2069
      %v2098 = vmul.f32 %v1927, %v2069
      %v2099 = vmul.f32 %v1928, %v2069
      %v2100 = vmul.f32 %v1929, %v2069
      %v2101 = vmul.f32 %v1930, %v2069
      %v2102 = vadd.f32 %v2037, %v2070
      %v2103 = vadd.f32 %v2038, %v2071
      %v2104 = vadd.f32 %v2039, %v2072
      %v2105 = vadd.f32 %v2040, %v2073
      %v2106 = vadd.f32 %v2041, %v2074
      %v2107 = vadd.f32 %v2042, %v2075
      %v2108 = vadd.f32 %v2043, %v2076
      %v2109 = vadd.f32 %v2044, %v2077
      %v2110 = vadd.f32 %v2045, %v2078
      %v2111 = vadd.f32 %v2046, %v2079
      %v2112 = vadd.f32 %v2047, %v2080
      %v2113 = vadd.f32 %v2048, %v2081
      %v2114 = vadd.f32 %v2049, %v2082
      %v2115 = vadd.f32 %v2050, %v2083
      %v2116 = vadd.f32 %v2051, %v2084
      %v2117 = vadd.f32 %v2052, %v2085
      %v2118 = vadd.f32 %v2053, %v2086
      %v2119 = vadd.f32 %v2054, %v2087
      %v2120 = vadd.f32 %v2055, %v2088
      %v2121 = vadd.f32 %v2056, %v2089
      %v2122 = vadd.f32 %v2057, %v2090
      %v2123 = vadd.f32 %v2058, %v2091
      %v2124 = vadd.f32 %v2059, %v2092
      %v2125 = vadd.f32 %v2060, %v2093
      %v2126 = vadd.f32 %v2061, %v2094
      %v2127 = vadd.f32 %v2062, %v2095
      %v2128 = vadd.f32 %v2063, %v2096
      %v2129 = vadd.f32 %v2064, %v2097
      %v2130 = vadd.f32 %v2065, %v2098
      %v2131 = vadd.f32 %v2066, %v2099
      %v2132 = vadd.f32 %v2067, %v2100
      %v2133 = vadd.f32 %v2068, %v2101
      %v2134 = vperm.slane %v381, 0
      %v2135 = vmul.f32 %v1901, %v2134
      %v2136 = vmul.f32 %v1902, %v2134
      %v2137 = vmul.f32 %v1903, %v2134
      %v2138 = vmul.f32 %v1904, %v2134
      %v2139 = vmul.f32 %v1905, %v2134
      %v2140 = vmul.f32 %v1906, %v2134
      %v2141 = vmul.f32 %v1907, %v2134
      %v2142 = vmul.f32 %v1908, %v2134
      %v2143 = vmul.f32 %v1909, %v2134
      %v2144 = vmul.f32 %v1910, %v2134
      %v2145 = vmul.f32 %v1911, %v2134
      %v2146 = vmul.f32 %v1912, %v2134
      %v2147 = vmul.f32 %v1913, %v2134
      %v2148 = vmul.f32 %v1914, %v2134
      %v2149 = vmul.f32 %v1915, %v2134
      %v2150 = vmul.f32 %v1916, %v2134
      %v2151 = vmul.f32 %v1917, %v2134
      %v2152 = vmul.f32 %v1918, %v2134
      %v2153 = vmul.f32 %v1919, %v2134
      %v2154 = vmul.f32 %v1920, %v2134
      %v2155 = vmul.f32 %v1921, %v2134
      %v2156 = vmul.f32 %v1922, %v2134
      %v2157 = vmul.f32 %v1923, %v2134
      %v2158 = vmul.f32 %v1924, %v2134
      %v2159 = vmul.f32 %v1925, %v2134
      %v2160 = vmul.f32 %v1926, %v2134
      %v2161 = vmul.f32 %v1927, %v2134
      %v2162 = vmul.f32 %v1928, %v2134
      %v2163 = vmul.f32 %v1929, %v2134
      %v2164 = vmul.f32 %v1930, %v2134
      %v2165 = vmul.f32 %v1931, %v2134
      %v2166 = vmul.f32 %v1932, %v2134
      %v2167 = vadd.f32 %v2102, %v2135
      %v2168 = vadd.f32 %v2103, %v2136
      %v2169 = vadd.f32 %v2104, %v2137
      %v2170 = vadd.f32 %v2105, %v2138
      %v2171 = vadd.f32 %v2106, %v2139
      %v2172 = vadd.f32 %v2107, %v2140
      %v2173 = vadd.f32 %v2108, %v2141
      %v2174 = vadd.f32 %v2109, %v2142
      %v2175 = vadd.f32 %v2110, %v2143
      %v2176 = vadd.f32 %v2111, %v2144
      %v2177 = vadd.f32 %v2112, %v2145
      %v2178 = vadd.f32 %v2113, %v2146
      %v2179 = vadd.f32 %v2114, %v2147
      %v2180 = vadd.f32 %v2115, %v2148
      %v2181 = vadd.f32 %v2116, %v2149
      %v2182 = vadd.f32 %v2117, %v2150
      %v2183 = vadd.f32 %v2118, %v2151
      %v2184 = vadd.f32 %v2119, %v2152
      %v2185 = vadd.f32 %v2120, %v2153
      %v2186 = vadd.f32 %v2121, %v2154
      %v2187 = vadd.f32 %v2122, %v2155
      %v2188 = vadd.f32 %v2123, %v2156
      %v2189 = vadd.f32 %v2124, %v2157
      %v2190 = vadd.f32 %v2125, %v2158
      %v2191 = vadd.f32 %v2126, %v2159
      %v2192 = vadd.f32 %v2127, %v2160
      %v2193 = vadd.f32 %v2128, %v2161
      %v2194 = vadd.f32 %v2129, %v2162
      %v2195 = vadd.f32 %v2130, %v2163
      %v2196 = vadd.f32 %v2131, %v2164
      %v2197 = vadd.f32 %v2132, %v2165
      %v2198 = vadd.f32 %v2133, %v2166
      %v2199 = vperm.slane %v381, 7
      %v2200 = vmul.f32 %v1903, %v2199
      %v2201 = vmul.f32 %v1904, %v2199
      %v2202 = vmul.f32 %v1905, %v2199
      %v2203 = vmul.f32 %v1906, %v2199
      %v2204 = vmul.f32 %v1907, %v2199
      %v2205 = vmul.f32 %v1908, %v2199
      %v2206 = vmul.f32 %v1909, %v2199
      %v2207 = vmul.f32 %v1910, %v2199
      %v2208 = vmul.f32 %v1911, %v2199
      %v2209 = vmul.f32 %v1912, %v2199
      %v2210 = vmul.f32 %v1913, %v2199
      %v2211 = vmul.f32 %v1914, %v2199
      %v2212 = vmul.f32 %v1915, %v2199
      %v2213 = vmul.f32 %v1916, %v2199
      %v2214 = vmul.f32 %v1917, %v2199
      %v2215 = vmul.f32 %v1918, %v2199
      %v2216 = vmul.f32 %v1919, %v2199
      %v2217 = vmul.f32 %v1920, %v2199
      %v2218 = vmul.f32 %v1921, %v2199
      %v2219 = vmul.f32 %v1922, %v2199
      %v2220 = vmul.f32 %v1923, %v2199
      %v2221 = vmul.f32 %v1924, %v2199
      %v2222 = vmul.f32 %v1925, %v2199
      %v2223 = vmul.f32 %v1926, %v2199
      %v2224 = vmul.f32 %v1927, %v2199
      %v2225 = vmul.f32 %v1928, %v2199
      %v2226 = vmul.f32 %v1929, %v2199
      %v2227 = vmul.f32 %v1930, %v2199
      %v2228 = vmul.f32 %v1931, %v2199
      %v2229 = vmul.f32 %v1932, %v2199
      %v2230 = vmul.f32 %v1933, %v2199
      %v2231 = vmul.f32 %v1934, %v2199
      %v2232 = vadd.f32 %v2167, %v2200
      %v2233 = vadd.f32 %v2168, %v2201
      %v2234 = vadd.f32 %v2169, %v2202
      %v2235 = vadd.f32 %v2170, %v2203
      %v2236 = vadd.f32 %v2171, %v2204
      %v2237 = vadd.f32 %v2172, %v2205
      %v2238 = vadd.f32 %v2173, %v2206
      %v2239 = vadd.f32 %v2174, %v2207
      %v2240 = vadd.f32 %v2175, %v2208
      %v2241 = vadd.f32 %v2176, %v2209
      %v2242 = vadd.f32 %v2177, %v2210
      %v2243 = vadd.f32 %v2178, %v2211
      %v2244 = vadd.f32 %v2179, %v2212
      %v2245 = vadd.f32 %v2180, %v2213
      %v2246 = vadd.f32 %v2181, %v2214
      %v2247 = vadd.f32 %v2182, %v2215
      %v2248 = vadd.f32 %v2183, %v2216
      %v2249 = vadd.f32 %v2184, %v2217
      %v2250 = vadd.f32 %v2185, %v2218
      %v2251 = vadd.f32 %v2186, %v2219
      %v2252 = vadd.f32 %v2187, %v2220
      %v2253 = vadd.f32 %v2188, %v2221
      %v2254 = vadd.f32 %v2189, %v2222
      %v2255 = vadd.f32 %v2190, %v2223
      %v2256 = vadd.f32 %v2191, %v2224
      %v2257 = vadd.f32 %v2192, %v2225
      %v2258 = vadd.f32 %v2193, %v2226
      %v2259 = vadd.f32 %v2194, %v2227
      %v2260 = vadd.f32 %v2195, %v2228
      %v2261 = vadd.f32 %v2196, %v2229
      %v2262 = vadd.f32 %v2197, %v2230
      %v2263 = vadd.f32 %v2198, %v2231
      %v2264 = vperm.slane %v382, 6
      %v2265 = vmul.f32 %v1905, %v2264
      %v2266 = vmul.f32 %v1906, %v2264
      %v2267 = vmul.f32 %v1907, %v2264
      %v2268 = vmul.f32 %v1908, %v2264
      %v2269 = vmul.f32 %v1909, %v2264
      %v2270 = vmul.f32 %v1910, %v2264
      %v2271 = vmul.f32 %v1911, %v2264
      %v2272 = vmul.f32 %v1912, %v2264
      %v2273 = vmul.f32 %v1913, %v2264
      %v2274 = vmul.f32 %v1914, %v2264
      %v2275 = vmul.f32 %v1915, %v2264
      %v2276 = vmul.f32 %v1916, %v2264
      %v2277 = vmul.f32 %v1917, %v2264
      %v2278 = vmul.f32 %v1918, %v2264
      %v2279 = vmul.f32 %v1919, %v2264
      %v2280 = vmul.f32 %v1920, %v2264
      %v2281 = vmul.f32 %v1921, %v2264
      %v2282 = vmul.f32 %v1922, %v2264
      %v2283 = vmul.f32 %v1923, %v2264
      %v2284 = vmul.f32 %v1924, %v2264
      %v2285 = vmul.f32 %v1925, %v2264
      %v2286 = vmul.f32 %v1926, %v2264
      %v2287 = vmul.f32 %v1927, %v2264
      %v2288 = vmul.f32 %v1928, %v2264
      %v2289 = vmul.f32 %v1929, %v2264
      %v2290 = vmul.f32 %v1930, %v2264
      %v2291 = vmul.f32 %v1931, %v2264
      %v2292 = vmul.f32 %v1932, %v2264
      %v2293 = vmul.f32 %v1933, %v2264
      %v2294 = vmul.f32 %v1934, %v2264
      %v2295 = vmul.f32 %v1935, %v2264
      %v2296 = vmul.f32 %v1936, %v2264
      %v2297 = vadd.f32 %v2232, %v2265
      %v2298 = vadd.f32 %v2233, %v2266
      %v2299 = vadd.f32 %v2234, %v2267
      %v2300 = vadd.f32 %v2235, %v2268
      %v2301 = vadd.f32 %v2236, %v2269
      %v2302 = vadd.f32 %v2237, %v2270
      %v2303 = vadd.f32 %v2238, %v2271
      %v2304 = vadd.f32 %v2239, %v2272
      %v2305 = vadd.f32 %v2240, %v2273
      %v2306 = vadd.f32 %v2241, %v2274
      %v2307 = vadd.f32 %v2242, %v2275
      %v2308 = vadd.f32 %v2243, %v2276
      %v2309 = vadd.f32 %v2244, %v2277
      %v2310 = vadd.f32 %v2245, %v2278
      %v2311 = vadd.f32 %v2246, %v2279
      %v2312 = vadd.f32 %v2247, %v2280
      %v2313 = vadd.f32 %v2248, %v2281
      %v2314 = vadd.f32 %v2249, %v2282
      %v2315 = vadd.f32 %v2250, %v2283
      %v2316 = vadd.f32 %v2251, %v2284
      %v2317 = vadd.f32 %v2252, %v2285
      %v2318 = vadd.f32 %v2253, %v2286
      %v2319 = vadd.f32 %v2254, %v2287
      %v2320 = vadd.f32 %v2255, %v2288
      %v2321 = vadd.f32 %v2256, %v2289
      %v2322 = vadd.f32 %v2257, %v2290
      %v2323 = vadd.f32 %v2258, %v2291
      %v2324 = vadd.f32 %v2259, %v2292
      %v2325 = vadd.f32 %v2260, %v2293
      %v2326 = vadd.f32 %v2261, %v2294
      %v2327 = vadd.f32 %v2262, %v2295
      %v2328 = vadd.f32 %v2263, %v2296
      %v2329 = vperm.slane %v383, 5
      %v2330 = vmul.f32 %v1907, %v2329
      %v2331 = vmul.f32 %v1908, %v2329
      %v2332 = vmul.f32 %v1909, %v2329
      %v2333 = vmul.f32 %v1910, %v2329
      %v2334 = vmul.f32 %v1911, %v2329
      %v2335 = vmul.f32 %v1912, %v2329
      %v2336 = vmul.f32 %v1913, %v2329
      %v2337 = vmul.f32 %v1914, %v2329
      %v2338 = vmul.f32 %v1915, %v2329
      %v2339 = vmul.f32 %v1916, %v2329
      %v2340 = vmul.f32 %v1917, %v2329
      %v2341 = vmul.f32 %v1918, %v2329
      %v2342 = vmul.f32 %v1919, %v2329
      %v2343 = vmul.f32 %v1920, %v2329
      %v2344 = vmul.f32 %v1921, %v2329
      %v2345 = vmul.f32 %v1922, %v2329
      %v2346 = vmul.f32 %v1923, %v2329
      %v2347 = vmul.f32 %v1924, %v2329
      %v2348 = vmul.f32 %v1925, %v2329
      %v2349 = vmul.f32 %v1926, %v2329
      %v2350 = vmul.f32 %v1927, %v2329
      %v2351 = vmul.f32 %v1928, %v2329
      %v2352 = vmul.f32 %v1929, %v2329
      %v2353 = vmul.f32 %v1930, %v2329
      %v2354 = vmul.f32 %v1931, %v2329
      %v2355 = vmul.f32 %v1932, %v2329
      %v2356 = vmul.f32 %v1933, %v2329
      %v2357 = vmul.f32 %v1934, %v2329
      %v2358 = vmul.f32 %v1935, %v2329
      %v2359 = vmul.f32 %v1936, %v2329
      %v2360 = vmul.f32 %v1937, %v2329
      %v2361 = vmul.f32 %v1938, %v2329
      %v2362 = vadd.f32 %v2297, %v2330
      %v2363 = vadd.f32 %v2298, %v2331
      %v2364 = vadd.f32 %v2299, %v2332
      %v2365 = vadd.f32 %v2300, %v2333
      %v2366 = vadd.f32 %v2301, %v2334
      %v2367 = vadd.f32 %v2302, %v2335
      %v2368 = vadd.f32 %v2303, %v2336
      %v2369 = vadd.f32 %v2304, %v2337
      %v2370 = vadd.f32 %v2305, %v2338
      %v2371 = vadd.f32 %v2306, %v2339
      %v2372 = vadd.f32 %v2307, %v2340
      %v2373 = vadd.f32 %v2308, %v2341
      %v2374 = vadd.f32 %v2309, %v2342
      %v2375 = vadd.f32 %v2310, %v2343
      %v2376 = vadd.f32 %v2311, %v2344
      %v2377 = vadd.f32 %v2312, %v2345
      %v2378 = vadd.f32 %v2313, %v2346
      %v2379 = vadd.f32 %v2314, %v2347
      %v2380 = vadd.f32 %v2315, %v2348
      %v2381 = vadd.f32 %v2316, %v2349
      %v2382 = vadd.f32 %v2317, %v2350
      %v2383 = vadd.f32 %v2318, %v2351
      %v2384 = vadd.f32 %v2319, %v2352
      %v2385 = vadd.f32 %v2320, %v2353
      %v2386 = vadd.f32 %v2321, %v2354
      %v2387 = vadd.f32 %v2322, %v2355
      %v2388 = vadd.f32 %v2323, %v2356
      %v2389 = vadd.f32 %v2324, %v2357
      %v2390 = vadd.f32 %v2325, %v2358
      %v2391 = vadd.f32 %v2326, %v2359
      %v2392 = vadd.f32 %v2327, %v2360
      %v2393 = vadd.f32 %v2328, %v2361
      %v2394 = vld [vmem:[#allocation2 + $0x9] sm:$0xff]
      %v2395 = vld [vmem:[#allocation2 + $0x11] sm:$0xff]
      %v2396 = vld [vmem:[#allocation2 + $0x29] sm:$0xff]
      %v2397 = vld [vmem:[#allocation2 + $0x31] sm:$0xff]
      %v2398 = vld [vmem:[#allocation2 + $0x49] sm:$0xff]
      %v2399 = vld [vmem:[#allocation2 + $0x51] sm:$0xff]
      %v2400 = vld [vmem:[#allocation2 + $0x69] sm:$0xff]
      %v2401 = vld [vmem:[#allocation2 + $0x71] sm:$0xff]
      %v2402 = vld [vmem:[#allocation2 + $0x89] sm:$0xff]
      %v2403 = vld [vmem:[#allocation2 + $0x91] sm:$0xff]
      %v2404 = vld [vmem:[#allocation2 + $0xa9] sm:$0xff]
      %v2405 = vld [vmem:[#allocation2 + $0xb1] sm:$0xff]
      %v2406 = vld [vmem:[#allocation2 + $0xc9] sm:$0xff]
      %v2407 = vld [vmem:[#allocation2 + $0xd1] sm:$0xff]
      %v2408 = vld [vmem:[#allocation2 + $0xe9] sm:$0xff]
      %v2409 = vld [vmem:[#allocation2 + $0xf1] sm:$0xff]
      %v2410 = vld [vmem:[#allocation2 + $0x109] sm:$0xff]
      %v2411 = vld [vmem:[#allocation2 + $0x111] sm:$0xff]
      %v2412 = vld [vmem:[#allocation2 + $0x129] sm:$0xff]
      %v2413 = vld [vmem:[#allocation2 + $0x131] sm:$0xff]
      %v2414 = vld [vmem:[#allocation2 + $0x149] sm:$0xff]
      %v2415 = vld [vmem:[#allocation2 + $0x151] sm:$0xff]
      %v2416 = vld [vmem:[#allocation2 + $0x169] sm:$0xff]
      %v2417 = vld [vmem:[#allocation2 + $0x171] sm:$0xff]
      %v2418 = vld [vmem:[#allocation2 + $0x189] sm:$0xff]
      %v2419 = vld [vmem:[#allocation2 + $0x191] sm:$0xff]
      %v2420 = vld [vmem:[#allocation2 + $0x1a9] sm:$0xff]
      %v2421 = vld [vmem:[#allocation2 + $0x1b1] sm:$0xff]
      %v2422 = vld [vmem:[#allocation2 + $0x1c9] sm:$0xff]
      %v2423 = vld [vmem:[#allocation2 + $0x1d1] sm:$0xff]
      %v2424 = vld [vmem:[#allocation2 + $0x1e9] sm:$0xff]
      %v2425 = vld [vmem:[#allocation2 + $0x1f1] sm:$0xff]
      %v2426 = vld [vmem:[#allocation2 + $0x209] sm:$0xff]
      %v2427 = vld [vmem:[#allocation2 + $0x211] sm:$0xff]
      %v2428 = vld [vmem:[#allocation2 + $0x229] sm:$0xff]
      %v2429 = vld [vmem:[#allocation2 + $0x231] sm:$0xff]
      %v2430 = vld [vmem:[#allocation2 + $0x249] sm:$0xff]
      %v2431 = vld [vmem:[#allocation2 + $0x251] sm:$0xff]
      %v2432 = vld [vmem:[#allocation2 + $0x269] sm:$0xff]
      %v2433 = vld [vmem:[#allocation2 + $0x271] sm:$0xff]
      %v2434 = vld [vmem:[#allocation2 + $0x289] sm:$0xff]
      %v2435 = vld [vmem:[#allocation2 + $0x291] sm:$0xff]
      %v2436 = vld [vmem:[#allocation2 + $0x2a9] sm:$0xff]
      %v2437 = vld [vmem:[#allocation2 + $0x2b1] sm:$0xff]
      %v2438 = vperm.slane %v378, 4
      %v2439 = vmul.f32 %v2394, %v2438
      %v2440 = vmul.f32 %v2395, %v2438
      %v2441 = vmul.f32 %v2396, %v2438
      %v2442 = vmul.f32 %v2397, %v2438
      %v2443 = vmul.f32 %v2398, %v2438
      %v2444 = vmul.f32 %v2399, %v2438
      %v2445 = vmul.f32 %v2400, %v2438
      %v2446 = vmul.f32 %v2401, %v2438
      %v2447 = vmul.f32 %v2402, %v2438
      %v2448 = vmul.f32 %v2403, %v2438
      %v2449 = vmul.f32 %v2404, %v2438
      %v2450 = vmul.f32 %v2405, %v2438
      %v2451 = vmul.f32 %v2406, %v2438
      %v2452 = vmul.f32 %v2407, %v2438
      %v2453 = vmul.f32 %v2408, %v2438
      %v2454 = vmul.f32 %v2409, %v2438
      %v2455 = vmul.f32 %v2410, %v2438
      %v2456 = vmul.f32 %v2411, %v2438
      %v2457 = vmul.f32 %v2412, %v2438
      %v2458 = vmul.f32 %v2413, %v2438
      %v2459 = vmul.f32 %v2414, %v2438
      %v2460 = vmul.f32 %v2415, %v2438
      %v2461 = vmul.f32 %v2416, %v2438
      %v2462 = vmul.f32 %v2417, %v2438
      %v2463 = vmul.f32 %v2418, %v2438
      %v2464 = vmul.f32 %v2419, %v2438
      %v2465 = vmul.f32 %v2420, %v2438
      %v2466 = vmul.f32 %v2421, %v2438
      %v2467 = vmul.f32 %v2422, %v2438
      %v2468 = vmul.f32 %v2423, %v2438
      %v2469 = vmul.f32 %v2424, %v2438
      %v2470 = vmul.f32 %v2425, %v2438
      %v2471 = vadd.f32 %v2362, %v2439
      %v2472 = vadd.f32 %v2363, %v2440
      %v2473 = vadd.f32 %v2364, %v2441
      %v2474 = vadd.f32 %v2365, %v2442
      %v2475 = vadd.f32 %v2366, %v2443
      %v2476 = vadd.f32 %v2367, %v2444
      %v2477 = vadd.f32 %v2368, %v2445
      %v2478 = vadd.f32 %v2369, %v2446
      %v2479 = vadd.f32 %v2370, %v2447
      %v2480 = vadd.f32 %v2371, %v2448
      %v2481 = vadd.f32 %v2372, %v2449
      %v2482 = vadd.f32 %v2373, %v2450
      %v2483 = vadd.f32 %v2374, %v2451
      %v2484 = vadd.f32 %v2375, %v2452
      %v2485 = vadd.f32 %v2376, %v2453
      %v2486 = vadd.f32 %v2377, %v2454
      %v2487 = vadd.f32 %v2378, %v2455
      %v2488 = vadd.f32 %v2379, %v2456
      %v2489 = vadd.f32 %v2380, %v2457
      %v2490 = vadd.f32 %v2381, %v2458
      %v2491 = vadd.f32 %v2382, %v2459
      %v2492 = vadd.f32 %v2383, %v2460
      %v2493 = vadd.f32 %v2384, %v2461
      %v2494 = vadd.f32 %v2385, %v2462
      %v2495 = vadd.f32 %v2386, %v2463
      %v2496 = vadd.f32 %v2387, %v2464
      %v2497 = vadd.f32 %v2388, %v2465
      %v2498 = vadd.f32 %v2389, %v2466
      %v2499 = vadd.f32 %v2390, %v2467
      %v2500 = vadd.f32 %v2391, %v2468
      %v2501 = vadd.f32 %v2392, %v2469
      %v2502 = vadd.f32 %v2393, %v2470
      %v2503 = vperm.slane %v379, 3
      %v2504 = vmul.f32 %v2396, %v2503
      %v2505 = vmul.f32 %v2397, %v2503
      %v2506 = vmul.f32 %v2398, %v2503
      %v2507 = vmul.f32 %v2399, %v2503
      %v2508 = vmul.f32 %v2400, %v2503
      %v2509 = vmul.f32 %v2401, %v2503
      %v2510 = vmul.f32 %v2402, %v2503
      %v2511 = vmul.f32 %v2403, %v2503
      %v2512 = vmul.f32 %v2404, %v2503
      %v2513 = vmul.f32 %v2405, %v2503
      %v2514 = vmul.f32 %v2406, %v2503
      %v2515 = vmul.f32 %v2407, %v2503
      %v2516 = vmul.f32 %v2408, %v2503
      %v2517 = vmul.f32 %v2409, %v2503
      %v2518 = vmul.f32 %v2410, %v2503
      %v2519 = vmul.f32 %v2411, %v2503
      %v2520 = vmul.f32 %v2412, %v2503
      %v2521 = vmul.f32 %v2413, %v2503
      %v2522 = vmul.f32 %v2414, %v2503
      %v2523 = vmul.f32 %v2415, %v2503
      %v2524 = vmul.f32 %v2416, %v2503
      %v2525 = vmul.f32 %v2417, %v2503
      %v2526 = vmul.f32 %v2418, %v2503
      %v2527 = vmul.f32 %v2419, %v2503
      %v2528 = vmul.f32 %v2420, %v2503
      %v2529 = vmul.f32 %v2421, %v2503
      %v2530 = vmul.f32 %v2422, %v2503
      %v2531 = vmul.f32 %v2423, %v2503
      %v2532 = vmul.f32 %v2424, %v2503
      %v2533 = vmul.f32 %v2425, %v2503
      %v2534 = vmul.f32 %v2426, %v2503
      %v2535 = vmul.f32 %v2427, %v2503
      %v2536 = vadd.f32 %v2471, %v2504
      %v2537 = vadd.f32 %v2472, %v2505
      %v2538 = vadd.f32 %v2473, %v2506
      %v2539 = vadd.f32 %v2474, %v2507
      %v2540 = vadd.f32 %v2475, %v2508
      %v2541 = vadd.f32 %v2476, %v2509
      %v2542 = vadd.f32 %v2477, %v2510
      %v2543 = vadd.f32 %v2478, %v2511
      %v2544 = vadd.f32 %v2479, %v2512
      %v2545 = vadd.f32 %v2480, %v2513
      %v2546 = vadd.f32 %v2481, %v2514
      %v2547 = vadd.f32 %v2482, %v2515
      %v2548 = vadd.f32 %v2483, %v2516
      %v2549 = vadd.f32 %v2484, %v2517
      %v2550 = vadd.f32 %v2485, %v2518
      %v2551 = vadd.f32 %v2486, %v2519
      %v2552 = vadd.f32 %v2487, %v2520
      %v2553 = vadd.f32 %v2488, %v2521
      %v2554 = vadd.f32 %v2489, %v2522
      %v2555 = vadd.f32 %v2490, %v2523
      %v2556 = vadd.f32 %v2491, %v2524
      %v2557 = vadd.f32 %v2492, %v2525
      %v2558 = vadd.f32 %v2493, %v2526
      %v2559 = vadd.f32 %v2494, %v2527
      %v2560 = vadd.f32 %v2495, %v2528
      %v2561 = vadd.f32 %v2496, %v2529
      %v2562 = vadd.f32 %v2497, %v2530
      %v2563 = vadd.f32 %v2498, %v2531
      %v2564 = vadd.f32 %v2499, %v2532
      %v2565 = vadd.f32 %v2500, %v2533
      %v2566 = vadd.f32 %v2501, %v2534
      %v2567 = vadd.f32 %v2502, %v2535
      %v2568 = vperm.slane %v380, 2
      %v2569 = vmul.f32 %v2398, %v2568
      %v2570 = vmul.f32 %v2399, %v2568
      %v2571 = vmul.f32 %v2400, %v2568
      %v2572 = vmul.f32 %v2401, %v2568
      %v2573 = vmul.f32 %v2402, %v2568
      %v2574 = vmul.f32 %v2403, %v2568
      %v2575 = vmul.f32 %v2404, %v2568
      %v2576 = vmul.f32 %v2405, %v2568
      %v2577 = vmul.f32 %v2406, %v2568
      %v2578 = vmul.f32 %v2407, %v2568
      %v2579 = vmul.f32 %v2408, %v2568
      %v2580 = vmul.f32 %v2409, %v2568
      %v2581 = vmul.f32 %v2410, %v2568
      %v2582 = vmul.f32 %v2411, %v2568
      %v2583 = vmul.f32 %v2412, %v2568
      %v2584 = vmul.f32 %v2413, %v2568
      %v2585 = vmul.f32 %v2414, %v2568
      %v2586 = vmul.f32 %v2415, %v2568
      %v2587 = vmul.f32 %v2416, %v2568
      %v2588 = vmul.f32 %v2417, %v2568
      %v2589 = vmul.f32 %v2418, %v2568
      %v2590 = vmul.f32 %v2419, %v2568
      %v2591 = vmul.f32 %v2420, %v2568
      %v2592 = vmul.f32 %v2421, %v2568
      %v2593 = vmul.f32 %v2422, %v2568
      %v2594 = vmul.f32 %v2423, %v2568
      %v2595 = vmul.f32 %v2424, %v2568
      %v2596 = vmul.f32 %v2425, %v2568
      %v2597 = vmul.f32 %v2426, %v2568
      %v2598 = vmul.f32 %v2427, %v2568
      %v2599 = vmul.f32 %v2428, %v2568
      %v2600 = vmul.f32 %v2429, %v2568
      %v2601 = vadd.f32 %v2536, %v2569
      %v2602 = vadd.f32 %v2537, %v2570
      %v2603 = vadd.f32 %v2538, %v2571
      %v2604 = vadd.f32 %v2539, %v2572
      %v2605 = vadd.f32 %v2540, %v2573
      %v2606 = vadd.f32 %v2541, %v2574
      %v2607 = vadd.f32 %v2542, %v2575
      %v2608 = vadd.f32 %v2543, %v2576
      %v2609 = vadd.f32 %v2544, %v2577
      %v2610 = vadd.f32 %v2545, %v2578
      %v2611 = vadd.f32 %v2546, %v2579
      %v2612 = vadd.f32 %v2547, %v2580
      %v2613 = vadd.f32 %v2548, %v2581
      %v2614 = vadd.f32 %v2549, %v2582
      %v2615 = vadd.f32 %v2550, %v2583
      %v2616 = vadd.f32 %v2551, %v2584
      %v2617 = vadd.f32 %v2552, %v2585
      %v2618 = vadd.f32 %v2553, %v2586
      %v2619 = vadd.f32 %v2554, %v2587
      %v2620 = vadd.f32 %v2555, %v2588
      %v2621 = vadd.f32 %v2556, %v2589
      %v2622 = vadd.f32 %v2557, %v2590
      %v2623 = vadd.f32 %v2558, %v2591
      %v2624 = vadd.f32 %v2559, %v2592
      %v2625 = vadd.f32 %v2560, %v2593
      %v2626 = vadd.f32 %v2561, %v2594
      %v2627 = vadd.f32 %v2562, %v2595
      %v2628 = vadd.f32 %v2563, %v2596
      %v2629 = vadd.f32 %v2564, %v2597
      %v2630 = vadd.f32 %v2565, %v2598
      %v2631 = vadd.f32 %v2566, %v2599
      %v2632 = vadd.f32 %v2567, %v2600
      %v2633 = vperm.slane %v381, 1
      %v2634 = vmul.f32 %v2400, %v2633
      %v2635 = vmul.f32 %v2401, %v2633
      %v2636 = vmul.f32 %v2402, %v2633
      %v2637 = vmul.f32 %v2403, %v2633
      %v2638 = vmul.f32 %v2404, %v2633
      %v2639 = vmul.f32 %v2405, %v2633
      %v2640 = vmul.f32 %v2406, %v2633
      %v2641 = vmul.f32 %v2407, %v2633
      %v2642 = vmul.f32 %v2408, %v2633
      %v2643 = vmul.f32 %v2409, %v2633
      %v2644 = vmul.f32 %v2410, %v2633
      %v2645 = vmul.f32 %v2411, %v2633
      %v2646 = vmul.f32 %v2412, %v2633
      %v2647 = vmul.f32 %v2413, %v2633
      %v2648 = vmul.f32 %v2414, %v2633
      %v2649 = vmul.f32 %v2415, %v2633
      %v2650 = vmul.f32 %v2416, %v2633
      %v2651 = vmul.f32 %v2417, %v2633
      %v2652 = vmul.f32 %v2418, %v2633
      %v2653 = vmul.f32 %v2419, %v2633
      %v2654 = vmul.f32 %v2420, %v2633
      %v2655 = vmul.f32 %v2421, %v2633
      %v2656 = vmul.f32 %v2422, %v2633
      %v2657 = vmul.f32 %v2423, %v2633
      %v2658 = vmul.f32 %v2424, %v2633
      %v2659 = vmul.f32 %v2425, %v2633
      %v2660 = vmul.f32 %v2426, %v2633
      %v2661 = vmul.f32 %v2427, %v2633
      %v2662 = vmul.f32 %v2428, %v2633
      %v2663 = vmul.f32 %v2429, %v2633
      %v2664 = vmul.f32 %v2430, %v2633
      %v2665 = vmul.f32 %v2431, %v2633
      %v2666 = vadd.f32 %v2601, %v2634
      %v2667 = vadd.f32 %v2602, %v2635
      %v2668 = vadd.f32 %v2603, %v2636
      %v2669 = vadd.f32 %v2604, %v2637
      %v2670 = vadd.f32 %v2605, %v2638
      %v2671 = vadd.f32 %v2606, %v2639
      %v2672 = vadd.f32 %v2607, %v2640
      %v2673 = vadd.f32 %v2608, %v2641
      %v2674 = vadd.f32 %v2609, %v2642
      %v2675 = vadd.f32 %v2610, %v2643
      %v2676 = vadd.f32 %v2611, %v2644
      %v2677 = vadd.f32 %v2612, %v2645
      %v2678 = vadd.f32 %v2613, %v2646
      %v2679 = vadd.f32 %v2614, %v2647
      %v2680 = vadd.f32 %v2615, %v2648
      %v2681 = vadd.f32 %v2616, %v2649
      %v2682 = vadd.f32 %v2617, %v2650
      %v2683 = vadd.f32 %v2618, %v2651
      %v2684 = vadd.f32 %v2619, %v2652
      %v2685 = vadd.f32 %v2620, %v2653
      %v2686 = vadd.f32 %v2621, %v2654
      %v2687 = vadd.f32 %v2622, %v2655
      %v2688 = vadd.f32 %v2623, %v2656
      %v2689 = vadd.f32 %v2624, %v2657
      %v2690 = vadd.f32 %v2625, %v2658
      %v2691 = vadd.f32 %v2626, %v2659
      %v2692 = vadd.f32 %v2627, %v2660
      %v2693 = vadd.f32 %v2628, %v2661
      %v2694 = vadd.f32 %v2629, %v2662
      %v2695 = vadd.f32 %v2630, %v2663
      %v2696 = vadd.f32 %v2631, %v2664
      %v2697 = vadd.f32 %v2632, %v2665
      %v2698 = vperm.slane %v382, 0
      %v2699 = vmul.f32 %v2402, %v2698
      %v2700 = vmul.f32 %v2403, %v2698
      %v2701 = vmul.f32 %v2404, %v2698
      %v2702 = vmul.f32 %v2405, %v2698
      %v2703 = vmul.f32 %v2406, %v2698
      %v2704 = vmul.f32 %v2407, %v2698
      %v2705 = vmul.f32 %v2408, %v2698
      %v2706 = vmul.f32 %v2409, %v2698
      %v2707 = vmul.f32 %v2410, %v2698
      %v2708 = vmul.f32 %v2411, %v2698
      %v2709 = vmul.f32 %v2412, %v2698
      %v2710 = vmul.f32 %v2413, %v2698
      %v2711 = vmul.f32 %v2414, %v2698
      %v2712 = vmul.f32 %v2415, %v2698
      %v2713 = vmul.f32 %v2416, %v2698
      %v2714 = vmul.f32 %v2417, %v2698
      %v2715 = vmul.f32 %v2418, %v2698
      %v2716 = vmul.f32 %v2419, %v2698
      %v2717 = vmul.f32 %v2420, %v2698
      %v2718 = vmul.f32 %v2421, %v2698
      %v2719 = vmul.f32 %v2422, %v2698
      %v2720 = vmul.f32 %v2423, %v2698
      %v2721 = vmul.f32 %v2424, %v2698
      %v2722 = vmul.f32 %v2425, %v2698
      %v2723 = vmul.f32 %v2426, %v2698
      %v2724 = vmul.f32 %v2427, %v2698
      %v2725 = vmul.f32 %v2428, %v2698
      %v2726 = vmul.f32 %v2429, %v2698
      %v2727 = vmul.f32 %v2430, %v2698
      %v2728 = vmul.f32 %v2431, %v2698
      %v2729 = vmul.f32 %v2432, %v2698
      %v2730 = vmul.f32 %v2433, %v2698
      %v2731 = vadd.f32 %v2666, %v2699
      %v2732 = vadd.f32 %v2667, %v2700
      %v2733 = vadd.f32 %v2668, %v2701
      %v2734 = vadd.f32 %v2669, %v2702
      %v2735 = vadd.f32 %v2670, %v2703
      %v2736 = vadd.f32 %v2671, %v2704
      %v2737 = vadd.f32 %v2672, %v2705
      %v2738 = vadd.f32 %v2673, %v2706
      %v2739 = vadd.f32 %v2674, %v2707
      %v2740 = vadd.f32 %v2675, %v2708
      %v2741 = vadd.f32 %v2676, %v2709
      %v2742 = vadd.f32 %v2677, %v2710
      %v2743 = vadd.f32 %v2678, %v2711
      %v2744 = vadd.f32 %v2679, %v2712
      %v2745 = vadd.f32 %v2680, %v2713
      %v2746 = vadd.f32 %v2681, %v2714
      %v2747 = vadd.f32 %v2682, %v2715
      %v2748 = vadd.f32 %v2683, %v2716
      %v2749 = vadd.f32 %v2684, %v2717
      %v2750 = vadd.f32 %v2685, %v2718
      %v2751 = vadd.f32 %v2686, %v2719
      %v2752 = vadd.f32 %v2687, %v2720
      %v2753 = vadd.f32 %v2688, %v2721
      %v2754 = vadd.f32 %v2689, %v2722
      %v2755 = vadd.f32 %v2690, %v2723
      %v2756 = vadd.f32 %v2691, %v2724
      %v2757 = vadd.f32 %v2692, %v2725
      %v2758 = vadd.f32 %v2693, %v2726
      %v2759 = vadd.f32 %v2694, %v2727
      %v2760 = vadd.f32 %v2695, %v2728
      %v2761 = vadd.f32 %v2696, %v2729
      %v2762 = vadd.f32 %v2697, %v2730
      %v2763 = vperm.slane %v382, 7
      %v2764 = vmul.f32 %v2404, %v2763
      %v2765 = vmul.f32 %v2405, %v2763
      %v2766 = vmul.f32 %v2406, %v2763
      %v2767 = vmul.f32 %v2407, %v2763
      %v2768 = vmul.f32 %v2408, %v2763
      %v2769 = vmul.f32 %v2409, %v2763
      %v2770 = vmul.f32 %v2410, %v2763
      %v2771 = vmul.f32 %v2411, %v2763
      %v2772 = vmul.f32 %v2412, %v2763
      %v2773 = vmul.f32 %v2413, %v2763
      %v2774 = vmul.f32 %v2414, %v2763
      %v2775 = vmul.f32 %v2415, %v2763
      %v2776 = vmul.f32 %v2416, %v2763
      %v2777 = vmul.f32 %v2417, %v2763
      %v2778 = vmul.f32 %v2418, %v2763
      %v2779 = vmul.f32 %v2419, %v2763
      %v2780 = vmul.f32 %v2420, %v2763
      %v2781 = vmul.f32 %v2421, %v2763
      %v2782 = vmul.f32 %v2422, %v2763
      %v2783 = vmul.f32 %v2423, %v2763
      %v2784 = vmul.f32 %v2424, %v2763
      %v2785 = vmul.f32 %v2425, %v2763
      %v2786 = vmul.f32 %v2426, %v2763
      %v2787 = vmul.f32 %v2427, %v2763
      %v2788 = vmul.f32 %v2428, %v2763
      %v2789 = vmul.f32 %v2429, %v2763
      %v2790 = vmul.f32 %v2430, %v2763
      %v2791 = vmul.f32 %v2431, %v2763
      %v2792 = vmul.f32 %v2432, %v2763
      %v2793 = vmul.f32 %v2433, %v2763
      %v2794 = vmul.f32 %v2434, %v2763
      %v2795 = vmul.f32 %v2435, %v2763
      %v2796 = vadd.f32 %v2731, %v2764
      %v2797 = vadd.f32 %v2732, %v2765
      %v2798 = vadd.f32 %v2733, %v2766
      %v2799 = vadd.f32 %v2734, %v2767
      %v2800 = vadd.f32 %v2735, %v2768
      %v2801 = vadd.f32 %v2736, %v2769
      %v2802 = vadd.f32 %v2737, %v2770
      %v2803 = vadd.f32 %v2738, %v2771
      %v2804 = vadd.f32 %v2739, %v2772
      %v2805 = vadd.f32 %v2740, %v2773
      %v2806 = vadd.f32 %v2741, %v2774
      %v2807 = vadd.f32 %v2742, %v2775
      %v2808 = vadd.f32 %v2743, %v2776
      %v2809 = vadd.f32 %v2744, %v2777
      %v2810 = vadd.f32 %v2745, %v2778
      %v2811 = vadd.f32 %v2746, %v2779
      %v2812 = vadd.f32 %v2747, %v2780
      %v2813 = vadd.f32 %v2748, %v2781
      %v2814 = vadd.f32 %v2749, %v2782
      %v2815 = vadd.f32 %v2750, %v2783
      %v2816 = vadd.f32 %v2751, %v2784
      %v2817 = vadd.f32 %v2752, %v2785
      %v2818 = vadd.f32 %v2753, %v2786
      %v2819 = vadd.f32 %v2754, %v2787
      %v2820 = vadd.f32 %v2755, %v2788
      %v2821 = vadd.f32 %v2756, %v2789
      %v2822 = vadd.f32 %v2757, %v2790
      %v2823 = vadd.f32 %v2758, %v2791
      %v2824 = vadd.f32 %v2759, %v2792
      %v2825 = vadd.f32 %v2760, %v2793
      %v2826 = vadd.f32 %v2761, %v2794
      %v2827 = vadd.f32 %v2762, %v2795
      %v2828 = vperm.slane %v383, 6
      %v2829 = vmul.f32 %v2406, %v2828
      %v2830 = vmul.f32 %v2407, %v2828
      %v2831 = vmul.f32 %v2408, %v2828
      %v2832 = vmul.f32 %v2409, %v2828
      %v2833 = vmul.f32 %v2410, %v2828
      %v2834 = vmul.f32 %v2411, %v2828
      %v2835 = vmul.f32 %v2412, %v2828
      %v2836 = vmul.f32 %v2413, %v2828
      %v2837 = vmul.f32 %v2414, %v2828
      %v2838 = vmul.f32 %v2415, %v2828
      %v2839 = vmul.f32 %v2416, %v2828
      %v2840 = vmul.f32 %v2417, %v2828
      %v2841 = vmul.f32 %v2418, %v2828
      %v2842 = vmul.f32 %v2419, %v2828
      %v2843 = vmul.f32 %v2420, %v2828
      %v2844 = vmul.f32 %v2421, %v2828
      %v2845 = vmul.f32 %v2422, %v2828
      %v2846 = vmul.f32 %v2423, %v2828
      %v2847 = vmul.f32 %v2424, %v2828
      %v2848 = vmul.f32 %v2425, %v2828
      %v2849 = vmul.f32 %v2426, %v2828
      %v2850 = vmul.f32 %v2427, %v2828
      %v2851 = vmul.f32 %v2428, %v2828
      %v2852 = vmul.f32 %v2429, %v2828
      %v2853 = vmul.f32 %v2430, %v2828
      %v2854 = vmul.f32 %v2431, %v2828
      %v2855 = vmul.f32 %v2432, %v2828
      %v2856 = vmul.f32 %v2433, %v2828
      %v2857 = vmul.f32 %v2434, %v2828
      %v2858 = vmul.f32 %v2435, %v2828
      %v2859 = vmul.f32 %v2436, %v2828
      %v2860 = vmul.f32 %v2437, %v2828
      %v2861 = vadd.f32 %v2796, %v2829
      %v2862 = vadd.f32 %v2797, %v2830
      %v2863 = vadd.f32 %v2798, %v2831
      %v2864 = vadd.f32 %v2799, %v2832
      %v2865 = vadd.f32 %v2800, %v2833
      %v2866 = vadd.f32 %v2801, %v2834
      %v2867 = vadd.f32 %v2802, %v2835
      %v2868 = vadd.f32 %v2803, %v2836
      %v2869 = vadd.f32 %v2804, %v2837
      %v2870 = vadd.f32 %v2805, %v2838
      %v2871 = vadd.f32 %v2806, %v2839
      %v2872 = vadd.f32 %v2807, %v2840
      %v2873 = vadd.f32 %v2808, %v2841
      %v2874 = vadd.f32 %v2809, %v2842
      %v2875 = vadd.f32 %v2810, %v2843
      %v2876 = vadd.f32 %v2811, %v2844
      %v2877 = vadd.f32 %v2812, %v2845
      %v2878 = vadd.f32 %v2813, %v2846
      %v2879 = vadd.f32 %v2814, %v2847
      %v2880 = vadd.f32 %v2815, %v2848
      %v2881 = vadd.f32 %v2816, %v2849
      %v2882 = vadd.f32 %v2817, %v2850
      %v2883 = vadd.f32 %v2818, %v2851
      %v2884 = vadd.f32 %v2819, %v2852
      %v2885 = vadd.f32 %v2820, %v2853
      %v2886 = vadd.f32 %v2821, %v2854
      %v2887 = vadd.f32 %v2822, %v2855
      %v2888 = vadd.f32 %v2823, %v2856
      %v2889 = vadd.f32 %v2824, %v2857
      %v2890 = vadd.f32 %v2825, %v2858
      %v2891 = vadd.f32 %v2826, %v2859
      %v2892 = vadd.f32 %v2827, %v2860
      %v2893 = vld [vmem:[#allocation2 + $0xa] sm:$0xff]
      %v2894 = vld [vmem:[#allocation2 + $0x12] sm:$0xff]
      %v2895 = vld [vmem:[#allocation2 + $0x2a] sm:$0xff]
      %v2896 = vld [vmem:[#allocation2 + $0x32] sm:$0xff]
      %v2897 = vld [vmem:[#allocation2 + $0x4a] sm:$0xff]
      %v2898 = vld [vmem:[#allocation2 + $0x52] sm:$0xff]
      %v2899 = vld [vmem:[#allocation2 + $0x6a] sm:$0xff]
      %v2900 = vld [vmem:[#allocation2 + $0x72] sm:$0xff]
      %v2901 = vld [vmem:[#allocation2 + $0x8a] sm:$0xff]
      %v2902 = vld [vmem:[#allocation2 + $0x92] sm:$0xff]
      %v2903 = vld [vmem:[#allocation2 + $0xaa] sm:$0xff]
      %v2904 = vld [vmem:[#allocation2 + $0xb2] sm:$0xff]
      %v2905 = vld [vmem:[#allocation2 + $0xca] sm:$0xff]
      %v2906 = vld [vmem:[#allocation2 + $0xd2] sm:$0xff]
      %v2907 = vld [vmem:[#allocation2 + $0xea] sm:$0xff]
      %v2908 = vld [vmem:[#allocation2 + $0xf2] sm:$0xff]
      %v2909 = vld [vmem:[#allocation2 + $0x10a] sm:$0xff]
      %v2910 = vld [vmem:[#allocation2 + $0x112] sm:$0xff]
      %v2911 = vld [vmem:[#allocation2 + $0x12a] sm:$0xff]
      %v2912 = vld [vmem:[#allocation2 + $0x132] sm:$0xff]
      %v2913 = vld [vmem:[#allocation2 + $0x14a] sm:$0xff]
      %v2914 = vld [vmem:[#allocation2 + $0x152] sm:$0xff]
      %v2915 = vld [vmem:[#allocation2 + $0x16a] sm:$0xff]
      %v2916 = vld [vmem:[#allocation2 + $0x172] sm:$0xff]
      %v2917 = vld [vmem:[#allocation2 + $0x18a] sm:$0xff]
      %v2918 = vld [vmem:[#allocation2 + $0x192] sm:$0xff]
      %v2919 = vld [vmem:[#allocation2 + $0x1aa] sm:$0xff]
      %v2920 = vld [vmem:[#allocation2 + $0x1b2] sm:$0xff]
      %v2921 = vld [vmem:[#allocation2 + $0x1ca] sm:$0xff]
      %v2922 = vld [vmem:[#allocation2 + $0x1d2] sm:$0xff]
      %v2923 = vld [vmem:[#allocation2 + $0x1ea] sm:$0xff]
      %v2924 = vld [vmem:[#allocation2 + $0x1f2] sm:$0xff]
      %v2925 = vld [vmem:[#allocation2 + $0x20a] sm:$0xff]
      %v2926 = vld [vmem:[#allocation2 + $0x212] sm:$0xff]
      %v2927 = vld [vmem:[#allocation2 + $0x22a] sm:$0xff]
      %v2928 = vld [vmem:[#allocation2 + $0x232] sm:$0xff]
      %v2929 = vld [vmem:[#allocation2 + $0x24a] sm:$0xff]
      %v2930 = vld [vmem:[#allocation2 + $0x252] sm:$0xff]
      %v2931 = vld [vmem:[#allocation2 + $0x26a] sm:$0xff]
      %v2932 = vld [vmem:[#allocation2 + $0x272] sm:$0xff]
      %v2933 = vld [vmem:[#allocation2 + $0x28a] sm:$0xff]
      %v2934 = vld [vmem:[#allocation2 + $0x292] sm:$0xff]
      %v2935 = vld [vmem:[#allocation2 + $0x2aa] sm:$0xff]
      %v2936 = vld [vmem:[#allocation2 + $0x2b2] sm:$0xff]
      %v2937 = vperm.slane %v378, 5
      %v2938 = vmul.f32 %v2893, %v2937
      %v2939 = vmul.f32 %v2894, %v2937
      %v2940 = vmul.f32 %v2895, %v2937
      %v2941 = vmul.f32 %v2896, %v2937
      %v2942 = vmul.f32 %v2897, %v2937
      %v2943 = vmul.f32 %v2898, %v2937
      %v2944 = vmul.f32 %v2899, %v2937
      %v2945 = vmul.f32 %v2900, %v2937
      %v2946 = vmul.f32 %v2901, %v2937
      %v2947 = vmul.f32 %v2902, %v2937
      %v2948 = vmul.f32 %v2903, %v2937
      %v2949 = vmul.f32 %v2904, %v2937
      %v2950 = vmul.f32 %v2905, %v2937
      %v2951 = vmul.f32 %v2906, %v2937
      %v2952 = vmul.f32 %v2907, %v2937
      %v2953 = vmul.f32 %v2908, %v2937
      %v2954 = vmul.f32 %v2909, %v2937
      %v2955 = vmul.f32 %v2910, %v2937
      %v2956 = vmul.f32 %v2911, %v2937
      %v2957 = vmul.f32 %v2912, %v2937
      %v2958 = vmul.f32 %v2913, %v2937
      %v2959 = vmul.f32 %v2914, %v2937
      %v2960 = vmul.f32 %v2915, %v2937
      %v2961 = vmul.f32 %v2916, %v2937
      %v2962 = vmul.f32 %v2917, %v2937
      %v2963 = vmul.f32 %v2918, %v2937
      %v2964 = vmul.f32 %v2919, %v2937
      %v2965 = vmul.f32 %v2920, %v2937
      %v2966 = vmul.f32 %v2921, %v2937
      %v2967 = vmul.f32 %v2922, %v2937
      %v2968 = vmul.f32 %v2923, %v2937
      %v2969 = vmul.f32 %v2924, %v2937
      %v2970 = vadd.f32 %v2861, %v2938
      %v2971 = vadd.f32 %v2862, %v2939
      %v2972 = vadd.f32 %v2863, %v2940
      %v2973 = vadd.f32 %v2864, %v2941
      %v2974 = vadd.f32 %v2865, %v2942
      %v2975 = vadd.f32 %v2866, %v2943
      %v2976 = vadd.f32 %v2867, %v2944
      %v2977 = vadd.f32 %v2868, %v2945
      %v2978 = vadd.f32 %v2869, %v2946
      %v2979 = vadd.f32 %v2870, %v2947
      %v2980 = vadd.f32 %v2871, %v2948
      %v2981 = vadd.f32 %v2872, %v2949
      %v2982 = vadd.f32 %v2873, %v2950
      %v2983 = vadd.f32 %v2874, %v2951
      %v2984 = vadd.f32 %v2875, %v2952
      %v2985 = vadd.f32 %v2876, %v2953
      %v2986 = vadd.f32 %v2877, %v2954
      %v2987 = vadd.f32 %v2878, %v2955
      %v2988 = vadd.f32 %v2879, %v2956
      %v2989 = vadd.f32 %v2880, %v2957
      %v2990 = vadd.f32 %v2881, %v2958
      %v2991 = vadd.f32 %v2882, %v2959
      %v2992 = vadd.f32 %v2883, %v2960
      %v2993 = vadd.f32 %v2884, %v2961
      %v2994 = vadd.f32 %v2885, %v2962
      %v2995 = vadd.f32 %v2886, %v2963
      %v2996 = vadd.f32 %v2887, %v2964
      %v2997 = vadd.f32 %v2888, %v2965
      %v2998 = vadd.f32 %v2889, %v2966
      %v2999 = vadd.f32 %v2890, %v2967
      %v3000 = vadd.f32 %v2891, %v2968
      %v3001 = vadd.f32 %v2892, %v2969
      %v3002 = vperm.slane %v379, 4
      %v3003 = vmul.f32 %v2895, %v3002
      %v3004 = vmul.f32 %v2896, %v3002
      %v3005 = vmul.f32 %v2897, %v3002
      %v3006 = vmul.f32 %v2898, %v3002
      %v3007 = vmul.f32 %v2899, %v3002
      %v3008 = vmul.f32 %v2900, %v3002
      %v3009 = vmul.f32 %v2901, %v3002
      %v3010 = vmul.f32 %v2902, %v3002
      %v3011 = vmul.f32 %v2903, %v3002
      %v3012 = vmul.f32 %v2904, %v3002
      %v3013 = vmul.f32 %v2905, %v3002
      %v3014 = vmul.f32 %v2906, %v3002
      %v3015 = vmul.f32 %v2907, %v3002
      %v3016 = vmul.f32 %v2908, %v3002
      %v3017 = vmul.f32 %v2909, %v3002
      %v3018 = vmul.f32 %v2910, %v3002
      %v3019 = vmul.f32 %v2911, %v3002
      %v3020 = vmul.f32 %v2912, %v3002
      %v3021 = vmul.f32 %v2913, %v3002
      %v3022 = vmul.f32 %v2914, %v3002
      %v3023 = vmul.f32 %v2915, %v3002
      %v3024 = vmul.f32 %v2916, %v3002
      %v3025 = vmul.f32 %v2917, %v3002
      %v3026 = vmul.f32 %v2918, %v3002
      %v3027 = vmul.f32 %v2919, %v3002
      %v3028 = vmul.f32 %v2920, %v3002
      %v3029 = vmul.f32 %v2921, %v3002
      %v3030 = vmul.f32 %v2922, %v3002
      %v3031 = vmul.f32 %v2923, %v3002
      %v3032 = vmul.f32 %v2924, %v3002
      %v3033 = vmul.f32 %v2925, %v3002
      %v3034 = vmul.f32 %v2926, %v3002
      %v3035 = vadd.f32 %v2970, %v3003
      %v3036 = vadd.f32 %v2971, %v3004
      %v3037 = vadd.f32 %v2972, %v3005
      %v3038 = vadd.f32 %v2973, %v3006
      %v3039 = vadd.f32 %v2974, %v3007
      %v3040 = vadd.f32 %v2975, %v3008
      %v3041 = vadd.f32 %v2976, %v3009
      %v3042 = vadd.f32 %v2977, %v3010
      %v3043 = vadd.f32 %v2978, %v3011
      %v3044 = vadd.f32 %v2979, %v3012
      %v3045 = vadd.f32 %v2980, %v3013
      %v3046 = vadd.f32 %v2981, %v3014
      %v3047 = vadd.f32 %v2982, %v3015
      %v3048 = vadd.f32 %v2983, %v3016
      %v3049 = vadd.f32 %v2984, %v3017
      %v3050 = vadd.f32 %v2985, %v3018
      %v3051 = vadd.f32 %v2986, %v3019
      %v3052 = vadd.f32 %v2987, %v3020
      %v3053 = vadd.f32 %v2988, %v3021
      %v3054 = vadd.f32 %v2989, %v3022
      %v3055 = vadd.f32 %v2990, %v3023
      %v3056 = vadd.f32 %v2991, %v3024
      %v3057 = vadd.f32 %v2992, %v3025
      %v3058 = vadd.f32 %v2993, %v3026
      %v3059 = vadd.f32 %v2994, %v3027
      %v3060 = vadd.f32 %v2995, %v3028
      %v3061 = vadd.f32 %v2996, %v3029
      %v3062 = vadd.f32 %v2997, %v3030
      %v3063 = vadd.f32 %v2998, %v3031
      %v3064 = vadd.f32 %v2999, %v3032
      %v3065 = vadd.f32 %v3000, %v3033
      %v3066 = vadd.f32 %v3001, %v3034
      %v3067 = vperm.slane %v380, 3
      %v3068 = vmul.f32 %v2897, %v3067
      %v3069 = vmul.f32 %v2898, %v3067
      %v3070 = vmul.f32 %v2899, %v3067
      %v3071 = vmul.f32 %v2900, %v3067
      %v3072 = vmul.f32 %v2901, %v3067
      %v3073 = vmul.f32 %v2902, %v3067
      %v3074 = vmul.f32 %v2903, %v3067
      %v3075 = vmul.f32 %v2904, %v3067
      %v3076 = vmul.f32 %v2905, %v3067
      %v3077 = vmul.f32 %v2906, %v3067
      %v3078 = vmul.f32 %v2907, %v3067
      %v3079 = vmul.f32 %v2908, %v3067
      %v3080 = vmul.f32 %v2909, %v3067
      %v3081 = vmul.f32 %v2910, %v3067
      %v3082 = vmul.f32 %v2911, %v3067
      %v3083 = vmul.f32 %v2912, %v3067
      %v3084 = vmul.f32 %v2913, %v3067
      %v3085 = vmul.f32 %v2914, %v3067
      %v3086 = vmul.f32 %v2915, %v3067
      %v3087 = vmul.f32 %v2916, %v3067
      %v3088 = vmul.f32 %v2917, %v3067
      %v3089 = vmul.f32 %v2918, %v3067
      %v3090 = vmul.f32 %v2919, %v3067
      %v3091 = vmul.f32 %v2920, %v3067
      %v3092 = vmul.f32 %v2921, %v3067
      %v3093 = vmul.f32 %v2922, %v3067
      %v3094 = vmul.f32 %v2923, %v3067
      %v3095 = vmul.f32 %v2924, %v3067
      %v3096 = vmul.f32 %v2925, %v3067
      %v3097 = vmul.f32 %v2926, %v3067
      %v3098 = vmul.f32 %v2927, %v3067
      %v3099 = vmul.f32 %v2928, %v3067
      %v3100 = vadd.f32 %v3035, %v3068
      %v3101 = vadd.f32 %v3036, %v3069
      %v3102 = vadd.f32 %v3037, %v3070
      %v3103 = vadd.f32 %v3038, %v3071
      %v3104 = vadd.f32 %v3039, %v3072
      %v3105 = vadd.f32 %v3040, %v3073
      %v3106 = vadd.f32 %v3041, %v3074
      %v3107 = vadd.f32 %v3042, %v3075
      %v3108 = vadd.f32 %v3043, %v3076
      %v3109 = vadd.f32 %v3044, %v3077
      %v3110 = vadd.f32 %v3045, %v3078
      %v3111 = vadd.f32 %v3046, %v3079
      %v3112 = vadd.f32 %v3047, %v3080
      %v3113 = vadd.f32 %v3048, %v3081
      %v3114 = vadd.f32 %v3049, %v3082
      %v3115 = vadd.f32 %v3050, %v3083
      %v3116 = vadd.f32 %v3051, %v3084
      %v3117 = vadd.f32 %v3052, %v3085
      %v3118 = vadd.f32 %v3053, %v3086
      %v3119 = vadd.f32 %v3054, %v3087
      %v3120 = vadd.f32 %v3055, %v3088
      %v3121 = vadd.f32 %v3056, %v3089
      %v3122 = vadd.f32 %v3057, %v3090
      %v3123 = vadd.f32 %v3058, %v3091
      %v3124 = vadd.f32 %v3059, %v3092
      %v3125 = vadd.f32 %v3060, %v3093
      %v3126 = vadd.f32 %v3061, %v3094
      %v3127 = vadd.f32 %v3062, %v3095
      %v3128 = vadd.f32 %v3063, %v3096
      %v3129 = vadd.f32 %v3064, %v3097
      %v3130 = vadd.f32 %v3065, %v3098
      %v3131 = vadd.f32 %v3066, %v3099
      %v3132 = vperm.slane %v381, 2
      %v3133 = vmul.f32 %v2899, %v3132
      %v3134 = vmul.f32 %v2900, %v3132
      %v3135 = vmul.f32 %v2901, %v3132
      %v3136 = vmul.f32 %v2902, %v3132
      %v3137 = vmul.f32 %v2903, %v3132
      %v3138 = vmul.f32 %v2904, %v3132
      %v3139 = vmul.f32 %v2905, %v3132
      %v3140 = vmul.f32 %v2906, %v3132
      %v3141 = vmul.f32 %v2907, %v3132
      %v3142 = vmul.f32 %v2908, %v3132
      %v3143 = vmul.f32 %v2909, %v3132
      %v3144 = vmul.f32 %v2910, %v3132
      %v3145 = vmul.f32 %v2911, %v3132
      %v3146 = vmul.f32 %v2912, %v3132
      %v3147 = vmul.f32 %v2913, %v3132
      %v3148 = vmul.f32 %v2914, %v3132
      %v3149 = vmul.f32 %v2915, %v3132
      %v3150 = vmul.f32 %v2916, %v3132
      %v3151 = vmul.f32 %v2917, %v3132
      %v3152 = vmul.f32 %v2918, %v3132
      %v3153 = vmul.f32 %v2919, %v3132
      %v3154 = vmul.f32 %v2920, %v3132
      %v3155 = vmul.f32 %v2921, %v3132
      %v3156 = vmul.f32 %v2922, %v3132
      %v3157 = vmul.f32 %v2923, %v3132
      %v3158 = vmul.f32 %v2924, %v3132
      %v3159 = vmul.f32 %v2925, %v3132
      %v3160 = vmul.f32 %v2926, %v3132
      %v3161 = vmul.f32 %v2927, %v3132
      %v3162 = vmul.f32 %v2928, %v3132
      %v3163 = vmul.f32 %v2929, %v3132
      %v3164 = vmul.f32 %v2930, %v3132
      %v3165 = vadd.f32 %v3100, %v3133
      %v3166 = vadd.f32 %v3101, %v3134
      %v3167 = vadd.f32 %v3102, %v3135
      %v3168 = vadd.f32 %v3103, %v3136
      %v3169 = vadd.f32 %v3104, %v3137
      %v3170 = vadd.f32 %v3105, %v3138
      %v3171 = vadd.f32 %v3106, %v3139
      %v3172 = vadd.f32 %v3107, %v3140
      %v3173 = vadd.f32 %v3108, %v3141
      %v3174 = vadd.f32 %v3109, %v3142
      %v3175 = vadd.f32 %v3110, %v3143
      %v3176 = vadd.f32 %v3111, %v3144
      %v3177 = vadd.f32 %v3112, %v3145
      %v3178 = vadd.f32 %v3113, %v3146
      %v3179 = vadd.f32 %v3114, %v3147
      %v3180 = vadd.f32 %v3115, %v3148
      %v3181 = vadd.f32 %v3116, %v3149
      %v3182 = vadd.f32 %v3117, %v3150
      %v3183 = vadd.f32 %v3118, %v3151
      %v3184 = vadd.f32 %v3119, %v3152
      %v3185 = vadd.f32 %v3120, %v3153
      %v3186 = vadd.f32 %v3121, %v3154
      %v3187 = vadd.f32 %v3122, %v3155
      %v3188 = vadd.f32 %v3123, %v3156
      %v3189 = vadd.f32 %v3124, %v3157
      %v3190 = vadd.f32 %v3125, %v3158
      %v3191 = vadd.f32 %v3126, %v3159
      %v3192 = vadd.f32 %v3127, %v3160
      %v3193 = vadd.f32 %v3128, %v3161
      %v3194 = vadd.f32 %v3129, %v3162
      %v3195 = vadd.f32 %v3130, %v3163
      %v3196 = vadd.f32 %v3131, %v3164
      %v3197 = vperm.slane %v382, 1
      %v3198 = vmul.f32 %v2901, %v3197
      %v3199 = vmul.f32 %v2902, %v3197
      %v3200 = vmul.f32 %v2903, %v3197
      %v3201 = vmul.f32 %v2904, %v3197
      %v3202 = vmul.f32 %v2905, %v3197
      %v3203 = vmul.f32 %v2906, %v3197
      %v3204 = vmul.f32 %v2907, %v3197
      %v3205 = vmul.f32 %v2908, %v3197
      %v3206 = vmul.f32 %v2909, %v3197
      %v3207 = vmul.f32 %v2910, %v3197
      %v3208 = vmul.f32 %v2911, %v3197
      %v3209 = vmul.f32 %v2912, %v3197
      %v3210 = vmul.f32 %v2913, %v3197
      %v3211 = vmul.f32 %v2914, %v3197
      %v3212 = vmul.f32 %v2915, %v3197
      %v3213 = vmul.f32 %v2916, %v3197
      %v3214 = vmul.f32 %v2917, %v3197
      %v3215 = vmul.f32 %v2918, %v3197
      %v3216 = vmul.f32 %v2919, %v3197
      %v3217 = vmul.f32 %v2920, %v3197
      %v3218 = vmul.f32 %v2921, %v3197
      %v3219 = vmul.f32 %v2922, %v3197
      %v3220 = vmul.f32 %v2923, %v3197
      %v3221 = vmul.f32 %v2924, %v3197
      %v3222 = vmul.f32 %v2925, %v3197
      %v3223 = vmul.f32 %v2926, %v3197
      %v3224 = vmul.f32 %v2927, %v3197
      %v3225 = vmul.f32 %v2928, %v3197
      %v3226 = vmul.f32 %v2929, %v3197
      %v3227 = vmul.f32 %v2930, %v3197
      %v3228 = vmul.f32 %v2931, %v3197
      %v3229 = vmul.f32 %v2932, %v3197
      %v3230 = vadd.f32 %v3165, %v3198
      %v3231 = vadd.f32 %v3166, %v3199
      %v3232 = vadd.f32 %v3167, %v3200
      %v3233 = vadd.f32 %v3168, %v3201
      %v3234 = vadd.f32 %v3169, %v3202
      %v3235 = vadd.f32 %v3170, %v3203
      %v3236 = vadd.f32 %v3171, %v3204
      %v3237 = vadd.f32 %v3172, %v3205
      %v3238 = vadd.f32 %v3173, %v3206
      %v3239 = vadd.f32 %v3174, %v3207
      %v3240 = vadd.f32 %v3175, %v3208
      %v3241 = vadd.f32 %v3176, %v3209
      %v3242 = vadd.f32 %v3177, %v3210
      %v3243 = vadd.f32 %v3178, %v3211
      %v3244 = vadd.f32 %v3179, %v3212
      %v3245 = vadd.f32 %v3180, %v3213
      %v3246 = vadd.f32 %v3181, %v3214
      %v3247 = vadd.f32 %v3182, %v3215
      %v3248 = vadd.f32 %v3183, %v3216
      %v3249 = vadd.f32 %v3184, %v3217
      %v3250 = vadd.f32 %v3185, %v3218
      %v3251 = vadd.f32 %v3186, %v3219
      %v3252 = vadd.f32 %v3187, %v3220
      %v3253 = vadd.f32 %v3188, %v3221
      %v3254 = vadd.f32 %v3189, %v3222
      %v3255 = vadd.f32 %v3190, %v3223
      %v3256 = vadd.f32 %v3191, %v3224
      %v3257 = vadd.f32 %v3192, %v3225
      %v3258 = vadd.f32 %v3193, %v3226
      %v3259 = vadd.f32 %v3194, %v3227
      %v3260 = vadd.f32 %v3195, %v3228
      %v3261 = vadd.f32 %v3196, %v3229
      %v3262 = vperm.slane %v383, 0
      %v3263 = vmul.f32 %v2903, %v3262
      %v3264 = vmul.f32 %v2904, %v3262
      %v3265 = vmul.f32 %v2905, %v3262
      %v3266 = vmul.f32 %v2906, %v3262
      %v3267 = vmul.f32 %v2907, %v3262
      %v3268 = vmul.f32 %v2908, %v3262
      %v3269 = vmul.f32 %v2909, %v3262
      %v3270 = vmul.f32 %v2910, %v3262
      %v3271 = vmul.f32 %v2911, %v3262
      %v3272 = vmul.f32 %v2912, %v3262
      %v3273 = vmul.f32 %v2913, %v3262
      %v3274 = vmul.f32 %v2914, %v3262
      %v3275 = vmul.f32 %v2915, %v3262
      %v3276 = vmul.f32 %v2916, %v3262
      %v3277 = vmul.f32 %v2917, %v3262
      %v3278 = vmul.f32 %v2918, %v3262
      %v3279 = vmul.f32 %v2919, %v3262
      %v3280 = vmul.f32 %v2920, %v3262
      %v3281 = vmul.f32 %v2921, %v3262
      %v3282 = vmul.f32 %v2922, %v3262
      %v3283 = vmul.f32 %v2923, %v3262
      %v3284 = vmul.f32 %v2924, %v3262
      %v3285 = vmul.f32 %v2925, %v3262
      %v3286 = vmul.f32 %v2926, %v3262
      %v3287 = vmul.f32 %v2927, %v3262
      %v3288 = vmul.f32 %v2928, %v3262
      %v3289 = vmul.f32 %v2929, %v3262
      %v3290 = vmul.f32 %v2930, %v3262
      %v3291 = vmul.f32 %v2931, %v3262
      %v3292 = vmul.f32 %v2932, %v3262
      %v3293 = vmul.f32 %v2933, %v3262
      %v3294 = vmul.f32 %v2934, %v3262
      %v3295 = vadd.f32 %v3230, %v3263
      %v3296 = vadd.f32 %v3231, %v3264
      %v3297 = vadd.f32 %v3232, %v3265
      %v3298 = vadd.f32 %v3233, %v3266
      %v3299 = vadd.f32 %v3234, %v3267
      %v3300 = vadd.f32 %v3235, %v3268
      %v3301 = vadd.f32 %v3236, %v3269
      %v3302 = vadd.f32 %v3237, %v3270
      %v3303 = vadd.f32 %v3238, %v3271
      %v3304 = vadd.f32 %v3239, %v3272
      %v3305 = vadd.f32 %v3240, %v3273
      %v3306 = vadd.f32 %v3241, %v3274
      %v3307 = vadd.f32 %v3242, %v3275
      %v3308 = vadd.f32 %v3243, %v3276
      %v3309 = vadd.f32 %v3244, %v3277
      %v3310 = vadd.f32 %v3245, %v3278
      %v3311 = vadd.f32 %v3246, %v3279
      %v3312 = vadd.f32 %v3247, %v3280
      %v3313 = vadd.f32 %v3248, %v3281
      %v3314 = vadd.f32 %v3249, %v3282
      %v3315 = vadd.f32 %v3250, %v3283
      %v3316 = vadd.f32 %v3251, %v3284
      %v3317 = vadd.f32 %v3252, %v3285
      %v3318 = vadd.f32 %v3253, %v3286
      %v3319 = vadd.f32 %v3254, %v3287
      %v3320 = vadd.f32 %v3255, %v3288
      %v3321 = vadd.f32 %v3256, %v3289
      %v3322 = vadd.f32 %v3257, %v3290
      %v3323 = vadd.f32 %v3258, %v3291
      %v3324 = vadd.f32 %v3259, %v3292
      %v3325 = vadd.f32 %v3260, %v3293
      %v3326 = vadd.f32 %v3261, %v3294
      %v3327 = vperm.slane %v383, 7
      %v3328 = vmul.f32 %v2905, %v3327
      %v3329 = vmul.f32 %v2906, %v3327
      %v3330 = vmul.f32 %v2907, %v3327
      %v3331 = vmul.f32 %v2908, %v3327
      %v3332 = vmul.f32 %v2909, %v3327
      %v3333 = vmul.f32 %v2910, %v3327
      %v3334 = vmul.f32 %v2911, %v3327
      %v3335 = vmul.f32 %v2912, %v3327
      %v3336 = vmul.f32 %v2913, %v3327
      %v3337 = vmul.f32 %v2914, %v3327
      %v3338 = vmul.f32 %v2915, %v3327
      %v3339 = vmul.f32 %v2916, %v3327
      %v3340 = vmul.f32 %v2917, %v3327
      %v3341 = vmul.f32 %v2918, %v3327
      %v3342 = vmul.f32 %v2919, %v3327
      %v3343 = vmul.f32 %v2920, %v3327
      %v3344 = vmul.f32 %v2921, %v3327
      %v3345 = vmul.f32 %v2922, %v3327
      %v3346 = vmul.f32 %v2923, %v3327
      %v3347 = vmul.f32 %v2924, %v3327
      %v3348 = vmul.f32 %v2925, %v3327
      %v3349 = vmul.f32 %v2926, %v3327
      %v3350 = vmul.f32 %v2927, %v3327
      %v3351 = vmul.f32 %v2928, %v3327
      %v3352 = vmul.f32 %v2929, %v3327
      %v3353 = vmul.f32 %v2930, %v3327
      %v3354 = vmul.f32 %v2931, %v3327
      %v3355 = vmul.f32 %v2932, %v3327
      %v3356 = vmul.f32 %v2933, %v3327
      %v3357 = vmul.f32 %v2934, %v3327
      %v3358 = vmul.f32 %v2935, %v3327
      %v3359 = vmul.f32 %v2936, %v3327
      %v3360 = vadd.f32 %v3295, %v3328
      %v3361 = vadd.f32 %v3296, %v3329
      %v3362 = vadd.f32 %v3297, %v3330
      %v3363 = vadd.f32 %v3298, %v3331
      %v3364 = vadd.f32 %v3299, %v3332
      %v3365 = vadd.f32 %v3300, %v3333
      %v3366 = vadd.f32 %v3301, %v3334
      %v3367 = vadd.f32 %v3302, %v3335
      %v3368 = vadd.f32 %v3303, %v3336
      %v3369 = vadd.f32 %v3304, %v3337
      %v3370 = vadd.f32 %v3305, %v3338
      %v3371 = vadd.f32 %v3306, %v3339
      %v3372 = vadd.f32 %v3307, %v3340
      %v3373 = vadd.f32 %v3308, %v3341
      %v3374 = vadd.f32 %v3309, %v3342
      %v3375 = vadd.f32 %v3310, %v3343
      %v3376 = vadd.f32 %v3311, %v3344
      %v3377 = vadd.f32 %v3312, %v3345
      %v3378 = vadd.f32 %v3313, %v3346
      %v3379 = vadd.f32 %v3314, %v3347
      %v3380 = vadd.f32 %v3315, %v3348
      %v3381 = vadd.f32 %v3316, %v3349
      %v3382 = vadd.f32 %v3317, %v3350
      %v3383 = vadd.f32 %v3318, %v3351
      %v3384 = vadd.f32 %v3319, %v3352
      %v3385 = vadd.f32 %v3320, %v3353
      %v3386 = vadd.f32 %v3321, %v3354
      %v3387 = vadd.f32 %v3322, %v3355
      %v3388 = vadd.f32 %v3323, %v3356
      %v3389 = vadd.f32 %v3324, %v3357
      %v3390 = vadd.f32 %v3325, %v3358
      %v3391 = vadd.f32 %v3326, %v3359
      %v3392 = vld [vmem:[#allocation2 + $0xb] sm:$0xff]
      %v3393 = vld [vmem:[#allocation2 + $0x13] sm:$0xff]
      %v3394 = vld [vmem:[#allocation2 + $0x2b] sm:$0xff]
      %v3395 = vld [vmem:[#allocation2 + $0x33] sm:$0xff]
      %v3396 = vld [vmem:[#allocation2 + $0x4b] sm:$0xff]
      %v3397 = vld [vmem:[#allocation2 + $0x53] sm:$0xff]
      %v3398 = vld [vmem:[#allocation2 + $0x6b] sm:$0xff]
      %v3399 = vld [vmem:[#allocation2 + $0x73] sm:$0xff]
      %v3400 = vld [vmem:[#allocation2 + $0x8b] sm:$0xff]
      %v3401 = vld [vmem:[#allocation2 + $0x93] sm:$0xff]
      %v3402 = vld [vmem:[#allocation2 + $0xab] sm:$0xff]
      %v3403 = vld [vmem:[#allocation2 + $0xb3] sm:$0xff]
      %v3404 = vld [vmem:[#allocation2 + $0xcb] sm:$0xff]
      %v3405 = vld [vmem:[#allocation2 + $0xd3] sm:$0xff]
      %v3406 = vld [vmem:[#allocation2 + $0xeb] sm:$0xff]
      %v3407 = vld [vmem:[#allocation2 + $0xf3] sm:$0xff]
      %v3408 = vld [vmem:[#allocation2 + $0x10b] sm:$0xff]
      %v3409 = vld [vmem:[#allocation2 + $0x113] sm:$0xff]
      %v3410 = vld [vmem:[#allocation2 + $0x12b] sm:$0xff]
      %v3411 = vld [vmem:[#allocation2 + $0x133] sm:$0xff]
      %v3412 = vld [vmem:[#allocation2 + $0x14b] sm:$0xff]
      %v3413 = vld [vmem:[#allocation2 + $0x153] sm:$0xff]
      %v3414 = vld [vmem:[#allocation2 + $0x16b] sm:$0xff]
      %v3415 = vld [vmem:[#allocation2 + $0x173] sm:$0xff]
      %v3416 = vld [vmem:[#allocation2 + $0x18b] sm:$0xff]
      %v3417 = vld [vmem:[#allocation2 + $0x193] sm:$0xff]
      %v3418 = vld [vmem:[#allocation2 + $0x1ab] sm:$0xff]
      %v3419 = vld [vmem:[#allocation2 + $0x1b3] sm:$0xff]
      %v3420 = vld [vmem:[#allocation2 + $0x1cb] sm:$0xff]
      %v3421 = vld [vmem:[#allocation2 + $0x1d3] sm:$0xff]
      %v3422 = vld [vmem:[#allocation2 + $0x1eb] sm:$0xff]
      %v3423 = vld [vmem:[#allocation2 + $0x1f3] sm:$0xff]
      %v3424 = vld [vmem:[#allocation2 + $0x20b] sm:$0xff]
      %v3425 = vld [vmem:[#allocation2 + $0x213] sm:$0xff]
      %v3426 = vld [vmem:[#allocation2 + $0x22b] sm:$0xff]
      %v3427 = vld [vmem:[#allocation2 + $0x233] sm:$0xff]
      %v3428 = vld [vmem:[#allocation2 + $0x24b] sm:$0xff]
      %v3429 = vld [vmem:[#allocation2 + $0x253] sm:$0xff]
      %v3430 = vld [vmem:[#allocation2 + $0x26b] sm:$0xff]
      %v3431 = vld [vmem:[#allocation2 + $0x273] sm:$0xff]
      %v3432 = vld [vmem:[#allocation2 + $0x28b] sm:$0xff]
      %v3433 = vld [vmem:[#allocation2 + $0x293] sm:$0xff]
      %v3434 = vld [vmem:[#allocation2 + $0x2ab] sm:$0xff]
      %v3435 = vld [vmem:[#allocation2 + $0x2b3] sm:$0xff]
      %v3436 = vperm.slane %v378, 6
      %v3437 = vmul.f32 %v3392, %v3436
      %v3438 = vmul.f32 %v3393, %v3436
      %v3439 = vmul.f32 %v3394, %v3436
      %v3440 = vmul.f32 %v3395, %v3436
      %v3441 = vmul.f32 %v3396, %v3436
      %v3442 = vmul.f32 %v3397, %v3436
      %v3443 = vmul.f32 %v3398, %v3436
      %v3444 = vmul.f32 %v3399, %v3436
      %v3445 = vmul.f32 %v3400, %v3436
      %v3446 = vmul.f32 %v3401, %v3436
      %v3447 = vmul.f32 %v3402, %v3436
      %v3448 = vmul.f32 %v3403, %v3436
      %v3449 = vmul.f32 %v3404, %v3436
      %v3450 = vmul.f32 %v3405, %v3436
      %v3451 = vmul.f32 %v3406, %v3436
      %v3452 = vmul.f32 %v3407, %v3436
      %v3453 = vmul.f32 %v3408, %v3436
      %v3454 = vmul.f32 %v3409, %v3436
      %v3455 = vmul.f32 %v3410, %v3436
      %v3456 = vmul.f32 %v3411, %v3436
      %v3457 = vmul.f32 %v3412, %v3436
      %v3458 = vmul.f32 %v3413, %v3436
      %v3459 = vmul.f32 %v3414, %v3436
      %v3460 = vmul.f32 %v3415, %v3436
      %v3461 = vmul.f32 %v3416, %v3436
      %v3462 = vmul.f32 %v3417, %v3436
      %v3463 = vmul.f32 %v3418, %v3436
      %v3464 = vmul.f32 %v3419, %v3436
      %v3465 = vmul.f32 %v3420, %v3436
      %v3466 = vmul.f32 %v3421, %v3436
      %v3467 = vmul.f32 %v3422, %v3436
      %v3468 = vmul.f32 %v3423, %v3436
      %v3469 = vadd.f32 %v3360, %v3437
      %v3470 = vadd.f32 %v3361, %v3438
      %v3471 = vadd.f32 %v3362, %v3439
      %v3472 = vadd.f32 %v3363, %v3440
      %v3473 = vadd.f32 %v3364, %v3441
      %v3474 = vadd.f32 %v3365, %v3442
      %v3475 = vadd.f32 %v3366, %v3443
      %v3476 = vadd.f32 %v3367, %v3444
      %v3477 = vadd.f32 %v3368, %v3445
      %v3478 = vadd.f32 %v3369, %v3446
      %v3479 = vadd.f32 %v3370, %v3447
      %v3480 = vadd.f32 %v3371, %v3448
      %v3481 = vadd.f32 %v3372, %v3449
      %v3482 = vadd.f32 %v3373, %v3450
      %v3483 = vadd.f32 %v3374, %v3451
      %v3484 = vadd.f32 %v3375, %v3452
      %v3485 = vadd.f32 %v3376, %v3453
      %v3486 = vadd.f32 %v3377, %v3454
      %v3487 = vadd.f32 %v3378, %v3455
      %v3488 = vadd.f32 %v3379, %v3456
      %v3489 = vadd.f32 %v3380, %v3457
      %v3490 = vadd.f32 %v3381, %v3458
      %v3491 = vadd.f32 %v3382, %v3459
      %v3492 = vadd.f32 %v3383, %v3460
      %v3493 = vadd.f32 %v3384, %v3461
      %v3494 = vadd.f32 %v3385, %v3462
      %v3495 = vadd.f32 %v3386, %v3463
      %v3496 = vadd.f32 %v3387, %v3464
      %v3497 = vadd.f32 %v3388, %v3465
      %v3498 = vadd.f32 %v3389, %v3466
      %v3499 = vadd.f32 %v3390, %v3467
      %v3500 = vadd.f32 %v3391, %v3468
      %v3501 = vperm.slane %v379, 5
      %v3502 = vmul.f32 %v3394, %v3501
      %v3503 = vmul.f32 %v3395, %v3501
      %v3504 = vmul.f32 %v3396, %v3501
      %v3505 = vmul.f32 %v3397, %v3501
      %v3506 = vmul.f32 %v3398, %v3501
      %v3507 = vmul.f32 %v3399, %v3501
      %v3508 = vmul.f32 %v3400, %v3501
      %v3509 = vmul.f32 %v3401, %v3501
      %v3510 = vmul.f32 %v3402, %v3501
      %v3511 = vmul.f32 %v3403, %v3501
      %v3512 = vmul.f32 %v3404, %v3501
      %v3513 = vmul.f32 %v3405, %v3501
      %v3514 = vmul.f32 %v3406, %v3501
      %v3515 = vmul.f32 %v3407, %v3501
      %v3516 = vmul.f32 %v3408, %v3501
      %v3517 = vmul.f32 %v3409, %v3501
      %v3518 = vmul.f32 %v3410, %v3501
      %v3519 = vmul.f32 %v3411, %v3501
      %v3520 = vmul.f32 %v3412, %v3501
      %v3521 = vmul.f32 %v3413, %v3501
      %v3522 = vmul.f32 %v3414, %v3501
      %v3523 = vmul.f32 %v3415, %v3501
      %v3524 = vmul.f32 %v3416, %v3501
      %v3525 = vmul.f32 %v3417, %v3501
      %v3526 = vmul.f32 %v3418, %v3501
      %v3527 = vmul.f32 %v3419, %v3501
      %v3528 = vmul.f32 %v3420, %v3501
      %v3529 = vmul.f32 %v3421, %v3501
      %v3530 = vmul.f32 %v3422, %v3501
      %v3531 = vmul.f32 %v3423, %v3501
      %v3532 = vmul.f32 %v3424, %v3501
      %v3533 = vmul.f32 %v3425, %v3501
      %v3534 = vadd.f32 %v3469, %v3502
      %v3535 = vadd.f32 %v3470, %v3503
      %v3536 = vadd.f32 %v3471, %v3504
      %v3537 = vadd.f32 %v3472, %v3505
      %v3538 = vadd.f32 %v3473, %v3506
      %v3539 = vadd.f32 %v3474, %v3507
      %v3540 = vadd.f32 %v3475, %v3508
      %v3541 = vadd.f32 %v3476, %v3509
      %v3542 = vadd.f32 %v3477, %v3510
      %v3543 = vadd.f32 %v3478, %v3511
      %v3544 = vadd.f32 %v3479, %v3512
      %v3545 = vadd.f32 %v3480, %v3513
      %v3546 = vadd.f32 %v3481, %v3514
      %v3547 = vadd.f32 %v3482, %v3515
      %v3548 = vadd.f32 %v3483, %v3516
      %v3549 = vadd.f32 %v3484, %v3517
      %v3550 = vadd.f32 %v3485, %v3518
      %v3551 = vadd.f32 %v3486, %v3519
      %v3552 = vadd.f32 %v3487, %v3520
      %v3553 = vadd.f32 %v3488, %v3521
      %v3554 = vadd.f32 %v3489, %v3522
      %v3555 = vadd.f32 %v3490, %v3523
      %v3556 = vadd.f32 %v3491, %v3524
      %v3557 = vadd.f32 %v3492, %v3525
      %v3558 = vadd.f32 %v3493, %v3526
      %v3559 = vadd.f32 %v3494, %v3527
      %v3560 = vadd.f32 %v3495, %v3528
      %v3561 = vadd.f32 %v3496, %v3529
      %v3562 = vadd.f32 %v3497, %v3530
      %v3563 = vadd.f32 %v3498, %v3531
      %v3564 = vadd.f32 %v3499, %v3532
      %v3565 = vadd.f32 %v3500, %v3533
      %v3566 = vperm.slane %v380, 4
      %v3567 = vmul.f32 %v3396, %v3566
      %v3568 = vmul.f32 %v3397, %v3566
      %v3569 = vmul.f32 %v3398, %v3566
      %v3570 = vmul.f32 %v3399, %v3566
      %v3571 = vmul.f32 %v3400, %v3566
      %v3572 = vmul.f32 %v3401, %v3566
      %v3573 = vmul.f32 %v3402, %v3566
      %v3574 = vmul.f32 %v3403, %v3566
      %v3575 = vmul.f32 %v3404, %v3566
      %v3576 = vmul.f32 %v3405, %v3566
      %v3577 = vmul.f32 %v3406, %v3566
      %v3578 = vmul.f32 %v3407, %v3566
      %v3579 = vmul.f32 %v3408, %v3566
      %v3580 = vmul.f32 %v3409, %v3566
      %v3581 = vmul.f32 %v3410, %v3566
      %v3582 = vmul.f32 %v3411, %v3566
      %v3583 = vmul.f32 %v3412, %v3566
      %v3584 = vmul.f32 %v3413, %v3566
      %v3585 = vmul.f32 %v3414, %v3566
      %v3586 = vmul.f32 %v3415, %v3566
      %v3587 = vmul.f32 %v3416, %v3566
      %v3588 = vmul.f32 %v3417, %v3566
      %v3589 = vmul.f32 %v3418, %v3566
      %v3590 = vmul.f32 %v3419, %v3566
      %v3591 = vmul.f32 %v3420, %v3566
      %v3592 = vmul.f32 %v3421, %v3566
      %v3593 = vmul.f32 %v3422, %v3566
      %v3594 = vmul.f32 %v3423, %v3566
      %v3595 = vmul.f32 %v3424, %v3566
      %v3596 = vmul.f32 %v3425, %v3566
      %v3597 = vmul.f32 %v3426, %v3566
      %v3598 = vmul.f32 %v3427, %v3566
      %v3599 = vadd.f32 %v3534, %v3567
      %v3600 = vadd.f32 %v3535, %v3568
      %v3601 = vadd.f32 %v3536, %v3569
      %v3602 = vadd.f32 %v3537, %v3570
      %v3603 = vadd.f32 %v3538, %v3571
      %v3604 = vadd.f32 %v3539, %v3572
      %v3605 = vadd.f32 %v3540, %v3573
      %v3606 = vadd.f32 %v3541, %v3574
      %v3607 = vadd.f32 %v3542, %v3575
      %v3608 = vadd.f32 %v3543, %v3576
      %v3609 = vadd.f32 %v3544, %v3577
      %v3610 = vadd.f32 %v3545, %v3578
      %v3611 = vadd.f32 %v3546, %v3579
      %v3612 = vadd.f32 %v3547, %v3580
      %v3613 = vadd.f32 %v3548, %v3581
      %v3614 = vadd.f32 %v3549, %v3582
      %v3615 = vadd.f32 %v3550, %v3583
      %v3616 = vadd.f32 %v3551, %v3584
      %v3617 = vadd.f32 %v3552, %v3585
      %v3618 = vadd.f32 %v3553, %v3586
      %v3619 = vadd.f32 %v3554, %v3587
      %v3620 = vadd.f32 %v3555, %v3588
      %v3621 = vadd.f32 %v3556, %v3589
      %v3622 = vadd.f32 %v3557, %v3590
      %v3623 = vadd.f32 %v3558, %v3591
      %v3624 = vadd.f32 %v3559, %v3592
      %v3625 = vadd.f32 %v3560, %v3593
      %v3626 = vadd.f32 %v3561, %v3594
      %v3627 = vadd.f32 %v3562, %v3595
      %v3628 = vadd.f32 %v3563, %v3596
      %v3629 = vadd.f32 %v3564, %v3597
      %v3630 = vadd.f32 %v3565, %v3598
      %v3631 = vperm.slane %v381, 3
      %v3632 = vmul.f32 %v3398, %v3631
      %v3633 = vmul.f32 %v3399, %v3631
      %v3634 = vmul.f32 %v3400, %v3631
      %v3635 = vmul.f32 %v3401, %v3631
      %v3636 = vmul.f32 %v3402, %v3631
      %v3637 = vmul.f32 %v3403, %v3631
      %v3638 = vmul.f32 %v3404, %v3631
      %v3639 = vmul.f32 %v3405, %v3631
      %v3640 = vmul.f32 %v3406, %v3631
      %v3641 = vmul.f32 %v3407, %v3631
      %v3642 = vmul.f32 %v3408, %v3631
      %v3643 = vmul.f32 %v3409, %v3631
      %v3644 = vmul.f32 %v3410, %v3631
      %v3645 = vmul.f32 %v3411, %v3631
      %v3646 = vmul.f32 %v3412, %v3631
      %v3647 = vmul.f32 %v3413, %v3631
      %v3648 = vmul.f32 %v3414, %v3631
      %v3649 = vmul.f32 %v3415, %v3631
      %v3650 = vmul.f32 %v3416, %v3631
      %v3651 = vmul.f32 %v3417, %v3631
      %v3652 = vmul.f32 %v3418, %v3631
      %v3653 = vmul.f32 %v3419, %v3631
      %v3654 = vmul.f32 %v3420, %v3631
      %v3655 = vmul.f32 %v3421, %v3631
      %v3656 = vmul.f32 %v3422, %v3631
      %v3657 = vmul.f32 %v3423, %v3631
      %v3658 = vmul.f32 %v3424, %v3631
      %v3659 = vmul.f32 %v3425, %v3631
      %v3660 = vmul.f32 %v3426, %v3631
      %v3661 = vmul.f32 %v3427, %v3631
      %v3662 = vmul.f32 %v3428, %v3631
      %v3663 = vmul.f32 %v3429, %v3631
      %v3664 = vadd.f32 %v3599, %v3632
      %v3665 = vadd.f32 %v3600, %v3633
      %v3666 = vadd.f32 %v3601, %v3634
      %v3667 = vadd.f32 %v3602, %v3635
      %v3668 = vadd.f32 %v3603, %v3636
      %v3669 = vadd.f32 %v3604, %v3637
      %v3670 = vadd.f32 %v3605, %v3638
      %v3671 = vadd.f32 %v3606, %v3639
      %v3672 = vadd.f32 %v3607, %v3640
      %v3673 = vadd.f32 %v3608, %v3641
      %v3674 = vadd.f32 %v3609, %v3642
      %v3675 = vadd.f32 %v3610, %v3643
      %v3676 = vadd.f32 %v3611, %v3644
      %v3677 = vadd.f32 %v3612, %v3645
      %v3678 = vadd.f32 %v3613, %v3646
      %v3679 = vadd.f32 %v3614, %v3647
      %v3680 = vadd.f32 %v3615, %v3648
      %v3681 = vadd.f32 %v3616, %v3649
      %v3682 = vadd.f32 %v3617, %v3650
      %v3683 = vadd.f32 %v3618, %v3651
      %v3684 = vadd.f32 %v3619, %v3652
      %v3685 = vadd.f32 %v3620, %v3653
      %v3686 = vadd.f32 %v3621, %v3654
      %v3687 = vadd.f32 %v3622, %v3655
      %v3688 = vadd.f32 %v3623, %v3656
      %v3689 = vadd.f32 %v3624, %v3657
      %v3690 = vadd.f32 %v3625, %v3658
      %v3691 = vadd.f32 %v3626, %v3659
      %v3692 = vadd.f32 %v3627, %v3660
      %v3693 = vadd.f32 %v3628, %v3661
      %v3694 = vadd.f32 %v3629, %v3662
      %v3695 = vadd.f32 %v3630, %v3663
      %v3696 = vperm.slane %v382, 2
      %v3697 = vmul.f32 %v3400, %v3696
      %v3698 = vmul.f32 %v3401, %v3696
      %v3699 = vmul.f32 %v3402, %v3696
      %v3700 = vmul.f32 %v3403, %v3696
      %v3701 = vmul.f32 %v3404, %v3696
      %v3702 = vmul.f32 %v3405, %v3696
      %v3703 = vmul.f32 %v3406, %v3696
      %v3704 = vmul.f32 %v3407, %v3696
      %v3705 = vmul.f32 %v3408, %v3696
      %v3706 = vmul.f32 %v3409, %v3696
      %v3707 = vmul.f32 %v3410, %v3696
      %v3708 = vmul.f32 %v3411, %v3696
      %v3709 = vmul.f32 %v3412, %v3696
      %v3710 = vmul.f32 %v3413, %v3696
      %v3711 = vmul.f32 %v3414, %v3696
      %v3712 = vmul.f32 %v3415, %v3696
      %v3713 = vmul.f32 %v3416, %v3696
      %v3714 = vmul.f32 %v3417, %v3696
      %v3715 = vmul.f32 %v3418, %v3696
      %v3716 = vmul.f32 %v3419, %v3696
      %v3717 = vmul.f32 %v3420, %v3696
      %v3718 = vmul.f32 %v3421, %v3696
      %v3719 = vmul.f32 %v3422, %v3696
      %v3720 = vmul.f32 %v3423, %v3696
      %v3721 = vmul.f32 %v3424, %v3696
      %v3722 = vmul.f32 %v3425, %v3696
      %v3723 = vmul.f32 %v3426, %v3696
      %v3724 = vmul.f32 %v3427, %v3696
      %v3725 = vmul.f32 %v3428, %v3696
      %v3726 = vmul.f32 %v3429, %v3696
      %v3727 = vmul.f32 %v3430, %v3696
      %v3728 = vmul.f32 %v3431, %v3696
      %v3729 = vadd.f32 %v3664, %v3697
      %v3730 = vadd.f32 %v3665, %v3698
      %v3731 = vadd.f32 %v3666, %v3699
      %v3732 = vadd.f32 %v3667, %v3700
      %v3733 = vadd.f32 %v3668, %v3701
      %v3734 = vadd.f32 %v3669, %v3702
      %v3735 = vadd.f32 %v3670, %v3703
      %v3736 = vadd.f32 %v3671, %v3704
      %v3737 = vadd.f32 %v3672, %v3705
      %v3738 = vadd.f32 %v3673, %v3706
      %v3739 = vadd.f32 %v3674, %v3707
      %v3740 = vadd.f32 %v3675, %v3708
      %v3741 = vadd.f32 %v3676, %v3709
      %v3742 = vadd.f32 %v3677, %v3710
      %v3743 = vadd.f32 %v3678, %v3711
      %v3744 = vadd.f32 %v3679, %v3712
      %v3745 = vadd.f32 %v3680, %v3713
      %v3746 = vadd.f32 %v3681, %v3714
      %v3747 = vadd.f32 %v3682, %v3715
      %v3748 = vadd.f32 %v3683, %v3716
      %v3749 = vadd.f32 %v3684, %v3717
      %v3750 = vadd.f32 %v3685, %v3718
      %v3751 = vadd.f32 %v3686, %v3719
      %v3752 = vadd.f32 %v3687, %v3720
      %v3753 = vadd.f32 %v3688, %v3721
      %v3754 = vadd.f32 %v3689, %v3722
      %v3755 = vadd.f32 %v3690, %v3723
      %v3756 = vadd.f32 %v3691, %v3724
      %v3757 = vadd.f32 %v3692, %v3725
      %v3758 = vadd.f32 %v3693, %v3726
      %v3759 = vadd.f32 %v3694, %v3727
      %v3760 = vadd.f32 %v3695, %v3728
      %v3761 = vperm.slane %v383, 1
      %v3762 = vmul.f32 %v3402, %v3761
      %v3763 = vmul.f32 %v3403, %v3761
      %v3764 = vmul.f32 %v3404, %v3761
      %v3765 = vmul.f32 %v3405, %v3761
      %v3766 = vmul.f32 %v3406, %v3761
      %v3767 = vmul.f32 %v3407, %v3761
      %v3768 = vmul.f32 %v3408, %v3761
      %v3769 = vmul.f32 %v3409, %v3761
      %v3770 = vmul.f32 %v3410, %v3761
      %v3771 = vmul.f32 %v3411, %v3761
      %v3772 = vmul.f32 %v3412, %v3761
      %v3773 = vmul.f32 %v3413, %v3761
      %v3774 = vmul.f32 %v3414, %v3761
      %v3775 = vmul.f32 %v3415, %v3761
      %v3776 = vmul.f32 %v3416, %v3761
      %v3777 = vmul.f32 %v3417, %v3761
      %v3778 = vmul.f32 %v3418, %v3761
      %v3779 = vmul.f32 %v3419, %v3761
      %v3780 = vmul.f32 %v3420, %v3761
      %v3781 = vmul.f32 %v3421, %v3761
      %v3782 = vmul.f32 %v3422, %v3761
      %v3783 = vmul.f32 %v3423, %v3761
      %v3784 = vmul.f32 %v3424, %v3761
      %v3785 = vmul.f32 %v3425, %v3761
      %v3786 = vmul.f32 %v3426, %v3761
      %v3787 = vmul.f32 %v3427, %v3761
      %v3788 = vmul.f32 %v3428, %v3761
      %v3789 = vmul.f32 %v3429, %v3761
      %v3790 = vmul.f32 %v3430, %v3761
      %v3791 = vmul.f32 %v3431, %v3761
      %v3792 = vmul.f32 %v3432, %v3761
      %v3793 = vmul.f32 %v3433, %v3761
      %v3794 = vadd.f32 %v3729, %v3762
      %v3795 = vadd.f32 %v3730, %v3763
      %v3796 = vadd.f32 %v3731, %v3764
      %v3797 = vadd.f32 %v3732, %v3765
      %v3798 = vadd.f32 %v3733, %v3766
      %v3799 = vadd.f32 %v3734, %v3767
      %v3800 = vadd.f32 %v3735, %v3768
      %v3801 = vadd.f32 %v3736, %v3769
      %v3802 = vadd.f32 %v3737, %v3770
      %v3803 = vadd.f32 %v3738, %v3771
      %v3804 = vadd.f32 %v3739, %v3772
      %v3805 = vadd.f32 %v3740, %v3773
      %v3806 = vadd.f32 %v3741, %v3774
      %v3807 = vadd.f32 %v3742, %v3775
      %v3808 = vadd.f32 %v3743, %v3776
      %v3809 = vadd.f32 %v3744, %v3777
      %v3810 = vadd.f32 %v3745, %v3778
      %v3811 = vadd.f32 %v3746, %v3779
      %v3812 = vadd.f32 %v3747, %v3780
      %v3813 = vadd.f32 %v3748, %v3781
      %v3814 = vadd.f32 %v3749, %v3782
      %v3815 = vadd.f32 %v3750, %v3783
      %v3816 = vadd.f32 %v3751, %v3784
      %v3817 = vadd.f32 %v3752, %v3785
      %v3818 = vadd.f32 %v3753, %v3786
      %v3819 = vadd.f32 %v3754, %v3787
      %v3820 = vadd.f32 %v3755, %v3788
      %v3821 = vadd.f32 %v3756, %v3789
      %v3822 = vadd.f32 %v3757, %v3790
      %v3823 = vadd.f32 %v3758, %v3791
      %v3824 = vadd.f32 %v3759, %v3792
      %v3825 = vadd.f32 %v3760, %v3793
      %v3826 = vperm.slane %v384, 0
      %v3827 = vmul.f32 %v3404, %v3826
      %v3828 = vmul.f32 %v3405, %v3826
      %v3829 = vmul.f32 %v3406, %v3826
      %v3830 = vmul.f32 %v3407, %v3826
      %v3831 = vmul.f32 %v3408, %v3826
      %v3832 = vmul.f32 %v3409, %v3826
      %v3833 = vmul.f32 %v3410, %v3826
      %v3834 = vmul.f32 %v3411, %v3826
      %v3835 = vmul.f32 %v3412, %v3826
      %v3836 = vmul.f32 %v3413, %v3826
      %v3837 = vmul.f32 %v3414, %v3826
      %v3838 = vmul.f32 %v3415, %v3826
      %v3839 = vmul.f32 %v3416, %v3826
      %v3840 = vmul.f32 %v3417, %v3826
      %v3841 = vmul.f32 %v3418, %v3826
      %v3842 = vmul.f32 %v3419, %v3826
      %v3843 = vmul.f32 %v3420, %v3826
      %v3844 = vmul.f32 %v3421, %v3826
      %v3845 = vmul.f32 %v3422, %v3826
      %v3846 = vmul.f32 %v3423, %v3826
      %v3847 = vmul.f32 %v3424, %v3826
      %v3848 = vmul.f32 %v3425, %v3826
      %v3849 = vmul.f32 %v3426, %v3826
      %v3850 = vmul.f32 %v3427, %v3826
      %v3851 = vmul.f32 %v3428, %v3826
      %v3852 = vmul.f32 %v3429, %v3826
      %v3853 = vmul.f32 %v3430, %v3826
      %v3854 = vmul.f32 %v3431, %v3826
      %v3855 = vmul.f32 %v3432, %v3826
      %v3856 = vmul.f32 %v3433, %v3826
      %v3857 = vmul.f32 %v3434, %v3826
      %v3858 = vmul.f32 %v3435, %v3826
      %v3859 = vadd.f32 %v3794, %v3827
      %v3860 = vadd.f32 %v3795, %v3828
      %v3861 = vadd.f32 %v3796, %v3829
      %v3862 = vadd.f32 %v3797, %v3830
      %v3863 = vadd.f32 %v3798, %v3831
      %v3864 = vadd.f32 %v3799, %v3832
      %v3865 = vadd.f32 %v3800, %v3833
      %v3866 = vadd.f32 %v3801, %v3834
      %v3867 = vadd.f32 %v3802, %v3835
      %v3868 = vadd.f32 %v3803, %v3836
      %v3869 = vadd.f32 %v3804, %v3837
      %v3870 = vadd.f32 %v3805, %v3838
      %v3871 = vadd.f32 %v3806, %v3839
      %v3872 = vadd.f32 %v3807, %v3840
      %v3873 = vadd.f32 %v3808, %v3841
      %v3874 = vadd.f32 %v3809, %v3842
      %v3875 = vadd.f32 %v3810, %v3843
      %v3876 = vadd.f32 %v3811, %v3844
      %v3877 = vadd.f32 %v3812, %v3845
      %v3878 = vadd.f32 %v3813, %v3846
      %v3879 = vadd.f32 %v3814, %v3847
      %v3880 = vadd.f32 %v3815, %v3848
      %v3881 = vadd.f32 %v3816, %v3849
      %v3882 = vadd.f32 %v3817, %v3850
      %v3883 = vadd.f32 %v3818, %v3851
      %v3884 = vadd.f32 %v3819, %v3852
      %v3885 = vadd.f32 %v3820, %v3853
      %v3886 = vadd.f32 %v3821, %v3854
      %v3887 = vadd.f32 %v3822, %v3855
      %v3888 = vadd.f32 %v3823, %v3856
      %v3889 = vadd.f32 %v3824, %v3857
      %v3890 = vadd.f32 %v3825, %v3858
      %v3891 = vpack.c.bf16 %v3859, %v3859
      %v3892 = vpack.c.bf16 %v3860, %v3860
      %v3893 = vpack.c.bf16 %v3861, %v3861
      %v3894 = vpack.c.bf16 %v3862, %v3862
      %v3895 = vpack.c.bf16 %v3863, %v3863
      %v3896 = vpack.c.bf16 %v3864, %v3864
      %v3897 = vpack.c.bf16 %v3865, %v3865
      %v3898 = vpack.c.bf16 %v3866, %v3866
      %v3899 = vpack.c.bf16 %v3867, %v3867
      %v3900 = vpack.c.bf16 %v3868, %v3868
      %v3901 = vpack.c.bf16 %v3869, %v3869
      %v3902 = vpack.c.bf16 %v3870, %v3870
      %v3903 = vpack.c.bf16 %v3871, %v3871
      %v3904 = vpack.c.bf16 %v3872, %v3872
      %v3905 = vpack.c.bf16 %v3873, %v3873
      %v3906 = vpack.c.bf16 %v3874, %v3874
      %v3907 = vpack.c.bf16 %v3875, %v3875
      %v3908 = vpack.c.bf16 %v3876, %v3876
      %v3909 = vpack.c.bf16 %v3877, %v3877
      %v3910 = vpack.c.bf16 %v3878, %v3878
      %v3911 = vpack.c.bf16 %v3879, %v3879
      %v3912 = vpack.c.bf16 %v3880, %v3880
      %v3913 = vpack.c.bf16 %v3881, %v3881
      %v3914 = vpack.c.bf16 %v3882, %v3882
      %v3915 = vpack.c.bf16 %v3883, %v3883
      %v3916 = vpack.c.bf16 %v3884, %v3884
      %v3917 = vpack.c.bf16 %v3885, %v3885
      %v3918 = vpack.c.bf16 %v3886, %v3886
      %v3919 = vpack.c.bf16 %v3887, %v3887
      %v3920 = vpack.c.bf16 %v3888, %v3888
      %v3921 = vpack.c.bf16 %v3889, %v3889
      %v3922 = vpack.c.bf16 %v3890, %v3890
      %vm3923 = vcmask 60416
      %3924 = vst.msk [vmem:[%s226] sm:$0xf] %vm3923, %v3891
      %3925 = vst.msk [vmem:[%s226 + $0x4] sm:$0xf] %vm3923, %v3892
      %3926 = vst.msk [vmem:[%s226 + $0x8] sm:$0xf] %vm3923, %v3893
      %3927 = vst.msk [vmem:[%s226 + $0xc] sm:$0xf] %vm3923, %v3894
      %3928 = vst.msk [vmem:[%s226 + $0x10] sm:$0xf] %vm3923, %v3895
      %3929 = vst.msk [vmem:[%s226 + $0x14] sm:$0xf] %vm3923, %v3896
      %3930 = vst.msk [vmem:[%s226 + $0x18] sm:$0xf] %vm3923, %v3897
      %3931 = vst.msk [vmem:[%s226 + $0x1c] sm:$0xf] %vm3923, %v3898
      %3932 = vst.msk [vmem:[%s226 + $0x20] sm:$0xf] %vm3923, %v3899
      %3933 = vst.msk [vmem:[%s226 + $0x24] sm:$0xf] %vm3923, %v3900
      %3934 = vst.msk [vmem:[%s226 + $0x28] sm:$0xf] %vm3923, %v3901
      %3935 = vst.msk [vmem:[%s226 + $0x2c] sm:$0xf] %vm3923, %v3902
      %3936 = vst.msk [vmem:[%s226 + $0x30] sm:$0xf] %vm3923, %v3903
      %3937 = vst.msk [vmem:[%s226 + $0x34] sm:$0xf] %vm3923, %v3904
      %3938 = vst.msk [vmem:[%s226 + $0x38] sm:$0xf] %vm3923, %v3905
      %3939 = vst.msk [vmem:[%s226 + $0x3c] sm:$0xf] %vm3923, %v3906
      %3940 = vst.msk [vmem:[%s226 + $0x40] sm:$0xf] %vm3923, %v3907
      %3941 = vst.msk [vmem:[%s226 + $0x44] sm:$0xf] %vm3923, %v3908
      %3942 = vst.msk [vmem:[%s226 + $0x48] sm:$0xf] %vm3923, %v3909
      %3943 = vst.msk [vmem:[%s226 + $0x4c] sm:$0xf] %vm3923, %v3910
      %3944 = vst.msk [vmem:[%s226 + $0x50] sm:$0xf] %vm3923, %v3911
      %3945 = vst.msk [vmem:[%s226 + $0x54] sm:$0xf] %vm3923, %v3912
      %3946 = vst.msk [vmem:[%s226 + $0x58] sm:$0xf] %vm3923, %v3913
      %3947 = vst.msk [vmem:[%s226 + $0x5c] sm:$0xf] %vm3923, %v3914
      %3948 = vst.msk [vmem:[%s226 + $0x60] sm:$0xf] %vm3923, %v3915
      %3949 = vst.msk [vmem:[%s226 + $0x64] sm:$0xf] %vm3923, %v3916
      %3950 = vst.msk [vmem:[%s226 + $0x68] sm:$0xf] %vm3923, %v3917
      %3951 = vst.msk [vmem:[%s226 + $0x6c] sm:$0xf] %vm3923, %v3918
      %3952 = vst.msk [vmem:[%s226 + $0x70] sm:$0xf] %vm3923, %v3919
      %3953 = vst.msk [vmem:[%s226 + $0x74] sm:$0xf] %vm3923, %v3920
      %3954 = vst.msk [vmem:[%s226 + $0x78] sm:$0xf] %vm3923, %v3921
      %3955 = vst.msk [vmem:[%s226 + $0x7c] sm:$0xf] %vm3923, %v3922
      %v3956 = vunpack.c.l.bf16 %v3891
      %v3957 = vunpack.c.l.bf16 %v3892
      %v3958 = vunpack.c.l.bf16 %v3893
      %v3959 = vunpack.c.l.bf16 %v3894
      %v3960 = vunpack.c.l.bf16 %v3895
      %v3961 = vunpack.c.l.bf16 %v3896
      %v3962 = vunpack.c.l.bf16 %v3897
      %v3963 = vunpack.c.l.bf16 %v3898
      %v3964 = vunpack.c.l.bf16 %v3899
      %v3965 = vunpack.c.l.bf16 %v3900
      %v3966 = vunpack.c.l.bf16 %v3901
      %v3967 = vunpack.c.l.bf16 %v3902
      %v3968 = vunpack.c.l.bf16 %v3903
      %v3969 = vunpack.c.l.bf16 %v3904
      %v3970 = vunpack.c.l.bf16 %v3905
      %v3971 = vunpack.c.l.bf16 %v3906
      %v3972 = vunpack.c.l.bf16 %v3907
      %v3973 = vunpack.c.l.bf16 %v3908
      %v3974 = vunpack.c.l.bf16 %v3909
      %v3975 = vunpack.c.l.bf16 %v3910
      %v3976 = vunpack.c.l.bf16 %v3911
      %v3977 = vunpack.c.l.bf16 %v3912
      %v3978 = vunpack.c.l.bf16 %v3913
      %v3979 = vunpack.c.l.bf16 %v3914
      %v3980 = vunpack.c.l.bf16 %v3915
      %v3981 = vunpack.c.l.bf16 %v3916
      %v3982 = vunpack.c.l.bf16 %v3917
      %v3983 = vunpack.c.l.bf16 %v3918
      %v3984 = vunpack.c.l.bf16 %v3919
      %v3985 = vunpack.c.l.bf16 %v3920
      %v3986 = vunpack.c.l.bf16 %v3921
      %v3987 = vunpack.c.l.bf16 %v3922
      %v3988 = vsel %vm345, %v3956, 0.0
      %v3989 = vsel %vm345, %v3957, 0.0
      %v3990 = vadd.f32 %v3988, %v3989
      %v3991 = vsel %vm345, %v3958, 0.0
      %v3992 = vadd.f32 %v3990, %v3991
      %v3993 = vsel %vm345, %v3959, 0.0
      %v3994 = vadd.f32 %v3992, %v3993
      %v3995 = vsel %vm345, %v3960, 0.0
      %v3996 = vadd.f32 %v3994, %v3995
      %v3997 = vsel %vm345, %v3961, 0.0
      %v3998 = vadd.f32 %v3996, %v3997
      %v3999 = vsel %vm345, %v3962, 0.0
      %v4000 = vadd.f32 %v3998, %v3999
      %v4001 = vsel %vm345, %v3963, 0.0
      %v4002 = vadd.f32 %v4000, %v4001
      %v4003 = vsel %vm345, %v3964, 0.0
      %v4004 = vadd.f32 %v4002, %v4003
      %v4005 = vsel %vm345, %v3965, 0.0
      %v4006 = vadd.f32 %v4004, %v4005
      %v4007 = vsel %vm345, %v3966, 0.0
      %v4008 = vadd.f32 %v4006, %v4007
      %v4009 = vsel %vm345, %v3967, 0.0
      %v4010 = vadd.f32 %v4008, %v4009
      %v4011 = vsel %vm345, %v3968, 0.0
      %v4012 = vadd.f32 %v4010, %v4011
      %v4013 = vsel %vm345, %v3969, 0.0
      %v4014 = vadd.f32 %v4012, %v4013
      %v4015 = vsel %vm345, %v3970, 0.0
      %v4016 = vadd.f32 %v4014, %v4015
      %v4017 = vsel %vm345, %v3971, 0.0
      %v4018 = vadd.f32 %v4016, %v4017
      %v4019 = vsel %vm345, %v3972, 0.0
      %v4020 = vadd.f32 %v4018, %v4019
      %v4021 = vsel %vm345, %v3973, 0.0
      %v4022 = vadd.f32 %v4020, %v4021
      %v4023 = vsel %vm345, %v3974, 0.0
      %v4024 = vadd.f32 %v4022, %v4023
      %v4025 = vsel %vm345, %v3975, 0.0
      %v4026 = vadd.f32 %v4024, %v4025
      %v4027 = vsel %vm345, %v3976, 0.0
      %v4028 = vadd.f32 %v4026, %v4027
      %v4029 = vsel %vm345, %v3977, 0.0
      %v4030 = vadd.f32 %v4028, %v4029
      %v4031 = vsel %vm345, %v3978, 0.0
      %v4032 = vadd.f32 %v4030, %v4031
      %v4033 = vsel %vm345, %v3979, 0.0
      %v4034 = vadd.f32 %v4032, %v4033
      %v4035 = vsel %vm345, %v3980, 0.0
      %v4036 = vadd.f32 %v4034, %v4035
      %v4037 = vsel %vm345, %v3981, 0.0
      %v4038 = vadd.f32 %v4036, %v4037
      %v4039 = vsel %vm345, %v3982, 0.0
      %v4040 = vadd.f32 %v4038, %v4039
      %v4041 = vsel %vm345, %v3983, 0.0
      %v4042 = vadd.f32 %v4040, %v4041
      %v4043 = vsel %vm345, %v3984, 0.0
      %v4044 = vadd.f32 %v4042, %v4043
      %v4045 = vsel %vm345, %v3985, 0.0
      %v4046 = vadd.f32 %v4044, %v4045
      %v4047 = vsel %vm345, %v3986, 0.0
      %v4048 = vadd.f32 %v4046, %v4047
      %v4049 = vsel %vm345, %v3987, 0.0
      %v4050 = vadd.f32 %v4048, %v4049
      %v4051 = vrot.slane %v4050, 4
      %v4052 = vadd.f32 %v4050, %v4051
      %v4053 = vrot.slane %v4052, 2
      %v4054 = vadd.f32 %v4052, %v4053
      %v4055 = vrot.slane %v4054, 1
      %v4056 = vadd.f32 %v4054, %v4055
      %v4057 = vmul.f32 %v4056, 0.00390625
      %v4058 = vsub.f32 %v3956, %v4057
      %v4059 = vsub.f32 %v3957, %v4057
      %v4060 = vsub.f32 %v3958, %v4057
      %v4061 = vsub.f32 %v3959, %v4057
      %v4062 = vsub.f32 %v3960, %v4057
      %v4063 = vsub.f32 %v3961, %v4057
      %v4064 = vsub.f32 %v3962, %v4057
      %v4065 = vsub.f32 %v3963, %v4057
      %v4066 = vsub.f32 %v3964, %v4057
      %v4067 = vsub.f32 %v3965, %v4057
      %v4068 = vsub.f32 %v3966, %v4057
      %v4069 = vsub.f32 %v3967, %v4057
      %v4070 = vsub.f32 %v3968, %v4057
      %v4071 = vsub.f32 %v3969, %v4057
      %v4072 = vsub.f32 %v3970, %v4057
      %v4073 = vsub.f32 %v3971, %v4057
      %v4074 = vsub.f32 %v3972, %v4057
      %v4075 = vsub.f32 %v3973, %v4057
      %v4076 = vsub.f32 %v3974, %v4057
      %v4077 = vsub.f32 %v3975, %v4057
      %v4078 = vsub.f32 %v3976, %v4057
      %v4079 = vsub.f32 %v3977, %v4057
      %v4080 = vsub.f32 %v3978, %v4057
      %v4081 = vsub.f32 %v3979, %v4057
      %v4082 = vsub.f32 %v3980, %v4057
      %v4083 = vsub.f32 %v3981, %v4057
      %v4084 = vsub.f32 %v3982, %v4057
      %v4085 = vsub.f32 %v3983, %v4057
      %v4086 = vsub.f32 %v3984, %v4057
      %v4087 = vsub.f32 %v3985, %v4057
      %v4088 = vsub.f32 %v3986, %v4057
      %v4089 = vsub.f32 %v3987, %v4057
      %vm4090 = vcmask 57344
      %4091 = vst.msk [vmem:[%s234] sm:$0x1] %vm4090, %v4056
      %v4092 = vmul.f32 %v4058, %v4058
      %v4093 = vmul.f32 %v4059, %v4059
      %v4094 = vmul.f32 %v4060, %v4060
      %v4095 = vmul.f32 %v4061, %v4061
      %v4096 = vmul.f32 %v4062, %v4062
      %v4097 = vmul.f32 %v4063, %v4063
      %v4098 = vmul.f32 %v4064, %v4064
      %v4099 = vmul.f32 %v4065, %v4065
      %v4100 = vmul.f32 %v4066, %v4066
      %v4101 = vmul.f32 %v4067, %v4067
      %v4102 = vmul.f32 %v4068, %v4068
      %v4103 = vmul.f32 %v4069, %v4069
      %v4104 = vmul.f32 %v4070, %v4070
      %v4105 = vmul.f32 %v4071, %v4071
      %v4106 = vmul.f32 %v4072, %v4072
      %v4107 = vmul.f32 %v4073, %v4073
      %v4108 = vmul.f32 %v4074, %v4074
      %v4109 = vmul.f32 %v4075, %v4075
      %v4110 = vmul.f32 %v4076, %v4076
      %v4111 = vmul.f32 %v4077, %v4077
      %v4112 = vmul.f32 %v4078, %v4078
      %v4113 = vmul.f32 %v4079, %v4079
      %v4114 = vmul.f32 %v4080, %v4080
      %v4115 = vmul.f32 %v4081, %v4081
      %v4116 = vmul.f32 %v4082, %v4082
      %v4117 = vmul.f32 %v4083, %v4083
      %v4118 = vmul.f32 %v4084, %v4084
      %v4119 = vmul.f32 %v4085, %v4085
      %v4120 = vmul.f32 %v4086, %v4086
      %v4121 = vmul.f32 %v4087, %v4087
      %v4122 = vmul.f32 %v4088, %v4088
      %v4123 = vmul.f32 %v4089, %v4089
      %v4124 = vsel %vm345, %v4092, 0.0
      %v4125 = vsel %vm345, %v4093, 0.0
      %v4126 = vadd.f32 %v4124, %v4125
      %v4127 = vsel %vm345, %v4094, 0.0
      %v4128 = vadd.f32 %v4126, %v4127
      %v4129 = vsel %vm345, %v4095, 0.0
      %v4130 = vadd.f32 %v4128, %v4129
      %v4131 = vsel %vm345, %v4096, 0.0
      %v4132 = vadd.f32 %v4130, %v4131
      %v4133 = vsel %vm345, %v4097, 0.0
      %v4134 = vadd.f32 %v4132, %v4133
      %v4135 = vsel %vm345, %v4098, 0.0
      %v4136 = vadd.f32 %v4134, %v4135
      %v4137 = vsel %vm345, %v4099, 0.0
      %v4138 = vadd.f32 %v4136, %v4137
      %v4139 = vsel %vm345, %v4100, 0.0
      %v4140 = vadd.f32 %v4138, %v4139
      %v4141 = vsel %vm345, %v4101, 0.0
      %v4142 = vadd.f32 %v4140, %v4141
      %v4143 = vsel %vm345, %v4102, 0.0
      %v4144 = vadd.f32 %v4142, %v4143
      %v4145 = vsel %vm345, %v4103, 0.0
      %v4146 = vadd.f32 %v4144, %v4145
      %v4147 = vsel %vm345, %v4104, 0.0
      %v4148 = vadd.f32 %v4146, %v4147
      %v4149 = vsel %vm345, %v4105, 0.0
      %v4150 = vadd.f32 %v4148, %v4149
      %v4151 = vsel %vm345, %v4106, 0.0
      %v4152 = vadd.f32 %v4150, %v4151
      %v4153 = vsel %vm345, %v4107, 0.0
      %v4154 = vadd.f32 %v4152, %v4153
      %v4155 = vsel %vm345, %v4108, 0.0
      %v4156 = vadd.f32 %v4154, %v4155
      %v4157 = vsel %vm345, %v4109, 0.0
      %v4158 = vadd.f32 %v4156, %v4157
      %v4159 = vsel %vm345, %v4110, 0.0
      %v4160 = vadd.f32 %v4158, %v4159
      %v4161 = vsel %vm345, %v4111, 0.0
      %v4162 = vadd.f32 %v4160, %v4161
      %v4163 = vsel %vm345, %v4112, 0.0
      %v4164 = vadd.f32 %v4162, %v4163
      %v4165 = vsel %vm345, %v4113, 0.0
      %v4166 = vadd.f32 %v4164, %v4165
      %v4167 = vsel %vm345, %v4114, 0.0
      %v4168 = vadd.f32 %v4166, %v4167
      %v4169 = vsel %vm345, %v4115, 0.0
      %v4170 = vadd.f32 %v4168, %v4169
      %v4171 = vsel %vm345, %v4116, 0.0
      %v4172 = vadd.f32 %v4170, %v4171
      %v4173 = vsel %vm345, %v4117, 0.0
      %v4174 = vadd.f32 %v4172, %v4173
      %v4175 = vsel %vm345, %v4118, 0.0
      %v4176 = vadd.f32 %v4174, %v4175
      %v4177 = vsel %vm345, %v4119, 0.0
      %v4178 = vadd.f32 %v4176, %v4177
      %v4179 = vsel %vm345, %v4120, 0.0
      %v4180 = vadd.f32 %v4178, %v4179
      %v4181 = vsel %vm345, %v4121, 0.0
      %v4182 = vadd.f32 %v4180, %v4181
      %v4183 = vsel %vm345, %v4122, 0.0
      %v4184 = vadd.f32 %v4182, %v4183
      %v4185 = vsel %vm345, %v4123, 0.0
      %v4186 = vadd.f32 %v4184, %v4185
      %v4187 = vrot.slane %v4186, 4
      %v4188 = vadd.f32 %v4186, %v4187
      %v4189 = vrot.slane %v4188, 2
      %v4190 = vadd.f32 %v4188, %v4189
      %v4191 = vrot.slane %v4190, 1
      %v4192 = vadd.f32 %v4190, %v4191
      %4193 = vst.msk [vmem:[%s234 + $0x1] sm:$0x1] %vm4090, %v4192
      %s4194 = smul.u32 16, %s21
      %p4195 = scmp.lt.s32.totalorder %s20, 1
      %s4196 = scalar_select %p4195, %s20, 1
      %p4197 = scmp.lt.s32.totalorder %s4194, 15
      %s4198 = scalar_select %p4197, %s4194, 15
      %s4199 = smul.addr %s4198, 2
      %s4200 = smul.addr %s4196, 32
      %s4201 = sadd.s32 %s4199, %s4200
      %s4202 = smul.addr %s4201, 4
      %s4203 = scalar_lea.vmem %s3, %s4202
      %p4204 = scmp.lt.s32.totalorder %s20, 1
      %s4205 = scalar_select %p4204, %s20, 1
      %p4206 = scmp.lt.s32.totalorder %s21, 0
      %s4207 = scalar_select %p4206, %s21, 0
      %s4208 = sadd.s32 %s4207, %s4205
      %s4209 = smul.addr %s4208, 2
      %s4210 = scalar_lea.vmem %s4, %s4209
      // Predicated region
      $region29: #{conv_mixer_forward.3} parent=27 // pred_check
        %p4211 = pneg %p97
      $region30: #{conv_mixer_forward.3} parent=27 // pred_check_branch
        %4213 = sbr.rel (%p4211) target = $region32
      $region31: #{conv_mixer_forward.3} parent=27 // pred_region
        %s4214 = smul.u32 16, %s21
      $region32: #{conv_mixer_forward.3} parent=27 // pred_fallthru
        _
      // Predicated region
      $region33: #{conv_mixer_forward.3} parent=27 // pred_check
        %p4215 = pneg %p125
      $region34: #{conv_mixer_forward.3} parent=27 // pred_check_branch
        %4217 = sbr.rel (%p4215) target = $region36
      $region35: #{conv_mixer_forward.3} parent=27 // pred_region
        _
      $region36: #{conv_mixer_forward.3} parent=27 // pred_fallthru
        _
    $region28: #{conv_mixer_forward.3} parent=5 // pred_fallthru
      _
    %p4218 = scmp.le.s32.totalorder 2, %s11
    // Predicated region
    $region37: #{conv_mixer_forward.3} parent=5 // pred_check
      %p4219 = pneg %p4218
    $region38: #{conv_mixer_forward.3} parent=5 // pred_check_branch
      %4221 = sbr.rel (%p4219) target = $region40
    $region39: #{conv_mixer_forward.3} parent=5 // pred_region
      %s4222 = ssub.s32 %s11, 2
      // Predicated region
      $region41: #{conv_mixer_forward.3} parent=39 // pred_check
        %p4223 = pneg %p103
      $region42: #{conv_mixer_forward.3} parent=39 // pred_check_branch
        %4225 = sbr.rel (%p4223) target = $region44
      $region43: #{conv_mixer_forward.3} parent=39 // pred_region
        %s4226 = smul.u32 16, %s23
        %p4227 = scmp.lt.s32.totalorder %s22, 1
        %s4228 = scalar_select %p4227, %s22, 1
        %p4229 = scmp.lt.s32.totalorder %s4226, 15
        %s4230 = scalar_select %p4229, %s4226, 15
        %s4231 = smul.addr %s4230, 2
        %s4232 = smul.addr %s4228, 32
        %s4233 = sadd.s32 %s4231, %s4232
        %s4234 = smul.addr %s4233, 4
        %s4235 = scalar_lea.vmem %s3, %s4234
      $region44: #{conv_mixer_forward.3} parent=39 // pred_fallthru
        _
      // Predicated region
      $region45: #{conv_mixer_forward.3} parent=39 // pred_check
        %p4236 = pneg %p131
      $region46: #{conv_mixer_forward.3} parent=39 // pred_check_branch
        %4238 = sbr.rel (%p4236) target = $region48
      $region47: #{conv_mixer_forward.3} parent=39 // pred_region
        %p4239 = scmp.lt.s32.totalorder %s22, 1
        %s4240 = scalar_select %p4239, %s22, 1
        %p4241 = scmp.lt.s32.totalorder %s23, 0
        %s4242 = scalar_select %p4241, %s23, 0
        %s4243 = sadd.s32 %s4242, %s4240
        %s4244 = smul.addr %s4243, 2
        %s4245 = scalar_lea.vmem %s4, %s4244
      $region48: #{conv_mixer_forward.3} parent=39 // pred_fallthru
        _
    $region40: #{conv_mixer_forward.3} parent=5 // pred_fallthru
      _
  $region6: #{conv_mixer_forward.3} parent=0 // loop_footer
    %s15 = sadd.s32 1, %s11
  $region7: #{conv_mixer_forward.3} parent=0 // loop_footer_branch
    %10 = sbr.rel target = $region3
  $region8: #{conv_mixer_forward.3} parent=0 // loop_exit
    _
  %4246 = vsyncmov [#allocation4]
  %s4247 = vpop.sfrf %4246
  %p4248 = scmp.eq.s32.totalorder %s4247, 0
  %p4249 = pneg %p4248
  %4251 = shalt.err (%p4249)
  %s4252 = scalar_lea.sflag [#allocation4], 1
  %4253 = vsyncmov %s4252
  %s4254 = vpop.sfrf %4253
  %p4255 = scmp.eq.s32.totalorder %s4254, 0
  %p4256 = pneg %p4255
  %4258 = shalt.err (%p4256)

</llo_original>
